<compile_context>
chip_gen: v6e
topology: v6e:2x2x1
jax: 0.10.0
libtpu: 0.0.40
codegen_flags: <defaults>
</compile_context>

<pallas_src>
import functools

import jax
import jax.numpy as jnp
from jax.experimental import pallas as pl
from jax.experimental.pallas import tpu as pltpu


_VMEM_LIMIT = 64 * 1024 * 1024


def _round_up(a, b):
    return ((a + b - 1) // b) * b


# ----------------------------------------------------------------------------
# Generic Pallas matmul (used by the upsample).  M tiled, K/N whole, output
# lane-dense (N on lanes).
# ----------------------------------------------------------------------------
def _matmul_kernel(a_ref, b_ref, o_ref, *, relu):
    acc = jnp.dot(a_ref[...], b_ref[...], preferred_element_type=jnp.float32)
    if relu:
        acc = jnp.maximum(acc, 0.0)
    o_ref[...] = acc.astype(o_ref.dtype)


def pallas_matmul(a, b, *, relu=False, tm=512):
    M, K = a.shape
    K2, Nc = b.shape
    assert K == K2
    tm = min(tm, _round_up(M, 8))
    Mp = _round_up(M, tm)
    if Mp != M:                      # only pads when M is not tileable (rare)
        a = jnp.pad(a, ((0, Mp - M), (0, 0)))
    out = pl.pallas_call(
        functools.partial(_matmul_kernel, relu=relu),
        out_shape=jax.ShapeDtypeStruct((Mp, Nc), jnp.float32),
        grid=(Mp // tm,),
        in_specs=[pl.BlockSpec((tm, K), lambda i: (i, 0)),
                  pl.BlockSpec((K, Nc), lambda i: (0, 0))],
        out_specs=pl.BlockSpec((tm, Nc), lambda i: (i, 0)),
        compiler_params=pltpu.CompilerParams(
            dimension_semantics=("parallel",),
            vmem_limit_bytes=_VMEM_LIMIT),
    )(a, b)
    return out[:M] if Mp != M else out


# ----------------------------------------------------------------------------
# GroupNorm (eps=1e-5, biased variance, affine), gridded over (N, G).
# gamma/beta enter as tiny (G, Cg, 1) arrays and broadcast inside the kernel.
# ----------------------------------------------------------------------------
def _groupnorm_kernel(x_ref, g_ref, b_ref, o_ref):
    x = x_ref[...].astype(jnp.float32)                       # (1, 1, Cg, S)
    mean = jnp.mean(x, axis=(2, 3), keepdims=True)
    var = jnp.mean(jnp.square(x - mean), axis=(2, 3), keepdims=True)
    inv = jax.lax.rsqrt(var + 1e-5)
    o_ref[...] = (x - mean) * inv * g_ref[...] + b_ref[...]  # g/b: (1, Cg, 1)


def groupnorm(x, gamma, beta, num_groups):
    N, C, D, H, W = x.shape
    if C < num_groups:               # matches create_conv's fallback
        num_groups = 1
    G = num_groups
    Cg = C // G
    S = D * H * W
    xr = x.reshape(N, G, Cg, S)
    g = gamma.reshape(G, Cg, 1).astype(jnp.float32)
    b = beta.reshape(G, Cg, 1).astype(jnp.float32)
    # TODO(synk): tile the Cg*S reduction axis (two-pass stats across an
    # 'arbitrary' grid axis) for volumes whose per-group row exceeds VMEM.
    out = pl.pallas_call(
        _groupnorm_kernel,
        out_shape=jax.ShapeDtypeStruct((N, G, Cg, S), jnp.float32),
        grid=(N, G),
        in_specs=[
            pl.BlockSpec((1, 1, Cg, S), lambda n, gg: (n, gg, 0, 0)),
            pl.BlockSpec((1, Cg, 1), lambda n, gg: (gg, 0, 0)),
            pl.BlockSpec((1, Cg, 1), lambda n, gg: (gg, 0, 0)),
        ],
        out_specs=pl.BlockSpec((1, 1, Cg, S), lambda n, gg: (n, gg, 0, 0)),
        compiler_params=pltpu.CompilerParams(
            dimension_semantics=("parallel", "parallel"),
            vmem_limit_bytes=_VMEM_LIMIT),
    )(xr, g, b)
    return out.reshape(N, C, D, H, W)


# ----------------------------------------------------------------------------
# Trilinear upsampling (F.interpolate, mode='trilinear', align_corners=False)
# as a single fused matmul against the Kronecker operator Md ⊗ Mh ⊗ Mw.
# ----------------------------------------------------------------------------
def _interp_matrix(out_size, in_size):
    scale = in_size / out_size
    dst = jnp.arange(out_size, dtype=jnp.float32)
    src = jnp.maximum(scale * (dst + 0.5) - 0.5, 0.0)
    i0 = jnp.clip(jnp.floor(src).astype(jnp.int32), 0, in_size - 1)
    i1 = jnp.minimum(i0 + 1, in_size - 1)
    w1 = src - i0.astype(jnp.float32)
    w0 = 1.0 - w1
    rows = jnp.arange(out_size)
    m = jnp.zeros((out_size, in_size), jnp.float32)
    m = m.at[rows, i0].add(w0)
    m = m.at[rows, i1].add(w1)
    return m


def trilinear_upsample(x, out_dhw):
    N, C, Di, Hi, Wi = x.shape
    Do, Ho, Wo = out_dhw
    Md, Mh, Mw = _interp_matrix(Do, Di), _interp_matrix(Ho, Hi), _interp_matrix(Wo, Wi)
    # One Pallas matmul with a lane-dense (Do*Ho*Wo wide) output instead of
    # 3 launches + 3 HBM transposes.
    # TODO(synk): for large volumes (where the dense Kronecker operator would
    # be too big) fall back to the separable three-pass form.
    kron = jnp.einsum('ab,cd,ef->acebdf', Md, Mh, Mw).reshape(Do * Ho * Wo,
                                                              Di * Hi * Wi)
    rows = x.reshape(N * C, Di * Hi * Wi)
    y = pallas_matmul(rows, kron.T, relu=False)
    return y.reshape(N, C, Do, Ho, Wo)


# ----------------------------------------------------------------------------
# Fused Conv3d (kernel 3, stride 1, pad 1, bias=False) + ReLU.
# The padded activation is flattened channels-first; every tap of the 3x3x3
# stencil is then a constant lane offset, so each grid step only needs its own
# lane tile plus a halo (tile i and i+1 of the same guarded array).
# ----------------------------------------------------------------------------
def _conv3x3x3_kernel(xa_ref, xb_ref, w_ref, o_ref, *, offsets, tm, relu):
    # xa/xb: (Cin, tm) bf16 -- adjacent lane tiles (tile + halo window).
    # w_ref: (27, Cout, Cin) bf16, tap-major (same order as `offsets`).
    # o_ref: (Cout, tm) f32 -- Cout on sublanes, tm on lanes: dense stores.
    win = jnp.concatenate([xa_ref[...], xb_ref[...]], axis=1)   # (Cin, 2*tm)
    acc = jnp.zeros(o_ref.shape, jnp.float32)
    for t, d0 in enumerate(offsets):                            # 27 static taps
        acc = acc + jnp.dot(w_ref[t], win[:, d0:d0 + tm],
                            preferred_element_type=jnp.float32)
    if relu:
        acc = jnp.maximum(acc, 0.0)
    o_ref[...] = acc


def conv3d_relu(x, w, *, relu=True, tm=512):
    N, Cin, D, H, W = x.shape
    Cout = w.shape[0]
    sd, sh = (H + 2) * (W + 2), (W + 2)
    off = sd + sh + 1                        # max |flat offset| of any tap
    tm = max(tm, _round_up(2 * off, 128))    # halo must fit inside one extra tile

    # Zero-pad spatially, flatten channels-first, prepend `off` guard zeros and
    # pad the tail so the array is (n_tiles+1) lane-tiles long (block i+1 is
    # always in range).  bf16 halves HBM bytes; MXU accumulates in f32.
    xp = jnp.pad(x, ((0, 0), (0, 0), (1, 1), (1, 1), (1, 1)))
    xflat = jnp.transpose(xp, (1, 0, 2, 3, 4)).reshape(Cin, -1)
    Mp = xflat.shape[1]                      # N*(D+2)*(H+2)*(W+2)
    n_tiles = -(-Mp // tm)
    total = (n_tiles + 1) * tm
    xg = jnp.pad(xflat.astype(jnp.bfloat16), ((0, 0), (off, total - off - Mp)))

    # Tap order (kd, kh, kw); lane offset of each tap inside the halo window.
    offsets = tuple(kd * sd + kh * sh + kw
                    for kd in range(3) for kh in range(3) for kw in range(3))
    wk = jnp.transpose(w, (2, 3, 4, 0, 1)).reshape(27, Cout, Cin).astype(jnp.bfloat16)

    out = pl.pallas_call(
        functools.partial(_conv3x3x3_kernel, offsets=offsets, tm=tm, relu=relu),
        out_shape=jax.ShapeDtypeStruct((Cout, n_tiles * tm), jnp.float32),
        grid=(n_tiles,),
        in_specs=[
            pl.BlockSpec((Cin, tm), lambda i: (0, i)),        # tile
            pl.BlockSpec((Cin, tm), lambda i: (0, i + 1)),    # halo tile
            pl.BlockSpec((27, Cout, Cin), lambda i: (0, 0, 0)),
        ],
        out_specs=pl.BlockSpec((Cout, tm), lambda i: (0, i)),
        compiler_params=pltpu.CompilerParams(
            dimension_semantics=("parallel",),
            vmem_limit_bytes=_VMEM_LIMIT),
    )(xg, xg, wk)

    # Outputs were computed on the padded grid; crop the interior, back to NCDHW.
    y = out[:, :Mp].reshape(Cout, N, D + 2, H + 2, W + 2)[:, :, 1:-1, 1:-1, 1:-1]
    return jnp.transpose(y, (1, 0, 2, 3, 4))


# ----------------------------------------------------------------------------
# Decoder forward (default: DoubleConv, order='gcr', num_groups=8, RSM=False)
# ----------------------------------------------------------------------------
def decoder_forward(params, encoder_features, x, num_groups=8):
    # 1) trilinear upsample (align_corners=False) to encoder spatial size
    x = trilinear_upsample(x, encoder_features.shape[2:])
    # 2) joining (concat=True for the DoubleConv decoder path)
    x = jnp.concatenate([encoder_features, x], axis=1)
    # 3) DoubleConv: (GroupNorm -> Conv3d -> ReLU) x 2
    x = groupnorm(x, params["gn1_w"], params["gn1_b"], num_groups)
    x = conv3d_relu(x, params["conv1_w"])
    x = groupnorm(x, params["gn2_w"], params["gn2_b"], num_groups)
    x = conv3d_relu(x, params["conv2_w"])
    return x


# ----------------------------------------------------------------------------
# main
# ----------------------------------------------------------------------------
if __name__ == "__main__":
    key = jax.random.PRNGKey(0)
    k_enc, k_x, k1, k2, k3, k4, k5, k6 = jax.random.split(key, 8)

    # Small shapes: Decoder(in_channels=16, out_channels=8)
    N = 2
    C_enc, C_x = 8, 8
    in_channels = C_enc + C_x      # 16 (after skip-connection concat)
    out_channels = 8
    enc_spatial = 8
    x_spatial = 4

    encoder_features = jax.random.normal(
        k_enc, (N, C_enc, enc_spatial, enc_spatial, enc_spatial), jnp.float32)
    x = jax.random.normal(
        k_x, (N, C_x, x_spatial, x_spatial, x_spatial), jnp.float32)

    params = {
        # SingleConv1: GroupNorm(8, 16) -> Conv3d(16, 8, 3, pad=1, bias=False) -> ReLU
        "gn1_w": 1.0 + 0.1 * jax.random.normal(k1, (in_channels,), jnp.float32),
        "gn1_b": 0.1 * jax.random.normal(k2, (in_channels,), jnp.float32),
        "conv1_w": jax.random.normal(
            k3, (out_channels, in_channels, 3, 3, 3), jnp.float32)
            * (1.0 / jnp.sqrt(in_channels * 27.0)),
        # SingleConv2: GroupNorm(8, 8) -> Conv3d(8, 8, 3, pad=1, bias=False) -> ReLU
        "gn2_w": 1.0 + 0.1 * jax.random.normal(k4, (out_channels,), jnp.float32),
        "gn2_b": 0.1 * jax.random.normal(k5, (out_channels,), jnp.float32),
        "conv2_w": jax.random.normal(
            k6, (out_channels, out_channels, 3, 3, 3), jnp.float32)
            * (1.0 / jnp.sqrt(out_channels * 27.0)),
    }

    out = jax.jit(decoder_forward)(params, encoder_features, x)
    out = jax.block_until_ready(out)
    assert out.shape == (N, out_channels, enc_spatial, enc_spatial, enc_spatial)
    assert bool(jnp.all(jnp.isfinite(out)))
    print("KERNEL_OK")
</pallas_src>

<mosaic_0001>
module attributes {stable_mosaic.version = 11 : i64} {
  func.func private @main(%arg0: i32) attributes {dimension_semantics = [#tpu.dimension_semantics<core_parallel>], iteration_bounds = array<i64: 2>, tpu.core_type = #tpu.core_type<sc_scalar_subcore>, window_params = []} {
    return
  }
}

module attributes {stable_mosaic.version = 11 : i64} {
  func.func private @main(%arg0: i32) attributes {dimension_semantics = [#tpu.dimension_semantics<core_parallel>], iteration_bounds = array<i64: 2>, tpu.core_type = #tpu.core_type<sc_scalar_subcore>, window_params = []} {
    return
  }
}

module attributes {stable_mosaic.version = 11 : i64} {
  func.func @_matmul_kernel(%arg0: i32, %arg1: memref<16x64xf32, #tpu.memory_space<vmem>>, %arg2: memref<64x512xf32, #tpu.memory_space<vmem>>, %arg3: memref<16x512xf32, #tpu.memory_space<vmem>>) attributes {dimension_semantics = [#tpu.dimension_semantics<parallel>], iteration_bounds = array<i64: 1>, scalar_prefetch = 0 : i64, scratch_operands = 0 : i64, tpu.core_type = #tpu.core_type<tc>, window_params = [{transform_indices = @transform_0, window_bounds = array<i64: 16, 64>}, {pipeline_mode = #tpu.pipeline_mode<synchronous>, transform_indices = @transform_1, window_bounds = array<i64: 64, 512>}, {transform_indices = @transform_2, window_bounds = array<i64: 16, 512>}]} {
    %c0 = arith.constant 0 : index
    %c0_0 = arith.constant 0 : index
    %0 = vector.load %arg1[%c0, %c0_0] : memref<16x64xf32, #tpu.memory_space<vmem>>, vector<16x64xf32>
    %c0_1 = arith.constant 0 : index
    %c0_2 = arith.constant 0 : index
    %1 = vector.load %arg2[%c0_1, %c0_2] : memref<64x512xf32, #tpu.memory_space<vmem>>, vector<64x512xf32>
    %cst = arith.constant dense<0.000000e+00> : vector<16x512xf32>
    %2 = tpu.matmul %0, %1, %cst {dimension_numbers = #tpu.dot_dimension_numbers<[1], [0], [0], [1], [0, 0, 1, 1], [], []>} : vector<16x64xf32>, vector<64x512xf32>, vector<16x512xf32> -> vector<16x512xf32>
    %c0_3 = arith.constant 0 : index
    %c0_4 = arith.constant 0 : index
    %3 = vector.load %arg3[%c0_3, %c0_4] : memref<16x512xf32, #tpu.memory_space<vmem>>, vector<16x512xf32>
    tpu.vector_store %arg3[%c0_3, %c0_4], %2 {strides = array<i32>} : memref<16x512xf32, #tpu.memory_space<vmem>>, vector<16x512xf32>,
    return
  }
  func.func @transform_0(%arg0: i32) -> (i32, i32) {
    %c0_i32 = arith.constant 0 : i32
    %c0_i32_0 = arith.constant 0 : i32
    return %arg0, %c0_i32 : i32, i32
  }
  func.func @transform_1(%arg0: i32) -> (i32, i32) {
    %c0_i32 = arith.constant 0 : i32
    %c0_i32_0 = arith.constant 0 : i32
    %c0_i32_1 = arith.constant 0 : i32
    return %c0_i32, %c0_i32_0 : i32, i32
  }
  func.func @transform_2(%arg0: i32) -> (i32, i32) {
    %c0_i32 = arith.constant 0 : i32
    %c0_i32_0 = arith.constant 0 : i32
    return %arg0, %c0_i32 : i32, i32
  }
}

module attributes {stable_mosaic.version = 11 : i64} {
  func.func @_groupnorm_kernel(%arg0: i32, %arg1: i32, %arg2: memref<1x1x2x512xf32, #tpu.memory_space<vmem>>, %arg3: memref<1x2x1xf32, #tpu.memory_space<vmem>>, %arg4: memref<1x2x1xf32, #tpu.memory_space<vmem>>, %arg5: memref<1x1x2x512xf32, #tpu.memory_space<vmem>>) attributes {dimension_semantics = [#tpu.dimension_semantics<parallel>, #tpu.dimension_semantics<parallel>], iteration_bounds = array<i64: 2, 8>, scalar_prefetch = 0 : i64, scratch_operands = 0 : i64, tpu.core_type = #tpu.core_type<tc>, window_params = [{transform_indices = @transform_0, window_bounds = array<i64: 1, 1, 2, 512>}, {transform_indices = @transform_1, window_bounds = array<i64: 1, 2, 1>}, {transform_indices = @transform_2, window_bounds = array<i64: 1, 2, 1>}, {transform_indices = @transform_3, window_bounds = array<i64: 1, 1, 2, 512>}]} {
    %c0 = arith.constant 0 : index
    %c0_0 = arith.constant 0 : index
    %c0_1 = arith.constant 0 : index
    %c0_2 = arith.constant 0 : index
    %0 = vector.load %arg2[%c0, %c0_0, %c0_1, %c0_2] : memref<1x1x2x512xf32, #tpu.memory_space<vmem>>, vector<1x1x2x512xf32>
    %cst = arith.constant dense<0.000000e+00> : vector<1x1xf32>
    %1 = vector.multi_reduction <add>, %0, %cst [2, 3] : vector<1x1x2x512xf32> to vector<1x1xf32>
    %2 = vector.shape_cast %1 : vector<1x1xf32> to vector<1x1x1x1xf32>
    %cst_3 = arith.constant 1.024000e+03 : f32
    %3 = vector.broadcast %cst_3 : f32 to vector<1x1x1x1xf32>
    %4 = arith.divf %2, %3 : vector<1x1x1x1xf32>
    %5 = vector.broadcast %4 : vector<1x1x1x1xf32> to vector<1x1x2x512xf32>
    %6 = arith.subf %0, %5 : vector<1x1x2x512xf32>
    %7 = arith.mulf %6, %6 : vector<1x1x2x512xf32>
    %cst_4 = arith.constant dense<0.000000e+00> : vector<1x1xf32>
    %8 = vector.multi_reduction <add>, %7, %cst_4 [2, 3] : vector<1x1x2x512xf32> to vector<1x1xf32>
    %9 = vector.shape_cast %8 : vector<1x1xf32> to vector<1x1x1x1xf32>
    %cst_5 = arith.constant 1.024000e+03 : f32
    %10 = vector.broadcast %cst_5 : f32 to vector<1x1x1x1xf32>
    %11 = arith.divf %9, %10 : vector<1x1x1x1xf32>
    %cst_6 = arith.constant 9.99999974E-6 : f32
    %12 = vector.broadcast %cst_6 : f32 to vector<1x1x1x1xf32>
    %13 = arith.addf %11, %12 : vector<1x1x1x1xf32>
    %14 = math.rsqrt %13 : vector<1x1x1x1xf32>
    %15 = vector.broadcast %4 : vector<1x1x1x1xf32> to vector<1x1x2x512xf32>
    %16 = arith.subf %0, %15 : vector<1x1x2x512xf32>
    %17 = vector.broadcast %14 : vector<1x1x1x1xf32> to vector<1x1x2x512xf32>
    %18 = arith.mulf %16, %17 : vector<1x1x2x512xf32>
    %c0_7 = arith.constant 0 : index
    %c0_8 = arith.constant 0 : index
    %c0_9 = arith.constant 0 : index
    %19 = vector.load %arg3[%c0_7, %c0_8, %c0_9] : memref<1x2x1xf32, #tpu.memory_space<vmem>>, vector<1x2x1xf32>
    %20 = vector.shape_cast %19 : vector<1x2x1xf32> to vector<1x1x2x1xf32>
    %21 = vector.broadcast %20 : vector<1x1x2x1xf32> to vector<1x1x2x512xf32>
    %22 = arith.mulf %18, %21 : vector<1x1x2x512xf32>
    %c0_10 = arith.constant 0 : index
    %c0_11 = arith.constant 0 : index
    %c0_12 = arith.constant 0 : index
    %23 = vector.load %arg4[%c0_10, %c0_11, %c0_12] : memref<1x2x1xf32, #tpu.memory_space<vmem>>, vector<1x2x1xf32>
    %24 = vector.shape_cast %23 : vector<1x2x1xf32> to vector<1x1x2x1xf32>
    %25 = vector.broadcast %24 : vector<1x1x2x1xf32> to vector<1x1x2x512xf32>
    %26 = arith.addf %22, %25 : vector<1x1x2x512xf32>
    %c0_13 = arith.constant 0 : index
    %c0_14 = arith.constant 0 : index
    %c0_15 = arith.constant 0 : index
    %c0_16 = arith.constant 0 : index
    %27 = vector.load %arg5[%c0_13, %c0_14, %c0_15, %c0_16] : memref<1x1x2x512xf32, #tpu.memory_space<vmem>>, vector<1x1x2x512xf32>
    tpu.vector_store %arg5[%c0_13, %c0_14, %c0_15, %c0_16], %26 {strides = array<i32>} : memref<1x1x2x512xf32, #tpu.memory_space<vmem>>, vector<1x1x2x512xf32>,
    return
  }
  func.func @transform_0(%arg0: i32, %arg1: i32) -> (i32, i32, i32, i32) {
    %c0_i32 = arith.constant 0 : i32
    %c0_i32_0 = arith.constant 0 : i32
    %c0_i32_1 = arith.constant 0 : i32
    return %arg0, %arg1, %c0_i32, %c0_i32_0 : i32, i32, i32, i32
  }
  func.func @transform_1(%arg0: i32, %arg1: i32) -> (i32, i32, i32) {
    %c0_i32 = arith.constant 0 : i32
    %c0_i32_0 = arith.constant 0 : i32
    %c0_i32_1 = arith.constant 0 : i32
    return %arg1, %c0_i32, %c0_i32_0 : i32, i32, i32
  }
  func.func @transform_2(%arg0: i32, %arg1: i32) -> (i32, i32, i32) {
    %c0_i32 = arith.constant 0 : i32
    %c0_i32_0 = arith.constant 0 : i32
    %c0_i32_1 = arith.constant 0 : i32
    return %arg1, %c0_i32, %c0_i32_0 : i32, i32, i32
  }
  func.func @transform_3(%arg0: i32, %arg1: i32) -> (i32, i32, i32, i32) {
    %c0_i32 = arith.constant 0 : i32
    %c0_i32_0 = arith.constant 0 : i32
    %c0_i32_1 = arith.constant 0 : i32
    return %arg0, %arg1, %c0_i32, %c0_i32_0 : i32, i32, i32, i32
  }
}

module attributes {stable_mosaic.version = 11 : i64} {
  func.func @_conv3x3x3_kernel(%arg0: i32, %arg1: memref<16x512xbf16, #tpu.memory_space<vmem>>, %arg2: memref<16x512xbf16, #tpu.memory_space<vmem>>, %arg3: memref<27x8x16xbf16, #tpu.memory_space<vmem>>, %arg4: memref<8x512xf32, #tpu.memory_space<vmem>>) attributes {dimension_semantics = [#tpu.dimension_semantics<parallel>], iteration_bounds = array<i64: 4>, scalar_prefetch = 0 : i64, scratch_operands = 0 : i64, tpu.core_type = #tpu.core_type<tc>, window_params = [{transform_indices = @transform_0, window_bounds = array<i64: 16, 512>}, {transform_indices = @transform_1, window_bounds = array<i64: 16, 512>}, {pipeline_mode = #tpu.pipeline_mode<synchronous>, transform_indices = @transform_2, window_bounds = array<i64: 27, 8, 16>}, {transform_indices = @transform_3, window_bounds = array<i64: 8, 512>}]} {
    %c0 = arith.constant 0 : index
    %c0_0 = arith.constant 0 : index
    %0 = vector.load %arg1[%c0, %c0_0] : memref<16x512xbf16, #tpu.memory_space<vmem>>, vector<16x512xbf16>
    %c0_1 = arith.constant 0 : index
    %c0_2 = arith.constant 0 : index
    %1 = vector.load %arg2[%c0_1, %c0_2] : memref<16x512xbf16, #tpu.memory_space<vmem>>, vector<16x512xbf16>
    %2 = tpu.concatenate %0, %1 in 1 : vector<16x512xbf16>, vector<16x512xbf16> -> vector<16x1024xbf16>
    %cst = arith.constant 0.000000e+00 : f32
    %3 = vector.broadcast %cst : f32 to vector<8x512xf32>
    %c0_3 = arith.constant 0 : index
    %c0_4 = arith.constant 0 : index
    %c0_5 = arith.constant 0 : index
    %4 = vector.load %arg3[%c0_3, %c0_4, %c0_5] : memref<27x8x16xbf16, #tpu.memory_space<vmem>>, vector<1x8x16xbf16>
    %5 = vector.shape_cast %4 : vector<1x8x16xbf16> to vector<8x16xbf16>
    %6 = vector.extract_strided_slice %2 {offsets = [0, 0], sizes = [16, 512], strides = [1, 1]} : vector<16x1024xbf16> to vector<16x512xbf16>
    %cst_6 = arith.constant dense<0.000000e+00> : vector<8x512xf32>
    %7 = tpu.matmul %5, %6, %cst_6 {dimension_numbers = #tpu.dot_dimension_numbers<[1], [0], [0], [1], [0, 0, 1, 1], [], []>} : vector<8x16xbf16>, vector<16x512xbf16>, vector<8x512xf32> -> vector<8x512xf32>
    %8 = arith.addf %3, %7 : vector<8x512xf32>
    %c1 = arith.constant 1 : index
    %c0_7 = arith.constant 0 : index
    %c0_8 = arith.constant 0 : index
    %9 = vector.load %arg3[%c1, %c0_7, %c0_8] : memref<27x8x16xbf16, #tpu.memory_space<vmem>>, vector<1x8x16xbf16>
    %10 = vector.shape_cast %9 : vector<1x8x16xbf16> to vector<8x16xbf16>
    %11 = vector.extract_strided_slice %2 {offsets = [0, 1], sizes = [16, 512], strides = [1, 1]} : vector<16x1024xbf16> to vector<16x512xbf16>
    %cst_9 = arith.constant dense<0.000000e+00> : vector<8x512xf32>
    %12 = tpu.matmul %10, %11, %cst_9 {dimension_numbers = #tpu.dot_dimension_numbers<[1], [0], [0], [1], [0, 0, 1, 1], [], []>} : vector<8x16xbf16>, vector<16x512xbf16>, vector<8x512xf32> -> vector<8x512xf32>
    %13 = arith.addf %8, %12 : vector<8x512xf32>
    %c2 = arith.constant 2 : index
    %c0_10 = arith.constant 0 : index
    %c0_11 = arith.constant 0 : index
    %14 = vector.load %arg3[%c2, %c0_10, %c0_11] : memref<27x8x16xbf16, #tpu.memory_space<vmem>>, vector<1x8x16xbf16>
    %15 = vector.shape_cast %14 : vector<1x8x16xbf16> to vector<8x16xbf16>
    %16 = vector.extract_strided_slice %2 {offsets = [0, 2], sizes = [16, 512], strides = [1, 1]} : vector<16x1024xbf16> to vector<16x512xbf16>
    %cst_12 = arith.constant dense<0.000000e+00> : vector<8x512xf32>
    %17 = tpu.matmul %15, %16, %cst_12 {dimension_numbers = #tpu.dot_dimension_numbers<[1], [0], [0], [1], [0, 0, 1, 1], [], []>} : vector<8x16xbf16>, vector<16x512xbf16>, vector<8x512xf32> -> vector<8x512xf32>
    %18 = arith.addf %13, %17 : vector<8x512xf32>
    %c3 = arith.constant 3 : index
    %c0_13 = arith.constant 0 : index
    %c0_14 = arith.constant 0 : index
    %19 = vector.load %arg3[%c3, %c0_13, %c0_14] : memref<27x8x16xbf16, #tpu.memory_space<vmem>>, vector<1x8x16xbf16>
    %20 = vector.shape_cast %19 : vector<1x8x16xbf16> to vector<8x16xbf16>
    %21 = vector.extract_strided_slice %2 {offsets = [0, 10], sizes = [16, 512], strides = [1, 1]} : vector<16x1024xbf16> to vector<16x512xbf16>
    %cst_15 = arith.constant dense<0.000000e+00> : vector<8x512xf32>
    %22 = tpu.matmul %20, %21, %cst_15 {dimension_numbers = #tpu.dot_dimension_numbers<[1], [0], [0], [1], [0, 0, 1, 1], [], []>} : vector<8x16xbf16>, vector<16x512xbf16>, vector<8x512xf32> -> vector<8x512xf32>
    %23 = arith.addf %18, %22 : vector<8x512xf32>
    %c4 = arith.constant 4 : index
    %c0_16 = arith.constant 0 : index
    %c0_17 = arith.constant 0 : index
    %24 = vector.load %arg3[%c4, %c0_16, %c0_17] : memref<27x8x16xbf16, #tpu.memory_space<vmem>>, vector<1x8x16xbf16>
    %25 = vector.shape_cast %24 : vector<1x8x16xbf16> to vector<8x16xbf16>
    %26 = vector.extract_strided_slice %2 {offsets = [0, 11], sizes = [16, 512], strides = [1, 1]} : vector<16x1024xbf16> to vector<16x512xbf16>
    %cst_18 = arith.constant dense<0.000000e+00> : vector<8x512xf32>
    %27 = tpu.matmul %25, %26, %cst_18 {dimension_numbers = #tpu.dot_dimension_numbers<[1], [0], [0], [1], [0, 0, 1, 1], [], []>} : vector<8x16xbf16>, vector<16x512xbf16>, vector<8x512xf32> -> vector<8x512xf32>
    %28 = arith.addf %23, %27 : vector<8x512xf32>
    %c5 = arith.constant 5 : index
    %c0_19 = arith.constant 0 : index
    %c0_20 = arith.constant 0 : index
    %29 = vector.load %arg3[%c5, %c0_19, %c0_20] : memref<27x8x16xbf16, #tpu.memory_space<vmem>>, vector<1x8x16xbf16>
    %30 = vector.shape_cast %29 : vector<1x8x16xbf16> to vector<8x16xbf16>
    %31 = vector.extract_strided_slice %2 {offsets = [0, 12], sizes = [16, 512], strides = [1, 1]} : vector<16x1024xbf16> to vector<16x512xbf16>
    %cst_21 = arith.constant dense<0.000000e+00> : vector<8x512xf32>
    %32 = tpu.matmul %30, %31, %cst_21 {dimension_numbers = #tpu.dot_dimension_numbers<[1], [0], [0], [1], [0, 0, 1, 1], [], []>} : vector<8x16xbf16>, vector<16x512xbf16>, vector<8x512xf32> -> vector<8x512xf32>
    %33 = arith.addf %28, %32 : vector<8x512xf32>
    %c6 = arith.constant 6 : index
    %c0_22 = arith.constant 0 : index
    %c0_23 = arith.constant 0 : index
    %34 = vector.load %arg3[%c6, %c0_22, %c0_23] : memref<27x8x16xbf16, #tpu.memory_space<vmem>>, vector<1x8x16xbf16>
    %35 = vector.shape_cast %34 : vector<1x8x16xbf16> to vector<8x16xbf16>
    %36 = vector.extract_strided_slice %2 {offsets = [0, 20], sizes = [16, 512], strides = [1, 1]} : vector<16x1024xbf16> to vector<16x512xbf16>
    %cst_24 = arith.constant dense<0.000000e+00> : vector<8x512xf32>
    %37 = tpu.matmul %35, %36, %cst_24 {dimension_numbers = #tpu.dot_dimension_numbers<[1], [0], [0], [1], [0, 0, 1, 1], [], []>} : vector<8x16xbf16>, vector<16x512xbf16>, vector<8x512xf32> -> vector<8x512xf32>
    %38 = arith.addf %33, %37 : vector<8x512xf32>
    %c7 = arith.constant 7 : index
    %c0_25 = arith.constant 0 : index
    %c0_26 = arith.constant 0 : index
    %39 = vector.load %arg3[%c7, %c0_25, %c0_26] : memref<27x8x16xbf16, #tpu.memory_space<vmem>>, vector<1x8x16xbf16>
    %40 = vector.shape_cast %39 : vector<1x8x16xbf16> to vector<8x16xbf16>
    %41 = vector.extract_strided_slice %2 {offsets = [0, 21], sizes = [16, 512], strides = [1, 1]} : vector<16x1024xbf16> to vector<16x512xbf16>
    %cst_27 = arith.constant dense<0.000000e+00> : vector<8x512xf32>
    %42 = tpu.matmul %40, %41, %cst_27 {dimension_numbers = #tpu.dot_dimension_numbers<[1], [0], [0], [1], [0, 0, 1, 1], [], []>} : vector<8x16xbf16>, vector<16x512xbf16>, vector<8x512xf32> -> vector<8x512xf32>
    %43 = arith.addf %38, %42 : vector<8x512xf32>
    %c8 = arith.constant 8 : index
    %c0_28 = arith.constant 0 : index
    %c0_29 = arith.constant 0 : index
    %44 = vector.load %arg3[%c8, %c0_28, %c0_29] : memref<27x8x16xbf16, #tpu.memory_space<vmem>>, vector<1x8x16xbf16>
    %45 = vector.shape_cast %44 : vector<1x8x16xbf16> to vector<8x16xbf16>
    %46 = vector.extract_strided_slice %2 {offsets = [0, 22], sizes = [16, 512], strides = [1, 1]} : vector<16x1024xbf16> to vector<16x512xbf16>
    %cst_30 = arith.constant dense<0.000000e+00> : vector<8x512xf32>
    %47 = tpu.matmul %45, %46, %cst_30 {dimension_numbers = #tpu.dot_dimension_numbers<[1], [0], [0], [1], [0, 0, 1, 1], [], []>} : vector<8x16xbf16>, vector<16x512xbf16>, vector<8x512xf32> -> vector<8x512xf32>
    %48 = arith.addf %43, %47 : vector<8x512xf32>
    %c9 = arith.constant 9 : index
    %c0_31 = arith.constant 0 : index
    %c0_32 = arith.constant 0 : index
    %49 = vector.load %arg3[%c9, %c0_31, %c0_32] : memref<27x8x16xbf16, #tpu.memory_space<vmem>>, vector<1x8x16xbf16>
    %50 = vector.shape_cast %49 : vector<1x8x16xbf16> to vector<8x16xbf16>
    %51 = vector.extract_strided_slice %2 {offsets = [0, 100], sizes = [16, 512], strides = [1, 1]} : vector<16x1024xbf16> to vector<16x512xbf16>
    %cst_33 = arith.constant dense<0.000000e+00> : vector<8x512xf32>
    %52 = tpu.matmul %50, %51, %cst_33 {dimension_numbers = #tpu.dot_dimension_numbers<[1], [0], [0], [1], [0, 0, 1, 1], [], []>} : vector<8x16xbf16>, vector<16x512xbf16>, vector<8x512xf32> -> vector<8x512xf32>
    %53 = arith.addf %48, %52 : vector<8x512xf32>
    %c10 = arith.constant 10 : index
    %c0_34 = arith.constant 0 : index
    %c0_35 = arith.constant 0 : index
    %54 = vector.load %arg3[%c10, %c0_34, %c0_35] : memref<27x8x16xbf16, #tpu.memory_space<vmem>>, vector<1x8x16xbf16>
    %55 = vector.shape_cast %54 : vector<1x8x16xbf16> to vector<8x16xbf16>
    %56 = vector.extract_strided_slice %2 {offsets = [0, 101], sizes = [16, 512], strides = [1, 1]} : vector<16x1024xbf16> to vector<16x512xbf16>
    %cst_36 = arith.constant dense<0.000000e+00> : vector<8x512xf32>
    %57 = tpu.matmul %55, %56, %cst_36 {dimension_numbers = #tpu.dot_dimension_numbers<[1], [0], [0], [1], [0, 0, 1, 1], [], []>} : vector<8x16xbf16>, vector<16x512xbf16>, vector<8x512xf32> -> vector<8x512xf32>
    %58 = arith.addf %53, %57 : vector<8x512xf32>
    %c11 = arith.constant 11 : index
    %c0_37 = arith.constant 0 : index
    %c0_38 = arith.constant 0 : index
    %59 = vector.load %arg3[%c11, %c0_37, %c0_38] : memref<27x8x16xbf16, #tpu.memory_space<vmem>>, vector<1x8x16xbf16>
    %60 = vector.shape_cast %59 : vector<1x8x16xbf16> to vector<8x16xbf16>
    %61 = vector.extract_strided_slice %2 {offsets = [0, 102], sizes = [16, 512], strides = [1, 1]} : vector<16x1024xbf16> to vector<16x512xbf16>
    %cst_39 = arith.constant dense<0.000000e+00> : vector<8x512xf32>
    %62 = tpu.matmul %60, %61, %cst_39 {dimension_numbers = #tpu.dot_dimension_numbers<[1], [0], [0], [1], [0, 0, 1, 1], [], []>} : vector<8x16xbf16>, vector<16x512xbf16>, vector<8x512xf32> -> vector<8x512xf32>
    %63 = arith.addf %58, %62 : vector<8x512xf32>
    %c12 = arith.constant 12 : index
    %c0_40 = arith.constant 0 : index
    %c0_41 = arith.constant 0 : index
    %64 = vector.load %arg3[%c12, %c0_40, %c0_41] : memref<27x8x16xbf16, #tpu.memory_space<vmem>>, vector<1x8x16xbf16>
    %65 = vector.shape_cast %64 : vector<1x8x16xbf16> to vector<8x16xbf16>
    %66 = vector.extract_strided_slice %2 {offsets = [0, 110], sizes = [16, 512], strides = [1, 1]} : vector<16x1024xbf16> to vector<16x512xbf16>
    %cst_42 = arith.constant dense<0.000000e+00> : vector<8x512xf32>
    %67 = tpu.matmul %65, %66, %cst_42 {dimension_numbers = #tpu.dot_dimension_numbers<[1], [0], [0], [1], [0, 0, 1, 1], [], []>} : vector<8x16xbf16>, vector<16x512xbf16>, vector<8x512xf32> -> vector<8x512xf32>
    %68 = arith.addf %63, %67 : vector<8x512xf32>
    %c13 = arith.constant 13 : index
    %c0_43 = arith.constant 0 : index
    %c0_44 = arith.constant 0 : index
    %69 = vector.load %arg3[%c13, %c0_43, %c0_44] : memref<27x8x16xbf16, #tpu.memory_space<vmem>>, vector<1x8x16xbf16>
    %70 = vector.shape_cast %69 : vector<1x8x16xbf16> to vector<8x16xbf16>
    %71 = vector.extract_strided_slice %2 {offsets = [0, 111], sizes = [16, 512], strides = [1, 1]} : vector<16x1024xbf16> to vector<16x512xbf16>
    %cst_45 = arith.constant dense<0.000000e+00> : vector<8x512xf32>
    %72 = tpu.matmul %70, %71, %cst_45 {dimension_numbers = #tpu.dot_dimension_numbers<[1], [0], [0], [1], [0, 0, 1, 1], [], []>} : vector<8x16xbf16>, vector<16x512xbf16>, vector<8x512xf32> -> vector<8x512xf32>
    %73 = arith.addf %68, %72 : vector<8x512xf32>
    %c14 = arith.constant 14 : index
    %c0_46 = arith.constant 0 : index
    %c0_47 = arith.constant 0 : index
    %74 = vector.load %arg3[%c14, %c0_46, %c0_47] : memref<27x8x16xbf16, #tpu.memory_space<vmem>>, vector<1x8x16xbf16>
    %75 = vector.shape_cast %74 : vector<1x8x16xbf16> to vector<8x16xbf16>
    %76 = vector.extract_strided_slice %2 {offsets = [0, 112], sizes = [16, 512], strides = [1, 1]} : vector<16x1024xbf16> to vector<16x512xbf16>
    %cst_48 = arith.constant dense<0.000000e+00> : vector<8x512xf32>
    %77 = tpu.matmul %75, %76, %cst_48 {dimension_numbers = #tpu.dot_dimension_numbers<[1], [0], [0], [1], [0, 0, 1, 1], [], []>} : vector<8x16xbf16>, vector<16x512xbf16>, vector<8x512xf32> -> vector<8x512xf32>
    %78 = arith.addf %73, %77 : vector<8x512xf32>
    %c15 = arith.constant 15 : index
    %c0_49 = arith.constant 0 : index
    %c0_50 = arith.constant 0 : index
    %79 = vector.load %arg3[%c15, %c0_49, %c0_50] : memref<27x8x16xbf16, #tpu.memory_space<vmem>>, vector<1x8x16xbf16>
    %80 = vector.shape_cast %79 : vector<1x8x16xbf16> to vector<8x16xbf16>
    %81 = vector.extract_strided_slice %2 {offsets = [0, 120], sizes = [16, 512], strides = [1, 1]} : vector<16x1024xbf16> to vector<16x512xbf16>
    %cst_51 = arith.constant dense<0.000000e+00> : vector<8x512xf32>
    %82 = tpu.matmul %80, %81, %cst_51 {dimension_numbers = #tpu.dot_dimension_numbers<[1], [0], [0], [1], [0, 0, 1, 1], [], []>} : vector<8x16xbf16>, vector<16x512xbf16>, vector<8x512xf32> -> vector<8x512xf32>
    %83 = arith.addf %78, %82 : vector<8x512xf32>
    %c16 = arith.constant 16 : index
    %c0_52 = arith.constant 0 : index
    %c0_53 = arith.constant 0 : index
    %84 = vector.load %arg3[%c16, %c0_52, %c0_53] : memref<27x8x16xbf16, #tpu.memory_space<vmem>>, vector<1x8x16xbf16>
    %85 = vector.shape_cast %84 : vector<1x8x16xbf16> to vector<8x16xbf16>
    %86 = vector.extract_strided_slice %2 {offsets = [0, 121], sizes = [16, 512], strides = [1, 1]} : vector<16x1024xbf16> to vector<16x512xbf16>
    %cst_54 = arith.constant dense<0.000000e+00> : vector<8x512xf32>
    %87 = tpu.matmul %85, %86, %cst_54 {dimension_numbers = #tpu.dot_dimension_numbers<[1], [0], [0], [1], [0, 0, 1, 1], [], []>} : vector<8x16xbf16>, vector<16x512xbf16>, vector<8x512xf32> -> vector<8x512xf32>
    %88 = arith.addf %83, %87 : vector<8x512xf32>
    %c17 = arith.constant 17 : index
    %c0_55 = arith.constant 0 : index
    %c0_56 = arith.constant 0 : index
    %89 = vector.load %arg3[%c17, %c0_55, %c0_56] : memref<27x8x16xbf16, #tpu.memory_space<vmem>>, vector<1x8x16xbf16>
    %90 = vector.shape_cast %89 : vector<1x8x16xbf16> to vector<8x16xbf16>
    %91 = vector.extract_strided_slice %2 {offsets = [0, 122], sizes = [16, 512], strides = [1, 1]} : vector<16x1024xbf16> to vector<16x512xbf16>
    %cst_57 = arith.constant dense<0.000000e+00> : vector<8x512xf32>
    %92 = tpu.matmul %90, %91, %cst_57 {dimension_numbers = #tpu.dot_dimension_numbers<[1], [0], [0], [1], [0, 0, 1, 1], [], []>} : vector<8x16xbf16>, vector<16x512xbf16>, vector<8x512xf32> -> vector<8x512xf32>
    %93 = arith.addf %88, %92 : vector<8x512xf32>
    %c18 = arith.constant 18 : index
    %c0_58 = arith.constant 0 : index
    %c0_59 = arith.constant 0 : index
    %94 = vector.load %arg3[%c18, %c0_58, %c0_59] : memref<27x8x16xbf16, #tpu.memory_space<vmem>>, vector<1x8x16xbf16>
    %95 = vector.shape_cast %94 : vector<1x8x16xbf16> to vector<8x16xbf16>
    %96 = vector.extract_strided_slice %2 {offsets = [0, 200], sizes = [16, 512], strides = [1, 1]} : vector<16x1024xbf16> to vector<16x512xbf16>
    %cst_60 = arith.constant dense<0.000000e+00> : vector<8x512xf32>
    %97 = tpu.matmul %95, %96, %cst_60 {dimension_numbers = #tpu.dot_dimension_numbers<[1], [0], [0], [1], [0, 0, 1, 1], [], []>} : vector<8x16xbf16>, vector<16x512xbf16>, vector<8x512xf32> -> vector<8x512xf32>
    %98 = arith.addf %93, %97 : vector<8x512xf32>
    %c19 = arith.constant 19 : index
    %c0_61 = arith.constant 0 : index
    %c0_62 = arith.constant 0 : index
    %99 = vector.load %arg3[%c19, %c0_61, %c0_62] : memref<27x8x16xbf16, #tpu.memory_space<vmem>>, vector<1x8x16xbf16>
    %100 = vector.shape_cast %99 : vector<1x8x16xbf16> to vector<8x16xbf16>
    %101 = vector.extract_strided_slice %2 {offsets = [0, 201], sizes = [16, 512], strides = [1, 1]} : vector<16x1024xbf16> to vector<16x512xbf16>
    %cst_63 = arith.constant dense<0.000000e+00> : vector<8x512xf32>
    %102 = tpu.matmul %100, %101, %cst_63 {dimension_numbers = #tpu.dot_dimension_numbers<[1], [0], [0], [1], [0, 0, 1, 1], [], []>} : vector<8x16xbf16>, vector<16x512xbf16>, vector<8x512xf32> -> vector<8x512xf32>
    %103 = arith.addf %98, %102 : vector<8x512xf32>
    %c20 = arith.constant 20 : index
    %c0_64 = arith.constant 0 : index
    %c0_65 = arith.constant 0 : index
    %104 = vector.load %arg3[%c20, %c0_64, %c0_65] : memref<27x8x16xbf16, #tpu.memory_space<vmem>>, vector<1x8x16xbf16>
    %105 = vector.shape_cast %104 : vector<1x8x16xbf16> to vector<8x16xbf16>
    %106 = vector.extract_strided_slice %2 {offsets = [0, 202], sizes = [16, 512], strides = [1, 1]} : vector<16x1024xbf16> to vector<16x512xbf16>
    %cst_66 = arith.constant dense<0.000000e+00> : vector<8x512xf32>
    %107 = tpu.matmul %105, %106, %cst_66 {dimension_numbers = #tpu.dot_dimension_numbers<[1], [0], [0], [1], [0, 0, 1, 1], [], []>} : vector<8x16xbf16>, vector<16x512xbf16>, vector<8x512xf32> -> vector<8x512xf32>
    %108 = arith.addf %103, %107 : vector<8x512xf32>
    %c21 = arith.constant 21 : index
    %c0_67 = arith.constant 0 : index
    %c0_68 = arith.constant 0 : index
    %109 = vector.load %arg3[%c21, %c0_67, %c0_68] : memref<27x8x16xbf16, #tpu.memory_space<vmem>>, vector<1x8x16xbf16>
    %110 = vector.shape_cast %109 : vector<1x8x16xbf16> to vector<8x16xbf16>
    %111 = vector.extract_strided_slice %2 {offsets = [0, 210], sizes = [16, 512], strides = [1, 1]} : vector<16x1024xbf16> to vector<16x512xbf16>
    %cst_69 = arith.constant dense<0.000000e+00> : vector<8x512xf32>
    %112 = tpu.matmul %110, %111, %cst_69 {dimension_numbers = #tpu.dot_dimension_numbers<[1], [0], [0], [1], [0, 0, 1, 1], [], []>} : vector<8x16xbf16>, vector<16x512xbf16>, vector<8x512xf32> -> vector<8x512xf32>
    %113 = arith.addf %108, %112 : vector<8x512xf32>
    %c22 = arith.constant 22 : index
    %c0_70 = arith.constant 0 : index
    %c0_71 = arith.constant 0 : index
    %114 = vector.load %arg3[%c22, %c0_70, %c0_71] : memref<27x8x16xbf16, #tpu.memory_space<vmem>>, vector<1x8x16xbf16>
    %115 = vector.shape_cast %114 : vector<1x8x16xbf16> to vector<8x16xbf16>
    %116 = vector.extract_strided_slice %2 {offsets = [0, 211], sizes = [16, 512], strides = [1, 1]} : vector<16x1024xbf16> to vector<16x512xbf16>
    %cst_72 = arith.constant dense<0.000000e+00> : vector<8x512xf32>
    %117 = tpu.matmul %115, %116, %cst_72 {dimension_numbers = #tpu.dot_dimension_numbers<[1], [0], [0], [1], [0, 0, 1, 1], [], []>} : vector<8x16xbf16>, vector<16x512xbf16>, vector<8x512xf32> -> vector<8x512xf32>
    %118 = arith.addf %113, %117 : vector<8x512xf32>
    %c23 = arith.constant 23 : index
    %c0_73 = arith.constant 0 : index
    %c0_74 = arith.constant 0 : index
    %119 = vector.load %arg3[%c23, %c0_73, %c0_74] : memref<27x8x16xbf16, #tpu.memory_space<vmem>>, vector<1x8x16xbf16>
    %120 = vector.shape_cast %119 : vector<1x8x16xbf16> to vector<8x16xbf16>
    %121 = vector.extract_strided_slice %2 {offsets = [0, 212], sizes = [16, 512], strides = [1, 1]} : vector<16x1024xbf16> to vector<16x512xbf16>
    %cst_75 = arith.constant dense<0.000000e+00> : vector<8x512xf32>
    %122 = tpu.matmul %120, %121, %cst_75 {dimension_numbers = #tpu.dot_dimension_numbers<[1], [0], [0], [1], [0, 0, 1, 1], [], []>} : vector<8x16xbf16>, vector<16x512xbf16>, vector<8x512xf32> -> vector<8x512xf32>
    %123 = arith.addf %118, %122 : vector<8x512xf32>
    %c24 = arith.constant 24 : index
    %c0_76 = arith.constant 0 : index
    %c0_77 = arith.constant 0 : index
    %124 = vector.load %arg3[%c24, %c0_76, %c0_77] : memref<27x8x16xbf16, #tpu.memory_space<vmem>>, vector<1x8x16xbf16>
    %125 = vector.shape_cast %124 : vector<1x8x16xbf16> to vector<8x16xbf16>
    %126 = vector.extract_strided_slice %2 {offsets = [0, 220], sizes = [16, 512], strides = [1, 1]} : vector<16x1024xbf16> to vector<16x512xbf16>
    %cst_78 = arith.constant dense<0.000000e+00> : vector<8x512xf32>
    %127 = tpu.matmul %125, %126, %cst_78 {dimension_numbers = #tpu.dot_dimension_numbers<[1], [0], [0], [1], [0, 0, 1, 1], [], []>} : vector<8x16xbf16>, vector<16x512xbf16>, vector<8x512xf32> -> vector<8x512xf32>
    %128 = arith.addf %123, %127 : vector<8x512xf32>
    %c25 = arith.constant 25 : index
    %c0_79 = arith.constant 0 : index
    %c0_80 = arith.constant 0 : index
    %129 = vector.load %arg3[%c25, %c0_79, %c0_80] : memref<27x8x16xbf16, #tpu.memory_space<vmem>>, vector<1x8x16xbf16>
    %130 = vector.shape_cast %129 : vector<1x8x16xbf16> to vector<8x16xbf16>
    %131 = vector.extract_strided_slice %2 {offsets = [0, 221], sizes = [16, 512], strides = [1, 1]} : vector<16x1024xbf16> to vector<16x512xbf16>
    %cst_81 = arith.constant dense<0.000000e+00> : vector<8x512xf32>
    %132 = tpu.matmul %130, %131, %cst_81 {dimension_numbers = #tpu.dot_dimension_numbers<[1], [0], [0], [1], [0, 0, 1, 1], [], []>} : vector<8x16xbf16>, vector<16x512xbf16>, vector<8x512xf32> -> vector<8x512xf32>
    %133 = arith.addf %128, %132 : vector<8x512xf32>
    %c26 = arith.constant 26 : index
    %c0_82 = arith.constant 0 : index
    %c0_83 = arith.constant 0 : index
    %134 = vector.load %arg3[%c26, %c0_82, %c0_83] : memref<27x8x16xbf16, #tpu.memory_space<vmem>>, vector<1x8x16xbf16>
    %135 = vector.shape_cast %134 : vector<1x8x16xbf16> to vector<8x16xbf16>
    %136 = vector.extract_strided_slice %2 {offsets = [0, 222], sizes = [16, 512], strides = [1, 1]} : vector<16x1024xbf16> to vector<16x512xbf16>
    %cst_84 = arith.constant dense<0.000000e+00> : vector<8x512xf32>
    %137 = tpu.matmul %135, %136, %cst_84 {dimension_numbers = #tpu.dot_dimension_numbers<[1], [0], [0], [1], [0, 0, 1, 1], [], []>} : vector<8x16xbf16>, vector<16x512xbf16>, vector<8x512xf32> -> vector<8x512xf32>
    %138 = arith.addf %133, %137 : vector<8x512xf32>
    %cst_85 = arith.constant 0.000000e+00 : f32
    %139 = vector.broadcast %cst_85 : f32 to vector<8x512xf32>
    %140 = arith.maximumf %138, %139 : vector<8x512xf32>
    %c0_86 = arith.constant 0 : index
    %c0_87 = arith.constant 0 : index
    %141 = vector.load %arg4[%c0_86, %c0_87] : memref<8x512xf32, #tpu.memory_space<vmem>>, vector<8x512xf32>
    tpu.vector_store %arg4[%c0_86, %c0_87], %140 {strides = array<i32>} : memref<8x512xf32, #tpu.memory_space<vmem>>, vector<8x512xf32>,
    return
  }
  func.func @transform_0(%arg0: i32) -> (i32, i32) {
    %c0_i32 = arith.constant 0 : i32
    %c0_i32_0 = arith.constant 0 : i32
    return %c0_i32, %arg0 : i32, i32
  }
  func.func @transform_1(%arg0: i32) -> (i32, i32) {
    %c1_i32 = arith.constant 1 : i32
    %0 = arith.addi %arg0, %c1_i32 : i32
    %c0_i32 = arith.constant 0 : i32
    %c0_i32_0 = arith.constant 0 : i32
    return %c0_i32, %0 : i32, i32
  }
  func.func @transform_2(%arg0: i32) -> (i32, i32, i32) {
    %c0_i32 = arith.constant 0 : i32
    %c0_i32_0 = arith.constant 0 : i32
    %c0_i32_1 = arith.constant 0 : i32
    %c0_i32_2 = arith.constant 0 : i32
    return %c0_i32, %c0_i32_0, %c0_i32_1 : i32, i32, i32
  }
  func.func @transform_3(%arg0: i32) -> (i32, i32) {
    %c0_i32 = arith.constant 0 : i32
    %c0_i32_0 = arith.constant 0 : i32
    return %c0_i32, %arg0 : i32, i32
  }
}

module attributes {stable_mosaic.version = 11 : i64} {
  func.func @_groupnorm_kernel(%arg0: i32, %arg1: i32, %arg2: memref<1x1x1x512xf32, #tpu.memory_space<vmem>>, %arg3: memref<1x1x1xf32, #tpu.memory_space<vmem>>, %arg4: memref<1x1x1xf32, #tpu.memory_space<vmem>>, %arg5: memref<1x1x1x512xf32, #tpu.memory_space<vmem>>) attributes {dimension_semantics = [#tpu.dimension_semantics<parallel>, #tpu.dimension_semantics<parallel>], iteration_bounds = array<i64: 2, 8>, scalar_prefetch = 0 : i64, scratch_operands = 0 : i64, tpu.core_type = #tpu.core_type<tc>, window_params = [{transform_indices = @transform_0, window_bounds = array<i64: 1, 1, 1, 512>}, {transform_indices = @transform_1, window_bounds = array<i64: 1, 1, 1>}, {transform_indices = @transform_2, window_bounds = array<i64: 1, 1, 1>}, {transform_indices = @transform_3, window_bounds = array<i64: 1, 1, 1, 512>}]} {
    %c0 = arith.constant 0 : index
    %c0_0 = arith.constant 0 : index
    %c0_1 = arith.constant 0 : index
    %c0_2 = arith.constant 0 : index
    %0 = vector.load %arg2[%c0, %c0_0, %c0_1, %c0_2] : memref<1x1x1x512xf32, #tpu.memory_space<vmem>>, vector<1x1x1x512xf32>
    %cst = arith.constant dense<0.000000e+00> : vector<1x1xf32>
    %1 = vector.multi_reduction <add>, %0, %cst [2, 3] : vector<1x1x1x512xf32> to vector<1x1xf32>
    %2 = vector.shape_cast %1 : vector<1x1xf32> to vector<1x1x1x1xf32>
    %cst_3 = arith.constant 5.120000e+02 : f32
    %3 = vector.broadcast %cst_3 : f32 to vector<1x1x1x1xf32>
    %4 = arith.divf %2, %3 : vector<1x1x1x1xf32>
    %5 = vector.broadcast %4 : vector<1x1x1x1xf32> to vector<1x1x1x512xf32>
    %6 = arith.subf %0, %5 : vector<1x1x1x512xf32>
    %7 = arith.mulf %6, %6 : vector<1x1x1x512xf32>
    %cst_4 = arith.constant dense<0.000000e+00> : vector<1x1xf32>
    %8 = vector.multi_reduction <add>, %7, %cst_4 [2, 3] : vector<1x1x1x512xf32> to vector<1x1xf32>
    %9 = vector.shape_cast %8 : vector<1x1xf32> to vector<1x1x1x1xf32>
    %cst_5 = arith.constant 5.120000e+02 : f32
    %10 = vector.broadcast %cst_5 : f32 to vector<1x1x1x1xf32>
    %11 = arith.divf %9, %10 : vector<1x1x1x1xf32>
    %cst_6 = arith.constant 9.99999974E-6 : f32
    %12 = vector.broadcast %cst_6 : f32 to vector<1x1x1x1xf32>
    %13 = arith.addf %11, %12 : vector<1x1x1x1xf32>
    %14 = math.rsqrt %13 : vector<1x1x1x1xf32>
    %15 = vector.broadcast %4 : vector<1x1x1x1xf32> to vector<1x1x1x512xf32>
    %16 = arith.subf %0, %15 : vector<1x1x1x512xf32>
    %17 = vector.broadcast %14 : vector<1x1x1x1xf32> to vector<1x1x1x512xf32>
    %18 = arith.mulf %16, %17 : vector<1x1x1x512xf32>
    %c0_7 = arith.constant 0 : index
    %c0_8 = arith.constant 0 : index
    %c0_9 = arith.constant 0 : index
    %19 = vector.load %arg3[%c0_7, %c0_8, %c0_9] : memref<1x1x1xf32, #tpu.memory_space<vmem>>, vector<1x1x1xf32>
    %20 = vector.shape_cast %19 : vector<1x1x1xf32> to vector<1x1x1x1xf32>
    %21 = vector.broadcast %20 : vector<1x1x1x1xf32> to vector<1x1x1x512xf32>
    %22 = arith.mulf %18, %21 : vector<1x1x1x512xf32>
    %c0_10 = arith.constant 0 : index
    %c0_11 = arith.constant 0 : index
    %c0_12 = arith.constant 0 : index
    %23 = vector.load %arg4[%c0_10, %c0_11, %c0_12] : memref<1x1x1xf32, #tpu.memory_space<vmem>>, vector<1x1x1xf32>
    %24 = vector.shape_cast %23 : vector<1x1x1xf32> to vector<1x1x1x1xf32>
    %25 = vector.broadcast %24 : vector<1x1x1x1xf32> to vector<1x1x1x512xf32>
    %26 = arith.addf %22, %25 : vector<1x1x1x512xf32>
    %c0_13 = arith.constant 0 : index
    %c0_14 = arith.constant 0 : index
    %c0_15 = arith.constant 0 : index
    %c0_16 = arith.constant 0 : index
    %27 = vector.load %arg5[%c0_13, %c0_14, %c0_15, %c0_16] : memref<1x1x1x512xf32, #tpu.memory_space<vmem>>, vector<1x1x1x512xf32>
    tpu.vector_store %arg5[%c0_13, %c0_14, %c0_15, %c0_16], %26 {strides = array<i32>} : memref<1x1x1x512xf32, #tpu.memory_space<vmem>>, vector<1x1x1x512xf32>,
    return
  }
  func.func @transform_0(%arg0: i32, %arg1: i32) -> (i32, i32, i32, i32) {
    %c0_i32 = arith.constant 0 : i32
    %c0_i32_0 = arith.constant 0 : i32
    %c0_i32_1 = arith.constant 0 : i32
    return %arg0, %arg1, %c0_i32, %c0_i32_0 : i32, i32, i32, i32
  }
  func.func @transform_1(%arg0: i32, %arg1: i32) -> (i32, i32, i32) {
    %c0_i32 = arith.constant 0 : i32
    %c0_i32_0 = arith.constant 0 : i32
    %c0_i32_1 = arith.constant 0 : i32
    return %arg1, %c0_i32, %c0_i32_0 : i32, i32, i32
  }
  func.func @transform_2(%arg0: i32, %arg1: i32) -> (i32, i32, i32) {
    %c0_i32 = arith.constant 0 : i32
    %c0_i32_0 = arith.constant 0 : i32
    %c0_i32_1 = arith.constant 0 : i32
    return %arg1, %c0_i32, %c0_i32_0 : i32, i32, i32
  }
  func.func @transform_3(%arg0: i32, %arg1: i32) -> (i32, i32, i32, i32) {
    %c0_i32 = arith.constant 0 : i32
    %c0_i32_0 = arith.constant 0 : i32
    %c0_i32_1 = arith.constant 0 : i32
    return %arg0, %arg1, %c0_i32, %c0_i32_0 : i32, i32, i32, i32
  }
}

module attributes {stable_mosaic.version = 11 : i64} {
  func.func @_conv3x3x3_kernel(%arg0: i32, %arg1: memref<8x512xbf16, #tpu.memory_space<vmem>>, %arg2: memref<8x512xbf16, #tpu.memory_space<vmem>>, %arg3: memref<27x8x8xbf16, #tpu.memory_space<vmem>>, %arg4: memref<8x512xf32, #tpu.memory_space<vmem>>) attributes {dimension_semantics = [#tpu.dimension_semantics<parallel>], iteration_bounds = array<i64: 4>, scalar_prefetch = 0 : i64, scratch_operands = 0 : i64, tpu.core_type = #tpu.core_type<tc>, window_params = [{transform_indices = @transform_0, window_bounds = array<i64: 8, 512>}, {transform_indices = @transform_1, window_bounds = array<i64: 8, 512>}, {pipeline_mode = #tpu.pipeline_mode<synchronous>, transform_indices = @transform_2, window_bounds = array<i64: 27, 8, 8>}, {transform_indices = @transform_3, window_bounds = array<i64: 8, 512>}]} {
    %c0 = arith.constant 0 : index
    %c0_0 = arith.constant 0 : index
    %0 = vector.load %arg1[%c0, %c0_0] : memref<8x512xbf16, #tpu.memory_space<vmem>>, vector<8x512xbf16>
    %c0_1 = arith.constant 0 : index
    %c0_2 = arith.constant 0 : index
    %1 = vector.load %arg2[%c0_1, %c0_2] : memref<8x512xbf16, #tpu.memory_space<vmem>>, vector<8x512xbf16>
    %2 = tpu.concatenate %0, %1 in 1 : vector<8x512xbf16>, vector<8x512xbf16> -> vector<8x1024xbf16>
    %cst = arith.constant 0.000000e+00 : f32
    %3 = vector.broadcast %cst : f32 to vector<8x512xf32>
    %c0_3 = arith.constant 0 : index
    %c0_4 = arith.constant 0 : index
    %c0_5 = arith.constant 0 : index
    %4 = vector.load %arg3[%c0_3, %c0_4, %c0_5] : memref<27x8x8xbf16, #tpu.memory_space<vmem>>, vector<1x8x8xbf16>
    %5 = vector.shape_cast %4 : vector<1x8x8xbf16> to vector<8x8xbf16>
    %6 = vector.extract_strided_slice %2 {offsets = [0, 0], sizes = [8, 512], strides = [1, 1]} : vector<8x1024xbf16> to vector<8x512xbf16>
    %cst_6 = arith.constant dense<0.000000e+00> : vector<8x512xf32>
    %7 = tpu.matmul %5, %6, %cst_6 {dimension_numbers = #tpu.dot_dimension_numbers<[1], [0], [0], [1], [0, 0, 1, 1], [], []>} : vector<8x8xbf16>, vector<8x512xbf16>, vector<8x512xf32> -> vector<8x512xf32>
    %8 = arith.addf %3, %7 : vector<8x512xf32>
    %c1 = arith.constant 1 : index
    %c0_7 = arith.constant 0 : index
    %c0_8 = arith.constant 0 : index
    %9 = vector.load %arg3[%c1, %c0_7, %c0_8] : memref<27x8x8xbf16, #tpu.memory_space<vmem>>, vector<1x8x8xbf16>
    %10 = vector.shape_cast %9 : vector<1x8x8xbf16> to vector<8x8xbf16>
    %11 = vector.extract_strided_slice %2 {offsets = [0, 1], sizes = [8, 512], strides = [1, 1]} : vector<8x1024xbf16> to vector<8x512xbf16>
    %cst_9 = arith.constant dense<0.000000e+00> : vector<8x512xf32>
    %12 = tpu.matmul %10, %11, %cst_9 {dimension_numbers = #tpu.dot_dimension_numbers<[1], [0], [0], [1], [0, 0, 1, 1], [], []>} : vector<8x8xbf16>, vector<8x512xbf16>, vector<8x512xf32> -> vector<8x512xf32>
    %13 = arith.addf %8, %12 : vector<8x512xf32>
    %c2 = arith.constant 2 : index
    %c0_10 = arith.constant 0 : index
    %c0_11 = arith.constant 0 : index
    %14 = vector.load %arg3[%c2, %c0_10, %c0_11] : memref<27x8x8xbf16, #tpu.memory_space<vmem>>, vector<1x8x8xbf16>
    %15 = vector.shape_cast %14 : vector<1x8x8xbf16> to vector<8x8xbf16>
    %16 = vector.extract_strided_slice %2 {offsets = [0, 2], sizes = [8, 512], strides = [1, 1]} : vector<8x1024xbf16> to vector<8x512xbf16>
    %cst_12 = arith.constant dense<0.000000e+00> : vector<8x512xf32>
    %17 = tpu.matmul %15, %16, %cst_12 {dimension_numbers = #tpu.dot_dimension_numbers<[1], [0], [0], [1], [0, 0, 1, 1], [], []>} : vector<8x8xbf16>, vector<8x512xbf16>, vector<8x512xf32> -> vector<8x512xf32>
    %18 = arith.addf %13, %17 : vector<8x512xf32>
    %c3 = arith.constant 3 : index
    %c0_13 = arith.constant 0 : index
    %c0_14 = arith.constant 0 : index
    %19 = vector.load %arg3[%c3, %c0_13, %c0_14] : memref<27x8x8xbf16, #tpu.memory_space<vmem>>, vector<1x8x8xbf16>
    %20 = vector.shape_cast %19 : vector<1x8x8xbf16> to vector<8x8xbf16>
    %21 = vector.extract_strided_slice %2 {offsets = [0, 10], sizes = [8, 512], strides = [1, 1]} : vector<8x1024xbf16> to vector<8x512xbf16>
    %cst_15 = arith.constant dense<0.000000e+00> : vector<8x512xf32>
    %22 = tpu.matmul %20, %21, %cst_15 {dimension_numbers = #tpu.dot_dimension_numbers<[1], [0], [0], [1], [0, 0, 1, 1], [], []>} : vector<8x8xbf16>, vector<8x512xbf16>, vector<8x512xf32> -> vector<8x512xf32>
    %23 = arith.addf %18, %22 : vector<8x512xf32>
    %c4 = arith.constant 4 : index
    %c0_16 = arith.constant 0 : index
    %c0_17 = arith.constant 0 : index
    %24 = vector.load %arg3[%c4, %c0_16, %c0_17] : memref<27x8x8xbf16, #tpu.memory_space<vmem>>, vector<1x8x8xbf16>
    %25 = vector.shape_cast %24 : vector<1x8x8xbf16> to vector<8x8xbf16>
    %26 = vector.extract_strided_slice %2 {offsets = [0, 11], sizes = [8, 512], strides = [1, 1]} : vector<8x1024xbf16> to vector<8x512xbf16>
    %cst_18 = arith.constant dense<0.000000e+00> : vector<8x512xf32>
    %27 = tpu.matmul %25, %26, %cst_18 {dimension_numbers = #tpu.dot_dimension_numbers<[1], [0], [0], [1], [0, 0, 1, 1], [], []>} : vector<8x8xbf16>, vector<8x512xbf16>, vector<8x512xf32> -> vector<8x512xf32>
    %28 = arith.addf %23, %27 : vector<8x512xf32>
    %c5 = arith.constant 5 : index
    %c0_19 = arith.constant 0 : index
    %c0_20 = arith.constant 0 : index
    %29 = vector.load %arg3[%c5, %c0_19, %c0_20] : memref<27x8x8xbf16, #tpu.memory_space<vmem>>, vector<1x8x8xbf16>
    %30 = vector.shape_cast %29 : vector<1x8x8xbf16> to vector<8x8xbf16>
    %31 = vector.extract_strided_slice %2 {offsets = [0, 12], sizes = [8, 512], strides = [1, 1]} : vector<8x1024xbf16> to vector<8x512xbf16>
    %cst_21 = arith.constant dense<0.000000e+00> : vector<8x512xf32>
    %32 = tpu.matmul %30, %31, %cst_21 {dimension_numbers = #tpu.dot_dimension_numbers<[1], [0], [0], [1], [0, 0, 1, 1], [], []>} : vector<8x8xbf16>, vector<8x512xbf16>, vector<8x512xf32> -> vector<8x512xf32>
    %33 = arith.addf %28, %32 : vector<8x512xf32>
    %c6 = arith.constant 6 : index
    %c0_22 = arith.constant 0 : index
    %c0_23 = arith.constant 0 : index
    %34 = vector.load %arg3[%c6, %c0_22, %c0_23] : memref<27x8x8xbf16, #tpu.memory_space<vmem>>, vector<1x8x8xbf16>
    %35 = vector.shape_cast %34 : vector<1x8x8xbf16> to vector<8x8xbf16>
    %36 = vector.extract_strided_slice %2 {offsets = [0, 20], sizes = [8, 512], strides = [1, 1]} : vector<8x1024xbf16> to vector<8x512xbf16>
    %cst_24 = arith.constant dense<0.000000e+00> : vector<8x512xf32>
    %37 = tpu.matmul %35, %36, %cst_24 {dimension_numbers = #tpu.dot_dimension_numbers<[1], [0], [0], [1], [0, 0, 1, 1], [], []>} : vector<8x8xbf16>, vector<8x512xbf16>, vector<8x512xf32> -> vector<8x512xf32>
    %38 = arith.addf %33, %37 : vector<8x512xf32>
    %c7 = arith.constant 7 : index
    %c0_25 = arith.constant 0 : index
    %c0_26 = arith.constant 0 : index
    %39 = vector.load %arg3[%c7, %c0_25, %c0_26] : memref<27x8x8xbf16, #tpu.memory_space<vmem>>, vector<1x8x8xbf16>
    %40 = vector.shape_cast %39 : vector<1x8x8xbf16> to vector<8x8xbf16>
    %41 = vector.extract_strided_slice %2 {offsets = [0, 21], sizes = [8, 512], strides = [1, 1]} : vector<8x1024xbf16> to vector<8x512xbf16>
    %cst_27 = arith.constant dense<0.000000e+00> : vector<8x512xf32>
    %42 = tpu.matmul %40, %41, %cst_27 {dimension_numbers = #tpu.dot_dimension_numbers<[1], [0], [0], [1], [0, 0, 1, 1], [], []>} : vector<8x8xbf16>, vector<8x512xbf16>, vector<8x512xf32> -> vector<8x512xf32>
    %43 = arith.addf %38, %42 : vector<8x512xf32>
    %c8 = arith.constant 8 : index
    %c0_28 = arith.constant 0 : index
    %c0_29 = arith.constant 0 : index
    %44 = vector.load %arg3[%c8, %c0_28, %c0_29] : memref<27x8x8xbf16, #tpu.memory_space<vmem>>, vector<1x8x8xbf16>
    %45 = vector.shape_cast %44 : vector<1x8x8xbf16> to vector<8x8xbf16>
    %46 = vector.extract_strided_slice %2 {offsets = [0, 22], sizes = [8, 512], strides = [1, 1]} : vector<8x1024xbf16> to vector<8x512xbf16>
    %cst_30 = arith.constant dense<0.000000e+00> : vector<8x512xf32>
    %47 = tpu.matmul %45, %46, %cst_30 {dimension_numbers = #tpu.dot_dimension_numbers<[1], [0], [0], [1], [0, 0, 1, 1], [], []>} : vector<8x8xbf16>, vector<8x512xbf16>, vector<8x512xf32> -> vector<8x512xf32>
    %48 = arith.addf %43, %47 : vector<8x512xf32>
    %c9 = arith.constant 9 : index
    %c0_31 = arith.constant 0 : index
    %c0_32 = arith.constant 0 : index
    %49 = vector.load %arg3[%c9, %c0_31, %c0_32] : memref<27x8x8xbf16, #tpu.memory_space<vmem>>, vector<1x8x8xbf16>
    %50 = vector.shape_cast %49 : vector<1x8x8xbf16> to vector<8x8xbf16>
    %51 = vector.extract_strided_slice %2 {offsets = [0, 100], sizes = [8, 512], strides = [1, 1]} : vector<8x1024xbf16> to vector<8x512xbf16>
    %cst_33 = arith.constant dense<0.000000e+00> : vector<8x512xf32>
    %52 = tpu.matmul %50, %51, %cst_33 {dimension_numbers = #tpu.dot_dimension_numbers<[1], [0], [0], [1], [0, 0, 1, 1], [], []>} : vector<8x8xbf16>, vector<8x512xbf16>, vector<8x512xf32> -> vector<8x512xf32>
    %53 = arith.addf %48, %52 : vector<8x512xf32>
    %c10 = arith.constant 10 : index
    %c0_34 = arith.constant 0 : index
    %c0_35 = arith.constant 0 : index
    %54 = vector.load %arg3[%c10, %c0_34, %c0_35] : memref<27x8x8xbf16, #tpu.memory_space<vmem>>, vector<1x8x8xbf16>
    %55 = vector.shape_cast %54 : vector<1x8x8xbf16> to vector<8x8xbf16>
    %56 = vector.extract_strided_slice %2 {offsets = [0, 101], sizes = [8, 512], strides = [1, 1]} : vector<8x1024xbf16> to vector<8x512xbf16>
    %cst_36 = arith.constant dense<0.000000e+00> : vector<8x512xf32>
    %57 = tpu.matmul %55, %56, %cst_36 {dimension_numbers = #tpu.dot_dimension_numbers<[1], [0], [0], [1], [0, 0, 1, 1], [], []>} : vector<8x8xbf16>, vector<8x512xbf16>, vector<8x512xf32> -> vector<8x512xf32>
    %58 = arith.addf %53, %57 : vector<8x512xf32>
    %c11 = arith.constant 11 : index
    %c0_37 = arith.constant 0 : index
    %c0_38 = arith.constant 0 : index
    %59 = vector.load %arg3[%c11, %c0_37, %c0_38] : memref<27x8x8xbf16, #tpu.memory_space<vmem>>, vector<1x8x8xbf16>
    %60 = vector.shape_cast %59 : vector<1x8x8xbf16> to vector<8x8xbf16>
    %61 = vector.extract_strided_slice %2 {offsets = [0, 102], sizes = [8, 512], strides = [1, 1]} : vector<8x1024xbf16> to vector<8x512xbf16>
    %cst_39 = arith.constant dense<0.000000e+00> : vector<8x512xf32>
    %62 = tpu.matmul %60, %61, %cst_39 {dimension_numbers = #tpu.dot_dimension_numbers<[1], [0], [0], [1], [0, 0, 1, 1], [], []>} : vector<8x8xbf16>, vector<8x512xbf16>, vector<8x512xf32> -> vector<8x512xf32>
    %63 = arith.addf %58, %62 : vector<8x512xf32>
    %c12 = arith.constant 12 : index
    %c0_40 = arith.constant 0 : index
    %c0_41 = arith.constant 0 : index
    %64 = vector.load %arg3[%c12, %c0_40, %c0_41] : memref<27x8x8xbf16, #tpu.memory_space<vmem>>, vector<1x8x8xbf16>
    %65 = vector.shape_cast %64 : vector<1x8x8xbf16> to vector<8x8xbf16>
    %66 = vector.extract_strided_slice %2 {offsets = [0, 110], sizes = [8, 512], strides = [1, 1]} : vector<8x1024xbf16> to vector<8x512xbf16>
    %cst_42 = arith.constant dense<0.000000e+00> : vector<8x512xf32>
    %67 = tpu.matmul %65, %66, %cst_42 {dimension_numbers = #tpu.dot_dimension_numbers<[1], [0], [0], [1], [0, 0, 1, 1], [], []>} : vector<8x8xbf16>, vector<8x512xbf16>, vector<8x512xf32> -> vector<8x512xf32>
    %68 = arith.addf %63, %67 : vector<8x512xf32>
    %c13 = arith.constant 13 : index
    %c0_43 = arith.constant 0 : index
    %c0_44 = arith.constant 0 : index
    %69 = vector.load %arg3[%c13, %c0_43, %c0_44] : memref<27x8x8xbf16, #tpu.memory_space<vmem>>, vector<1x8x8xbf16>
    %70 = vector.shape_cast %69 : vector<1x8x8xbf16> to vector<8x8xbf16>
    %71 = vector.extract_strided_slice %2 {offsets = [0, 111], sizes = [8, 512], strides = [1, 1]} : vector<8x1024xbf16> to vector<8x512xbf16>
    %cst_45 = arith.constant dense<0.000000e+00> : vector<8x512xf32>
    %72 = tpu.matmul %70, %71, %cst_45 {dimension_numbers = #tpu.dot_dimension_numbers<[1], [0], [0], [1], [0, 0, 1, 1], [], []>} : vector<8x8xbf16>, vector<8x512xbf16>, vector<8x512xf32> -> vector<8x512xf32>
    %73 = arith.addf %68, %72 : vector<8x512xf32>
    %c14 = arith.constant 14 : index
    %c0_46 = arith.constant 0 : index
    %c0_47 = arith.constant 0 : index
    %74 = vector.load %arg3[%c14, %c0_46, %c0_47] : memref<27x8x8xbf16, #tpu.memory_space<vmem>>, vector<1x8x8xbf16>
    %75 = vector.shape_cast %74 : vector<1x8x8xbf16> to vector<8x8xbf16>
    %76 = vector.extract_strided_slice %2 {offsets = [0, 112], sizes = [8, 512], strides = [1, 1]} : vector<8x1024xbf16> to vector<8x512xbf16>
    %cst_48 = arith.constant dense<0.000000e+00> : vector<8x512xf32>
    %77 = tpu.matmul %75, %76, %cst_48 {dimension_numbers = #tpu.dot_dimension_numbers<[1], [0], [0], [1], [0, 0, 1, 1], [], []>} : vector<8x8xbf16>, vector<8x512xbf16>, vector<8x512xf32> -> vector<8x512xf32>
    %78 = arith.addf %73, %77 : vector<8x512xf32>
    %c15 = arith.constant 15 : index
    %c0_49 = arith.constant 0 : index
    %c0_50 = arith.constant 0 : index
    %79 = vector.load %arg3[%c15, %c0_49, %c0_50] : memref<27x8x8xbf16, #tpu.memory_space<vmem>>, vector<1x8x8xbf16>
    %80 = vector.shape_cast %79 : vector<1x8x8xbf16> to vector<8x8xbf16>
    %81 = vector.extract_strided_slice %2 {offsets = [0, 120], sizes = [8, 512], strides = [1, 1]} : vector<8x1024xbf16> to vector<8x512xbf16>
    %cst_51 = arith.constant dense<0.000000e+00> : vector<8x512xf32>
    %82 = tpu.matmul %80, %81, %cst_51 {dimension_numbers = #tpu.dot_dimension_numbers<[1], [0], [0], [1], [0, 0, 1, 1], [], []>} : vector<8x8xbf16>, vector<8x512xbf16>, vector<8x512xf32> -> vector<8x512xf32>
    %83 = arith.addf %78, %82 : vector<8x512xf32>
    %c16 = arith.constant 16 : index
    %c0_52 = arith.constant 0 : index
    %c0_53 = arith.constant 0 : index
    %84 = vector.load %arg3[%c16, %c0_52, %c0_53] : memref<27x8x8xbf16, #tpu.memory_space<vmem>>, vector<1x8x8xbf16>
    %85 = vector.shape_cast %84 : vector<1x8x8xbf16> to vector<8x8xbf16>
    %86 = vector.extract_strided_slice %2 {offsets = [0, 121], sizes = [8, 512], strides = [1, 1]} : vector<8x1024xbf16> to vector<8x512xbf16>
    %cst_54 = arith.constant dense<0.000000e+00> : vector<8x512xf32>
    %87 = tpu.matmul %85, %86, %cst_54 {dimension_numbers = #tpu.dot_dimension_numbers<[1], [0], [0], [1], [0, 0, 1, 1], [], []>} : vector<8x8xbf16>, vector<8x512xbf16>, vector<8x512xf32> -> vector<8x512xf32>
    %88 = arith.addf %83, %87 : vector<8x512xf32>
    %c17 = arith.constant 17 : index
    %c0_55 = arith.constant 0 : index
    %c0_56 = arith.constant 0 : index
    %89 = vector.load %arg3[%c17, %c0_55, %c0_56] : memref<27x8x8xbf16, #tpu.memory_space<vmem>>, vector<1x8x8xbf16>
    %90 = vector.shape_cast %89 : vector<1x8x8xbf16> to vector<8x8xbf16>
    %91 = vector.extract_strided_slice %2 {offsets = [0, 122], sizes = [8, 512], strides = [1, 1]} : vector<8x1024xbf16> to vector<8x512xbf16>
    %cst_57 = arith.constant dense<0.000000e+00> : vector<8x512xf32>
    %92 = tpu.matmul %90, %91, %cst_57 {dimension_numbers = #tpu.dot_dimension_numbers<[1], [0], [0], [1], [0, 0, 1, 1], [], []>} : vector<8x8xbf16>, vector<8x512xbf16>, vector<8x512xf32> -> vector<8x512xf32>
    %93 = arith.addf %88, %92 : vector<8x512xf32>
    %c18 = arith.constant 18 : index
    %c0_58 = arith.constant 0 : index
    %c0_59 = arith.constant 0 : index
    %94 = vector.load %arg3[%c18, %c0_58, %c0_59] : memref<27x8x8xbf16, #tpu.memory_space<vmem>>, vector<1x8x8xbf16>
    %95 = vector.shape_cast %94 : vector<1x8x8xbf16> to vector<8x8xbf16>
    %96 = vector.extract_strided_slice %2 {offsets = [0, 200], sizes = [8, 512], strides = [1, 1]} : vector<8x1024xbf16> to vector<8x512xbf16>
    %cst_60 = arith.constant dense<0.000000e+00> : vector<8x512xf32>
    %97 = tpu.matmul %95, %96, %cst_60 {dimension_numbers = #tpu.dot_dimension_numbers<[1], [0], [0], [1], [0, 0, 1, 1], [], []>} : vector<8x8xbf16>, vector<8x512xbf16>, vector<8x512xf32> -> vector<8x512xf32>
    %98 = arith.addf %93, %97 : vector<8x512xf32>
    %c19 = arith.constant 19 : index
    %c0_61 = arith.constant 0 : index
    %c0_62 = arith.constant 0 : index
    %99 = vector.load %arg3[%c19, %c0_61, %c0_62] : memref<27x8x8xbf16, #tpu.memory_space<vmem>>, vector<1x8x8xbf16>
    %100 = vector.shape_cast %99 : vector<1x8x8xbf16> to vector<8x8xbf16>
    %101 = vector.extract_strided_slice %2 {offsets = [0, 201], sizes = [8, 512], strides = [1, 1]} : vector<8x1024xbf16> to vector<8x512xbf16>
    %cst_63 = arith.constant dense<0.000000e+00> : vector<8x512xf32>
    %102 = tpu.matmul %100, %101, %cst_63 {dimension_numbers = #tpu.dot_dimension_numbers<[1], [0], [0], [1], [0, 0, 1, 1], [], []>} : vector<8x8xbf16>, vector<8x512xbf16>, vector<8x512xf32> -> vector<8x512xf32>
    %103 = arith.addf %98, %102 : vector<8x512xf32>
    %c20 = arith.constant 20 : index
    %c0_64 = arith.constant 0 : index
    %c0_65 = arith.constant 0 : index
    %104 = vector.load %arg3[%c20, %c0_64, %c0_65] : memref<27x8x8xbf16, #tpu.memory_space<vmem>>, vector<1x8x8xbf16>
    %105 = vector.shape_cast %104 : vector<1x8x8xbf16> to vector<8x8xbf16>
    %106 = vector.extract_strided_slice %2 {offsets = [0, 202], sizes = [8, 512], strides = [1, 1]} : vector<8x1024xbf16> to vector<8x512xbf16>
    %cst_66 = arith.constant dense<0.000000e+00> : vector<8x512xf32>
    %107 = tpu.matmul %105, %106, %cst_66 {dimension_numbers = #tpu.dot_dimension_numbers<[1], [0], [0], [1], [0, 0, 1, 1], [], []>} : vector<8x8xbf16>, vector<8x512xbf16>, vector<8x512xf32> -> vector<8x512xf32>
    %108 = arith.addf %103, %107 : vector<8x512xf32>
    %c21 = arith.constant 21 : index
    %c0_67 = arith.constant 0 : index
    %c0_68 = arith.constant 0 : index
    %109 = vector.load %arg3[%c21, %c0_67, %c0_68] : memref<27x8x8xbf16, #tpu.memory_space<vmem>>, vector<1x8x8xbf16>
    %110 = vector.shape_cast %109 : vector<1x8x8xbf16> to vector<8x8xbf16>
    %111 = vector.extract_strided_slice %2 {offsets = [0, 210], sizes = [8, 512], strides = [1, 1]} : vector<8x1024xbf16> to vector<8x512xbf16>
    %cst_69 = arith.constant dense<0.000000e+00> : vector<8x512xf32>
    %112 = tpu.matmul %110, %111, %cst_69 {dimension_numbers = #tpu.dot_dimension_numbers<[1], [0], [0], [1], [0, 0, 1, 1], [], []>} : vector<8x8xbf16>, vector<8x512xbf16>, vector<8x512xf32> -> vector<8x512xf32>
    %113 = arith.addf %108, %112 : vector<8x512xf32>
    %c22 = arith.constant 22 : index
    %c0_70 = arith.constant 0 : index
    %c0_71 = arith.constant 0 : index
    %114 = vector.load %arg3[%c22, %c0_70, %c0_71] : memref<27x8x8xbf16, #tpu.memory_space<vmem>>, vector<1x8x8xbf16>
    %115 = vector.shape_cast %114 : vector<1x8x8xbf16> to vector<8x8xbf16>
    %116 = vector.extract_strided_slice %2 {offsets = [0, 211], sizes = [8, 512], strides = [1, 1]} : vector<8x1024xbf16> to vector<8x512xbf16>
    %cst_72 = arith.constant dense<0.000000e+00> : vector<8x512xf32>
    %117 = tpu.matmul %115, %116, %cst_72 {dimension_numbers = #tpu.dot_dimension_numbers<[1], [0], [0], [1], [0, 0, 1, 1], [], []>} : vector<8x8xbf16>, vector<8x512xbf16>, vector<8x512xf32> -> vector<8x512xf32>
    %118 = arith.addf %113, %117 : vector<8x512xf32>
    %c23 = arith.constant 23 : index
    %c0_73 = arith.constant 0 : index
    %c0_74 = arith.constant 0 : index
    %119 = vector.load %arg3[%c23, %c0_73, %c0_74] : memref<27x8x8xbf16, #tpu.memory_space<vmem>>, vector<1x8x8xbf16>
    %120 = vector.shape_cast %119 : vector<1x8x8xbf16> to vector<8x8xbf16>
    %121 = vector.extract_strided_slice %2 {offsets = [0, 212], sizes = [8, 512], strides = [1, 1]} : vector<8x1024xbf16> to vector<8x512xbf16>
    %cst_75 = arith.constant dense<0.000000e+00> : vector<8x512xf32>
    %122 = tpu.matmul %120, %121, %cst_75 {dimension_numbers = #tpu.dot_dimension_numbers<[1], [0], [0], [1], [0, 0, 1, 1], [], []>} : vector<8x8xbf16>, vector<8x512xbf16>, vector<8x512xf32> -> vector<8x512xf32>
    %123 = arith.addf %118, %122 : vector<8x512xf32>
    %c24 = arith.constant 24 : index
    %c0_76 = arith.constant 0 : index
    %c0_77 = arith.constant 0 : index
    %124 = vector.load %arg3[%c24, %c0_76, %c0_77] : memref<27x8x8xbf16, #tpu.memory_space<vmem>>, vector<1x8x8xbf16>
    %125 = vector.shape_cast %124 : vector<1x8x8xbf16> to vector<8x8xbf16>
    %126 = vector.extract_strided_slice %2 {offsets = [0, 220], sizes = [8, 512], strides = [1, 1]} : vector<8x1024xbf16> to vector<8x512xbf16>
    %cst_78 = arith.constant dense<0.000000e+00> : vector<8x512xf32>
    %127 = tpu.matmul %125, %126, %cst_78 {dimension_numbers = #tpu.dot_dimension_numbers<[1], [0], [0], [1], [0, 0, 1, 1], [], []>} : vector<8x8xbf16>, vector<8x512xbf16>, vector<8x512xf32> -> vector<8x512xf32>
    %128 = arith.addf %123, %127 : vector<8x512xf32>
    %c25 = arith.constant 25 : index
    %c0_79 = arith.constant 0 : index
    %c0_80 = arith.constant 0 : index
    %129 = vector.load %arg3[%c25, %c0_79, %c0_80] : memref<27x8x8xbf16, #tpu.memory_space<vmem>>, vector<1x8x8xbf16>
    %130 = vector.shape_cast %129 : vector<1x8x8xbf16> to vector<8x8xbf16>
    %131 = vector.extract_strided_slice %2 {offsets = [0, 221], sizes = [8, 512], strides = [1, 1]} : vector<8x1024xbf16> to vector<8x512xbf16>
    %cst_81 = arith.constant dense<0.000000e+00> : vector<8x512xf32>
    %132 = tpu.matmul %130, %131, %cst_81 {dimension_numbers = #tpu.dot_dimension_numbers<[1], [0], [0], [1], [0, 0, 1, 1], [], []>} : vector<8x8xbf16>, vector<8x512xbf16>, vector<8x512xf32> -> vector<8x512xf32>
    %133 = arith.addf %128, %132 : vector<8x512xf32>
    %c26 = arith.constant 26 : index
    %c0_82 = arith.constant 0 : index
    %c0_83 = arith.constant 0 : index
    %134 = vector.load %arg3[%c26, %c0_82, %c0_83] : memref<27x8x8xbf16, #tpu.memory_space<vmem>>, vector<1x8x8xbf16>
    %135 = vector.shape_cast %134 : vector<1x8x8xbf16> to vector<8x8xbf16>
    %136 = vector.extract_strided_slice %2 {offsets = [0, 222], sizes = [8, 512], strides = [1, 1]} : vector<8x1024xbf16> to vector<8x512xbf16>
    %cst_84 = arith.constant dense<0.000000e+00> : vector<8x512xf32>
    %137 = tpu.matmul %135, %136, %cst_84 {dimension_numbers = #tpu.dot_dimension_numbers<[1], [0], [0], [1], [0, 0, 1, 1], [], []>} : vector<8x8xbf16>, vector<8x512xbf16>, vector<8x512xf32> -> vector<8x512xf32>
    %138 = arith.addf %133, %137 : vector<8x512xf32>
    %cst_85 = arith.constant 0.000000e+00 : f32
    %139 = vector.broadcast %cst_85 : f32 to vector<8x512xf32>
    %140 = arith.maximumf %138, %139 : vector<8x512xf32>
    %c0_86 = arith.constant 0 : index
    %c0_87 = arith.constant 0 : index
    %141 = vector.load %arg4[%c0_86, %c0_87] : memref<8x512xf32, #tpu.memory_space<vmem>>, vector<8x512xf32>
    tpu.vector_store %arg4[%c0_86, %c0_87], %140 {strides = array<i32>} : memref<8x512xf32, #tpu.memory_space<vmem>>, vector<8x512xf32>,
    return
  }
  func.func @transform_0(%arg0: i32) -> (i32, i32) {
    %c0_i32 = arith.constant 0 : i32
    %c0_i32_0 = arith.constant 0 : i32
    return %c0_i32, %arg0 : i32, i32
  }
  func.func @transform_1(%arg0: i32) -> (i32, i32) {
    %c1_i32 = arith.constant 1 : i32
    %0 = arith.addi %arg0, %c1_i32 : i32
    %c0_i32 = arith.constant 0 : i32
    %c0_i32_0 = arith.constant 0 : i32
    return %c0_i32, %0 : i32, i32
  }
  func.func @transform_2(%arg0: i32) -> (i32, i32, i32) {
    %c0_i32 = arith.constant 0 : i32
    %c0_i32_0 = arith.constant 0 : i32
    %c0_i32_1 = arith.constant 0 : i32
    %c0_i32_2 = arith.constant 0 : i32
    return %c0_i32, %c0_i32_0, %c0_i32_1 : i32, i32, i32
  }
  func.func @transform_3(%arg0: i32) -> (i32, i32) {
    %c0_i32 = arith.constant 0 : i32
    %c0_i32_0 = arith.constant 0 : i32
    return %c0_i32, %arg0 : i32, i32
  }
}

</mosaic_0001>

<llo_original>
// kernel: decoder_forward.5
$region0: #{decoder_forward.5}
  #allocation0 [shape = 'u32[]', space=smem, size = 0x4, offset = 0x4, fixed_abs, tag = 'smem constant byte address 0x4 - core index']
  #allocation1 [shape = 'u32[144,128]{1,0:T(1,128)}', space=vmem, size = 0x12000, scoped, tag = 'internal scratch']
  %s0 = inlined_call_operand.vmem [shape: f32[16,64], index: 0, kind: input, shape index: {}]
  %s1 = inlined_call_operand.vmem [shape: f32[64,512], index: 1, kind: input, shape index: {}]
  %s2 = inlined_call_operand.vmem [shape: f32[16,512], index: 2, kind: output, shape index: {}]
  %s3 = sld [smem:[#allocation0]]
  $region18: #{decoder_forward.5} parent=0
    _
  %s5 = ssub.s32 1, %s3
  %s6 = scalar_select 0, %s5, %s3
  // Predicated region
  $region2: #{decoder_forward.5} parent=0 // pred_check
    _
  $region3: #{decoder_forward.5} parent=0 // pred_check_branch
    %8 = sbr.rel (0) target = $region5
  $region4: #{decoder_forward.5} parent=0 // pred_region
    _
  $region5: #{decoder_forward.5} parent=0 // pred_fallthru
    _
  // Predicated region
  $region6: #{decoder_forward.5} parent=0 // pred_check
    _
  $region7: #{decoder_forward.5} parent=0 // pred_check_branch
    %10 = sbr.rel (0) target = $region9
  $region8: #{decoder_forward.5} parent=0 // pred_region
    _
  $region9: #{decoder_forward.5} parent=0 // pred_fallthru
    _
  %v11 = vld [vmem:[%s0] sm:$0xff]
  %v12 = vld [vmem:[%s0 + $0x8] sm:$0xff]
  %v13 = vld [vmem:[%s1] sm:$0xff]
  %v14 = vld [vmem:[%s1 + $0x8] sm:$0xff]
  %v15 = vld [vmem:[%s1 + $0x10] sm:$0xff]
  %v16 = vld [vmem:[%s1 + $0x18] sm:$0xff]
  %v17 = vld [vmem:[%s1 + $0x20] sm:$0xff]
  %v18 = vld [vmem:[%s1 + $0x28] sm:$0xff]
  %v19 = vld [vmem:[%s1 + $0x30] sm:$0xff]
  %v20 = vld [vmem:[%s1 + $0x38] sm:$0xff]
  %v21 = vld [vmem:[%s1 + $0x40] sm:$0xff]
  %v22 = vld [vmem:[%s1 + $0x48] sm:$0xff]
  %v23 = vld [vmem:[%s1 + $0x50] sm:$0xff]
  %v24 = vld [vmem:[%s1 + $0x58] sm:$0xff]
  %v25 = vld [vmem:[%s1 + $0x60] sm:$0xff]
  %v26 = vld [vmem:[%s1 + $0x68] sm:$0xff]
  %v27 = vld [vmem:[%s1 + $0x70] sm:$0xff]
  %v28 = vld [vmem:[%s1 + $0x78] sm:$0xff]
  %v29 = vld [vmem:[%s1 + $0x80] sm:$0xff]
  %v30 = vld [vmem:[%s1 + $0x88] sm:$0xff]
  %v31 = vld [vmem:[%s1 + $0x90] sm:$0xff]
  %v32 = vld [vmem:[%s1 + $0x98] sm:$0xff]
  %v33 = vld [vmem:[%s1 + $0xa0] sm:$0xff]
  %v34 = vld [vmem:[%s1 + $0xa8] sm:$0xff]
  %v35 = vld [vmem:[%s1 + $0xb0] sm:$0xff]
  %v36 = vld [vmem:[%s1 + $0xb8] sm:$0xff]
  %v37 = vld [vmem:[%s1 + $0xc0] sm:$0xff]
  %v38 = vld [vmem:[%s1 + $0xc8] sm:$0xff]
  %v39 = vld [vmem:[%s1 + $0xd0] sm:$0xff]
  %v40 = vld [vmem:[%s1 + $0xd8] sm:$0xff]
  %v41 = vld [vmem:[%s1 + $0xe0] sm:$0xff]
  %v42 = vld [vmem:[%s1 + $0xe8] sm:$0xff]
  %v43 = vld [vmem:[%s1 + $0xf0] sm:$0xff]
  %v44 = vld [vmem:[%s1 + $0xf8] sm:$0xff]
  %vm45 = vcmask 523264
  %v47 = vsel %vm45, %v11, 0
  %v50 = vsel %vm45, %v12, 0
  %52 = vmatprep.subr.mxu0 0.0
  %53 = vmatpush1.msra.mxu0 0.0
  %54 = vmatprep.subr.mxu0 0.0
  %55 = vmatpush1.msra.mxu0 0.0
  %56 = vmatprep.subr.mxu0 0.0
  %57 = vmatpush1.msra.mxu0 0.0
  %58 = vmatprep.subr.mxu0 0.0
  %59 = vmatpush1.msra.mxu0 0.0
  %60 = vmatprep.subr.mxu0 0.0
  %61 = vmatpush1.msra.mxu0 0.0
  %62 = vmatprep.subr.mxu0 0.0
  %63 = vmatpush1.msra.mxu0 0.0
  %64 = vmatprep.subr.mxu0 0.0
  %65 = vmatpush1.msra.mxu0 0.0
  %66 = vmatprep.subr.mxu0 0.0
  %67 = vmatpush1.msra.mxu0 0.0
  %68 = vmatprep.subr.mxu0 %v42
  %69 = vmatpush1.msra.mxu0 %v41
  %70 = vmatprep.subr.mxu0 %v38
  %71 = vmatpush1.msra.mxu0 %v37
  %72 = vmatprep.subr.mxu0 %v34
  %73 = vmatpush1.msra.mxu0 %v33
  %74 = vmatprep.subr.mxu0 %v30
  %75 = vmatpush1.msra.mxu0 %v29
  %76 = vmatprep.subr.mxu0 %v26
  %77 = vmatpush1.msra.mxu0 %v25
  %78 = vmatprep.subr.mxu0 %v22
  %79 = vmatpush1.msra.mxu0 %v21
  %80 = vmatprep.subr.mxu0 %v18
  %81 = vmatpush1.msra.mxu0 %v17
  %82 = vmatprep.subr.mxu0 %v14
  %83 = vmatpush1.msra.mxu0 %v13
  %84 = vmatprep.subr.mxu0 0.0
  %85 = vmatpush2.msra.mxu0 0.0
  %86 = vmatprep.subr.mxu0 0.0
  %87 = vmatpush2.msra.mxu0 0.0
  %88 = vmatprep.subr.mxu0 0.0
  %89 = vmatpush2.msra.mxu0 0.0
  %90 = vmatprep.subr.mxu0 0.0
  %91 = vmatpush2.msra.mxu0 0.0
  %92 = vmatprep.subr.mxu0 0.0
  %93 = vmatpush2.msra.mxu0 0.0
  %94 = vmatprep.subr.mxu0 0.0
  %95 = vmatpush2.msra.mxu0 0.0
  %96 = vmatprep.subr.mxu0 0.0
  %97 = vmatpush2.msra.mxu0 0.0
  %98 = vmatprep.subr.mxu0 0.0
  %99 = vmatpush2.msra.mxu0 0.0
  %100 = vmatprep.subr.mxu0 0.0
  %101 = vmatpush2.msra.mxu0 0.0
  %102 = vmatprep.subr.mxu0 0.0
  %103 = vmatpush2.msra.mxu0 0.0
  %104 = vmatprep.subr.mxu0 0.0
  %105 = vmatpush2.msra.mxu0 0.0
  %106 = vmatprep.subr.mxu0 0.0
  %107 = vmatpush2.msra.mxu0 0.0
  %108 = vmatprep.subr.mxu0 0.0
  %109 = vmatpush2.msra.mxu0 0.0
  %110 = vmatprep.subr.mxu0 0.0
  %111 = vmatpush2.msra.mxu0 0.0
  %112 = vmatprep.subr.mxu0 0.0
  %113 = vmatpush2.msra.mxu0 0.0
  %114 = vmatprep.subr.mxu0 0.0
  %115 = vmatpush2.msra.mxu0 0.0
  %116 = vmatprep.mubr.f32.mxu0 0.0
  %117 = vmatmul.mubr.f32.gmra.mxu0 %v47
  %v118 = vpop.f32.mrf.mxu0
  %v119 = vadd.f32 0.0, %v118
  %v120 = vpop.f32.mrf.mxu0
  %v121 = vadd.f32 0.0, %v120
  %122 = vmatprep.mubr.f32.mxu0 0.0
  %123 = vmatmul.mubr.f32.gmra.mxu0 %v50
  %v124 = vpop.f32.mrf.mxu0
  %v125 = vadd.f32 0.0, %v124
  %v126 = vpop.f32.mrf.mxu0
  %v127 = vadd.f32 0.0, %v126
  %128 = vdwg.mxu0
  %129 = vmatprep.subr.mxu0 0.0
  %130 = vmatpush1.msra.mxu0 0.0
  %131 = vmatprep.subr.mxu0 0.0
  %132 = vmatpush1.msra.mxu0 0.0
  %133 = vmatprep.subr.mxu0 0.0
  %134 = vmatpush1.msra.mxu0 0.0
  %135 = vmatprep.subr.mxu0 0.0
  %136 = vmatpush1.msra.mxu0 0.0
  %137 = vmatprep.subr.mxu0 0.0
  %138 = vmatpush1.msra.mxu0 0.0
  %139 = vmatprep.subr.mxu0 0.0
  %140 = vmatpush1.msra.mxu0 0.0
  %141 = vmatprep.subr.mxu0 0.0
  %142 = vmatpush1.msra.mxu0 0.0
  %143 = vmatprep.subr.mxu0 0.0
  %144 = vmatpush1.msra.mxu0 0.0
  %145 = vmatprep.subr.mxu0 %v44
  %146 = vmatpush1.msra.mxu0 %v43
  %147 = vmatprep.subr.mxu0 %v40
  %148 = vmatpush1.msra.mxu0 %v39
  %149 = vmatprep.subr.mxu0 %v36
  %150 = vmatpush1.msra.mxu0 %v35
  %151 = vmatprep.subr.mxu0 %v32
  %152 = vmatpush1.msra.mxu0 %v31
  %153 = vmatprep.subr.mxu0 %v28
  %154 = vmatpush1.msra.mxu0 %v27
  %155 = vmatprep.subr.mxu0 %v24
  %156 = vmatpush1.msra.mxu0 %v23
  %157 = vmatprep.subr.mxu0 %v20
  %158 = vmatpush1.msra.mxu0 %v19
  %159 = vmatprep.subr.mxu0 %v16
  %160 = vmatpush1.msra.mxu0 %v15
  %161 = vmatprep.subr.mxu0 0.0
  %162 = vmatpush2.msra.mxu0 0.0
  %163 = vmatprep.subr.mxu0 0.0
  %164 = vmatpush2.msra.mxu0 0.0
  %165 = vmatprep.subr.mxu0 0.0
  %166 = vmatpush2.msra.mxu0 0.0
  %167 = vmatprep.subr.mxu0 0.0
  %168 = vmatpush2.msra.mxu0 0.0
  %169 = vmatprep.subr.mxu0 0.0
  %170 = vmatpush2.msra.mxu0 0.0
  %171 = vmatprep.subr.mxu0 0.0
  %172 = vmatpush2.msra.mxu0 0.0
  %173 = vmatprep.subr.mxu0 0.0
  %174 = vmatpush2.msra.mxu0 0.0
  %175 = vmatprep.subr.mxu0 0.0
  %176 = vmatpush2.msra.mxu0 0.0
  %177 = vmatprep.subr.mxu0 0.0
  %178 = vmatpush2.msra.mxu0 0.0
  %179 = vmatprep.subr.mxu0 0.0
  %180 = vmatpush2.msra.mxu0 0.0
  %181 = vmatprep.subr.mxu0 0.0
  %182 = vmatpush2.msra.mxu0 0.0
  %183 = vmatprep.subr.mxu0 0.0
  %184 = vmatpush2.msra.mxu0 0.0
  %185 = vmatprep.subr.mxu0 0.0
  %186 = vmatpush2.msra.mxu0 0.0
  %187 = vmatprep.subr.mxu0 0.0
  %188 = vmatpush2.msra.mxu0 0.0
  %189 = vmatprep.subr.mxu0 0.0
  %190 = vmatpush2.msra.mxu0 0.0
  %191 = vmatprep.subr.mxu0 0.0
  %192 = vmatpush2.msra.mxu0 0.0
  %193 = vmatprep.mubr.f32.mxu0 0.0
  %194 = vmatmul.mubr.f32.gmra.mxu0 %v47
  %v195 = vpop.f32.mrf.mxu0
  %v196 = vadd.f32 0.0, %v195
  %v197 = vpop.f32.mrf.mxu0
  %v198 = vadd.f32 0.0, %v197
  %199 = vmatprep.mubr.f32.mxu0 0.0
  %200 = vmatmul.mubr.f32.gmra.mxu0 %v50
  %v201 = vpop.f32.mrf.mxu0
  %v202 = vadd.f32 0.0, %v201
  %v203 = vpop.f32.mrf.mxu0
  %v204 = vadd.f32 0.0, %v203
  %205 = vdwg.mxu0
  %206 = vst [vmem:[%s2] sm:$0xff] %v119
  %207 = vst [vmem:[%s2 + $0x8] sm:$0xff] %v121
  %208 = vst [vmem:[%s2 + $0x10] sm:$0xff] %v196
  %209 = vst [vmem:[%s2 + $0x18] sm:$0xff] %v198
  %210 = vst [vmem:[%s2 + $0x20] sm:$0xff] %v125
  %211 = vst [vmem:[%s2 + $0x28] sm:$0xff] %v127
  %212 = vst [vmem:[%s2 + $0x30] sm:$0xff] %v202
  %213 = vst [vmem:[%s2 + $0x38] sm:$0xff] %v204
  // Predicated region
  $region10: #{decoder_forward.5} parent=0 // pred_check
    _
  $region11: #{decoder_forward.5} parent=0 // pred_check_branch
    %215 = sbr.rel (0) target = $region13
  $region12: #{decoder_forward.5} parent=0 // pred_region
    _
  $region13: #{decoder_forward.5} parent=0 // pred_fallthru
    _
  // Predicated region
  $region14: #{decoder_forward.5} parent=0 // pred_check
    _
  $region15: #{decoder_forward.5} parent=0 // pred_check_branch
    %217 = sbr.rel (0) target = $region17
  $region16: #{decoder_forward.5} parent=0 // pred_region
    _
  $region17: #{decoder_forward.5} parent=0 // pred_fallthru
    _

// kernel: decoder_forward.6
$region0: #{decoder_forward.6}
  #allocation0 [shape = 'u32[]', space=smem, size = 0x4, offset = 0x4, fixed_abs, tag = 'smem constant byte address 0x4 - core index']
  #allocation1 [shape = 'u32[144,128]{1,0:T(1,128)}', space=vmem, size = 0x12000, scoped, tag = 'internal scratch']
  %s0 = inlined_call_operand.vmem [shape: f32[2,8,2,512], index: 0, kind: input, shape index: {}]
  %s1 = inlined_call_operand.vmem [shape: f32[8,2,1], index: 1, kind: input, shape index: {}]
  %s2 = inlined_call_operand.vmem [shape: f32[8,2,1], index: 2, kind: input, shape index: {}]
  %s3 = inlined_call_operand.vmem [shape: f32[2,8,2,512], index: 3, kind: output, shape index: {}]
  %s4 = sld [smem:[#allocation0]]
  $region45: #{decoder_forward.6} parent=0
    _
  %s6 = ssub.s32 1, %s4
  %s7 = scalar_select 0, %s6, %s4
  loop: start=0, step=1, limit=18
  $region2: #{decoder_forward.6} parent=0 // loop_pre_header
    _
  $region3: #{decoder_forward.6} parent=0 // loop_header
    %s9 = sphi 0, %s13
    %p10 = scmp.ge.s32.totalorder %s9, 18
    %s16 = sphi 0, %s28
    %s17 = sphi 0, %s24
    %s18 = sphi 0, %s16
    %s19 = sphi 0, %s17
    %s20 = sphi 0, %s18
    %s21 = sphi 0, %s19
    %s33 = sphi 0, %s35
    %s36 = sphi 0, %s33
    %s37 = sphi 0, %s36
    %s53 = sphi 0, %s37
    %s59 = sphi 0, %s61
    %s62 = sphi 0, %s59
    %s63 = sphi 0, %s62
    %s79 = sphi 0, %s63
    %s85 = sphi 0, %s87
    %s88 = sphi 0, %s85
    %s89 = sphi 0, %s88
    %s105 = sphi 0, %s89
    %s113 = sphi 0, %s115
    %s116 = sphi 0, %s113
    %s117 = sphi 0, %s116
    %s133 = sphi 0, %s117
  $region4: #{decoder_forward.6} parent=0 // loop_header_branch
    %12 = sbr.rel (%p10) target = $region8
  $region5: #{decoder_forward.6} parent=0 // loop_body
    %s14 = ssub.s32 %s9, 1
    %s15 = ssub.s32 %s9, 2
    %s22 = sadd.s32 1, %s17
    %p23 = scmp.ge.s32.totalorder %s22, 8
    %s24 = scalar_select %p23, 0, %s22
    %s25 = sadd.s32 1, %s16
    %s26 = scalar_select %p23, %s25, %s16
    %p27 = scmp.ge.s32.totalorder %s26, 2
    %s28 = scalar_select %p27, 0, %s26
    %s29 = ssub.s32 %s16, %s28
    %s30 = ssub.s32 %s17, %s24
    %s31 = sor.u32 %s29, %s30
    %p32 = scmp.eq.s32.totalorder %s31, 0
    %s34 = sadd.s32 %s33, 1
    %s35 = scalar_select %p32, %s33, %s34
    %p38 = pneg %p32
    %p39 = scmp.eq.s32.totalorder %s9, 15
    %p40 = por %p38, %p39
    %p41 = scmp.ne.s32.totalorder %s33, %s36
    %p42 = scmp.eq.s32.totalorder %s9, 0
    %p43 = por %p41, %p42
    %p44 = scmp.ne.s32.totalorder %s33, %s36
    %p45 = scmp.eq.s32.totalorder %s14, 15
    %p46 = por %p44, %p45
    %p47 = scmp.ne.s32.totalorder %s36, %s37
    %p48 = scmp.eq.s32.totalorder %s14, 0
    %p49 = por %p47, %p48
    %p50 = scmp.ne.s32.totalorder %s36, %s37
    %p51 = scmp.eq.s32.totalorder %s15, 15
    %p52 = por %p50, %p51
    %p54 = scmp.ne.s32.totalorder %s37, %s53
    %p55 = scmp.eq.s32.totalorder %s15, 0
    %p56 = por %p54, %p55
    %s57 = ssub.s32 %s17, %s24
    %p58 = scmp.eq.s32.totalorder %s57, 0
    %s60 = sadd.s32 %s59, 1
    %s61 = scalar_select %p58, %s59, %s60
    %p64 = pneg %p58
    %p65 = scmp.eq.s32.totalorder %s9, 15
    %p66 = por %p64, %p65
    %p67 = scmp.ne.s32.totalorder %s59, %s62
    %p68 = scmp.eq.s32.totalorder %s9, 0
    %p69 = por %p67, %p68
    %p70 = scmp.ne.s32.totalorder %s59, %s62
    %p71 = scmp.eq.s32.totalorder %s14, 15
    %p72 = por %p70, %p71
    %p73 = scmp.ne.s32.totalorder %s62, %s63
    %p74 = scmp.eq.s32.totalorder %s14, 0
    %p75 = por %p73, %p74
    %p76 = scmp.ne.s32.totalorder %s62, %s63
    %p77 = scmp.eq.s32.totalorder %s15, 15
    %p78 = por %p76, %p77
    %p80 = scmp.ne.s32.totalorder %s63, %s79
    %p81 = scmp.eq.s32.totalorder %s15, 0
    %p82 = por %p80, %p81
    %s83 = ssub.s32 %s17, %s24
    %p84 = scmp.eq.s32.totalorder %s83, 0
    %s86 = sadd.s32 %s85, 1
    %s87 = scalar_select %p84, %s85, %s86
    %p90 = pneg %p84
    %p91 = scmp.eq.s32.totalorder %s9, 15
    %p92 = por %p90, %p91
    %p93 = scmp.ne.s32.totalorder %s85, %s88
    %p94 = scmp.eq.s32.totalorder %s9, 0
    %p95 = por %p93, %p94
    %p96 = scmp.ne.s32.totalorder %s85, %s88
    %p97 = scmp.eq.s32.totalorder %s14, 15
    %p98 = por %p96, %p97
    %p99 = scmp.ne.s32.totalorder %s88, %s89
    %p100 = scmp.eq.s32.totalorder %s14, 0
    %p101 = por %p99, %p100
    %p102 = scmp.ne.s32.totalorder %s88, %s89
    %p103 = scmp.eq.s32.totalorder %s15, 15
    %p104 = por %p102, %p103
    %p106 = scmp.ne.s32.totalorder %s89, %s105
    %p107 = scmp.eq.s32.totalorder %s15, 0
    %p108 = por %p106, %p107
    %s109 = ssub.s32 %s16, %s28
    %s110 = ssub.s32 %s17, %s24
    %s111 = sor.u32 %s109, %s110
    %p112 = scmp.eq.s32.totalorder %s111, 0
    %s114 = sadd.s32 %s113, 1
    %s115 = scalar_select %p112, %s113, %s114
    %p118 = pneg %p112
    %p119 = scmp.eq.s32.totalorder %s9, 15
    %p120 = por %p118, %p119
    %p121 = scmp.ne.s32.totalorder %s113, %s116
    %p122 = scmp.eq.s32.totalorder %s9, 0
    %p123 = por %p121, %p122
    %p124 = scmp.ne.s32.totalorder %s113, %s116
    %p125 = scmp.eq.s32.totalorder %s14, 15
    %p126 = por %p124, %p125
    %p127 = scmp.ne.s32.totalorder %s116, %s117
    %p128 = scmp.eq.s32.totalorder %s14, 0
    %p129 = por %p127, %p128
    %p130 = scmp.ne.s32.totalorder %s116, %s117
    %p131 = scmp.eq.s32.totalorder %s15, 15
    %p132 = por %p130, %p131
    %p134 = scmp.ne.s32.totalorder %s117, %s133
    %p135 = scmp.eq.s32.totalorder %s15, 0
    %p136 = por %p134, %p135
    %p137 = scmp.le.s32.totalorder 1, %s9
    %p138 = scmp.lt.s32.totalorder %s9, 17
    %p139 = pnand %p137, %p138
    %p140 = pneg %p139
    // Predicated region
    $region9: #{decoder_forward.6} parent=5 // pred_check
      _
    $region10: #{decoder_forward.6} parent=5 // pred_check_branch
      %142 = sbr.rel (%p139) target = $region12
    $region11: #{decoder_forward.6} parent=5 // pred_region
      %s143 = ssub.s32 %s9, 1
    $region12: #{decoder_forward.6} parent=5 // pred_fallthru
      _
    %p144 = scmp.lt.s32.totalorder %s9, 16
    // Predicated region
    $region13: #{decoder_forward.6} parent=5 // pred_check
      %p145 = pneg %p144
    $region14: #{decoder_forward.6} parent=5 // pred_check_branch
      %147 = sbr.rel (%p145) target = $region16
    $region15: #{decoder_forward.6} parent=5 // pred_region
      // Predicated region
      $region17: #{decoder_forward.6} parent=15 // pred_check
        %p148 = pneg %p43
      $region18: #{decoder_forward.6} parent=15 // pred_check_branch
        %150 = sbr.rel (%p148) target = $region20
      $region19: #{decoder_forward.6} parent=15 // pred_region
        %p151 = scmp.lt.s32.totalorder %s16, 1
        %s152 = scalar_select %p151, %s16, 1
        %p153 = scmp.lt.s32.totalorder %s17, 7
        %s154 = scalar_select %p153, %s17, 7
        %s155 = smul.addr %s154, 4
        %s156 = smul.addr %s152, 32
        %s157 = sadd.s32 %s155, %s156
        %s158 = smul.addr %s157, 2
        %s159 = scalar_lea.vmem %s0, %s158
      $region20: #{decoder_forward.6} parent=15 // pred_fallthru
        _
      // Predicated region
      $region21: #{decoder_forward.6} parent=15 // pred_check
        %p160 = pneg %p69
      $region22: #{decoder_forward.6} parent=15 // pred_check_branch
        %162 = sbr.rel (%p160) target = $region24
      $region23: #{decoder_forward.6} parent=15 // pred_region
        %p163 = scmp.lt.s32.totalorder %s17, 7
        %s164 = scalar_select %p163, %s17, 7
        %s165 = smul.addr %s164, 2
        %s166 = scalar_lea.vmem %s1, %s165
      $region24: #{decoder_forward.6} parent=15 // pred_fallthru
        _
      // Predicated region
      $region25: #{decoder_forward.6} parent=15 // pred_check
        %p167 = pneg %p95
      $region26: #{decoder_forward.6} parent=15 // pred_check_branch
        %169 = sbr.rel (%p167) target = $region28
      $region27: #{decoder_forward.6} parent=15 // pred_region
        %p170 = scmp.lt.s32.totalorder %s17, 7
        %s171 = scalar_select %p170, %s17, 7
        %s172 = smul.addr %s171, 2
        %s173 = scalar_lea.vmem %s2, %s172
      $region28: #{decoder_forward.6} parent=15 // pred_fallthru
        _
    $region16: #{decoder_forward.6} parent=5 // pred_fallthru
      _
    %p174 = scmp.le.s32.totalorder 1, %s9
    %p175 = scmp.lt.s32.totalorder %s9, 17
    %p176 = pnand %p174, %p175
    %p177 = pneg %p176
    // Predicated region
    $region29: #{decoder_forward.6} parent=5 // pred_check
      _
    $region30: #{decoder_forward.6} parent=5 // pred_check_branch
      %179 = sbr.rel (%p176) target = $region32
    $region31: #{decoder_forward.6} parent=5 // pred_region
      %s180 = ssub.s32 %s9, 1
      %p181 = scmp.lt.s32.totalorder %s18, 1
      %s182 = scalar_select %p181, %s18, 1
      %p183 = scmp.lt.s32.totalorder %s19, 7
      %s184 = scalar_select %p183, %s19, 7
      %s185 = smul.addr %s184, 4
      %s186 = smul.addr %s182, 32
      %s187 = sadd.s32 %s185, %s186
      %s188 = smul.addr %s187, 2
      %s189 = scalar_lea.vmem %s0, %s188
      %p190 = pneg %p49
      %p191 = pneg %p46
      %p192 = scmp.lt.s32.totalorder %s19, 7
      %s193 = scalar_select %p192, %s19, 7
      %s194 = smul.addr %s193, 2
      %s195 = scalar_lea.vmem %s1, %s194
      %p196 = pneg %p75
      %p197 = pneg %p72
      %p198 = scmp.lt.s32.totalorder %s19, 7
      %s199 = scalar_select %p198, %s19, 7
      %s200 = smul.addr %s199, 2
      %s201 = scalar_lea.vmem %s2, %s200
      %p202 = pneg %p101
      %p203 = pneg %p98
      %p204 = pneg %p129
      %p205 = pneg %p126
      %p206 = scmp.lt.s32.totalorder %s18, 1
      %s207 = scalar_select %p206, %s18, 1
      %p208 = scmp.lt.s32.totalorder %s19, 7
      %s209 = scalar_select %p208, %s19, 7
      %s210 = smul.addr %s209, 4
      %s211 = smul.addr %s207, 32
      %s212 = sadd.s32 %s210, %s211
      %s213 = smul.addr %s212, 2
      %s214 = scalar_lea.vmem %s3, %s213
      %p215 = scmp.lt.s32.totalorder %s18, 1
      %s216 = scalar_select %p215, %s18, 1
      %p217 = scmp.lt.s32.totalorder %s19, 7
      %s218 = scalar_select %p217, %s19, 7
      %s219 = smul.addr %s218, 4
      %s220 = smul.addr %s216, 32
      %s221 = sadd.s32 %s219, %s220
      %s222 = smul.addr %s221, 2
      %s223 = scalar_lea.vmem %s0, %s222
      %p224 = scmp.lt.s32.totalorder %s19, 7
      %s225 = scalar_select %p224, %s19, 7
      %s226 = smul.addr %s225, 2
      %s227 = scalar_lea.vmem %s1, %s226
      %p228 = scmp.lt.s32.totalorder %s19, 7
      %s229 = scalar_select %p228, %s19, 7
      %s230 = smul.addr %s229, 2
      %s231 = scalar_lea.vmem %s2, %s230
      %p232 = scmp.lt.s32.totalorder %s18, 1
      %s233 = scalar_select %p232, %s18, 1
      %p234 = scmp.lt.s32.totalorder %s19, 7
      %s235 = scalar_select %p234, %s19, 7
      %s236 = smul.addr %s235, 4
      %s237 = smul.addr %s233, 32
      %s238 = sadd.s32 %s236, %s237
      %s239 = smul.addr %s238, 2
      %s240 = scalar_lea.vmem %s3, %s239
      %v241 = vld [vmem:[%s223] sm:$0xff]
      %v243 = vcombine.high %v241, %v241
      %v245 = vunpack.c.l.s4 1983009808
      %v246 = vunpack.c.0.s8 %v245
      %v247 = vlaneseq
      %v248 = vshrl.u32 %v247, 7
      %v249 = vsub.s32 %v246, %v248
      %v250 = vrot.slane %v241, %v249
      %v252 = vunpack.c.l.s4 1983009808
      %v253 = vunpack.c.0.s8 %v252
      %v254 = vlaneseq
      %v255 = vshrl.u32 %v254, 7
      %v256 = vsub.s32 %v253, %v255
      %v257 = vrot.slane %v243, %v256
      %v258 = vcombine.high %v250, %v250
      %v259 = vcombine.high %v257, %v257
      %vm264 = vcmask 1041408
      %v265 = vsel %vm264, %v250, 0.0
      %v266 = vsel %vm264, %v258, 0.0
      %v267 = vadd.f32 %v265, %v266
      %v268 = vsel %vm264, %v257, 0.0
      %v269 = vadd.f32 %v267, %v268
      %v270 = vsel %vm264, %v259, 0.0
      %v271 = vadd.f32 %v269, %v270
      %272 = vadd.xlane.f32.xlu0 %v271
      %v273 = vpop.xlane.xlu0 %272
      %v274 = vrot.slane %v273, 4
      %v275 = vadd.f32 %v273, %v274
      %v276 = vrot.slane %v275, 2
      %v277 = vadd.f32 %v275, %v276
      %v278 = vrot.slane %v277, 1
      %v279 = vadd.f32 %v277, %v278
      %v280 = vrcp.pop 1024.0
      %v281 = vmul.f32 %v279, %v280
      %v282 = vsub.f32 %v241, %v281
      %v283 = vmul.f32 %v282, %v282
      %v285 = vcombine.high %v283, %v283
      %v287 = vunpack.c.l.s4 1983009808
      %v288 = vunpack.c.0.s8 %v287
      %v289 = vlaneseq
      %v290 = vshrl.u32 %v289, 7
      %v291 = vsub.s32 %v288, %v290
      %v292 = vrot.slane %v283, %v291
      %v294 = vunpack.c.l.s4 1983009808
      %v295 = vunpack.c.0.s8 %v294
      %v296 = vlaneseq
      %v297 = vshrl.u32 %v296, 7
      %v298 = vsub.s32 %v295, %v297
      %v299 = vrot.slane %v285, %v298
      %v300 = vcombine.high %v292, %v292
      %v301 = vcombine.high %v299, %v299
      %v306 = vsel %vm264, %v292, 0.0
      %v307 = vsel %vm264, %v300, 0.0
      %v308 = vadd.f32 %v306, %v307
      %v309 = vsel %vm264, %v299, 0.0
      %v310 = vadd.f32 %v308, %v309
      %v311 = vsel %vm264, %v301, 0.0
      %v312 = vadd.f32 %v310, %v311
      %313 = vadd.xlane.f32.xlu0 %v312
      %v314 = vpop.xlane.xlu0 %313
      %v315 = vrot.slane %v314, 4
      %v316 = vadd.f32 %v314, %v315
      %v317 = vrot.slane %v316, 2
      %v318 = vadd.f32 %v316, %v317
      %v319 = vrot.slane %v318, 1
      %v320 = vadd.f32 %v318, %v319
      %v321 = vmul.f32 %v320, %v280
      %v322 = vadd.f32 %v321, 1e-05
      %v323 = vrsqrt.pop %v322
      %v324 = vmul.f32 %v282, %v323
      %v325 = vld [vmem:[%s227] sm:$0x3]
      %327 = vset.pattern.permute.xlu0 0
      %328 = vperm.xlu0 %327, %v325
      %v329 = vpop.permute.xlu0 %328
      %v331 = vunpack.c.l.s4 269488144
      %v332 = vunpack.c.0.s8 %v331
      %v333 = vlaneseq
      %v334 = vshrl.u32 %v333, 7
      %v335 = vsub.s32 %v332, %v334
      %v336 = vrot.slane %v329, %v335
      %v338 = vmul.f32 %v324, %v336
      %v339 = vld [vmem:[%s231] sm:$0x3]
      %341 = vset.pattern.permute.xlu0 0
      %342 = vperm.xlu0 %341, %v339
      %v343 = vpop.permute.xlu0 %342
      %v345 = vunpack.c.l.s4 269488144
      %v346 = vunpack.c.0.s8 %v345
      %v347 = vlaneseq
      %v348 = vshrl.u32 %v347, 7
      %v349 = vsub.s32 %v346, %v348
      %v350 = vrot.slane %v343, %v349
      %v352 = vadd.f32 %v338, %v350
      %353 = vst [vmem:[%s240] sm:$0xff] %v352
      %p354 = scmp.lt.s32.totalorder %s18, 1
      %s355 = scalar_select %p354, %s18, 1
      %p356 = scmp.lt.s32.totalorder %s19, 7
      %s357 = scalar_select %p356, %s19, 7
      %s358 = smul.addr %s357, 4
      %s359 = smul.addr %s355, 32
      %s360 = sadd.s32 %s358, %s359
      %s361 = smul.addr %s360, 2
      %s362 = scalar_lea.vmem %s3, %s361
      // Predicated region
      $region33: #{decoder_forward.6} parent=31 // pred_check
        %p363 = pneg %p126
      $region34: #{decoder_forward.6} parent=31 // pred_check_branch
        %365 = sbr.rel (%p363) target = $region36
      $region35: #{decoder_forward.6} parent=31 // pred_region
        _
      $region36: #{decoder_forward.6} parent=31 // pred_fallthru
        _
    $region32: #{decoder_forward.6} parent=5 // pred_fallthru
      _
    %p366 = scmp.le.s32.totalorder 2, %s9
    // Predicated region
    $region37: #{decoder_forward.6} parent=5 // pred_check
      %p367 = pneg %p366
    $region38: #{decoder_forward.6} parent=5 // pred_check_branch
      %369 = sbr.rel (%p367) target = $region40
    $region39: #{decoder_forward.6} parent=5 // pred_region
      %s370 = ssub.s32 %s9, 2
      // Predicated region
      $region41: #{decoder_forward.6} parent=39 // pred_check
        %p371 = pneg %p132
      $region42: #{decoder_forward.6} parent=39 // pred_check_branch
        %373 = sbr.rel (%p371) target = $region44
      $region43: #{decoder_forward.6} parent=39 // pred_region
        %p374 = scmp.lt.s32.totalorder %s20, 1
        %s375 = scalar_select %p374, %s20, 1
        %p376 = scmp.lt.s32.totalorder %s21, 7
        %s377 = scalar_select %p376, %s21, 7
        %s378 = smul.addr %s377, 4
        %s379 = smul.addr %s375, 32
        %s380 = sadd.s32 %s378, %s379
        %s381 = smul.addr %s380, 2
        %s382 = scalar_lea.vmem %s3, %s381
      $region44: #{decoder_forward.6} parent=39 // pred_fallthru
        _
    $region40: #{decoder_forward.6} parent=5 // pred_fallthru
      _
  $region6: #{decoder_forward.6} parent=0 // loop_footer
    %s13 = sadd.s32 1, %s9
  $region7: #{decoder_forward.6} parent=0 // loop_footer_branch
    %8 = sbr.rel target = $region3
  $region8: #{decoder_forward.6} parent=0 // loop_exit
    _

// kernel: decoder_forward.7
$region0: #{decoder_forward.7}
  #allocation0 [shape = 'u32[]', space=smem, size = 0x4, offset = 0x4, fixed_abs, tag = 'smem constant byte address 0x4 - core index']
  #allocation1 [shape = 'u32[144,128]{1,0:T(1,128)}', space=vmem, size = 0x12000, scoped, tag = 'internal scratch']
  %s0 = inlined_call_operand.vmem [shape: bf16[16,2560], index: 0, kind: input, shape index: {}, may-alias: {0,1}]
  %s1 = inlined_call_operand.vmem [shape: bf16[16,2560], index: 1, kind: input, shape index: {}, may-alias: {0,1}]
  %s2 = inlined_call_operand.vmem [shape: bf16[27,8,16], index: 2, kind: input, shape index: {}]
  %s3 = inlined_call_operand.vmem [shape: f32[8,2048], index: 3, kind: output, shape index: {}]
  %s4 = sld [smem:[#allocation0]]
  $region91: #{decoder_forward.7} parent=0
    _
  %s6 = ssub.s32 1, %s4
  %s7 = scalar_select 0, %s6, %s4
  $region1: #{decoder_forward.7} parent=0
    #allocation2 [shape = 'u8[32768]{0}', space=vmem, size = 0x8000, scoped, tag = 'input window, operand 0']
    #allocation3 [shape = 'u8[32768]{0}', space=vmem, size = 0x8000, scoped, tag = 'input window, operand 1']
    loop: start=0, step=1, limit=6
    $region2: #{decoder_forward.7} parent=1 // loop_pre_header
      _
    $region3: #{decoder_forward.7} parent=1 // loop_header
      %s9 = sphi 0, %s13
      %p10 = scmp.ge.s32.totalorder %s9, 6
      %s19 = sphi 0, %s21
      %s22 = sphi 0, %s19
      %s23 = sphi 0, %s22
      %s39 = sphi 0, %s23
      %s47 = sphi 0, %s49
      %s50 = sphi 0, %s47
      %s51 = sphi 0, %s50
      %s67 = sphi 0, %s51
      %s71 = sphi 0, %s71
      %s73 = sphi 0, %s71
      %s74 = sphi 0, %s73
      %s88 = sphi 0, %s74
      %s94 = sphi 0, %s96
      %s97 = sphi 0, %s94
      %s98 = sphi 0, %s97
      %s114 = sphi 0, %s98
    $region4: #{decoder_forward.7} parent=1 // loop_header_branch
      %12 = sbr.rel (%p10) target = $region8
    $region5: #{decoder_forward.7} parent=1 // loop_body
      %s14 = ssub.s32 %s9, 1
      %s15 = ssub.s32 %s9, 2
      %s16 = sadd.s32 %s9, 1
      %s17 = ssub.s32 %s9, %s16
      %p18 = scmp.eq.s32.totalorder %s17, 0
      %s20 = sadd.s32 %s19, 1
      %s21 = scalar_select %p18, %s19, %s20
      %p24 = pneg %p18
      %p25 = scmp.eq.s32.totalorder %s9, 3
      %p26 = por %p24, %p25
      %p27 = scmp.ne.s32.totalorder %s19, %s22
      %p28 = scmp.eq.s32.totalorder %s9, 0
      %p29 = por %p27, %p28
      %p30 = scmp.ne.s32.totalorder %s19, %s22
      %p31 = scmp.eq.s32.totalorder %s14, 3
      %p32 = por %p30, %p31
      %p33 = scmp.ne.s32.totalorder %s22, %s23
      %p34 = scmp.eq.s32.totalorder %s14, 0
      %p35 = por %p33, %p34
      %p36 = scmp.ne.s32.totalorder %s22, %s23
      %p37 = scmp.eq.s32.totalorder %s15, 3
      %p38 = por %p36, %p37
      %p40 = scmp.ne.s32.totalorder %s23, %s39
      %p41 = scmp.eq.s32.totalorder %s15, 0
      %p42 = por %p40, %p41
      %s43 = sadd.s32 %s9, 1
      %s44 = sadd.s32 %s16, 1
      %s45 = ssub.s32 %s43, %s44
      %p46 = scmp.eq.s32.totalorder %s45, 0
      %s48 = sadd.s32 %s47, 1
      %s49 = scalar_select %p46, %s47, %s48
      %p52 = pneg %p46
      %p53 = scmp.eq.s32.totalorder %s9, 3
      %p54 = por %p52, %p53
      %p55 = scmp.ne.s32.totalorder %s47, %s50
      %p56 = scmp.eq.s32.totalorder %s9, 0
      %p57 = por %p55, %p56
      %p58 = scmp.ne.s32.totalorder %s47, %s50
      %p59 = scmp.eq.s32.totalorder %s14, 3
      %p60 = por %p58, %p59
      %p61 = scmp.ne.s32.totalorder %s50, %s51
      %p62 = scmp.eq.s32.totalorder %s14, 0
      %p63 = por %p61, %p62
      %p64 = scmp.ne.s32.totalorder %s50, %s51
      %p65 = scmp.eq.s32.totalorder %s15, 3
      %p66 = por %p64, %p65
      %p68 = scmp.ne.s32.totalorder %s51, %s67
      %p69 = scmp.eq.s32.totalorder %s15, 0
      %p70 = por %p68, %p69
      %s72 = sadd.s32 %s71, 1
      %p75 = scmp.eq.s32.totalorder %s9, 3
      %p76 = scmp.ne.s32.totalorder %s71, %s73
      %p77 = scmp.eq.s32.totalorder %s9, 0
      %p78 = por %p76, %p77
      %p79 = scmp.ne.s32.totalorder %s71, %s73
      %p80 = scmp.eq.s32.totalorder %s14, 3
      %p81 = por %p79, %p80
      %p82 = scmp.ne.s32.totalorder %s73, %s74
      %p83 = scmp.eq.s32.totalorder %s14, 0
      %p84 = por %p82, %p83
      %p85 = scmp.ne.s32.totalorder %s73, %s74
      %p86 = scmp.eq.s32.totalorder %s15, 3
      %p87 = por %p85, %p86
      %p89 = scmp.ne.s32.totalorder %s74, %s88
      %p90 = scmp.eq.s32.totalorder %s15, 0
      %p91 = por %p89, %p90
      %s92 = ssub.s32 %s9, %s16
      %p93 = scmp.eq.s32.totalorder %s92, 0
      %s95 = sadd.s32 %s94, 1
      %s96 = scalar_select %p93, %s94, %s95
      %p99 = pneg %p93
      %p100 = scmp.eq.s32.totalorder %s9, 3
      %p101 = por %p99, %p100
      %p102 = scmp.ne.s32.totalorder %s94, %s97
      %p103 = scmp.eq.s32.totalorder %s9, 0
      %p104 = por %p102, %p103
      %p105 = scmp.ne.s32.totalorder %s94, %s97
      %p106 = scmp.eq.s32.totalorder %s14, 3
      %p107 = por %p105, %p106
      %p108 = scmp.ne.s32.totalorder %s97, %s98
      %p109 = scmp.eq.s32.totalorder %s14, 0
      %p110 = por %p108, %p109
      %p111 = scmp.ne.s32.totalorder %s97, %s98
      %p112 = scmp.eq.s32.totalorder %s15, 3
      %p113 = por %p111, %p112
      %p115 = scmp.ne.s32.totalorder %s98, %s114
      %p116 = scmp.eq.s32.totalorder %s15, 0
      %p117 = por %p115, %p116
      %p118 = scmp.le.s32.totalorder 1, %s9
      %p119 = scmp.lt.s32.totalorder %s9, 5
      %p120 = pnand %p118, %p119
      %p121 = pneg %p120
      // Predicated region
      $region9: #{decoder_forward.7} parent=5 // pred_check
        _
      $region10: #{decoder_forward.7} parent=5 // pred_check_branch
        %123 = sbr.rel (%p120) target = $region12
      $region11: #{decoder_forward.7} parent=5 // pred_region
        %s124 = ssub.s32 %s9, 1
        // Predicated region
        $region13: #{decoder_forward.7} parent=11 // pred_check
          %p125 = pneg %p84
        $region14: #{decoder_forward.7} parent=11 // pred_check_branch
          %127 = sbr.rel (%p125) target = $region16
        $region15: #{decoder_forward.7} parent=11 // pred_region
          _
        $region16: #{decoder_forward.7} parent=11 // pred_fallthru
          _
      $region12: #{decoder_forward.7} parent=5 // pred_fallthru
        _
      %p128 = scmp.lt.s32.totalorder %s9, 4
      // Predicated region
      $region17: #{decoder_forward.7} parent=5 // pred_check
        %p129 = pneg %p128
      $region18: #{decoder_forward.7} parent=5 // pred_check_branch
        %131 = sbr.rel (%p129) target = $region20
      $region19: #{decoder_forward.7} parent=5 // pred_region
        // Predicated region
        $region21: #{decoder_forward.7} parent=19 // pred_check
          %p132 = pneg %p29
        $region22: #{decoder_forward.7} parent=19 // pred_check_branch
          %134 = sbr.rel (%p132) target = $region24
        $region23: #{decoder_forward.7} parent=19 // pred_region
          %s135 = sand.u32 %s19, 1
          %s136 = sand.u32 %s19, 1
          %s137 = smul.addr %s136, 32
          %s138 = scalar_lea.vmem [#allocation2], %s137
          %s139 = smul.u32 4, %s9
          %s140 = smul.addr %s139, 4
          %s141 = scalar_lea.vmem %s0, %s140
          // Predicated region
          $region25: #{decoder_forward.7} parent=23 // pred_check
            _
          $region26: #{decoder_forward.7} parent=23 // pred_check_branch
            %143 = sbr.rel (0) target = $region28
          $region27: #{decoder_forward.7} parent=23 // pred_region
            // Predicated region
            $region29: #{decoder_forward.7} parent=27 // pred_check
              _
            $region30: #{decoder_forward.7} parent=27 // pred_check_branch
              %145 = sbr.rel (0) target = $region32
            $region31: #{decoder_forward.7} parent=27 // pred_region
              loop: start=0, step=1, limit=1
              $region33: #{decoder_forward.7} parent=31 // loop_pre_header
                _
              $region34: #{decoder_forward.7} parent=31 // loop_header
                %s147 = sphi 0, %s151
                %p148 = scmp.ge.s32.totalorder %s147, 1
                %s152 = sphi %s141, %s141
                %s153 = sphi %s138, %s138
              $region35: #{decoder_forward.7} parent=31 // loop_header_branch
                %150 = sbr.rel (%p148) target = $region39
              $region36: #{decoder_forward.7} parent=31 // loop_body
                %v154 = vld [vmem:[%s152] sm:$0xff]
                %155 = vst [vmem:[%s153] sm:$0xff] %v154
                %v156 = vld [vmem:[%s152 + $0x8] sm:$0xff]
                %157 = vst [vmem:[%s153 + $0x8] sm:$0xff] %v156
                %v158 = vld [vmem:[%s152 + $0x50] sm:$0xff]
                %159 = vst [vmem:[%s153 + $0x10] sm:$0xff] %v158
                %v160 = vld [vmem:[%s152 + $0x58] sm:$0xff]
                %161 = vst [vmem:[%s153 + $0x18] sm:$0xff] %v160
              $region37: #{decoder_forward.7} parent=31 // loop_footer
                %s151 = sadd.s32 1, %s147
              $region38: #{decoder_forward.7} parent=31 // loop_footer_branch
                %146 = sbr.rel target = $region34
              $region39: #{decoder_forward.7} parent=31 // loop_exit
                _
            $region32: #{decoder_forward.7} parent=27 // pred_fallthru
              _
            // Predicated region
            $region40: #{decoder_forward.7} parent=27 // pred_check
              _
            $region41: #{decoder_forward.7} parent=27 // pred_check_branch
              %163 = sbr.rel target = $region43
            $region42: #{decoder_forward.7} parent=27 // pred_region
              _
            $region43: #{decoder_forward.7} parent=27 // pred_fallthru
              _
          $region28: #{decoder_forward.7} parent=23 // pred_fallthru
            _
          %164 = vnop
        $region24: #{decoder_forward.7} parent=19 // pred_fallthru
          _
        // Predicated region
        $region44: #{decoder_forward.7} parent=19 // pred_check
          %p165 = pneg %p57
        $region45: #{decoder_forward.7} parent=19 // pred_check_branch
          %167 = sbr.rel (%p165) target = $region47
        $region46: #{decoder_forward.7} parent=19 // pred_region
          %s168 = sand.u32 %s47, 1
          %s169 = sand.u32 %s47, 1
          %s170 = smul.addr %s169, 32
          %s171 = scalar_lea.vmem [#allocation3], %s170
          %s172 = sadd.s32 %s9, 1
          %s173 = smul.u32 4, %s172
          %s174 = smul.addr %s173, 4
          %s175 = scalar_lea.vmem %s1, %s174
          // Predicated region
          $region48: #{decoder_forward.7} parent=46 // pred_check
            _
          $region49: #{decoder_forward.7} parent=46 // pred_check_branch
            %177 = sbr.rel (0) target = $region51
          $region50: #{decoder_forward.7} parent=46 // pred_region
            // Predicated region
            $region52: #{decoder_forward.7} parent=50 // pred_check
              _
            $region53: #{decoder_forward.7} parent=50 // pred_check_branch
              %179 = sbr.rel (0) target = $region55
            $region54: #{decoder_forward.7} parent=50 // pred_region
              loop: start=0, step=1, limit=1
              $region56: #{decoder_forward.7} parent=54 // loop_pre_header
                _
              $region57: #{decoder_forward.7} parent=54 // loop_header
                %s181 = sphi 0, %s185
                %p182 = scmp.ge.s32.totalorder %s181, 1
                %s186 = sphi %s175, %s175
                %s187 = sphi %s171, %s171
              $region58: #{decoder_forward.7} parent=54 // loop_header_branch
                %184 = sbr.rel (%p182) target = $region62
              $region59: #{decoder_forward.7} parent=54 // loop_body
                %v188 = vld [vmem:[%s186] sm:$0xff]
                %189 = vst [vmem:[%s187] sm:$0xff] %v188
                %v190 = vld [vmem:[%s186 + $0x8] sm:$0xff]
                %191 = vst [vmem:[%s187 + $0x8] sm:$0xff] %v190
                %v192 = vld [vmem:[%s186 + $0x50] sm:$0xff]
                %193 = vst [vmem:[%s187 + $0x10] sm:$0xff] %v192
                %v194 = vld [vmem:[%s186 + $0x58] sm:$0xff]
                %195 = vst [vmem:[%s187 + $0x18] sm:$0xff] %v194
              $region60: #{decoder_forward.7} parent=54 // loop_footer
                %s185 = sadd.s32 1, %s181
              $region61: #{decoder_forward.7} parent=54 // loop_footer_branch
                %180 = sbr.rel target = $region57
              $region62: #{decoder_forward.7} parent=54 // loop_exit
                _
            $region55: #{decoder_forward.7} parent=50 // pred_fallthru
              _
            // Predicated region
            $region63: #{decoder_forward.7} parent=50 // pred_check
              _
            $region64: #{decoder_forward.7} parent=50 // pred_check_branch
              %197 = sbr.rel target = $region66
            $region65: #{decoder_forward.7} parent=50 // pred_region
              _
            $region66: #{decoder_forward.7} parent=50 // pred_fallthru
              _
          $region51: #{decoder_forward.7} parent=46 // pred_fallthru
            _
          %198 = vnop
        $region47: #{decoder_forward.7} parent=19 // pred_fallthru
          _
      $region20: #{decoder_forward.7} parent=5 // pred_fallthru
        _
      %p199 = scmp.le.s32.totalorder 1, %s9
      %p200 = scmp.lt.s32.totalorder %s9, 5
      %p201 = pnand %p199, %p200
      %p202 = pneg %p201
      // Predicated region
      $region67: #{decoder_forward.7} parent=5 // pred_check
        _
      $region68: #{decoder_forward.7} parent=5 // pred_check_branch
        %204 = sbr.rel (%p201) target = $region70
      $region69: #{decoder_forward.7} parent=5 // pred_region
        %s205 = ssub.s32 %s9, 1
        %s206 = sand.u32 %s22, 1
        %s207 = sand.u32 %s22, 1
        %s208 = smul.addr %s207, 32
        %s209 = scalar_lea.vmem [#allocation2], %s208
        // Predicated region
        $region71: #{decoder_forward.7} parent=69 // pred_check
          %p210 = pneg %p35
        $region72: #{decoder_forward.7} parent=69 // pred_check_branch
          %212 = sbr.rel (%p210) target = $region74
        $region73: #{decoder_forward.7} parent=69 // pred_region
          _
        $region74: #{decoder_forward.7} parent=69 // pred_fallthru
          _
        %s213 = sand.u32 %s50, 1
        %s214 = sand.u32 %s50, 1
        %s215 = smul.addr %s214, 32
        %s216 = scalar_lea.vmem [#allocation3], %s215
        // Predicated region
        $region75: #{decoder_forward.7} parent=69 // pred_check
          %p217 = pneg %p63
        $region76: #{decoder_forward.7} parent=69 // pred_check_branch
          %219 = sbr.rel (%p217) target = $region78
        $region77: #{decoder_forward.7} parent=69 // pred_region
          _
        $region78: #{decoder_forward.7} parent=69 // pred_fallthru
          _
        %s220 = sand.u32 %s22, 1
        %s221 = sand.u32 %s22, 1
        %s222 = smul.addr %s221, 32
        %s223 = scalar_lea.vmem [#allocation2], %s222
        %p224 = pneg %p35
        %p225 = pneg %p32
        %s226 = sand.u32 %s50, 1
        %s227 = sand.u32 %s50, 1
        %s228 = smul.addr %s227, 32
        %s229 = scalar_lea.vmem [#allocation3], %s228
        %p230 = pneg %p63
        %p231 = pneg %p60
        %p232 = pneg %p84
        %p233 = pneg %p81
        %p234 = pneg %p110
        %p235 = pneg %p107
        %s236 = smul.u32 4, %s14
        %p237 = scmp.lt.s32.totalorder %s236, 15
        %s238 = scalar_select %p237, %s236, 15
        %s239 = smul.addr %s238, 8
        %s240 = scalar_lea.vmem %s3, %s239
        %s241 = smul.u32 4, %s14
        %s242 = sadd.s32 %s14, 1
        %s243 = smul.u32 4, %s242
        %s244 = smul.u32 4, %s14
        %p245 = scmp.lt.s32.totalorder %s244, 15
        %s246 = scalar_select %p245, %s244, 15
        %s247 = smul.addr %s246, 8
        %s248 = scalar_lea.vmem %s3, %s247
        %s249 = smul.u32 4, %s14
        %v251 = vld [vmem:[%s209] sm:$0xff]
        %v252 = vld [vmem:[%s209 + $0x8] sm:$0xff]
        %v253 = vld [vmem:[%s209 + $0x10] sm:$0xff]
        %v254 = vld [vmem:[%s209 + $0x18] sm:$0xff]
        %v255 = vld [vmem:[%s216] sm:$0xff]
        %v256 = vld [vmem:[%s216 + $0x10] sm:$0xff]
        %v261 = vunpack.c.l.b16 %v251
        %v262 = vunpack.c.h.b16 %v251
        %v263 = vunpack.c.l.b16 %v252
        %v264 = vunpack.c.h.b16 %v252
        %v265 = vunpack.c.l.b16 %v253
        %v266 = vunpack.c.h.b16 %v253
        %v267 = vunpack.c.l.b16 %v254
        %v268 = vunpack.c.h.b16 %v254
        %v269 = vpack.c.b16 %v265, %v261
        %v270 = vpack.c.b16 %v266, %v262
        %v271 = vpack.c.b16 %v267, %v263
        %v272 = vpack.c.b16 %v268, %v264
        %v279 = vunpack.c.l.b16 %v255
        %v280 = vunpack.c.h.b16 %v255
        %v281 = vunpack.c.l.b16 %v256
        %v282 = vunpack.c.h.b16 %v256
        %v283 = vpack.c.b16 %v281, %v279
        %v284 = vpack.c.b16 %v282, %v280
        %v285 = vld [vmem:[%s2] sm:$0xf]
        %s286 = scalar_lea.vmem %s2, 4
        %v287 = vld [vmem:[%s286] sm:$0xf]
        %288 = vrot.lane.b32.xlu0 %v269, 127
        %v289 = vpop.permute.xlu0 %288
        %290 = vrot.lane.b32.xlu0 %v270, 127
        %v291 = vpop.permute.xlu0 %290
        %292 = vrot.lane.b32.xlu0 %v271, 127
        %v293 = vpop.permute.xlu0 %292
        %294 = vrot.lane.b32.xlu0 %v272, 127
        %v295 = vpop.permute.xlu0 %294
        %296 = vrot.lane.b32.xlu0 %v283, 127
        %v297 = vpop.permute.xlu0 %296
        %vm298 = vcmask 1039360
        %v299 = vsel %vm298, %v289, %v291
        %v300 = vsel %vm298, %v291, %v293
        %v301 = vsel %vm298, %v293, %v295
        %v302 = vsel %vm298, %v295, %v297
        %vm307 = vcmask 130048
        %v309 = vsel %vm307, %v287, 0
        %311 = vmatprep.subr.bf16.mxu0 0
        %312 = vmatpush1.bf16.msra.mxu0 0
        %313 = vmatprep.subr.bf16.mxu0 0
        %314 = vmatpush1.bf16.msra.mxu0 0
        %315 = vmatprep.subr.bf16.mxu0 0
        %316 = vmatpush1.bf16.msra.mxu0 0
        %317 = vmatprep.subr.bf16.mxu0 0
        %318 = vmatpush1.bf16.msra.mxu0 0
        %319 = vmatprep.subr.bf16.mxu0 0
        %320 = vmatpush1.bf16.msra.mxu0 0
        %321 = vmatprep.subr.bf16.mxu0 0
        %322 = vmatpush1.bf16.msra.mxu0 0
        %323 = vmatprep.subr.bf16.mxu0 0
        %324 = vmatpush1.bf16.msra.mxu0 0
        %325 = vmatprep.subr.bf16.mxu0 %v300
        %326 = vmatpush1.bf16.msra.mxu0 %v299
        %327 = vmatprep.subr.bf16.mxu0 0
        %328 = vmatpush2.bf16.msra.mxu0 0
        %329 = vmatprep.subr.bf16.mxu0 0
        %330 = vmatpush2.bf16.msra.mxu0 0
        %331 = vmatprep.subr.bf16.mxu0 0
        %332 = vmatpush2.bf16.msra.mxu0 0
        %333 = vmatprep.subr.bf16.mxu0 0
        %334 = vmatpush2.bf16.msra.mxu0 0
        %335 = vmatprep.subr.bf16.mxu0 0
        %336 = vmatpush2.bf16.msra.mxu0 0
        %337 = vmatprep.subr.bf16.mxu0 0
        %338 = vmatpush2.bf16.msra.mxu0 0
        %339 = vmatprep.subr.bf16.mxu0 0
        %340 = vmatpush2.bf16.msra.mxu0 0
        %341 = vmatprep.subr.bf16.mxu0 0
        %342 = vmatpush2.bf16.msra.mxu0 0
        %343 = vmatprep.mubr.bf16.mxu0 0
        %344 = vmatmul.mubr.bf16.gmra.mxu0 %v309
        %v345 = vpop.f32.mrf.mxu0
        %v346 = vadd.f32 0.0, %v345
        %v347 = vpop.f32.mrf.mxu0
        %v348 = vadd.f32 0.0, %v347
        %v349 = vpop.f32.mrf.mxu0
        %v350 = vpop.f32.mrf.mxu0
        %351 = vdwg.mxu0
        %352 = vmatprep.subr.bf16.mxu0 0
        %353 = vmatpush1.bf16.msra.mxu0 0
        %354 = vmatprep.subr.bf16.mxu0 0
        %355 = vmatpush1.bf16.msra.mxu0 0
        %356 = vmatprep.subr.bf16.mxu0 0
        %357 = vmatpush1.bf16.msra.mxu0 0
        %358 = vmatprep.subr.bf16.mxu0 0
        %359 = vmatpush1.bf16.msra.mxu0 0
        %360 = vmatprep.subr.bf16.mxu0 0
        %361 = vmatpush1.bf16.msra.mxu0 0
        %362 = vmatprep.subr.bf16.mxu0 0
        %363 = vmatpush1.bf16.msra.mxu0 0
        %364 = vmatprep.subr.bf16.mxu0 0
        %365 = vmatpush1.bf16.msra.mxu0 0
        %366 = vmatprep.subr.bf16.mxu0 %v302
        %367 = vmatpush1.bf16.msra.mxu0 %v301
        %368 = vmatprep.subr.bf16.mxu0 0
        %369 = vmatpush2.bf16.msra.mxu0 0
        %370 = vmatprep.subr.bf16.mxu0 0
        %371 = vmatpush2.bf16.msra.mxu0 0
        %372 = vmatprep.subr.bf16.mxu0 0
        %373 = vmatpush2.bf16.msra.mxu0 0
        %374 = vmatprep.subr.bf16.mxu0 0
        %375 = vmatpush2.bf16.msra.mxu0 0
        %376 = vmatprep.subr.bf16.mxu0 0
        %377 = vmatpush2.bf16.msra.mxu0 0
        %378 = vmatprep.subr.bf16.mxu0 0
        %379 = vmatpush2.bf16.msra.mxu0 0
        %380 = vmatprep.subr.bf16.mxu0 0
        %381 = vmatpush2.bf16.msra.mxu0 0
        %382 = vmatprep.subr.bf16.mxu0 0
        %383 = vmatpush2.bf16.msra.mxu0 0
        %384 = vmatprep.mubr.bf16.mxu0 0
        %385 = vmatmul.mubr.bf16.gmra.mxu0 %v309
        %v386 = vpop.f32.mrf.mxu0
        %v387 = vadd.f32 0.0, %v386
        %v388 = vpop.f32.mrf.mxu0
        %v389 = vadd.f32 0.0, %v388
        %v390 = vpop.f32.mrf.mxu0
        %v391 = vpop.f32.mrf.mxu0
        %392 = vdwg.mxu0
        %v394 = vsel %vm307, %v285, 0
        %396 = vmatprep.subr.bf16.mxu0 0
        %397 = vmatpush1.bf16.msra.mxu0 0
        %398 = vmatprep.subr.bf16.mxu0 0
        %399 = vmatpush1.bf16.msra.mxu0 0
        %400 = vmatprep.subr.bf16.mxu0 0
        %401 = vmatpush1.bf16.msra.mxu0 0
        %402 = vmatprep.subr.bf16.mxu0 0
        %403 = vmatpush1.bf16.msra.mxu0 0
        %404 = vmatprep.subr.bf16.mxu0 0
        %405 = vmatpush1.bf16.msra.mxu0 0
        %406 = vmatprep.subr.bf16.mxu0 0
        %407 = vmatpush1.bf16.msra.mxu0 0
        %408 = vmatprep.subr.bf16.mxu0 0
        %409 = vmatpush1.bf16.msra.mxu0 0
        %410 = vmatprep.subr.bf16.mxu0 %v270
        %411 = vmatpush1.bf16.msra.mxu0 %v269
        %412 = vmatprep.subr.bf16.mxu0 0
        %413 = vmatpush2.bf16.msra.mxu0 0
        %414 = vmatprep.subr.bf16.mxu0 0
        %415 = vmatpush2.bf16.msra.mxu0 0
        %416 = vmatprep.subr.bf16.mxu0 0
        %417 = vmatpush2.bf16.msra.mxu0 0
        %418 = vmatprep.subr.bf16.mxu0 0
        %419 = vmatpush2.bf16.msra.mxu0 0
        %420 = vmatprep.subr.bf16.mxu0 0
        %421 = vmatpush2.bf16.msra.mxu0 0
        %422 = vmatprep.subr.bf16.mxu0 0
        %423 = vmatpush2.bf16.msra.mxu0 0
        %424 = vmatprep.subr.bf16.mxu0 0
        %425 = vmatpush2.bf16.msra.mxu0 0
        %426 = vmatprep.subr.bf16.mxu0 0
        %427 = vmatpush2.bf16.msra.mxu0 0
        %428 = vmatprep.mubr.bf16.mxu0 0
        %429 = vmatmul.mubr.bf16.gmra.mxu0 %v394
        %v430 = vpop.f32.mrf.mxu0
        %v431 = vadd.f32 %v346, %v430
        %v432 = vpop.f32.mrf.mxu0
        %v433 = vadd.f32 %v348, %v432
        %v434 = vpop.f32.mrf.mxu0
        %v435 = vpop.f32.mrf.mxu0
        %436 = vdwg.mxu0
        %437 = vmatprep.subr.bf16.mxu0 0
        %438 = vmatpush1.bf16.msra.mxu0 0
        %439 = vmatprep.subr.bf16.mxu0 0
        %440 = vmatpush1.bf16.msra.mxu0 0
        %441 = vmatprep.subr.bf16.mxu0 0
        %442 = vmatpush1.bf16.msra.mxu0 0
        %443 = vmatprep.subr.bf16.mxu0 0
        %444 = vmatpush1.bf16.msra.mxu0 0
        %445 = vmatprep.subr.bf16.mxu0 0
        %446 = vmatpush1.bf16.msra.mxu0 0
        %447 = vmatprep.subr.bf16.mxu0 0
        %448 = vmatpush1.bf16.msra.mxu0 0
        %449 = vmatprep.subr.bf16.mxu0 0
        %450 = vmatpush1.bf16.msra.mxu0 0
        %451 = vmatprep.subr.bf16.mxu0 %v272
        %452 = vmatpush1.bf16.msra.mxu0 %v271
        %453 = vmatprep.subr.bf16.mxu0 0
        %454 = vmatpush2.bf16.msra.mxu0 0
        %455 = vmatprep.subr.bf16.mxu0 0
        %456 = vmatpush2.bf16.msra.mxu0 0
        %457 = vmatprep.subr.bf16.mxu0 0
        %458 = vmatpush2.bf16.msra.mxu0 0
        %459 = vmatprep.subr.bf16.mxu0 0
        %460 = vmatpush2.bf16.msra.mxu0 0
        %461 = vmatprep.subr.bf16.mxu0 0
        %462 = vmatpush2.bf16.msra.mxu0 0
        %463 = vmatprep.subr.bf16.mxu0 0
        %464 = vmatpush2.bf16.msra.mxu0 0
        %465 = vmatprep.subr.bf16.mxu0 0
        %466 = vmatpush2.bf16.msra.mxu0 0
        %467 = vmatprep.subr.bf16.mxu0 0
        %468 = vmatpush2.bf16.msra.mxu0 0
        %469 = vmatprep.mubr.bf16.mxu0 0
        %470 = vmatmul.mubr.bf16.gmra.mxu0 %v394
        %v471 = vpop.f32.mrf.mxu0
        %v472 = vadd.f32 %v387, %v471
        %v473 = vpop.f32.mrf.mxu0
        %v474 = vadd.f32 %v389, %v473
        %v475 = vpop.f32.mrf.mxu0
        %v476 = vpop.f32.mrf.mxu0
        %477 = vdwg.mxu0
        %s478 = scalar_lea.vmem %s2, 8
        %v479 = vld [vmem:[%s478] sm:$0xf]
        %480 = vrot.lane.b32.xlu0 %v269, 126
        %v481 = vpop.permute.xlu0 %480
        %482 = vrot.lane.b32.xlu0 %v270, 126
        %v483 = vpop.permute.xlu0 %482
        %484 = vrot.lane.b32.xlu0 %v271, 126
        %v485 = vpop.permute.xlu0 %484
        %486 = vrot.lane.b32.xlu0 %v272, 126
        %v487 = vpop.permute.xlu0 %486
        %488 = vrot.lane.b32.xlu0 %v283, 126
        %v489 = vpop.permute.xlu0 %488
        %vm490 = vcmask 1031168
        %v491 = vsel %vm490, %v481, %v483
        %v492 = vsel %vm490, %v483, %v485
        %v493 = vsel %vm490, %v485, %v487
        %v494 = vsel %vm490, %v487, %v489
        %v500 = vsel %vm307, %v479, 0
        %502 = vmatprep.subr.bf16.mxu0 0
        %503 = vmatpush1.bf16.msra.mxu0 0
        %504 = vmatprep.subr.bf16.mxu0 0
        %505 = vmatpush1.bf16.msra.mxu0 0
        %506 = vmatprep.subr.bf16.mxu0 0
        %507 = vmatpush1.bf16.msra.mxu0 0
        %508 = vmatprep.subr.bf16.mxu0 0
        %509 = vmatpush1.bf16.msra.mxu0 0
        %510 = vmatprep.subr.bf16.mxu0 0
        %511 = vmatpush1.bf16.msra.mxu0 0
        %512 = vmatprep.subr.bf16.mxu0 0
        %513 = vmatpush1.bf16.msra.mxu0 0
        %514 = vmatprep.subr.bf16.mxu0 0
        %515 = vmatpush1.bf16.msra.mxu0 0
        %516 = vmatprep.subr.bf16.mxu0 %v492
        %517 = vmatpush1.bf16.msra.mxu0 %v491
        %518 = vmatprep.subr.bf16.mxu0 0
        %519 = vmatpush2.bf16.msra.mxu0 0
        %520 = vmatprep.subr.bf16.mxu0 0
        %521 = vmatpush2.bf16.msra.mxu0 0
        %522 = vmatprep.subr.bf16.mxu0 0
        %523 = vmatpush2.bf16.msra.mxu0 0
        %524 = vmatprep.subr.bf16.mxu0 0
        %525 = vmatpush2.bf16.msra.mxu0 0
        %526 = vmatprep.subr.bf16.mxu0 0
        %527 = vmatpush2.bf16.msra.mxu0 0
        %528 = vmatprep.subr.bf16.mxu0 0
        %529 = vmatpush2.bf16.msra.mxu0 0
        %530 = vmatprep.subr.bf16.mxu0 0
        %531 = vmatpush2.bf16.msra.mxu0 0
        %532 = vmatprep.subr.bf16.mxu0 0
        %533 = vmatpush2.bf16.msra.mxu0 0
        %534 = vmatprep.mubr.bf16.mxu0 0
        %535 = vmatmul.mubr.bf16.gmra.mxu0 %v500
        %v536 = vpop.f32.mrf.mxu0
        %v537 = vadd.f32 0.0, %v536
        %v538 = vpop.f32.mrf.mxu0
        %v539 = vadd.f32 0.0, %v538
        %v540 = vpop.f32.mrf.mxu0
        %v541 = vpop.f32.mrf.mxu0
        %542 = vdwg.mxu0
        %543 = vmatprep.subr.bf16.mxu0 0
        %544 = vmatpush1.bf16.msra.mxu0 0
        %545 = vmatprep.subr.bf16.mxu0 0
        %546 = vmatpush1.bf16.msra.mxu0 0
        %547 = vmatprep.subr.bf16.mxu0 0
        %548 = vmatpush1.bf16.msra.mxu0 0
        %549 = vmatprep.subr.bf16.mxu0 0
        %550 = vmatpush1.bf16.msra.mxu0 0
        %551 = vmatprep.subr.bf16.mxu0 0
        %552 = vmatpush1.bf16.msra.mxu0 0
        %553 = vmatprep.subr.bf16.mxu0 0
        %554 = vmatpush1.bf16.msra.mxu0 0
        %555 = vmatprep.subr.bf16.mxu0 0
        %556 = vmatpush1.bf16.msra.mxu0 0
        %557 = vmatprep.subr.bf16.mxu0 %v494
        %558 = vmatpush1.bf16.msra.mxu0 %v493
        %559 = vmatprep.subr.bf16.mxu0 0
        %560 = vmatpush2.bf16.msra.mxu0 0
        %561 = vmatprep.subr.bf16.mxu0 0
        %562 = vmatpush2.bf16.msra.mxu0 0
        %563 = vmatprep.subr.bf16.mxu0 0
        %564 = vmatpush2.bf16.msra.mxu0 0
        %565 = vmatprep.subr.bf16.mxu0 0
        %566 = vmatpush2.bf16.msra.mxu0 0
        %567 = vmatprep.subr.bf16.mxu0 0
        %568 = vmatpush2.bf16.msra.mxu0 0
        %569 = vmatprep.subr.bf16.mxu0 0
        %570 = vmatpush2.bf16.msra.mxu0 0
        %571 = vmatprep.subr.bf16.mxu0 0
        %572 = vmatpush2.bf16.msra.mxu0 0
        %573 = vmatprep.subr.bf16.mxu0 0
        %574 = vmatpush2.bf16.msra.mxu0 0
        %575 = vmatprep.mubr.bf16.mxu0 0
        %576 = vmatmul.mubr.bf16.gmra.mxu0 %v500
        %v577 = vpop.f32.mrf.mxu0
        %v578 = vadd.f32 0.0, %v577
        %v579 = vpop.f32.mrf.mxu0
        %v580 = vadd.f32 0.0, %v579
        %v581 = vpop.f32.mrf.mxu0
        %v582 = vpop.f32.mrf.mxu0
        %583 = vdwg.mxu0
        %v584 = vadd.f32 %v431, %v537
        %v585 = vadd.f32 %v433, %v539
        %v586 = vadd.f32 %v472, %v578
        %v587 = vadd.f32 %v474, %v580
        %s588 = scalar_lea.vmem %s2, 12
        %v589 = vld [vmem:[%s588] sm:$0xf]
        %590 = vrot.lane.b32.xlu0 %v269, 118
        %v591 = vpop.permute.xlu0 %590
        %592 = vrot.lane.b32.xlu0 %v270, 118
        %v593 = vpop.permute.xlu0 %592
        %594 = vrot.lane.b32.xlu0 %v271, 118
        %v595 = vpop.permute.xlu0 %594
        %596 = vrot.lane.b32.xlu0 %v272, 118
        %v597 = vpop.permute.xlu0 %596
        %598 = vrot.lane.b32.xlu0 %v283, 118
        %v599 = vpop.permute.xlu0 %598
        %vm600 = vcmask 965632
        %v601 = vsel %vm600, %v591, %v593
        %v602 = vsel %vm600, %v593, %v595
        %v603 = vsel %vm600, %v595, %v597
        %v604 = vsel %vm600, %v597, %v599
        %v610 = vsel %vm307, %v589, 0
        %612 = vmatprep.subr.bf16.mxu0 0
        %613 = vmatpush1.bf16.msra.mxu0 0
        %614 = vmatprep.subr.bf16.mxu0 0
        %615 = vmatpush1.bf16.msra.mxu0 0
        %616 = vmatprep.subr.bf16.mxu0 0
        %617 = vmatpush1.bf16.msra.mxu0 0
        %618 = vmatprep.subr.bf16.mxu0 0
        %619 = vmatpush1.bf16.msra.mxu0 0
        %620 = vmatprep.subr.bf16.mxu0 0
        %621 = vmatpush1.bf16.msra.mxu0 0
        %622 = vmatprep.subr.bf16.mxu0 0
        %623 = vmatpush1.bf16.msra.mxu0 0
        %624 = vmatprep.subr.bf16.mxu0 0
        %625 = vmatpush1.bf16.msra.mxu0 0
        %626 = vmatprep.subr.bf16.mxu0 %v602
        %627 = vmatpush1.bf16.msra.mxu0 %v601
        %628 = vmatprep.subr.bf16.mxu0 0
        %629 = vmatpush2.bf16.msra.mxu0 0
        %630 = vmatprep.subr.bf16.mxu0 0
        %631 = vmatpush2.bf16.msra.mxu0 0
        %632 = vmatprep.subr.bf16.mxu0 0
        %633 = vmatpush2.bf16.msra.mxu0 0
        %634 = vmatprep.subr.bf16.mxu0 0
        %635 = vmatpush2.bf16.msra.mxu0 0
        %636 = vmatprep.subr.bf16.mxu0 0
        %637 = vmatpush2.bf16.msra.mxu0 0
        %638 = vmatprep.subr.bf16.mxu0 0
        %639 = vmatpush2.bf16.msra.mxu0 0
        %640 = vmatprep.subr.bf16.mxu0 0
        %641 = vmatpush2.bf16.msra.mxu0 0
        %642 = vmatprep.subr.bf16.mxu0 0
        %643 = vmatpush2.bf16.msra.mxu0 0
        %644 = vmatprep.mubr.bf16.mxu0 0
        %645 = vmatmul.mubr.bf16.gmra.mxu0 %v610
        %v646 = vpop.f32.mrf.mxu0
        %v647 = vadd.f32 0.0, %v646
        %v648 = vpop.f32.mrf.mxu0
        %v649 = vadd.f32 0.0, %v648
        %v650 = vpop.f32.mrf.mxu0
        %v651 = vpop.f32.mrf.mxu0
        %652 = vdwg.mxu0
        %653 = vmatprep.subr.bf16.mxu0 0
        %654 = vmatpush1.bf16.msra.mxu0 0
        %655 = vmatprep.subr.bf16.mxu0 0
        %656 = vmatpush1.bf16.msra.mxu0 0
        %657 = vmatprep.subr.bf16.mxu0 0
        %658 = vmatpush1.bf16.msra.mxu0 0
        %659 = vmatprep.subr.bf16.mxu0 0
        %660 = vmatpush1.bf16.msra.mxu0 0
        %661 = vmatprep.subr.bf16.mxu0 0
        %662 = vmatpush1.bf16.msra.mxu0 0
        %663 = vmatprep.subr.bf16.mxu0 0
        %664 = vmatpush1.bf16.msra.mxu0 0
        %665 = vmatprep.subr.bf16.mxu0 0
        %666 = vmatpush1.bf16.msra.mxu0 0
        %667 = vmatprep.subr.bf16.mxu0 %v604
        %668 = vmatpush1.bf16.msra.mxu0 %v603
        %669 = vmatprep.subr.bf16.mxu0 0
        %670 = vmatpush2.bf16.msra.mxu0 0
        %671 = vmatprep.subr.bf16.mxu0 0
        %672 = vmatpush2.bf16.msra.mxu0 0
        %673 = vmatprep.subr.bf16.mxu0 0
        %674 = vmatpush2.bf16.msra.mxu0 0
        %675 = vmatprep.subr.bf16.mxu0 0
        %676 = vmatpush2.bf16.msra.mxu0 0
        %677 = vmatprep.subr.bf16.mxu0 0
        %678 = vmatpush2.bf16.msra.mxu0 0
        %679 = vmatprep.subr.bf16.mxu0 0
        %680 = vmatpush2.bf16.msra.mxu0 0
        %681 = vmatprep.subr.bf16.mxu0 0
        %682 = vmatpush2.bf16.msra.mxu0 0
        %683 = vmatprep.subr.bf16.mxu0 0
        %684 = vmatpush2.bf16.msra.mxu0 0
        %685 = vmatprep.mubr.bf16.mxu0 0
        %686 = vmatmul.mubr.bf16.gmra.mxu0 %v610
        %v687 = vpop.f32.mrf.mxu0
        %v688 = vadd.f32 0.0, %v687
        %v689 = vpop.f32.mrf.mxu0
        %v690 = vadd.f32 0.0, %v689
        %v691 = vpop.f32.mrf.mxu0
        %v692 = vpop.f32.mrf.mxu0
        %693 = vdwg.mxu0
        %v694 = vadd.f32 %v584, %v647
        %v695 = vadd.f32 %v585, %v649
        %v696 = vadd.f32 %v586, %v688
        %v697 = vadd.f32 %v587, %v690
        %s698 = scalar_lea.vmem %s2, 16
        %v699 = vld [vmem:[%s698] sm:$0xf]
        %700 = vrot.lane.b32.xlu0 %v269, 117
        %v701 = vpop.permute.xlu0 %700
        %702 = vrot.lane.b32.xlu0 %v270, 117
        %v703 = vpop.permute.xlu0 %702
        %704 = vrot.lane.b32.xlu0 %v271, 117
        %v705 = vpop.permute.xlu0 %704
        %706 = vrot.lane.b32.xlu0 %v272, 117
        %v707 = vpop.permute.xlu0 %706
        %708 = vrot.lane.b32.xlu0 %v283, 117
        %v709 = vpop.permute.xlu0 %708
        %vm710 = vcmask 957440
        %v711 = vsel %vm710, %v701, %v703
        %v712 = vsel %vm710, %v703, %v705
        %v713 = vsel %vm710, %v705, %v707
        %v714 = vsel %vm710, %v707, %v709
        %v720 = vsel %vm307, %v699, 0
        %722 = vmatprep.subr.bf16.mxu0 0
        %723 = vmatpush1.bf16.msra.mxu0 0
        %724 = vmatprep.subr.bf16.mxu0 0
        %725 = vmatpush1.bf16.msra.mxu0 0
        %726 = vmatprep.subr.bf16.mxu0 0
        %727 = vmatpush1.bf16.msra.mxu0 0
        %728 = vmatprep.subr.bf16.mxu0 0
        %729 = vmatpush1.bf16.msra.mxu0 0
        %730 = vmatprep.subr.bf16.mxu0 0
        %731 = vmatpush1.bf16.msra.mxu0 0
        %732 = vmatprep.subr.bf16.mxu0 0
        %733 = vmatpush1.bf16.msra.mxu0 0
        %734 = vmatprep.subr.bf16.mxu0 0
        %735 = vmatpush1.bf16.msra.mxu0 0
        %736 = vmatprep.subr.bf16.mxu0 %v712
        %737 = vmatpush1.bf16.msra.mxu0 %v711
        %738 = vmatprep.subr.bf16.mxu0 0
        %739 = vmatpush2.bf16.msra.mxu0 0
        %740 = vmatprep.subr.bf16.mxu0 0
        %741 = vmatpush2.bf16.msra.mxu0 0
        %742 = vmatprep.subr.bf16.mxu0 0
        %743 = vmatpush2.bf16.msra.mxu0 0
        %744 = vmatprep.subr.bf16.mxu0 0
        %745 = vmatpush2.bf16.msra.mxu0 0
        %746 = vmatprep.subr.bf16.mxu0 0
        %747 = vmatpush2.bf16.msra.mxu0 0
        %748 = vmatprep.subr.bf16.mxu0 0
        %749 = vmatpush2.bf16.msra.mxu0 0
        %750 = vmatprep.subr.bf16.mxu0 0
        %751 = vmatpush2.bf16.msra.mxu0 0
        %752 = vmatprep.subr.bf16.mxu0 0
        %753 = vmatpush2.bf16.msra.mxu0 0
        %754 = vmatprep.mubr.bf16.mxu0 0
        %755 = vmatmul.mubr.bf16.gmra.mxu0 %v720
        %v756 = vpop.f32.mrf.mxu0
        %v757 = vadd.f32 0.0, %v756
        %v758 = vpop.f32.mrf.mxu0
        %v759 = vadd.f32 0.0, %v758
        %v760 = vpop.f32.mrf.mxu0
        %v761 = vpop.f32.mrf.mxu0
        %762 = vdwg.mxu0
        %763 = vmatprep.subr.bf16.mxu0 0
        %764 = vmatpush1.bf16.msra.mxu0 0
        %765 = vmatprep.subr.bf16.mxu0 0
        %766 = vmatpush1.bf16.msra.mxu0 0
        %767 = vmatprep.subr.bf16.mxu0 0
        %768 = vmatpush1.bf16.msra.mxu0 0
        %769 = vmatprep.subr.bf16.mxu0 0
        %770 = vmatpush1.bf16.msra.mxu0 0
        %771 = vmatprep.subr.bf16.mxu0 0
        %772 = vmatpush1.bf16.msra.mxu0 0
        %773 = vmatprep.subr.bf16.mxu0 0
        %774 = vmatpush1.bf16.msra.mxu0 0
        %775 = vmatprep.subr.bf16.mxu0 0
        %776 = vmatpush1.bf16.msra.mxu0 0
        %777 = vmatprep.subr.bf16.mxu0 %v714
        %778 = vmatpush1.bf16.msra.mxu0 %v713
        %779 = vmatprep.subr.bf16.mxu0 0
        %780 = vmatpush2.bf16.msra.mxu0 0
        %781 = vmatprep.subr.bf16.mxu0 0
        %782 = vmatpush2.bf16.msra.mxu0 0
        %783 = vmatprep.subr.bf16.mxu0 0
        %784 = vmatpush2.bf16.msra.mxu0 0
        %785 = vmatprep.subr.bf16.mxu0 0
        %786 = vmatpush2.bf16.msra.mxu0 0
        %787 = vmatprep.subr.bf16.mxu0 0
        %788 = vmatpush2.bf16.msra.mxu0 0
        %789 = vmatprep.subr.bf16.mxu0 0
        %790 = vmatpush2.bf16.msra.mxu0 0
        %791 = vmatprep.subr.bf16.mxu0 0
        %792 = vmatpush2.bf16.msra.mxu0 0
        %793 = vmatprep.subr.bf16.mxu0 0
        %794 = vmatpush2.bf16.msra.mxu0 0
        %795 = vmatprep.mubr.bf16.mxu0 0
        %796 = vmatmul.mubr.bf16.gmra.mxu0 %v720
        %v797 = vpop.f32.mrf.mxu0
        %v798 = vadd.f32 0.0, %v797
        %v799 = vpop.f32.mrf.mxu0
        %v800 = vadd.f32 0.0, %v799
        %v801 = vpop.f32.mrf.mxu0
        %v802 = vpop.f32.mrf.mxu0
        %803 = vdwg.mxu0
        %v804 = vadd.f32 %v694, %v757
        %v805 = vadd.f32 %v695, %v759
        %v806 = vadd.f32 %v696, %v798
        %v807 = vadd.f32 %v697, %v800
        %s808 = scalar_lea.vmem %s2, 20
        %v809 = vld [vmem:[%s808] sm:$0xf]
        %810 = vrot.lane.b32.xlu0 %v269, 116
        %v811 = vpop.permute.xlu0 %810
        %812 = vrot.lane.b32.xlu0 %v270, 116
        %v813 = vpop.permute.xlu0 %812
        %814 = vrot.lane.b32.xlu0 %v271, 116
        %v815 = vpop.permute.xlu0 %814
        %816 = vrot.lane.b32.xlu0 %v272, 116
        %v817 = vpop.permute.xlu0 %816
        %818 = vrot.lane.b32.xlu0 %v283, 116
        %v819 = vpop.permute.xlu0 %818
        %vm820 = vcmask 949248
        %v821 = vsel %vm820, %v811, %v813
        %v822 = vsel %vm820, %v813, %v815
        %v823 = vsel %vm820, %v815, %v817
        %v824 = vsel %vm820, %v817, %v819
        %v830 = vsel %vm307, %v809, 0
        %832 = vmatprep.subr.bf16.mxu0 0
        %833 = vmatpush1.bf16.msra.mxu0 0
        %834 = vmatprep.subr.bf16.mxu0 0
        %835 = vmatpush1.bf16.msra.mxu0 0
        %836 = vmatprep.subr.bf16.mxu0 0
        %837 = vmatpush1.bf16.msra.mxu0 0
        %838 = vmatprep.subr.bf16.mxu0 0
        %839 = vmatpush1.bf16.msra.mxu0 0
        %840 = vmatprep.subr.bf16.mxu0 0
        %841 = vmatpush1.bf16.msra.mxu0 0
        %842 = vmatprep.subr.bf16.mxu0 0
        %843 = vmatpush1.bf16.msra.mxu0 0
        %844 = vmatprep.subr.bf16.mxu0 0
        %845 = vmatpush1.bf16.msra.mxu0 0
        %846 = vmatprep.subr.bf16.mxu0 %v822
        %847 = vmatpush1.bf16.msra.mxu0 %v821
        %848 = vmatprep.subr.bf16.mxu0 0
        %849 = vmatpush2.bf16.msra.mxu0 0
        %850 = vmatprep.subr.bf16.mxu0 0
        %851 = vmatpush2.bf16.msra.mxu0 0
        %852 = vmatprep.subr.bf16.mxu0 0
        %853 = vmatpush2.bf16.msra.mxu0 0
        %854 = vmatprep.subr.bf16.mxu0 0
        %855 = vmatpush2.bf16.msra.mxu0 0
        %856 = vmatprep.subr.bf16.mxu0 0
        %857 = vmatpush2.bf16.msra.mxu0 0
        %858 = vmatprep.subr.bf16.mxu0 0
        %859 = vmatpush2.bf16.msra.mxu0 0
        %860 = vmatprep.subr.bf16.mxu0 0
        %861 = vmatpush2.bf16.msra.mxu0 0
        %862 = vmatprep.subr.bf16.mxu0 0
        %863 = vmatpush2.bf16.msra.mxu0 0
        %864 = vmatprep.mubr.bf16.mxu0 0
        %865 = vmatmul.mubr.bf16.gmra.mxu0 %v830
        %v866 = vpop.f32.mrf.mxu0
        %v867 = vadd.f32 0.0, %v866
        %v868 = vpop.f32.mrf.mxu0
        %v869 = vadd.f32 0.0, %v868
        %v870 = vpop.f32.mrf.mxu0
        %v871 = vpop.f32.mrf.mxu0
        %872 = vdwg.mxu0
        %873 = vmatprep.subr.bf16.mxu0 0
        %874 = vmatpush1.bf16.msra.mxu0 0
        %875 = vmatprep.subr.bf16.mxu0 0
        %876 = vmatpush1.bf16.msra.mxu0 0
        %877 = vmatprep.subr.bf16.mxu0 0
        %878 = vmatpush1.bf16.msra.mxu0 0
        %879 = vmatprep.subr.bf16.mxu0 0
        %880 = vmatpush1.bf16.msra.mxu0 0
        %881 = vmatprep.subr.bf16.mxu0 0
        %882 = vmatpush1.bf16.msra.mxu0 0
        %883 = vmatprep.subr.bf16.mxu0 0
        %884 = vmatpush1.bf16.msra.mxu0 0
        %885 = vmatprep.subr.bf16.mxu0 0
        %886 = vmatpush1.bf16.msra.mxu0 0
        %887 = vmatprep.subr.bf16.mxu0 %v824
        %888 = vmatpush1.bf16.msra.mxu0 %v823
        %889 = vmatprep.subr.bf16.mxu0 0
        %890 = vmatpush2.bf16.msra.mxu0 0
        %891 = vmatprep.subr.bf16.mxu0 0
        %892 = vmatpush2.bf16.msra.mxu0 0
        %893 = vmatprep.subr.bf16.mxu0 0
        %894 = vmatpush2.bf16.msra.mxu0 0
        %895 = vmatprep.subr.bf16.mxu0 0
        %896 = vmatpush2.bf16.msra.mxu0 0
        %897 = vmatprep.subr.bf16.mxu0 0
        %898 = vmatpush2.bf16.msra.mxu0 0
        %899 = vmatprep.subr.bf16.mxu0 0
        %900 = vmatpush2.bf16.msra.mxu0 0
        %901 = vmatprep.subr.bf16.mxu0 0
        %902 = vmatpush2.bf16.msra.mxu0 0
        %903 = vmatprep.subr.bf16.mxu0 0
        %904 = vmatpush2.bf16.msra.mxu0 0
        %905 = vmatprep.mubr.bf16.mxu0 0
        %906 = vmatmul.mubr.bf16.gmra.mxu0 %v830
        %v907 = vpop.f32.mrf.mxu0
        %v908 = vadd.f32 0.0, %v907
        %v909 = vpop.f32.mrf.mxu0
        %v910 = vadd.f32 0.0, %v909
        %v911 = vpop.f32.mrf.mxu0
        %v912 = vpop.f32.mrf.mxu0
        %913 = vdwg.mxu0
        %v914 = vadd.f32 %v804, %v867
        %v915 = vadd.f32 %v805, %v869
        %v916 = vadd.f32 %v806, %v908
        %v917 = vadd.f32 %v807, %v910
        %s918 = scalar_lea.vmem %s2, 24
        %v919 = vld [vmem:[%s918] sm:$0xf]
        %920 = vrot.lane.b32.xlu0 %v269, 108
        %v921 = vpop.permute.xlu0 %920
        %922 = vrot.lane.b32.xlu0 %v270, 108
        %v923 = vpop.permute.xlu0 %922
        %924 = vrot.lane.b32.xlu0 %v271, 108
        %v925 = vpop.permute.xlu0 %924
        %926 = vrot.lane.b32.xlu0 %v272, 108
        %v927 = vpop.permute.xlu0 %926
        %928 = vrot.lane.b32.xlu0 %v283, 108
        %v929 = vpop.permute.xlu0 %928
        %vm930 = vcmask 883712
        %v931 = vsel %vm930, %v921, %v923
        %v932 = vsel %vm930, %v923, %v925
        %v933 = vsel %vm930, %v925, %v927
        %v934 = vsel %vm930, %v927, %v929
        %v940 = vsel %vm307, %v919, 0
        %942 = vmatprep.subr.bf16.mxu0 0
        %943 = vmatpush1.bf16.msra.mxu0 0
        %944 = vmatprep.subr.bf16.mxu0 0
        %945 = vmatpush1.bf16.msra.mxu0 0
        %946 = vmatprep.subr.bf16.mxu0 0
        %947 = vmatpush1.bf16.msra.mxu0 0
        %948 = vmatprep.subr.bf16.mxu0 0
        %949 = vmatpush1.bf16.msra.mxu0 0
        %950 = vmatprep.subr.bf16.mxu0 0
        %951 = vmatpush1.bf16.msra.mxu0 0
        %952 = vmatprep.subr.bf16.mxu0 0
        %953 = vmatpush1.bf16.msra.mxu0 0
        %954 = vmatprep.subr.bf16.mxu0 0
        %955 = vmatpush1.bf16.msra.mxu0 0
        %956 = vmatprep.subr.bf16.mxu0 %v932
        %957 = vmatpush1.bf16.msra.mxu0 %v931
        %958 = vmatprep.subr.bf16.mxu0 0
        %959 = vmatpush2.bf16.msra.mxu0 0
        %960 = vmatprep.subr.bf16.mxu0 0
        %961 = vmatpush2.bf16.msra.mxu0 0
        %962 = vmatprep.subr.bf16.mxu0 0
        %963 = vmatpush2.bf16.msra.mxu0 0
        %964 = vmatprep.subr.bf16.mxu0 0
        %965 = vmatpush2.bf16.msra.mxu0 0
        %966 = vmatprep.subr.bf16.mxu0 0
        %967 = vmatpush2.bf16.msra.mxu0 0
        %968 = vmatprep.subr.bf16.mxu0 0
        %969 = vmatpush2.bf16.msra.mxu0 0
        %970 = vmatprep.subr.bf16.mxu0 0
        %971 = vmatpush2.bf16.msra.mxu0 0
        %972 = vmatprep.subr.bf16.mxu0 0
        %973 = vmatpush2.bf16.msra.mxu0 0
        %974 = vmatprep.mubr.bf16.mxu0 0
        %975 = vmatmul.mubr.bf16.gmra.mxu0 %v940
        %v976 = vpop.f32.mrf.mxu0
        %v977 = vadd.f32 0.0, %v976
        %v978 = vpop.f32.mrf.mxu0
        %v979 = vadd.f32 0.0, %v978
        %v980 = vpop.f32.mrf.mxu0
        %v981 = vpop.f32.mrf.mxu0
        %982 = vdwg.mxu0
        %983 = vmatprep.subr.bf16.mxu0 0
        %984 = vmatpush1.bf16.msra.mxu0 0
        %985 = vmatprep.subr.bf16.mxu0 0
        %986 = vmatpush1.bf16.msra.mxu0 0
        %987 = vmatprep.subr.bf16.mxu0 0
        %988 = vmatpush1.bf16.msra.mxu0 0
        %989 = vmatprep.subr.bf16.mxu0 0
        %990 = vmatpush1.bf16.msra.mxu0 0
        %991 = vmatprep.subr.bf16.mxu0 0
        %992 = vmatpush1.bf16.msra.mxu0 0
        %993 = vmatprep.subr.bf16.mxu0 0
        %994 = vmatpush1.bf16.msra.mxu0 0
        %995 = vmatprep.subr.bf16.mxu0 0
        %996 = vmatpush1.bf16.msra.mxu0 0
        %997 = vmatprep.subr.bf16.mxu0 %v934
        %998 = vmatpush1.bf16.msra.mxu0 %v933
        %999 = vmatprep.subr.bf16.mxu0 0
        %1000 = vmatpush2.bf16.msra.mxu0 0
        %1001 = vmatprep.subr.bf16.mxu0 0
        %1002 = vmatpush2.bf16.msra.mxu0 0
        %1003 = vmatprep.subr.bf16.mxu0 0
        %1004 = vmatpush2.bf16.msra.mxu0 0
        %1005 = vmatprep.subr.bf16.mxu0 0
        %1006 = vmatpush2.bf16.msra.mxu0 0
        %1007 = vmatprep.subr.bf16.mxu0 0
        %1008 = vmatpush2.bf16.msra.mxu0 0
        %1009 = vmatprep.subr.bf16.mxu0 0
        %1010 = vmatpush2.bf16.msra.mxu0 0
        %1011 = vmatprep.subr.bf16.mxu0 0
        %1012 = vmatpush2.bf16.msra.mxu0 0
        %1013 = vmatprep.subr.bf16.mxu0 0
        %1014 = vmatpush2.bf16.msra.mxu0 0
        %1015 = vmatprep.mubr.bf16.mxu0 0
        %1016 = vmatmul.mubr.bf16.gmra.mxu0 %v940
        %v1017 = vpop.f32.mrf.mxu0
        %v1018 = vadd.f32 0.0, %v1017
        %v1019 = vpop.f32.mrf.mxu0
        %v1020 = vadd.f32 0.0, %v1019
        %v1021 = vpop.f32.mrf.mxu0
        %v1022 = vpop.f32.mrf.mxu0
        %1023 = vdwg.mxu0
        %v1024 = vadd.f32 %v914, %v977
        %v1025 = vadd.f32 %v915, %v979
        %v1026 = vadd.f32 %v916, %v1018
        %v1027 = vadd.f32 %v917, %v1020
        %s1028 = scalar_lea.vmem %s2, 28
        %v1029 = vld [vmem:[%s1028] sm:$0xf]
        %1030 = vrot.lane.b32.xlu0 %v269, 107
        %v1031 = vpop.permute.xlu0 %1030
        %1032 = vrot.lane.b32.xlu0 %v270, 107
        %v1033 = vpop.permute.xlu0 %1032
        %1034 = vrot.lane.b32.xlu0 %v271, 107
        %v1035 = vpop.permute.xlu0 %1034
        %1036 = vrot.lane.b32.xlu0 %v272, 107
        %v1037 = vpop.permute.xlu0 %1036
        %1038 = vrot.lane.b32.xlu0 %v283, 107
        %v1039 = vpop.permute.xlu0 %1038
        %vm1040 = vcmask 875520
        %v1041 = vsel %vm1040, %v1031, %v1033
        %v1042 = vsel %vm1040, %v1033, %v1035
        %v1043 = vsel %vm1040, %v1035, %v1037
        %v1044 = vsel %vm1040, %v1037, %v1039
        %v1050 = vsel %vm307, %v1029, 0
        %1052 = vmatprep.subr.bf16.mxu0 0
        %1053 = vmatpush1.bf16.msra.mxu0 0
        %1054 = vmatprep.subr.bf16.mxu0 0
        %1055 = vmatpush1.bf16.msra.mxu0 0
        %1056 = vmatprep.subr.bf16.mxu0 0
        %1057 = vmatpush1.bf16.msra.mxu0 0
        %1058 = vmatprep.subr.bf16.mxu0 0
        %1059 = vmatpush1.bf16.msra.mxu0 0
        %1060 = vmatprep.subr.bf16.mxu0 0
        %1061 = vmatpush1.bf16.msra.mxu0 0
        %1062 = vmatprep.subr.bf16.mxu0 0
        %1063 = vmatpush1.bf16.msra.mxu0 0
        %1064 = vmatprep.subr.bf16.mxu0 0
        %1065 = vmatpush1.bf16.msra.mxu0 0
        %1066 = vmatprep.subr.bf16.mxu0 %v1042
        %1067 = vmatpush1.bf16.msra.mxu0 %v1041
        %1068 = vmatprep.subr.bf16.mxu0 0
        %1069 = vmatpush2.bf16.msra.mxu0 0
        %1070 = vmatprep.subr.bf16.mxu0 0
        %1071 = vmatpush2.bf16.msra.mxu0 0
        %1072 = vmatprep.subr.bf16.mxu0 0
        %1073 = vmatpush2.bf16.msra.mxu0 0
        %1074 = vmatprep.subr.bf16.mxu0 0
        %1075 = vmatpush2.bf16.msra.mxu0 0
        %1076 = vmatprep.subr.bf16.mxu0 0
        %1077 = vmatpush2.bf16.msra.mxu0 0
        %1078 = vmatprep.subr.bf16.mxu0 0
        %1079 = vmatpush2.bf16.msra.mxu0 0
        %1080 = vmatprep.subr.bf16.mxu0 0
        %1081 = vmatpush2.bf16.msra.mxu0 0
        %1082 = vmatprep.subr.bf16.mxu0 0
        %1083 = vmatpush2.bf16.msra.mxu0 0
        %1084 = vmatprep.mubr.bf16.mxu0 0
        %1085 = vmatmul.mubr.bf16.gmra.mxu0 %v1050
        %v1086 = vpop.f32.mrf.mxu0
        %v1087 = vadd.f32 0.0, %v1086
        %v1088 = vpop.f32.mrf.mxu0
        %v1089 = vadd.f32 0.0, %v1088
        %v1090 = vpop.f32.mrf.mxu0
        %v1091 = vpop.f32.mrf.mxu0
        %1092 = vdwg.mxu0
        %1093 = vmatprep.subr.bf16.mxu0 0
        %1094 = vmatpush1.bf16.msra.mxu0 0
        %1095 = vmatprep.subr.bf16.mxu0 0
        %1096 = vmatpush1.bf16.msra.mxu0 0
        %1097 = vmatprep.subr.bf16.mxu0 0
        %1098 = vmatpush1.bf16.msra.mxu0 0
        %1099 = vmatprep.subr.bf16.mxu0 0
        %1100 = vmatpush1.bf16.msra.mxu0 0
        %1101 = vmatprep.subr.bf16.mxu0 0
        %1102 = vmatpush1.bf16.msra.mxu0 0
        %1103 = vmatprep.subr.bf16.mxu0 0
        %1104 = vmatpush1.bf16.msra.mxu0 0
        %1105 = vmatprep.subr.bf16.mxu0 0
        %1106 = vmatpush1.bf16.msra.mxu0 0
        %1107 = vmatprep.subr.bf16.mxu0 %v1044
        %1108 = vmatpush1.bf16.msra.mxu0 %v1043
        %1109 = vmatprep.subr.bf16.mxu0 0
        %1110 = vmatpush2.bf16.msra.mxu0 0
        %1111 = vmatprep.subr.bf16.mxu0 0
        %1112 = vmatpush2.bf16.msra.mxu0 0
        %1113 = vmatprep.subr.bf16.mxu0 0
        %1114 = vmatpush2.bf16.msra.mxu0 0
        %1115 = vmatprep.subr.bf16.mxu0 0
        %1116 = vmatpush2.bf16.msra.mxu0 0
        %1117 = vmatprep.subr.bf16.mxu0 0
        %1118 = vmatpush2.bf16.msra.mxu0 0
        %1119 = vmatprep.subr.bf16.mxu0 0
        %1120 = vmatpush2.bf16.msra.mxu0 0
        %1121 = vmatprep.subr.bf16.mxu0 0
        %1122 = vmatpush2.bf16.msra.mxu0 0
        %1123 = vmatprep.subr.bf16.mxu0 0
        %1124 = vmatpush2.bf16.msra.mxu0 0
        %1125 = vmatprep.mubr.bf16.mxu0 0
        %1126 = vmatmul.mubr.bf16.gmra.mxu0 %v1050
        %v1127 = vpop.f32.mrf.mxu0
        %v1128 = vadd.f32 0.0, %v1127
        %v1129 = vpop.f32.mrf.mxu0
        %v1130 = vadd.f32 0.0, %v1129
        %v1131 = vpop.f32.mrf.mxu0
        %v1132 = vpop.f32.mrf.mxu0
        %1133 = vdwg.mxu0
        %v1134 = vadd.f32 %v1024, %v1087
        %v1135 = vadd.f32 %v1025, %v1089
        %v1136 = vadd.f32 %v1026, %v1128
        %v1137 = vadd.f32 %v1027, %v1130
        %s1138 = scalar_lea.vmem %s2, 32
        %v1139 = vld [vmem:[%s1138] sm:$0xf]
        %1140 = vrot.lane.b32.xlu0 %v269, 106
        %v1141 = vpop.permute.xlu0 %1140
        %1142 = vrot.lane.b32.xlu0 %v270, 106
        %v1143 = vpop.permute.xlu0 %1142
        %1144 = vrot.lane.b32.xlu0 %v271, 106
        %v1145 = vpop.permute.xlu0 %1144
        %1146 = vrot.lane.b32.xlu0 %v272, 106
        %v1147 = vpop.permute.xlu0 %1146
        %1148 = vrot.lane.b32.xlu0 %v283, 106
        %v1149 = vpop.permute.xlu0 %1148
        %vm1150 = vcmask 867328
        %v1151 = vsel %vm1150, %v1141, %v1143
        %v1152 = vsel %vm1150, %v1143, %v1145
        %v1153 = vsel %vm1150, %v1145, %v1147
        %v1154 = vsel %vm1150, %v1147, %v1149
        %v1160 = vsel %vm307, %v1139, 0
        %1162 = vmatprep.subr.bf16.mxu0 0
        %1163 = vmatpush1.bf16.msra.mxu0 0
        %1164 = vmatprep.subr.bf16.mxu0 0
        %1165 = vmatpush1.bf16.msra.mxu0 0
        %1166 = vmatprep.subr.bf16.mxu0 0
        %1167 = vmatpush1.bf16.msra.mxu0 0
        %1168 = vmatprep.subr.bf16.mxu0 0
        %1169 = vmatpush1.bf16.msra.mxu0 0
        %1170 = vmatprep.subr.bf16.mxu0 0
        %1171 = vmatpush1.bf16.msra.mxu0 0
        %1172 = vmatprep.subr.bf16.mxu0 0
        %1173 = vmatpush1.bf16.msra.mxu0 0
        %1174 = vmatprep.subr.bf16.mxu0 0
        %1175 = vmatpush1.bf16.msra.mxu0 0
        %1176 = vmatprep.subr.bf16.mxu0 %v1152
        %1177 = vmatpush1.bf16.msra.mxu0 %v1151
        %1178 = vmatprep.subr.bf16.mxu0 0
        %1179 = vmatpush2.bf16.msra.mxu0 0
        %1180 = vmatprep.subr.bf16.mxu0 0
        %1181 = vmatpush2.bf16.msra.mxu0 0
        %1182 = vmatprep.subr.bf16.mxu0 0
        %1183 = vmatpush2.bf16.msra.mxu0 0
        %1184 = vmatprep.subr.bf16.mxu0 0
        %1185 = vmatpush2.bf16.msra.mxu0 0
        %1186 = vmatprep.subr.bf16.mxu0 0
        %1187 = vmatpush2.bf16.msra.mxu0 0
        %1188 = vmatprep.subr.bf16.mxu0 0
        %1189 = vmatpush2.bf16.msra.mxu0 0
        %1190 = vmatprep.subr.bf16.mxu0 0
        %1191 = vmatpush2.bf16.msra.mxu0 0
        %1192 = vmatprep.subr.bf16.mxu0 0
        %1193 = vmatpush2.bf16.msra.mxu0 0
        %1194 = vmatprep.mubr.bf16.mxu0 0
        %1195 = vmatmul.mubr.bf16.gmra.mxu0 %v1160
        %v1196 = vpop.f32.mrf.mxu0
        %v1197 = vadd.f32 0.0, %v1196
        %v1198 = vpop.f32.mrf.mxu0
        %v1199 = vadd.f32 0.0, %v1198
        %v1200 = vpop.f32.mrf.mxu0
        %v1201 = vpop.f32.mrf.mxu0
        %1202 = vdwg.mxu0
        %1203 = vmatprep.subr.bf16.mxu0 0
        %1204 = vmatpush1.bf16.msra.mxu0 0
        %1205 = vmatprep.subr.bf16.mxu0 0
        %1206 = vmatpush1.bf16.msra.mxu0 0
        %1207 = vmatprep.subr.bf16.mxu0 0
        %1208 = vmatpush1.bf16.msra.mxu0 0
        %1209 = vmatprep.subr.bf16.mxu0 0
        %1210 = vmatpush1.bf16.msra.mxu0 0
        %1211 = vmatprep.subr.bf16.mxu0 0
        %1212 = vmatpush1.bf16.msra.mxu0 0
        %1213 = vmatprep.subr.bf16.mxu0 0
        %1214 = vmatpush1.bf16.msra.mxu0 0
        %1215 = vmatprep.subr.bf16.mxu0 0
        %1216 = vmatpush1.bf16.msra.mxu0 0
        %1217 = vmatprep.subr.bf16.mxu0 %v1154
        %1218 = vmatpush1.bf16.msra.mxu0 %v1153
        %1219 = vmatprep.subr.bf16.mxu0 0
        %1220 = vmatpush2.bf16.msra.mxu0 0
        %1221 = vmatprep.subr.bf16.mxu0 0
        %1222 = vmatpush2.bf16.msra.mxu0 0
        %1223 = vmatprep.subr.bf16.mxu0 0
        %1224 = vmatpush2.bf16.msra.mxu0 0
        %1225 = vmatprep.subr.bf16.mxu0 0
        %1226 = vmatpush2.bf16.msra.mxu0 0
        %1227 = vmatprep.subr.bf16.mxu0 0
        %1228 = vmatpush2.bf16.msra.mxu0 0
        %1229 = vmatprep.subr.bf16.mxu0 0
        %1230 = vmatpush2.bf16.msra.mxu0 0
        %1231 = vmatprep.subr.bf16.mxu0 0
        %1232 = vmatpush2.bf16.msra.mxu0 0
        %1233 = vmatprep.subr.bf16.mxu0 0
        %1234 = vmatpush2.bf16.msra.mxu0 0
        %1235 = vmatprep.mubr.bf16.mxu0 0
        %1236 = vmatmul.mubr.bf16.gmra.mxu0 %v1160
        %v1237 = vpop.f32.mrf.mxu0
        %v1238 = vadd.f32 0.0, %v1237
        %v1239 = vpop.f32.mrf.mxu0
        %v1240 = vadd.f32 0.0, %v1239
        %v1241 = vpop.f32.mrf.mxu0
        %v1242 = vpop.f32.mrf.mxu0
        %1243 = vdwg.mxu0
        %v1244 = vadd.f32 %v1134, %v1197
        %v1245 = vadd.f32 %v1135, %v1199
        %v1246 = vadd.f32 %v1136, %v1238
        %v1247 = vadd.f32 %v1137, %v1240
        %s1248 = scalar_lea.vmem %s2, 36
        %v1249 = vld [vmem:[%s1248] sm:$0xf]
        %1250 = vrot.lane.b32.xlu0 %v269, 28
        %v1251 = vpop.permute.xlu0 %1250
        %1252 = vrot.lane.b32.xlu0 %v270, 28
        %v1253 = vpop.permute.xlu0 %1252
        %1254 = vrot.lane.b32.xlu0 %v271, 28
        %v1255 = vpop.permute.xlu0 %1254
        %1256 = vrot.lane.b32.xlu0 %v272, 28
        %v1257 = vpop.permute.xlu0 %1256
        %1258 = vrot.lane.b32.xlu0 %v283, 28
        %v1259 = vpop.permute.xlu0 %1258
        %vm1260 = vcmask 228352
        %v1261 = vsel %vm1260, %v1251, %v1253
        %v1262 = vsel %vm1260, %v1253, %v1255
        %v1263 = vsel %vm1260, %v1255, %v1257
        %v1264 = vsel %vm1260, %v1257, %v1259
        %v1270 = vsel %vm307, %v1249, 0
        %1272 = vmatprep.subr.bf16.mxu0 0
        %1273 = vmatpush1.bf16.msra.mxu0 0
        %1274 = vmatprep.subr.bf16.mxu0 0
        %1275 = vmatpush1.bf16.msra.mxu0 0
        %1276 = vmatprep.subr.bf16.mxu0 0
        %1277 = vmatpush1.bf16.msra.mxu0 0
        %1278 = vmatprep.subr.bf16.mxu0 0
        %1279 = vmatpush1.bf16.msra.mxu0 0
        %1280 = vmatprep.subr.bf16.mxu0 0
        %1281 = vmatpush1.bf16.msra.mxu0 0
        %1282 = vmatprep.subr.bf16.mxu0 0
        %1283 = vmatpush1.bf16.msra.mxu0 0
        %1284 = vmatprep.subr.bf16.mxu0 0
        %1285 = vmatpush1.bf16.msra.mxu0 0
        %1286 = vmatprep.subr.bf16.mxu0 %v1262
        %1287 = vmatpush1.bf16.msra.mxu0 %v1261
        %1288 = vmatprep.subr.bf16.mxu0 0
        %1289 = vmatpush2.bf16.msra.mxu0 0
        %1290 = vmatprep.subr.bf16.mxu0 0
        %1291 = vmatpush2.bf16.msra.mxu0 0
        %1292 = vmatprep.subr.bf16.mxu0 0
        %1293 = vmatpush2.bf16.msra.mxu0 0
        %1294 = vmatprep.subr.bf16.mxu0 0
        %1295 = vmatpush2.bf16.msra.mxu0 0
        %1296 = vmatprep.subr.bf16.mxu0 0
        %1297 = vmatpush2.bf16.msra.mxu0 0
        %1298 = vmatprep.subr.bf16.mxu0 0
        %1299 = vmatpush2.bf16.msra.mxu0 0
        %1300 = vmatprep.subr.bf16.mxu0 0
        %1301 = vmatpush2.bf16.msra.mxu0 0
        %1302 = vmatprep.subr.bf16.mxu0 0
        %1303 = vmatpush2.bf16.msra.mxu0 0
        %1304 = vmatprep.mubr.bf16.mxu0 0
        %1305 = vmatmul.mubr.bf16.gmra.mxu0 %v1270
        %v1306 = vpop.f32.mrf.mxu0
        %v1307 = vadd.f32 0.0, %v1306
        %v1308 = vpop.f32.mrf.mxu0
        %v1309 = vadd.f32 0.0, %v1308
        %v1310 = vpop.f32.mrf.mxu0
        %v1311 = vpop.f32.mrf.mxu0
        %1312 = vdwg.mxu0
        %1313 = vmatprep.subr.bf16.mxu0 0
        %1314 = vmatpush1.bf16.msra.mxu0 0
        %1315 = vmatprep.subr.bf16.mxu0 0
        %1316 = vmatpush1.bf16.msra.mxu0 0
        %1317 = vmatprep.subr.bf16.mxu0 0
        %1318 = vmatpush1.bf16.msra.mxu0 0
        %1319 = vmatprep.subr.bf16.mxu0 0
        %1320 = vmatpush1.bf16.msra.mxu0 0
        %1321 = vmatprep.subr.bf16.mxu0 0
        %1322 = vmatpush1.bf16.msra.mxu0 0
        %1323 = vmatprep.subr.bf16.mxu0 0
        %1324 = vmatpush1.bf16.msra.mxu0 0
        %1325 = vmatprep.subr.bf16.mxu0 0
        %1326 = vmatpush1.bf16.msra.mxu0 0
        %1327 = vmatprep.subr.bf16.mxu0 %v1264
        %1328 = vmatpush1.bf16.msra.mxu0 %v1263
        %1329 = vmatprep.subr.bf16.mxu0 0
        %1330 = vmatpush2.bf16.msra.mxu0 0
        %1331 = vmatprep.subr.bf16.mxu0 0
        %1332 = vmatpush2.bf16.msra.mxu0 0
        %1333 = vmatprep.subr.bf16.mxu0 0
        %1334 = vmatpush2.bf16.msra.mxu0 0
        %1335 = vmatprep.subr.bf16.mxu0 0
        %1336 = vmatpush2.bf16.msra.mxu0 0
        %1337 = vmatprep.subr.bf16.mxu0 0
        %1338 = vmatpush2.bf16.msra.mxu0 0
        %1339 = vmatprep.subr.bf16.mxu0 0
        %1340 = vmatpush2.bf16.msra.mxu0 0
        %1341 = vmatprep.subr.bf16.mxu0 0
        %1342 = vmatpush2.bf16.msra.mxu0 0
        %1343 = vmatprep.subr.bf16.mxu0 0
        %1344 = vmatpush2.bf16.msra.mxu0 0
        %1345 = vmatprep.mubr.bf16.mxu0 0
        %1346 = vmatmul.mubr.bf16.gmra.mxu0 %v1270
        %v1347 = vpop.f32.mrf.mxu0
        %v1348 = vadd.f32 0.0, %v1347
        %v1349 = vpop.f32.mrf.mxu0
        %v1350 = vadd.f32 0.0, %v1349
        %v1351 = vpop.f32.mrf.mxu0
        %v1352 = vpop.f32.mrf.mxu0
        %1353 = vdwg.mxu0
        %v1354 = vadd.f32 %v1244, %v1307
        %v1355 = vadd.f32 %v1245, %v1309
        %v1356 = vadd.f32 %v1246, %v1348
        %v1357 = vadd.f32 %v1247, %v1350
        %s1358 = scalar_lea.vmem %s2, 40
        %v1359 = vld [vmem:[%s1358] sm:$0xf]
        %1360 = vrot.lane.b32.xlu0 %v269, 27
        %v1361 = vpop.permute.xlu0 %1360
        %1362 = vrot.lane.b32.xlu0 %v270, 27
        %v1363 = vpop.permute.xlu0 %1362
        %1364 = vrot.lane.b32.xlu0 %v271, 27
        %v1365 = vpop.permute.xlu0 %1364
        %1366 = vrot.lane.b32.xlu0 %v272, 27
        %v1367 = vpop.permute.xlu0 %1366
        %1368 = vrot.lane.b32.xlu0 %v283, 27
        %v1369 = vpop.permute.xlu0 %1368
        %vm1370 = vcmask 220160
        %v1371 = vsel %vm1370, %v1361, %v1363
        %v1372 = vsel %vm1370, %v1363, %v1365
        %v1373 = vsel %vm1370, %v1365, %v1367
        %v1374 = vsel %vm1370, %v1367, %v1369
        %v1380 = vsel %vm307, %v1359, 0
        %1382 = vmatprep.subr.bf16.mxu0 0
        %1383 = vmatpush1.bf16.msra.mxu0 0
        %1384 = vmatprep.subr.bf16.mxu0 0
        %1385 = vmatpush1.bf16.msra.mxu0 0
        %1386 = vmatprep.subr.bf16.mxu0 0
        %1387 = vmatpush1.bf16.msra.mxu0 0
        %1388 = vmatprep.subr.bf16.mxu0 0
        %1389 = vmatpush1.bf16.msra.mxu0 0
        %1390 = vmatprep.subr.bf16.mxu0 0
        %1391 = vmatpush1.bf16.msra.mxu0 0
        %1392 = vmatprep.subr.bf16.mxu0 0
        %1393 = vmatpush1.bf16.msra.mxu0 0
        %1394 = vmatprep.subr.bf16.mxu0 0
        %1395 = vmatpush1.bf16.msra.mxu0 0
        %1396 = vmatprep.subr.bf16.mxu0 %v1372
        %1397 = vmatpush1.bf16.msra.mxu0 %v1371
        %1398 = vmatprep.subr.bf16.mxu0 0
        %1399 = vmatpush2.bf16.msra.mxu0 0
        %1400 = vmatprep.subr.bf16.mxu0 0
        %1401 = vmatpush2.bf16.msra.mxu0 0
        %1402 = vmatprep.subr.bf16.mxu0 0
        %1403 = vmatpush2.bf16.msra.mxu0 0
        %1404 = vmatprep.subr.bf16.mxu0 0
        %1405 = vmatpush2.bf16.msra.mxu0 0
        %1406 = vmatprep.subr.bf16.mxu0 0
        %1407 = vmatpush2.bf16.msra.mxu0 0
        %1408 = vmatprep.subr.bf16.mxu0 0
        %1409 = vmatpush2.bf16.msra.mxu0 0
        %1410 = vmatprep.subr.bf16.mxu0 0
        %1411 = vmatpush2.bf16.msra.mxu0 0
        %1412 = vmatprep.subr.bf16.mxu0 0
        %1413 = vmatpush2.bf16.msra.mxu0 0
        %1414 = vmatprep.mubr.bf16.mxu0 0
        %1415 = vmatmul.mubr.bf16.gmra.mxu0 %v1380
        %v1416 = vpop.f32.mrf.mxu0
        %v1417 = vadd.f32 0.0, %v1416
        %v1418 = vpop.f32.mrf.mxu0
        %v1419 = vadd.f32 0.0, %v1418
        %v1420 = vpop.f32.mrf.mxu0
        %v1421 = vpop.f32.mrf.mxu0
        %1422 = vdwg.mxu0
        %1423 = vmatprep.subr.bf16.mxu0 0
        %1424 = vmatpush1.bf16.msra.mxu0 0
        %1425 = vmatprep.subr.bf16.mxu0 0
        %1426 = vmatpush1.bf16.msra.mxu0 0
        %1427 = vmatprep.subr.bf16.mxu0 0
        %1428 = vmatpush1.bf16.msra.mxu0 0
        %1429 = vmatprep.subr.bf16.mxu0 0
        %1430 = vmatpush1.bf16.msra.mxu0 0
        %1431 = vmatprep.subr.bf16.mxu0 0
        %1432 = vmatpush1.bf16.msra.mxu0 0
        %1433 = vmatprep.subr.bf16.mxu0 0
        %1434 = vmatpush1.bf16.msra.mxu0 0
        %1435 = vmatprep.subr.bf16.mxu0 0
        %1436 = vmatpush1.bf16.msra.mxu0 0
        %1437 = vmatprep.subr.bf16.mxu0 %v1374
        %1438 = vmatpush1.bf16.msra.mxu0 %v1373
        %1439 = vmatprep.subr.bf16.mxu0 0
        %1440 = vmatpush2.bf16.msra.mxu0 0
        %1441 = vmatprep.subr.bf16.mxu0 0
        %1442 = vmatpush2.bf16.msra.mxu0 0
        %1443 = vmatprep.subr.bf16.mxu0 0
        %1444 = vmatpush2.bf16.msra.mxu0 0
        %1445 = vmatprep.subr.bf16.mxu0 0
        %1446 = vmatpush2.bf16.msra.mxu0 0
        %1447 = vmatprep.subr.bf16.mxu0 0
        %1448 = vmatpush2.bf16.msra.mxu0 0
        %1449 = vmatprep.subr.bf16.mxu0 0
        %1450 = vmatpush2.bf16.msra.mxu0 0
        %1451 = vmatprep.subr.bf16.mxu0 0
        %1452 = vmatpush2.bf16.msra.mxu0 0
        %1453 = vmatprep.subr.bf16.mxu0 0
        %1454 = vmatpush2.bf16.msra.mxu0 0
        %1455 = vmatprep.mubr.bf16.mxu0 0
        %1456 = vmatmul.mubr.bf16.gmra.mxu0 %v1380
        %v1457 = vpop.f32.mrf.mxu0
        %v1458 = vadd.f32 0.0, %v1457
        %v1459 = vpop.f32.mrf.mxu0
        %v1460 = vadd.f32 0.0, %v1459
        %v1461 = vpop.f32.mrf.mxu0
        %v1462 = vpop.f32.mrf.mxu0
        %1463 = vdwg.mxu0
        %v1464 = vadd.f32 %v1354, %v1417
        %v1465 = vadd.f32 %v1355, %v1419
        %v1466 = vadd.f32 %v1356, %v1458
        %v1467 = vadd.f32 %v1357, %v1460
        %s1468 = scalar_lea.vmem %s2, 44
        %v1469 = vld [vmem:[%s1468] sm:$0xf]
        %1470 = vrot.lane.b32.xlu0 %v269, 26
        %v1471 = vpop.permute.xlu0 %1470
        %1472 = vrot.lane.b32.xlu0 %v270, 26
        %v1473 = vpop.permute.xlu0 %1472
        %1474 = vrot.lane.b32.xlu0 %v271, 26
        %v1475 = vpop.permute.xlu0 %1474
        %1476 = vrot.lane.b32.xlu0 %v272, 26
        %v1477 = vpop.permute.xlu0 %1476
        %1478 = vrot.lane.b32.xlu0 %v283, 26
        %v1479 = vpop.permute.xlu0 %1478
        %vm1480 = vcmask 211968
        %v1481 = vsel %vm1480, %v1471, %v1473
        %v1482 = vsel %vm1480, %v1473, %v1475
        %v1483 = vsel %vm1480, %v1475, %v1477
        %v1484 = vsel %vm1480, %v1477, %v1479
        %v1490 = vsel %vm307, %v1469, 0
        %1492 = vmatprep.subr.bf16.mxu0 0
        %1493 = vmatpush1.bf16.msra.mxu0 0
        %1494 = vmatprep.subr.bf16.mxu0 0
        %1495 = vmatpush1.bf16.msra.mxu0 0
        %1496 = vmatprep.subr.bf16.mxu0 0
        %1497 = vmatpush1.bf16.msra.mxu0 0
        %1498 = vmatprep.subr.bf16.mxu0 0
        %1499 = vmatpush1.bf16.msra.mxu0 0
        %1500 = vmatprep.subr.bf16.mxu0 0
        %1501 = vmatpush1.bf16.msra.mxu0 0
        %1502 = vmatprep.subr.bf16.mxu0 0
        %1503 = vmatpush1.bf16.msra.mxu0 0
        %1504 = vmatprep.subr.bf16.mxu0 0
        %1505 = vmatpush1.bf16.msra.mxu0 0
        %1506 = vmatprep.subr.bf16.mxu0 %v1482
        %1507 = vmatpush1.bf16.msra.mxu0 %v1481
        %1508 = vmatprep.subr.bf16.mxu0 0
        %1509 = vmatpush2.bf16.msra.mxu0 0
        %1510 = vmatprep.subr.bf16.mxu0 0
        %1511 = vmatpush2.bf16.msra.mxu0 0
        %1512 = vmatprep.subr.bf16.mxu0 0
        %1513 = vmatpush2.bf16.msra.mxu0 0
        %1514 = vmatprep.subr.bf16.mxu0 0
        %1515 = vmatpush2.bf16.msra.mxu0 0
        %1516 = vmatprep.subr.bf16.mxu0 0
        %1517 = vmatpush2.bf16.msra.mxu0 0
        %1518 = vmatprep.subr.bf16.mxu0 0
        %1519 = vmatpush2.bf16.msra.mxu0 0
        %1520 = vmatprep.subr.bf16.mxu0 0
        %1521 = vmatpush2.bf16.msra.mxu0 0
        %1522 = vmatprep.subr.bf16.mxu0 0
        %1523 = vmatpush2.bf16.msra.mxu0 0
        %1524 = vmatprep.mubr.bf16.mxu0 0
        %1525 = vmatmul.mubr.bf16.gmra.mxu0 %v1490
        %v1526 = vpop.f32.mrf.mxu0
        %v1527 = vadd.f32 0.0, %v1526
        %v1528 = vpop.f32.mrf.mxu0
        %v1529 = vadd.f32 0.0, %v1528
        %v1530 = vpop.f32.mrf.mxu0
        %v1531 = vpop.f32.mrf.mxu0
        %1532 = vdwg.mxu0
        %1533 = vmatprep.subr.bf16.mxu0 0
        %1534 = vmatpush1.bf16.msra.mxu0 0
        %1535 = vmatprep.subr.bf16.mxu0 0
        %1536 = vmatpush1.bf16.msra.mxu0 0
        %1537 = vmatprep.subr.bf16.mxu0 0
        %1538 = vmatpush1.bf16.msra.mxu0 0
        %1539 = vmatprep.subr.bf16.mxu0 0
        %1540 = vmatpush1.bf16.msra.mxu0 0
        %1541 = vmatprep.subr.bf16.mxu0 0
        %1542 = vmatpush1.bf16.msra.mxu0 0
        %1543 = vmatprep.subr.bf16.mxu0 0
        %1544 = vmatpush1.bf16.msra.mxu0 0
        %1545 = vmatprep.subr.bf16.mxu0 0
        %1546 = vmatpush1.bf16.msra.mxu0 0
        %1547 = vmatprep.subr.bf16.mxu0 %v1484
        %1548 = vmatpush1.bf16.msra.mxu0 %v1483
        %1549 = vmatprep.subr.bf16.mxu0 0
        %1550 = vmatpush2.bf16.msra.mxu0 0
        %1551 = vmatprep.subr.bf16.mxu0 0
        %1552 = vmatpush2.bf16.msra.mxu0 0
        %1553 = vmatprep.subr.bf16.mxu0 0
        %1554 = vmatpush2.bf16.msra.mxu0 0
        %1555 = vmatprep.subr.bf16.mxu0 0
        %1556 = vmatpush2.bf16.msra.mxu0 0
        %1557 = vmatprep.subr.bf16.mxu0 0
        %1558 = vmatpush2.bf16.msra.mxu0 0
        %1559 = vmatprep.subr.bf16.mxu0 0
        %1560 = vmatpush2.bf16.msra.mxu0 0
        %1561 = vmatprep.subr.bf16.mxu0 0
        %1562 = vmatpush2.bf16.msra.mxu0 0
        %1563 = vmatprep.subr.bf16.mxu0 0
        %1564 = vmatpush2.bf16.msra.mxu0 0
        %1565 = vmatprep.mubr.bf16.mxu0 0
        %1566 = vmatmul.mubr.bf16.gmra.mxu0 %v1490
        %v1567 = vpop.f32.mrf.mxu0
        %v1568 = vadd.f32 0.0, %v1567
        %v1569 = vpop.f32.mrf.mxu0
        %v1570 = vadd.f32 0.0, %v1569
        %v1571 = vpop.f32.mrf.mxu0
        %v1572 = vpop.f32.mrf.mxu0
        %1573 = vdwg.mxu0
        %v1574 = vadd.f32 %v1464, %v1527
        %v1575 = vadd.f32 %v1465, %v1529
        %v1576 = vadd.f32 %v1466, %v1568
        %v1577 = vadd.f32 %v1467, %v1570
        %s1578 = scalar_lea.vmem %s2, 48
        %v1579 = vld [vmem:[%s1578] sm:$0xf]
        %1580 = vrot.lane.b32.xlu0 %v269, 18
        %v1581 = vpop.permute.xlu0 %1580
        %1582 = vrot.lane.b32.xlu0 %v270, 18
        %v1583 = vpop.permute.xlu0 %1582
        %1584 = vrot.lane.b32.xlu0 %v271, 18
        %v1585 = vpop.permute.xlu0 %1584
        %1586 = vrot.lane.b32.xlu0 %v272, 18
        %v1587 = vpop.permute.xlu0 %1586
        %1588 = vrot.lane.b32.xlu0 %v283, 18
        %v1589 = vpop.permute.xlu0 %1588
        %vm1590 = vcmask 146432
        %v1591 = vsel %vm1590, %v1581, %v1583
        %v1592 = vsel %vm1590, %v1583, %v1585
        %v1593 = vsel %vm1590, %v1585, %v1587
        %v1594 = vsel %vm1590, %v1587, %v1589
        %v1600 = vsel %vm307, %v1579, 0
        %1602 = vmatprep.subr.bf16.mxu0 0
        %1603 = vmatpush1.bf16.msra.mxu0 0
        %1604 = vmatprep.subr.bf16.mxu0 0
        %1605 = vmatpush1.bf16.msra.mxu0 0
        %1606 = vmatprep.subr.bf16.mxu0 0
        %1607 = vmatpush1.bf16.msra.mxu0 0
        %1608 = vmatprep.subr.bf16.mxu0 0
        %1609 = vmatpush1.bf16.msra.mxu0 0
        %1610 = vmatprep.subr.bf16.mxu0 0
        %1611 = vmatpush1.bf16.msra.mxu0 0
        %1612 = vmatprep.subr.bf16.mxu0 0
        %1613 = vmatpush1.bf16.msra.mxu0 0
        %1614 = vmatprep.subr.bf16.mxu0 0
        %1615 = vmatpush1.bf16.msra.mxu0 0
        %1616 = vmatprep.subr.bf16.mxu0 %v1592
        %1617 = vmatpush1.bf16.msra.mxu0 %v1591
        %1618 = vmatprep.subr.bf16.mxu0 0
        %1619 = vmatpush2.bf16.msra.mxu0 0
        %1620 = vmatprep.subr.bf16.mxu0 0
        %1621 = vmatpush2.bf16.msra.mxu0 0
        %1622 = vmatprep.subr.bf16.mxu0 0
        %1623 = vmatpush2.bf16.msra.mxu0 0
        %1624 = vmatprep.subr.bf16.mxu0 0
        %1625 = vmatpush2.bf16.msra.mxu0 0
        %1626 = vmatprep.subr.bf16.mxu0 0
        %1627 = vmatpush2.bf16.msra.mxu0 0
        %1628 = vmatprep.subr.bf16.mxu0 0
        %1629 = vmatpush2.bf16.msra.mxu0 0
        %1630 = vmatprep.subr.bf16.mxu0 0
        %1631 = vmatpush2.bf16.msra.mxu0 0
        %1632 = vmatprep.subr.bf16.mxu0 0
        %1633 = vmatpush2.bf16.msra.mxu0 0
        %1634 = vmatprep.mubr.bf16.mxu0 0
        %1635 = vmatmul.mubr.bf16.gmra.mxu0 %v1600
        %v1636 = vpop.f32.mrf.mxu0
        %v1637 = vadd.f32 0.0, %v1636
        %v1638 = vpop.f32.mrf.mxu0
        %v1639 = vadd.f32 0.0, %v1638
        %v1640 = vpop.f32.mrf.mxu0
        %v1641 = vpop.f32.mrf.mxu0
        %1642 = vdwg.mxu0
        %1643 = vmatprep.subr.bf16.mxu0 0
        %1644 = vmatpush1.bf16.msra.mxu0 0
        %1645 = vmatprep.subr.bf16.mxu0 0
        %1646 = vmatpush1.bf16.msra.mxu0 0
        %1647 = vmatprep.subr.bf16.mxu0 0
        %1648 = vmatpush1.bf16.msra.mxu0 0
        %1649 = vmatprep.subr.bf16.mxu0 0
        %1650 = vmatpush1.bf16.msra.mxu0 0
        %1651 = vmatprep.subr.bf16.mxu0 0
        %1652 = vmatpush1.bf16.msra.mxu0 0
        %1653 = vmatprep.subr.bf16.mxu0 0
        %1654 = vmatpush1.bf16.msra.mxu0 0
        %1655 = vmatprep.subr.bf16.mxu0 0
        %1656 = vmatpush1.bf16.msra.mxu0 0
        %1657 = vmatprep.subr.bf16.mxu0 %v1594
        %1658 = vmatpush1.bf16.msra.mxu0 %v1593
        %1659 = vmatprep.subr.bf16.mxu0 0
        %1660 = vmatpush2.bf16.msra.mxu0 0
        %1661 = vmatprep.subr.bf16.mxu0 0
        %1662 = vmatpush2.bf16.msra.mxu0 0
        %1663 = vmatprep.subr.bf16.mxu0 0
        %1664 = vmatpush2.bf16.msra.mxu0 0
        %1665 = vmatprep.subr.bf16.mxu0 0
        %1666 = vmatpush2.bf16.msra.mxu0 0
        %1667 = vmatprep.subr.bf16.mxu0 0
        %1668 = vmatpush2.bf16.msra.mxu0 0
        %1669 = vmatprep.subr.bf16.mxu0 0
        %1670 = vmatpush2.bf16.msra.mxu0 0
        %1671 = vmatprep.subr.bf16.mxu0 0
        %1672 = vmatpush2.bf16.msra.mxu0 0
        %1673 = vmatprep.subr.bf16.mxu0 0
        %1674 = vmatpush2.bf16.msra.mxu0 0
        %1675 = vmatprep.mubr.bf16.mxu0 0
        %1676 = vmatmul.mubr.bf16.gmra.mxu0 %v1600
        %v1677 = vpop.f32.mrf.mxu0
        %v1678 = vadd.f32 0.0, %v1677
        %v1679 = vpop.f32.mrf.mxu0
        %v1680 = vadd.f32 0.0, %v1679
        %v1681 = vpop.f32.mrf.mxu0
        %v1682 = vpop.f32.mrf.mxu0
        %1683 = vdwg.mxu0
        %v1684 = vadd.f32 %v1574, %v1637
        %v1685 = vadd.f32 %v1575, %v1639
        %v1686 = vadd.f32 %v1576, %v1678
        %v1687 = vadd.f32 %v1577, %v1680
        %s1688 = scalar_lea.vmem %s2, 52
        %v1689 = vld [vmem:[%s1688] sm:$0xf]
        %1690 = vrot.lane.b32.xlu0 %v269, 17
        %v1691 = vpop.permute.xlu0 %1690
        %1692 = vrot.lane.b32.xlu0 %v270, 17
        %v1693 = vpop.permute.xlu0 %1692
        %1694 = vrot.lane.b32.xlu0 %v271, 17
        %v1695 = vpop.permute.xlu0 %1694
        %1696 = vrot.lane.b32.xlu0 %v272, 17
        %v1697 = vpop.permute.xlu0 %1696
        %1698 = vrot.lane.b32.xlu0 %v283, 17
        %v1699 = vpop.permute.xlu0 %1698
        %vm1700 = vcmask 138240
        %v1701 = vsel %vm1700, %v1691, %v1693
        %v1702 = vsel %vm1700, %v1693, %v1695
        %v1703 = vsel %vm1700, %v1695, %v1697
        %v1704 = vsel %vm1700, %v1697, %v1699
        %v1710 = vsel %vm307, %v1689, 0
        %1712 = vmatprep.subr.bf16.mxu0 0
        %1713 = vmatpush1.bf16.msra.mxu0 0
        %1714 = vmatprep.subr.bf16.mxu0 0
        %1715 = vmatpush1.bf16.msra.mxu0 0
        %1716 = vmatprep.subr.bf16.mxu0 0
        %1717 = vmatpush1.bf16.msra.mxu0 0
        %1718 = vmatprep.subr.bf16.mxu0 0
        %1719 = vmatpush1.bf16.msra.mxu0 0
        %1720 = vmatprep.subr.bf16.mxu0 0
        %1721 = vmatpush1.bf16.msra.mxu0 0
        %1722 = vmatprep.subr.bf16.mxu0 0
        %1723 = vmatpush1.bf16.msra.mxu0 0
        %1724 = vmatprep.subr.bf16.mxu0 0
        %1725 = vmatpush1.bf16.msra.mxu0 0
        %1726 = vmatprep.subr.bf16.mxu0 %v1702
        %1727 = vmatpush1.bf16.msra.mxu0 %v1701
        %1728 = vmatprep.subr.bf16.mxu0 0
        %1729 = vmatpush2.bf16.msra.mxu0 0
        %1730 = vmatprep.subr.bf16.mxu0 0
        %1731 = vmatpush2.bf16.msra.mxu0 0
        %1732 = vmatprep.subr.bf16.mxu0 0
        %1733 = vmatpush2.bf16.msra.mxu0 0
        %1734 = vmatprep.subr.bf16.mxu0 0
        %1735 = vmatpush2.bf16.msra.mxu0 0
        %1736 = vmatprep.subr.bf16.mxu0 0
        %1737 = vmatpush2.bf16.msra.mxu0 0
        %1738 = vmatprep.subr.bf16.mxu0 0
        %1739 = vmatpush2.bf16.msra.mxu0 0
        %1740 = vmatprep.subr.bf16.mxu0 0
        %1741 = vmatpush2.bf16.msra.mxu0 0
        %1742 = vmatprep.subr.bf16.mxu0 0
        %1743 = vmatpush2.bf16.msra.mxu0 0
        %1744 = vmatprep.mubr.bf16.mxu0 0
        %1745 = vmatmul.mubr.bf16.gmra.mxu0 %v1710
        %v1746 = vpop.f32.mrf.mxu0
        %v1747 = vadd.f32 0.0, %v1746
        %v1748 = vpop.f32.mrf.mxu0
        %v1749 = vadd.f32 0.0, %v1748
        %v1750 = vpop.f32.mrf.mxu0
        %v1751 = vpop.f32.mrf.mxu0
        %1752 = vdwg.mxu0
        %1753 = vmatprep.subr.bf16.mxu0 0
        %1754 = vmatpush1.bf16.msra.mxu0 0
        %1755 = vmatprep.subr.bf16.mxu0 0
        %1756 = vmatpush1.bf16.msra.mxu0 0
        %1757 = vmatprep.subr.bf16.mxu0 0
        %1758 = vmatpush1.bf16.msra.mxu0 0
        %1759 = vmatprep.subr.bf16.mxu0 0
        %1760 = vmatpush1.bf16.msra.mxu0 0
        %1761 = vmatprep.subr.bf16.mxu0 0
        %1762 = vmatpush1.bf16.msra.mxu0 0
        %1763 = vmatprep.subr.bf16.mxu0 0
        %1764 = vmatpush1.bf16.msra.mxu0 0
        %1765 = vmatprep.subr.bf16.mxu0 0
        %1766 = vmatpush1.bf16.msra.mxu0 0
        %1767 = vmatprep.subr.bf16.mxu0 %v1704
        %1768 = vmatpush1.bf16.msra.mxu0 %v1703
        %1769 = vmatprep.subr.bf16.mxu0 0
        %1770 = vmatpush2.bf16.msra.mxu0 0
        %1771 = vmatprep.subr.bf16.mxu0 0
        %1772 = vmatpush2.bf16.msra.mxu0 0
        %1773 = vmatprep.subr.bf16.mxu0 0
        %1774 = vmatpush2.bf16.msra.mxu0 0
        %1775 = vmatprep.subr.bf16.mxu0 0
        %1776 = vmatpush2.bf16.msra.mxu0 0
        %1777 = vmatprep.subr.bf16.mxu0 0
        %1778 = vmatpush2.bf16.msra.mxu0 0
        %1779 = vmatprep.subr.bf16.mxu0 0
        %1780 = vmatpush2.bf16.msra.mxu0 0
        %1781 = vmatprep.subr.bf16.mxu0 0
        %1782 = vmatpush2.bf16.msra.mxu0 0
        %1783 = vmatprep.subr.bf16.mxu0 0
        %1784 = vmatpush2.bf16.msra.mxu0 0
        %1785 = vmatprep.mubr.bf16.mxu0 0
        %1786 = vmatmul.mubr.bf16.gmra.mxu0 %v1710
        %v1787 = vpop.f32.mrf.mxu0
        %v1788 = vadd.f32 0.0, %v1787
        %v1789 = vpop.f32.mrf.mxu0
        %v1790 = vadd.f32 0.0, %v1789
        %v1791 = vpop.f32.mrf.mxu0
        %v1792 = vpop.f32.mrf.mxu0
        %1793 = vdwg.mxu0
        %v1794 = vadd.f32 %v1684, %v1747
        %v1795 = vadd.f32 %v1685, %v1749
        %v1796 = vadd.f32 %v1686, %v1788
        %v1797 = vadd.f32 %v1687, %v1790
        %s1798 = scalar_lea.vmem %s2, 56
        %v1799 = vld [vmem:[%s1798] sm:$0xf]
        %1800 = vrot.lane.b32.xlu0 %v269, 16
        %v1801 = vpop.permute.xlu0 %1800
        %1802 = vrot.lane.b32.xlu0 %v270, 16
        %v1803 = vpop.permute.xlu0 %1802
        %1804 = vrot.lane.b32.xlu0 %v271, 16
        %v1805 = vpop.permute.xlu0 %1804
        %1806 = vrot.lane.b32.xlu0 %v272, 16
        %v1807 = vpop.permute.xlu0 %1806
        %1808 = vrot.lane.b32.xlu0 %v283, 16
        %v1809 = vpop.permute.xlu0 %1808
        %vm1810 = vcmask 130048
        %v1811 = vsel %vm1810, %v1801, %v1803
        %v1812 = vsel %vm1810, %v1803, %v1805
        %v1813 = vsel %vm1810, %v1805, %v1807
        %v1814 = vsel %vm1810, %v1807, %v1809
        %v1820 = vsel %vm307, %v1799, 0
        %1822 = vmatprep.subr.bf16.mxu0 0
        %1823 = vmatpush1.bf16.msra.mxu0 0
        %1824 = vmatprep.subr.bf16.mxu0 0
        %1825 = vmatpush1.bf16.msra.mxu0 0
        %1826 = vmatprep.subr.bf16.mxu0 0
        %1827 = vmatpush1.bf16.msra.mxu0 0
        %1828 = vmatprep.subr.bf16.mxu0 0
        %1829 = vmatpush1.bf16.msra.mxu0 0
        %1830 = vmatprep.subr.bf16.mxu0 0
        %1831 = vmatpush1.bf16.msra.mxu0 0
        %1832 = vmatprep.subr.bf16.mxu0 0
        %1833 = vmatpush1.bf16.msra.mxu0 0
        %1834 = vmatprep.subr.bf16.mxu0 0
        %1835 = vmatpush1.bf16.msra.mxu0 0
        %1836 = vmatprep.subr.bf16.mxu0 %v1812
        %1837 = vmatpush1.bf16.msra.mxu0 %v1811
        %1838 = vmatprep.subr.bf16.mxu0 0
        %1839 = vmatpush2.bf16.msra.mxu0 0
        %1840 = vmatprep.subr.bf16.mxu0 0
        %1841 = vmatpush2.bf16.msra.mxu0 0
        %1842 = vmatprep.subr.bf16.mxu0 0
        %1843 = vmatpush2.bf16.msra.mxu0 0
        %1844 = vmatprep.subr.bf16.mxu0 0
        %1845 = vmatpush2.bf16.msra.mxu0 0
        %1846 = vmatprep.subr.bf16.mxu0 0
        %1847 = vmatpush2.bf16.msra.mxu0 0
        %1848 = vmatprep.subr.bf16.mxu0 0
        %1849 = vmatpush2.bf16.msra.mxu0 0
        %1850 = vmatprep.subr.bf16.mxu0 0
        %1851 = vmatpush2.bf16.msra.mxu0 0
        %1852 = vmatprep.subr.bf16.mxu0 0
        %1853 = vmatpush2.bf16.msra.mxu0 0
        %1854 = vmatprep.mubr.bf16.mxu0 0
        %1855 = vmatmul.mubr.bf16.gmra.mxu0 %v1820
        %v1856 = vpop.f32.mrf.mxu0
        %v1857 = vadd.f32 0.0, %v1856
        %v1858 = vpop.f32.mrf.mxu0
        %v1859 = vadd.f32 0.0, %v1858
        %v1860 = vpop.f32.mrf.mxu0
        %v1861 = vpop.f32.mrf.mxu0
        %1862 = vdwg.mxu0
        %1863 = vmatprep.subr.bf16.mxu0 0
        %1864 = vmatpush1.bf16.msra.mxu0 0
        %1865 = vmatprep.subr.bf16.mxu0 0
        %1866 = vmatpush1.bf16.msra.mxu0 0
        %1867 = vmatprep.subr.bf16.mxu0 0
        %1868 = vmatpush1.bf16.msra.mxu0 0
        %1869 = vmatprep.subr.bf16.mxu0 0
        %1870 = vmatpush1.bf16.msra.mxu0 0
        %1871 = vmatprep.subr.bf16.mxu0 0
        %1872 = vmatpush1.bf16.msra.mxu0 0
        %1873 = vmatprep.subr.bf16.mxu0 0
        %1874 = vmatpush1.bf16.msra.mxu0 0
        %1875 = vmatprep.subr.bf16.mxu0 0
        %1876 = vmatpush1.bf16.msra.mxu0 0
        %1877 = vmatprep.subr.bf16.mxu0 %v1814
        %1878 = vmatpush1.bf16.msra.mxu0 %v1813
        %1879 = vmatprep.subr.bf16.mxu0 0
        %1880 = vmatpush2.bf16.msra.mxu0 0
        %1881 = vmatprep.subr.bf16.mxu0 0
        %1882 = vmatpush2.bf16.msra.mxu0 0
        %1883 = vmatprep.subr.bf16.mxu0 0
        %1884 = vmatpush2.bf16.msra.mxu0 0
        %1885 = vmatprep.subr.bf16.mxu0 0
        %1886 = vmatpush2.bf16.msra.mxu0 0
        %1887 = vmatprep.subr.bf16.mxu0 0
        %1888 = vmatpush2.bf16.msra.mxu0 0
        %1889 = vmatprep.subr.bf16.mxu0 0
        %1890 = vmatpush2.bf16.msra.mxu0 0
        %1891 = vmatprep.subr.bf16.mxu0 0
        %1892 = vmatpush2.bf16.msra.mxu0 0
        %1893 = vmatprep.subr.bf16.mxu0 0
        %1894 = vmatpush2.bf16.msra.mxu0 0
        %1895 = vmatprep.mubr.bf16.mxu0 0
        %1896 = vmatmul.mubr.bf16.gmra.mxu0 %v1820
        %v1897 = vpop.f32.mrf.mxu0
        %v1898 = vadd.f32 0.0, %v1897
        %v1899 = vpop.f32.mrf.mxu0
        %v1900 = vadd.f32 0.0, %v1899
        %v1901 = vpop.f32.mrf.mxu0
        %v1902 = vpop.f32.mrf.mxu0
        %1903 = vdwg.mxu0
        %v1904 = vadd.f32 %v1794, %v1857
        %v1905 = vadd.f32 %v1795, %v1859
        %v1906 = vadd.f32 %v1796, %v1898
        %v1907 = vadd.f32 %v1797, %v1900
        %s1908 = scalar_lea.vmem %s2, 60
        %v1909 = vld [vmem:[%s1908] sm:$0xf]
        %1910 = vrot.lane.b32.xlu0 %v269, 8
        %v1911 = vpop.permute.xlu0 %1910
        %1912 = vrot.lane.b32.xlu0 %v270, 8
        %v1913 = vpop.permute.xlu0 %1912
        %1914 = vrot.lane.b32.xlu0 %v271, 8
        %v1915 = vpop.permute.xlu0 %1914
        %1916 = vrot.lane.b32.xlu0 %v272, 8
        %v1917 = vpop.permute.xlu0 %1916
        %1918 = vrot.lane.b32.xlu0 %v283, 8
        %v1919 = vpop.permute.xlu0 %1918
        %vm1920 = vcmask 64512
        %v1921 = vsel %vm1920, %v1911, %v1913
        %v1922 = vsel %vm1920, %v1913, %v1915
        %v1923 = vsel %vm1920, %v1915, %v1917
        %v1924 = vsel %vm1920, %v1917, %v1919
        %v1930 = vsel %vm307, %v1909, 0
        %1932 = vmatprep.subr.bf16.mxu0 0
        %1933 = vmatpush1.bf16.msra.mxu0 0
        %1934 = vmatprep.subr.bf16.mxu0 0
        %1935 = vmatpush1.bf16.msra.mxu0 0
        %1936 = vmatprep.subr.bf16.mxu0 0
        %1937 = vmatpush1.bf16.msra.mxu0 0
        %1938 = vmatprep.subr.bf16.mxu0 0
        %1939 = vmatpush1.bf16.msra.mxu0 0
        %1940 = vmatprep.subr.bf16.mxu0 0
        %1941 = vmatpush1.bf16.msra.mxu0 0
        %1942 = vmatprep.subr.bf16.mxu0 0
        %1943 = vmatpush1.bf16.msra.mxu0 0
        %1944 = vmatprep.subr.bf16.mxu0 0
        %1945 = vmatpush1.bf16.msra.mxu0 0
        %1946 = vmatprep.subr.bf16.mxu0 %v1922
        %1947 = vmatpush1.bf16.msra.mxu0 %v1921
        %1948 = vmatprep.subr.bf16.mxu0 0
        %1949 = vmatpush2.bf16.msra.mxu0 0
        %1950 = vmatprep.subr.bf16.mxu0 0
        %1951 = vmatpush2.bf16.msra.mxu0 0
        %1952 = vmatprep.subr.bf16.mxu0 0
        %1953 = vmatpush2.bf16.msra.mxu0 0
        %1954 = vmatprep.subr.bf16.mxu0 0
        %1955 = vmatpush2.bf16.msra.mxu0 0
        %1956 = vmatprep.subr.bf16.mxu0 0
        %1957 = vmatpush2.bf16.msra.mxu0 0
        %1958 = vmatprep.subr.bf16.mxu0 0
        %1959 = vmatpush2.bf16.msra.mxu0 0
        %1960 = vmatprep.subr.bf16.mxu0 0
        %1961 = vmatpush2.bf16.msra.mxu0 0
        %1962 = vmatprep.subr.bf16.mxu0 0
        %1963 = vmatpush2.bf16.msra.mxu0 0
        %1964 = vmatprep.mubr.bf16.mxu0 0
        %1965 = vmatmul.mubr.bf16.gmra.mxu0 %v1930
        %v1966 = vpop.f32.mrf.mxu0
        %v1967 = vadd.f32 0.0, %v1966
        %v1968 = vpop.f32.mrf.mxu0
        %v1969 = vadd.f32 0.0, %v1968
        %v1970 = vpop.f32.mrf.mxu0
        %v1971 = vpop.f32.mrf.mxu0
        %1972 = vdwg.mxu0
        %1973 = vmatprep.subr.bf16.mxu0 0
        %1974 = vmatpush1.bf16.msra.mxu0 0
        %1975 = vmatprep.subr.bf16.mxu0 0
        %1976 = vmatpush1.bf16.msra.mxu0 0
        %1977 = vmatprep.subr.bf16.mxu0 0
        %1978 = vmatpush1.bf16.msra.mxu0 0
        %1979 = vmatprep.subr.bf16.mxu0 0
        %1980 = vmatpush1.bf16.msra.mxu0 0
        %1981 = vmatprep.subr.bf16.mxu0 0
        %1982 = vmatpush1.bf16.msra.mxu0 0
        %1983 = vmatprep.subr.bf16.mxu0 0
        %1984 = vmatpush1.bf16.msra.mxu0 0
        %1985 = vmatprep.subr.bf16.mxu0 0
        %1986 = vmatpush1.bf16.msra.mxu0 0
        %1987 = vmatprep.subr.bf16.mxu0 %v1924
        %1988 = vmatpush1.bf16.msra.mxu0 %v1923
        %1989 = vmatprep.subr.bf16.mxu0 0
        %1990 = vmatpush2.bf16.msra.mxu0 0
        %1991 = vmatprep.subr.bf16.mxu0 0
        %1992 = vmatpush2.bf16.msra.mxu0 0
        %1993 = vmatprep.subr.bf16.mxu0 0
        %1994 = vmatpush2.bf16.msra.mxu0 0
        %1995 = vmatprep.subr.bf16.mxu0 0
        %1996 = vmatpush2.bf16.msra.mxu0 0
        %1997 = vmatprep.subr.bf16.mxu0 0
        %1998 = vmatpush2.bf16.msra.mxu0 0
        %1999 = vmatprep.subr.bf16.mxu0 0
        %2000 = vmatpush2.bf16.msra.mxu0 0
        %2001 = vmatprep.subr.bf16.mxu0 0
        %2002 = vmatpush2.bf16.msra.mxu0 0
        %2003 = vmatprep.subr.bf16.mxu0 0
        %2004 = vmatpush2.bf16.msra.mxu0 0
        %2005 = vmatprep.mubr.bf16.mxu0 0
        %2006 = vmatmul.mubr.bf16.gmra.mxu0 %v1930
        %v2007 = vpop.f32.mrf.mxu0
        %v2008 = vadd.f32 0.0, %v2007
        %v2009 = vpop.f32.mrf.mxu0
        %v2010 = vadd.f32 0.0, %v2009
        %v2011 = vpop.f32.mrf.mxu0
        %v2012 = vpop.f32.mrf.mxu0
        %2013 = vdwg.mxu0
        %v2014 = vadd.f32 %v1904, %v1967
        %v2015 = vadd.f32 %v1905, %v1969
        %v2016 = vadd.f32 %v1906, %v2008
        %v2017 = vadd.f32 %v1907, %v2010
        %s2018 = scalar_lea.vmem %s2, 64
        %v2019 = vld [vmem:[%s2018] sm:$0xf]
        %2020 = vrot.lane.b32.xlu0 %v269, 7
        %v2021 = vpop.permute.xlu0 %2020
        %2022 = vrot.lane.b32.xlu0 %v270, 7
        %v2023 = vpop.permute.xlu0 %2022
        %2024 = vrot.lane.b32.xlu0 %v271, 7
        %v2025 = vpop.permute.xlu0 %2024
        %2026 = vrot.lane.b32.xlu0 %v272, 7
        %v2027 = vpop.permute.xlu0 %2026
        %2028 = vrot.lane.b32.xlu0 %v283, 7
        %v2029 = vpop.permute.xlu0 %2028
        %vm2030 = vcmask 56320
        %v2031 = vsel %vm2030, %v2021, %v2023
        %v2032 = vsel %vm2030, %v2023, %v2025
        %v2033 = vsel %vm2030, %v2025, %v2027
        %v2034 = vsel %vm2030, %v2027, %v2029
        %v2040 = vsel %vm307, %v2019, 0
        %2042 = vmatprep.subr.bf16.mxu0 0
        %2043 = vmatpush1.bf16.msra.mxu0 0
        %2044 = vmatprep.subr.bf16.mxu0 0
        %2045 = vmatpush1.bf16.msra.mxu0 0
        %2046 = vmatprep.subr.bf16.mxu0 0
        %2047 = vmatpush1.bf16.msra.mxu0 0
        %2048 = vmatprep.subr.bf16.mxu0 0
        %2049 = vmatpush1.bf16.msra.mxu0 0
        %2050 = vmatprep.subr.bf16.mxu0 0
        %2051 = vmatpush1.bf16.msra.mxu0 0
        %2052 = vmatprep.subr.bf16.mxu0 0
        %2053 = vmatpush1.bf16.msra.mxu0 0
        %2054 = vmatprep.subr.bf16.mxu0 0
        %2055 = vmatpush1.bf16.msra.mxu0 0
        %2056 = vmatprep.subr.bf16.mxu0 %v2032
        %2057 = vmatpush1.bf16.msra.mxu0 %v2031
        %2058 = vmatprep.subr.bf16.mxu0 0
        %2059 = vmatpush2.bf16.msra.mxu0 0
        %2060 = vmatprep.subr.bf16.mxu0 0
        %2061 = vmatpush2.bf16.msra.mxu0 0
        %2062 = vmatprep.subr.bf16.mxu0 0
        %2063 = vmatpush2.bf16.msra.mxu0 0
        %2064 = vmatprep.subr.bf16.mxu0 0
        %2065 = vmatpush2.bf16.msra.mxu0 0
        %2066 = vmatprep.subr.bf16.mxu0 0
        %2067 = vmatpush2.bf16.msra.mxu0 0
        %2068 = vmatprep.subr.bf16.mxu0 0
        %2069 = vmatpush2.bf16.msra.mxu0 0
        %2070 = vmatprep.subr.bf16.mxu0 0
        %2071 = vmatpush2.bf16.msra.mxu0 0
        %2072 = vmatprep.subr.bf16.mxu0 0
        %2073 = vmatpush2.bf16.msra.mxu0 0
        %2074 = vmatprep.mubr.bf16.mxu0 0
        %2075 = vmatmul.mubr.bf16.gmra.mxu0 %v2040
        %v2076 = vpop.f32.mrf.mxu0
        %v2077 = vadd.f32 0.0, %v2076
        %v2078 = vpop.f32.mrf.mxu0
        %v2079 = vadd.f32 0.0, %v2078
        %v2080 = vpop.f32.mrf.mxu0
        %v2081 = vpop.f32.mrf.mxu0
        %2082 = vdwg.mxu0
        %2083 = vmatprep.subr.bf16.mxu0 0
        %2084 = vmatpush1.bf16.msra.mxu0 0
        %2085 = vmatprep.subr.bf16.mxu0 0
        %2086 = vmatpush1.bf16.msra.mxu0 0
        %2087 = vmatprep.subr.bf16.mxu0 0
        %2088 = vmatpush1.bf16.msra.mxu0 0
        %2089 = vmatprep.subr.bf16.mxu0 0
        %2090 = vmatpush1.bf16.msra.mxu0 0
        %2091 = vmatprep.subr.bf16.mxu0 0
        %2092 = vmatpush1.bf16.msra.mxu0 0
        %2093 = vmatprep.subr.bf16.mxu0 0
        %2094 = vmatpush1.bf16.msra.mxu0 0
        %2095 = vmatprep.subr.bf16.mxu0 0
        %2096 = vmatpush1.bf16.msra.mxu0 0
        %2097 = vmatprep.subr.bf16.mxu0 %v2034
        %2098 = vmatpush1.bf16.msra.mxu0 %v2033
        %2099 = vmatprep.subr.bf16.mxu0 0
        %2100 = vmatpush2.bf16.msra.mxu0 0
        %2101 = vmatprep.subr.bf16.mxu0 0
        %2102 = vmatpush2.bf16.msra.mxu0 0
        %2103 = vmatprep.subr.bf16.mxu0 0
        %2104 = vmatpush2.bf16.msra.mxu0 0
        %2105 = vmatprep.subr.bf16.mxu0 0
        %2106 = vmatpush2.bf16.msra.mxu0 0
        %2107 = vmatprep.subr.bf16.mxu0 0
        %2108 = vmatpush2.bf16.msra.mxu0 0
        %2109 = vmatprep.subr.bf16.mxu0 0
        %2110 = vmatpush2.bf16.msra.mxu0 0
        %2111 = vmatprep.subr.bf16.mxu0 0
        %2112 = vmatpush2.bf16.msra.mxu0 0
        %2113 = vmatprep.subr.bf16.mxu0 0
        %2114 = vmatpush2.bf16.msra.mxu0 0
        %2115 = vmatprep.mubr.bf16.mxu0 0
        %2116 = vmatmul.mubr.bf16.gmra.mxu0 %v2040
        %v2117 = vpop.f32.mrf.mxu0
        %v2118 = vadd.f32 0.0, %v2117
        %v2119 = vpop.f32.mrf.mxu0
        %v2120 = vadd.f32 0.0, %v2119
        %v2121 = vpop.f32.mrf.mxu0
        %v2122 = vpop.f32.mrf.mxu0
        %2123 = vdwg.mxu0
        %v2124 = vadd.f32 %v2014, %v2077
        %v2125 = vadd.f32 %v2015, %v2079
        %v2126 = vadd.f32 %v2016, %v2118
        %v2127 = vadd.f32 %v2017, %v2120
        %s2128 = scalar_lea.vmem %s2, 68
        %v2129 = vld [vmem:[%s2128] sm:$0xf]
        %2130 = vrot.lane.b32.xlu0 %v269, 6
        %v2131 = vpop.permute.xlu0 %2130
        %2132 = vrot.lane.b32.xlu0 %v270, 6
        %v2133 = vpop.permute.xlu0 %2132
        %2134 = vrot.lane.b32.xlu0 %v271, 6
        %v2135 = vpop.permute.xlu0 %2134
        %2136 = vrot.lane.b32.xlu0 %v272, 6
        %v2137 = vpop.permute.xlu0 %2136
        %2138 = vrot.lane.b32.xlu0 %v283, 6
        %v2139 = vpop.permute.xlu0 %2138
        %vm2140 = vcmask 48128
        %v2141 = vsel %vm2140, %v2131, %v2133
        %v2142 = vsel %vm2140, %v2133, %v2135
        %v2143 = vsel %vm2140, %v2135, %v2137
        %v2144 = vsel %vm2140, %v2137, %v2139
        %v2150 = vsel %vm307, %v2129, 0
        %2152 = vmatprep.subr.bf16.mxu0 0
        %2153 = vmatpush1.bf16.msra.mxu0 0
        %2154 = vmatprep.subr.bf16.mxu0 0
        %2155 = vmatpush1.bf16.msra.mxu0 0
        %2156 = vmatprep.subr.bf16.mxu0 0
        %2157 = vmatpush1.bf16.msra.mxu0 0
        %2158 = vmatprep.subr.bf16.mxu0 0
        %2159 = vmatpush1.bf16.msra.mxu0 0
        %2160 = vmatprep.subr.bf16.mxu0 0
        %2161 = vmatpush1.bf16.msra.mxu0 0
        %2162 = vmatprep.subr.bf16.mxu0 0
        %2163 = vmatpush1.bf16.msra.mxu0 0
        %2164 = vmatprep.subr.bf16.mxu0 0
        %2165 = vmatpush1.bf16.msra.mxu0 0
        %2166 = vmatprep.subr.bf16.mxu0 %v2142
        %2167 = vmatpush1.bf16.msra.mxu0 %v2141
        %2168 = vmatprep.subr.bf16.mxu0 0
        %2169 = vmatpush2.bf16.msra.mxu0 0
        %2170 = vmatprep.subr.bf16.mxu0 0
        %2171 = vmatpush2.bf16.msra.mxu0 0
        %2172 = vmatprep.subr.bf16.mxu0 0
        %2173 = vmatpush2.bf16.msra.mxu0 0
        %2174 = vmatprep.subr.bf16.mxu0 0
        %2175 = vmatpush2.bf16.msra.mxu0 0
        %2176 = vmatprep.subr.bf16.mxu0 0
        %2177 = vmatpush2.bf16.msra.mxu0 0
        %2178 = vmatprep.subr.bf16.mxu0 0
        %2179 = vmatpush2.bf16.msra.mxu0 0
        %2180 = vmatprep.subr.bf16.mxu0 0
        %2181 = vmatpush2.bf16.msra.mxu0 0
        %2182 = vmatprep.subr.bf16.mxu0 0
        %2183 = vmatpush2.bf16.msra.mxu0 0
        %2184 = vmatprep.mubr.bf16.mxu0 0
        %2185 = vmatmul.mubr.bf16.gmra.mxu0 %v2150
        %v2186 = vpop.f32.mrf.mxu0
        %v2187 = vadd.f32 0.0, %v2186
        %v2188 = vpop.f32.mrf.mxu0
        %v2189 = vadd.f32 0.0, %v2188
        %v2190 = vpop.f32.mrf.mxu0
        %v2191 = vpop.f32.mrf.mxu0
        %2192 = vdwg.mxu0
        %2193 = vmatprep.subr.bf16.mxu0 0
        %2194 = vmatpush1.bf16.msra.mxu0 0
        %2195 = vmatprep.subr.bf16.mxu0 0
        %2196 = vmatpush1.bf16.msra.mxu0 0
        %2197 = vmatprep.subr.bf16.mxu0 0
        %2198 = vmatpush1.bf16.msra.mxu0 0
        %2199 = vmatprep.subr.bf16.mxu0 0
        %2200 = vmatpush1.bf16.msra.mxu0 0
        %2201 = vmatprep.subr.bf16.mxu0 0
        %2202 = vmatpush1.bf16.msra.mxu0 0
        %2203 = vmatprep.subr.bf16.mxu0 0
        %2204 = vmatpush1.bf16.msra.mxu0 0
        %2205 = vmatprep.subr.bf16.mxu0 0
        %2206 = vmatpush1.bf16.msra.mxu0 0
        %2207 = vmatprep.subr.bf16.mxu0 %v2144
        %2208 = vmatpush1.bf16.msra.mxu0 %v2143
        %2209 = vmatprep.subr.bf16.mxu0 0
        %2210 = vmatpush2.bf16.msra.mxu0 0
        %2211 = vmatprep.subr.bf16.mxu0 0
        %2212 = vmatpush2.bf16.msra.mxu0 0
        %2213 = vmatprep.subr.bf16.mxu0 0
        %2214 = vmatpush2.bf16.msra.mxu0 0
        %2215 = vmatprep.subr.bf16.mxu0 0
        %2216 = vmatpush2.bf16.msra.mxu0 0
        %2217 = vmatprep.subr.bf16.mxu0 0
        %2218 = vmatpush2.bf16.msra.mxu0 0
        %2219 = vmatprep.subr.bf16.mxu0 0
        %2220 = vmatpush2.bf16.msra.mxu0 0
        %2221 = vmatprep.subr.bf16.mxu0 0
        %2222 = vmatpush2.bf16.msra.mxu0 0
        %2223 = vmatprep.subr.bf16.mxu0 0
        %2224 = vmatpush2.bf16.msra.mxu0 0
        %2225 = vmatprep.mubr.bf16.mxu0 0
        %2226 = vmatmul.mubr.bf16.gmra.mxu0 %v2150
        %v2227 = vpop.f32.mrf.mxu0
        %v2228 = vadd.f32 0.0, %v2227
        %v2229 = vpop.f32.mrf.mxu0
        %v2230 = vadd.f32 0.0, %v2229
        %v2231 = vpop.f32.mrf.mxu0
        %v2232 = vpop.f32.mrf.mxu0
        %2233 = vdwg.mxu0
        %v2234 = vadd.f32 %v2124, %v2187
        %v2235 = vadd.f32 %v2125, %v2189
        %v2236 = vadd.f32 %v2126, %v2228
        %v2237 = vadd.f32 %v2127, %v2230
        %s2238 = scalar_lea.vmem %s2, 72
        %v2239 = vld [vmem:[%s2238] sm:$0xf]
        %2240 = vrot.lane.b32.xlu0 %v270, 56
        %v2241 = vpop.permute.xlu0 %2240
        %2242 = vrot.lane.b32.xlu0 %v271, 56
        %v2243 = vpop.permute.xlu0 %2242
        %2244 = vrot.lane.b32.xlu0 %v272, 56
        %v2245 = vpop.permute.xlu0 %2244
        %2246 = vrot.lane.b32.xlu0 %v283, 56
        %v2247 = vpop.permute.xlu0 %2246
        %2248 = vrot.lane.b32.xlu0 %v284, 56
        %v2249 = vpop.permute.xlu0 %2248
        %vm2250 = vcmask 457728
        %v2251 = vsel %vm2250, %v2241, %v2243
        %v2252 = vsel %vm2250, %v2243, %v2245
        %v2253 = vsel %vm2250, %v2245, %v2247
        %v2254 = vsel %vm2250, %v2247, %v2249
        %v2260 = vsel %vm307, %v2239, 0
        %2262 = vmatprep.subr.bf16.mxu0 0
        %2263 = vmatpush1.bf16.msra.mxu0 0
        %2264 = vmatprep.subr.bf16.mxu0 0
        %2265 = vmatpush1.bf16.msra.mxu0 0
        %2266 = vmatprep.subr.bf16.mxu0 0
        %2267 = vmatpush1.bf16.msra.mxu0 0
        %2268 = vmatprep.subr.bf16.mxu0 0
        %2269 = vmatpush1.bf16.msra.mxu0 0
        %2270 = vmatprep.subr.bf16.mxu0 0
        %2271 = vmatpush1.bf16.msra.mxu0 0
        %2272 = vmatprep.subr.bf16.mxu0 0
        %2273 = vmatpush1.bf16.msra.mxu0 0
        %2274 = vmatprep.subr.bf16.mxu0 0
        %2275 = vmatpush1.bf16.msra.mxu0 0
        %2276 = vmatprep.subr.bf16.mxu0 %v2252
        %2277 = vmatpush1.bf16.msra.mxu0 %v2251
        %2278 = vmatprep.subr.bf16.mxu0 0
        %2279 = vmatpush2.bf16.msra.mxu0 0
        %2280 = vmatprep.subr.bf16.mxu0 0
        %2281 = vmatpush2.bf16.msra.mxu0 0
        %2282 = vmatprep.subr.bf16.mxu0 0
        %2283 = vmatpush2.bf16.msra.mxu0 0
        %2284 = vmatprep.subr.bf16.mxu0 0
        %2285 = vmatpush2.bf16.msra.mxu0 0
        %2286 = vmatprep.subr.bf16.mxu0 0
        %2287 = vmatpush2.bf16.msra.mxu0 0
        %2288 = vmatprep.subr.bf16.mxu0 0
        %2289 = vmatpush2.bf16.msra.mxu0 0
        %2290 = vmatprep.subr.bf16.mxu0 0
        %2291 = vmatpush2.bf16.msra.mxu0 0
        %2292 = vmatprep.subr.bf16.mxu0 0
        %2293 = vmatpush2.bf16.msra.mxu0 0
        %2294 = vmatprep.mubr.bf16.mxu0 0
        %2295 = vmatmul.mubr.bf16.gmra.mxu0 %v2260
        %v2296 = vpop.f32.mrf.mxu0
        %v2297 = vadd.f32 0.0, %v2296
        %v2298 = vpop.f32.mrf.mxu0
        %v2299 = vadd.f32 0.0, %v2298
        %v2300 = vpop.f32.mrf.mxu0
        %v2301 = vpop.f32.mrf.mxu0
        %2302 = vdwg.mxu0
        %2303 = vmatprep.subr.bf16.mxu0 0
        %2304 = vmatpush1.bf16.msra.mxu0 0
        %2305 = vmatprep.subr.bf16.mxu0 0
        %2306 = vmatpush1.bf16.msra.mxu0 0
        %2307 = vmatprep.subr.bf16.mxu0 0
        %2308 = vmatpush1.bf16.msra.mxu0 0
        %2309 = vmatprep.subr.bf16.mxu0 0
        %2310 = vmatpush1.bf16.msra.mxu0 0
        %2311 = vmatprep.subr.bf16.mxu0 0
        %2312 = vmatpush1.bf16.msra.mxu0 0
        %2313 = vmatprep.subr.bf16.mxu0 0
        %2314 = vmatpush1.bf16.msra.mxu0 0
        %2315 = vmatprep.subr.bf16.mxu0 0
        %2316 = vmatpush1.bf16.msra.mxu0 0
        %2317 = vmatprep.subr.bf16.mxu0 %v2254
        %2318 = vmatpush1.bf16.msra.mxu0 %v2253
        %2319 = vmatprep.subr.bf16.mxu0 0
        %2320 = vmatpush2.bf16.msra.mxu0 0
        %2321 = vmatprep.subr.bf16.mxu0 0
        %2322 = vmatpush2.bf16.msra.mxu0 0
        %2323 = vmatprep.subr.bf16.mxu0 0
        %2324 = vmatpush2.bf16.msra.mxu0 0
        %2325 = vmatprep.subr.bf16.mxu0 0
        %2326 = vmatpush2.bf16.msra.mxu0 0
        %2327 = vmatprep.subr.bf16.mxu0 0
        %2328 = vmatpush2.bf16.msra.mxu0 0
        %2329 = vmatprep.subr.bf16.mxu0 0
        %2330 = vmatpush2.bf16.msra.mxu0 0
        %2331 = vmatprep.subr.bf16.mxu0 0
        %2332 = vmatpush2.bf16.msra.mxu0 0
        %2333 = vmatprep.subr.bf16.mxu0 0
        %2334 = vmatpush2.bf16.msra.mxu0 0
        %2335 = vmatprep.mubr.bf16.mxu0 0
        %2336 = vmatmul.mubr.bf16.gmra.mxu0 %v2260
        %v2337 = vpop.f32.mrf.mxu0
        %v2338 = vadd.f32 0.0, %v2337
        %v2339 = vpop.f32.mrf.mxu0
        %v2340 = vadd.f32 0.0, %v2339
        %v2341 = vpop.f32.mrf.mxu0
        %v2342 = vpop.f32.mrf.mxu0
        %2343 = vdwg.mxu0
        %v2344 = vadd.f32 %v2234, %v2297
        %v2345 = vadd.f32 %v2235, %v2299
        %v2346 = vadd.f32 %v2236, %v2338
        %v2347 = vadd.f32 %v2237, %v2340
        %s2348 = scalar_lea.vmem %s2, 76
        %v2349 = vld [vmem:[%s2348] sm:$0xf]
        %2350 = vrot.lane.b32.xlu0 %v270, 55
        %v2351 = vpop.permute.xlu0 %2350
        %2352 = vrot.lane.b32.xlu0 %v271, 55
        %v2353 = vpop.permute.xlu0 %2352
        %2354 = vrot.lane.b32.xlu0 %v272, 55
        %v2355 = vpop.permute.xlu0 %2354
        %2356 = vrot.lane.b32.xlu0 %v283, 55
        %v2357 = vpop.permute.xlu0 %2356
        %2358 = vrot.lane.b32.xlu0 %v284, 55
        %v2359 = vpop.permute.xlu0 %2358
        %vm2360 = vcmask 449536
        %v2361 = vsel %vm2360, %v2351, %v2353
        %v2362 = vsel %vm2360, %v2353, %v2355
        %v2363 = vsel %vm2360, %v2355, %v2357
        %v2364 = vsel %vm2360, %v2357, %v2359
        %v2370 = vsel %vm307, %v2349, 0
        %2372 = vmatprep.subr.bf16.mxu0 0
        %2373 = vmatpush1.bf16.msra.mxu0 0
        %2374 = vmatprep.subr.bf16.mxu0 0
        %2375 = vmatpush1.bf16.msra.mxu0 0
        %2376 = vmatprep.subr.bf16.mxu0 0
        %2377 = vmatpush1.bf16.msra.mxu0 0
        %2378 = vmatprep.subr.bf16.mxu0 0
        %2379 = vmatpush1.bf16.msra.mxu0 0
        %2380 = vmatprep.subr.bf16.mxu0 0
        %2381 = vmatpush1.bf16.msra.mxu0 0
        %2382 = vmatprep.subr.bf16.mxu0 0
        %2383 = vmatpush1.bf16.msra.mxu0 0
        %2384 = vmatprep.subr.bf16.mxu0 0
        %2385 = vmatpush1.bf16.msra.mxu0 0
        %2386 = vmatprep.subr.bf16.mxu0 %v2362
        %2387 = vmatpush1.bf16.msra.mxu0 %v2361
        %2388 = vmatprep.subr.bf16.mxu0 0
        %2389 = vmatpush2.bf16.msra.mxu0 0
        %2390 = vmatprep.subr.bf16.mxu0 0
        %2391 = vmatpush2.bf16.msra.mxu0 0
        %2392 = vmatprep.subr.bf16.mxu0 0
        %2393 = vmatpush2.bf16.msra.mxu0 0
        %2394 = vmatprep.subr.bf16.mxu0 0
        %2395 = vmatpush2.bf16.msra.mxu0 0
        %2396 = vmatprep.subr.bf16.mxu0 0
        %2397 = vmatpush2.bf16.msra.mxu0 0
        %2398 = vmatprep.subr.bf16.mxu0 0
        %2399 = vmatpush2.bf16.msra.mxu0 0
        %2400 = vmatprep.subr.bf16.mxu0 0
        %2401 = vmatpush2.bf16.msra.mxu0 0
        %2402 = vmatprep.subr.bf16.mxu0 0
        %2403 = vmatpush2.bf16.msra.mxu0 0
        %2404 = vmatprep.mubr.bf16.mxu0 0
        %2405 = vmatmul.mubr.bf16.gmra.mxu0 %v2370
        %v2406 = vpop.f32.mrf.mxu0
        %v2407 = vadd.f32 0.0, %v2406
        %v2408 = vpop.f32.mrf.mxu0
        %v2409 = vadd.f32 0.0, %v2408
        %v2410 = vpop.f32.mrf.mxu0
        %v2411 = vpop.f32.mrf.mxu0
        %2412 = vdwg.mxu0
        %2413 = vmatprep.subr.bf16.mxu0 0
        %2414 = vmatpush1.bf16.msra.mxu0 0
        %2415 = vmatprep.subr.bf16.mxu0 0
        %2416 = vmatpush1.bf16.msra.mxu0 0
        %2417 = vmatprep.subr.bf16.mxu0 0
        %2418 = vmatpush1.bf16.msra.mxu0 0
        %2419 = vmatprep.subr.bf16.mxu0 0
        %2420 = vmatpush1.bf16.msra.mxu0 0
        %2421 = vmatprep.subr.bf16.mxu0 0
        %2422 = vmatpush1.bf16.msra.mxu0 0
        %2423 = vmatprep.subr.bf16.mxu0 0
        %2424 = vmatpush1.bf16.msra.mxu0 0
        %2425 = vmatprep.subr.bf16.mxu0 0
        %2426 = vmatpush1.bf16.msra.mxu0 0
        %2427 = vmatprep.subr.bf16.mxu0 %v2364
        %2428 = vmatpush1.bf16.msra.mxu0 %v2363
        %2429 = vmatprep.subr.bf16.mxu0 0
        %2430 = vmatpush2.bf16.msra.mxu0 0
        %2431 = vmatprep.subr.bf16.mxu0 0
        %2432 = vmatpush2.bf16.msra.mxu0 0
        %2433 = vmatprep.subr.bf16.mxu0 0
        %2434 = vmatpush2.bf16.msra.mxu0 0
        %2435 = vmatprep.subr.bf16.mxu0 0
        %2436 = vmatpush2.bf16.msra.mxu0 0
        %2437 = vmatprep.subr.bf16.mxu0 0
        %2438 = vmatpush2.bf16.msra.mxu0 0
        %2439 = vmatprep.subr.bf16.mxu0 0
        %2440 = vmatpush2.bf16.msra.mxu0 0
        %2441 = vmatprep.subr.bf16.mxu0 0
        %2442 = vmatpush2.bf16.msra.mxu0 0
        %2443 = vmatprep.subr.bf16.mxu0 0
        %2444 = vmatpush2.bf16.msra.mxu0 0
        %2445 = vmatprep.mubr.bf16.mxu0 0
        %2446 = vmatmul.mubr.bf16.gmra.mxu0 %v2370
        %v2447 = vpop.f32.mrf.mxu0
        %v2448 = vadd.f32 0.0, %v2447
        %v2449 = vpop.f32.mrf.mxu0
        %v2450 = vadd.f32 0.0, %v2449
        %v2451 = vpop.f32.mrf.mxu0
        %v2452 = vpop.f32.mrf.mxu0
        %2453 = vdwg.mxu0
        %v2454 = vadd.f32 %v2344, %v2407
        %v2455 = vadd.f32 %v2345, %v2409
        %v2456 = vadd.f32 %v2346, %v2448
        %v2457 = vadd.f32 %v2347, %v2450
        %s2458 = scalar_lea.vmem %s2, 80
        %v2459 = vld [vmem:[%s2458] sm:$0xf]
        %2460 = vrot.lane.b32.xlu0 %v270, 54
        %v2461 = vpop.permute.xlu0 %2460
        %2462 = vrot.lane.b32.xlu0 %v271, 54
        %v2463 = vpop.permute.xlu0 %2462
        %2464 = vrot.lane.b32.xlu0 %v272, 54
        %v2465 = vpop.permute.xlu0 %2464
        %2466 = vrot.lane.b32.xlu0 %v283, 54
        %v2467 = vpop.permute.xlu0 %2466
        %2468 = vrot.lane.b32.xlu0 %v284, 54
        %v2469 = vpop.permute.xlu0 %2468
        %vm2470 = vcmask 441344
        %v2471 = vsel %vm2470, %v2461, %v2463
        %v2472 = vsel %vm2470, %v2463, %v2465
        %v2473 = vsel %vm2470, %v2465, %v2467
        %v2474 = vsel %vm2470, %v2467, %v2469
        %v2480 = vsel %vm307, %v2459, 0
        %2482 = vmatprep.subr.bf16.mxu0 0
        %2483 = vmatpush1.bf16.msra.mxu0 0
        %2484 = vmatprep.subr.bf16.mxu0 0
        %2485 = vmatpush1.bf16.msra.mxu0 0
        %2486 = vmatprep.subr.bf16.mxu0 0
        %2487 = vmatpush1.bf16.msra.mxu0 0
        %2488 = vmatprep.subr.bf16.mxu0 0
        %2489 = vmatpush1.bf16.msra.mxu0 0
        %2490 = vmatprep.subr.bf16.mxu0 0
        %2491 = vmatpush1.bf16.msra.mxu0 0
        %2492 = vmatprep.subr.bf16.mxu0 0
        %2493 = vmatpush1.bf16.msra.mxu0 0
        %2494 = vmatprep.subr.bf16.mxu0 0
        %2495 = vmatpush1.bf16.msra.mxu0 0
        %2496 = vmatprep.subr.bf16.mxu0 %v2472
        %2497 = vmatpush1.bf16.msra.mxu0 %v2471
        %2498 = vmatprep.subr.bf16.mxu0 0
        %2499 = vmatpush2.bf16.msra.mxu0 0
        %2500 = vmatprep.subr.bf16.mxu0 0
        %2501 = vmatpush2.bf16.msra.mxu0 0
        %2502 = vmatprep.subr.bf16.mxu0 0
        %2503 = vmatpush2.bf16.msra.mxu0 0
        %2504 = vmatprep.subr.bf16.mxu0 0
        %2505 = vmatpush2.bf16.msra.mxu0 0
        %2506 = vmatprep.subr.bf16.mxu0 0
        %2507 = vmatpush2.bf16.msra.mxu0 0
        %2508 = vmatprep.subr.bf16.mxu0 0
        %2509 = vmatpush2.bf16.msra.mxu0 0
        %2510 = vmatprep.subr.bf16.mxu0 0
        %2511 = vmatpush2.bf16.msra.mxu0 0
        %2512 = vmatprep.subr.bf16.mxu0 0
        %2513 = vmatpush2.bf16.msra.mxu0 0
        %2514 = vmatprep.mubr.bf16.mxu0 0
        %2515 = vmatmul.mubr.bf16.gmra.mxu0 %v2480
        %v2516 = vpop.f32.mrf.mxu0
        %v2517 = vadd.f32 0.0, %v2516
        %v2518 = vpop.f32.mrf.mxu0
        %v2519 = vadd.f32 0.0, %v2518
        %v2520 = vpop.f32.mrf.mxu0
        %v2521 = vpop.f32.mrf.mxu0
        %2522 = vdwg.mxu0
        %2523 = vmatprep.subr.bf16.mxu0 0
        %2524 = vmatpush1.bf16.msra.mxu0 0
        %2525 = vmatprep.subr.bf16.mxu0 0
        %2526 = vmatpush1.bf16.msra.mxu0 0
        %2527 = vmatprep.subr.bf16.mxu0 0
        %2528 = vmatpush1.bf16.msra.mxu0 0
        %2529 = vmatprep.subr.bf16.mxu0 0
        %2530 = vmatpush1.bf16.msra.mxu0 0
        %2531 = vmatprep.subr.bf16.mxu0 0
        %2532 = vmatpush1.bf16.msra.mxu0 0
        %2533 = vmatprep.subr.bf16.mxu0 0
        %2534 = vmatpush1.bf16.msra.mxu0 0
        %2535 = vmatprep.subr.bf16.mxu0 0
        %2536 = vmatpush1.bf16.msra.mxu0 0
        %2537 = vmatprep.subr.bf16.mxu0 %v2474
        %2538 = vmatpush1.bf16.msra.mxu0 %v2473
        %2539 = vmatprep.subr.bf16.mxu0 0
        %2540 = vmatpush2.bf16.msra.mxu0 0
        %2541 = vmatprep.subr.bf16.mxu0 0
        %2542 = vmatpush2.bf16.msra.mxu0 0
        %2543 = vmatprep.subr.bf16.mxu0 0
        %2544 = vmatpush2.bf16.msra.mxu0 0
        %2545 = vmatprep.subr.bf16.mxu0 0
        %2546 = vmatpush2.bf16.msra.mxu0 0
        %2547 = vmatprep.subr.bf16.mxu0 0
        %2548 = vmatpush2.bf16.msra.mxu0 0
        %2549 = vmatprep.subr.bf16.mxu0 0
        %2550 = vmatpush2.bf16.msra.mxu0 0
        %2551 = vmatprep.subr.bf16.mxu0 0
        %2552 = vmatpush2.bf16.msra.mxu0 0
        %2553 = vmatprep.subr.bf16.mxu0 0
        %2554 = vmatpush2.bf16.msra.mxu0 0
        %2555 = vmatprep.mubr.bf16.mxu0 0
        %2556 = vmatmul.mubr.bf16.gmra.mxu0 %v2480
        %v2557 = vpop.f32.mrf.mxu0
        %v2558 = vadd.f32 0.0, %v2557
        %v2559 = vpop.f32.mrf.mxu0
        %v2560 = vadd.f32 0.0, %v2559
        %v2561 = vpop.f32.mrf.mxu0
        %v2562 = vpop.f32.mrf.mxu0
        %2563 = vdwg.mxu0
        %v2564 = vadd.f32 %v2454, %v2517
        %v2565 = vadd.f32 %v2455, %v2519
        %v2566 = vadd.f32 %v2456, %v2558
        %v2567 = vadd.f32 %v2457, %v2560
        %s2568 = scalar_lea.vmem %s2, 84
        %v2569 = vld [vmem:[%s2568] sm:$0xf]
        %2570 = vrot.lane.b32.xlu0 %v270, 46
        %v2571 = vpop.permute.xlu0 %2570
        %2572 = vrot.lane.b32.xlu0 %v271, 46
        %v2573 = vpop.permute.xlu0 %2572
        %2574 = vrot.lane.b32.xlu0 %v272, 46
        %v2575 = vpop.permute.xlu0 %2574
        %2576 = vrot.lane.b32.xlu0 %v283, 46
        %v2577 = vpop.permute.xlu0 %2576
        %2578 = vrot.lane.b32.xlu0 %v284, 46
        %v2579 = vpop.permute.xlu0 %2578
        %vm2580 = vcmask 375808
        %v2581 = vsel %vm2580, %v2571, %v2573
        %v2582 = vsel %vm2580, %v2573, %v2575
        %v2583 = vsel %vm2580, %v2575, %v2577
        %v2584 = vsel %vm2580, %v2577, %v2579
        %v2590 = vsel %vm307, %v2569, 0
        %2592 = vmatprep.subr.bf16.mxu0 0
        %2593 = vmatpush1.bf16.msra.mxu0 0
        %2594 = vmatprep.subr.bf16.mxu0 0
        %2595 = vmatpush1.bf16.msra.mxu0 0
        %2596 = vmatprep.subr.bf16.mxu0 0
        %2597 = vmatpush1.bf16.msra.mxu0 0
        %2598 = vmatprep.subr.bf16.mxu0 0
        %2599 = vmatpush1.bf16.msra.mxu0 0
        %2600 = vmatprep.subr.bf16.mxu0 0
        %2601 = vmatpush1.bf16.msra.mxu0 0
        %2602 = vmatprep.subr.bf16.mxu0 0
        %2603 = vmatpush1.bf16.msra.mxu0 0
        %2604 = vmatprep.subr.bf16.mxu0 0
        %2605 = vmatpush1.bf16.msra.mxu0 0
        %2606 = vmatprep.subr.bf16.mxu0 %v2582
        %2607 = vmatpush1.bf16.msra.mxu0 %v2581
        %2608 = vmatprep.subr.bf16.mxu0 0
        %2609 = vmatpush2.bf16.msra.mxu0 0
        %2610 = vmatprep.subr.bf16.mxu0 0
        %2611 = vmatpush2.bf16.msra.mxu0 0
        %2612 = vmatprep.subr.bf16.mxu0 0
        %2613 = vmatpush2.bf16.msra.mxu0 0
        %2614 = vmatprep.subr.bf16.mxu0 0
        %2615 = vmatpush2.bf16.msra.mxu0 0
        %2616 = vmatprep.subr.bf16.mxu0 0
        %2617 = vmatpush2.bf16.msra.mxu0 0
        %2618 = vmatprep.subr.bf16.mxu0 0
        %2619 = vmatpush2.bf16.msra.mxu0 0
        %2620 = vmatprep.subr.bf16.mxu0 0
        %2621 = vmatpush2.bf16.msra.mxu0 0
        %2622 = vmatprep.subr.bf16.mxu0 0
        %2623 = vmatpush2.bf16.msra.mxu0 0
        %2624 = vmatprep.mubr.bf16.mxu0 0
        %2625 = vmatmul.mubr.bf16.gmra.mxu0 %v2590
        %v2626 = vpop.f32.mrf.mxu0
        %v2627 = vadd.f32 0.0, %v2626
        %v2628 = vpop.f32.mrf.mxu0
        %v2629 = vadd.f32 0.0, %v2628
        %v2630 = vpop.f32.mrf.mxu0
        %v2631 = vpop.f32.mrf.mxu0
        %2632 = vdwg.mxu0
        %2633 = vmatprep.subr.bf16.mxu0 0
        %2634 = vmatpush1.bf16.msra.mxu0 0
        %2635 = vmatprep.subr.bf16.mxu0 0
        %2636 = vmatpush1.bf16.msra.mxu0 0
        %2637 = vmatprep.subr.bf16.mxu0 0
        %2638 = vmatpush1.bf16.msra.mxu0 0
        %2639 = vmatprep.subr.bf16.mxu0 0
        %2640 = vmatpush1.bf16.msra.mxu0 0
        %2641 = vmatprep.subr.bf16.mxu0 0
        %2642 = vmatpush1.bf16.msra.mxu0 0
        %2643 = vmatprep.subr.bf16.mxu0 0
        %2644 = vmatpush1.bf16.msra.mxu0 0
        %2645 = vmatprep.subr.bf16.mxu0 0
        %2646 = vmatpush1.bf16.msra.mxu0 0
        %2647 = vmatprep.subr.bf16.mxu0 %v2584
        %2648 = vmatpush1.bf16.msra.mxu0 %v2583
        %2649 = vmatprep.subr.bf16.mxu0 0
        %2650 = vmatpush2.bf16.msra.mxu0 0
        %2651 = vmatprep.subr.bf16.mxu0 0
        %2652 = vmatpush2.bf16.msra.mxu0 0
        %2653 = vmatprep.subr.bf16.mxu0 0
        %2654 = vmatpush2.bf16.msra.mxu0 0
        %2655 = vmatprep.subr.bf16.mxu0 0
        %2656 = vmatpush2.bf16.msra.mxu0 0
        %2657 = vmatprep.subr.bf16.mxu0 0
        %2658 = vmatpush2.bf16.msra.mxu0 0
        %2659 = vmatprep.subr.bf16.mxu0 0
        %2660 = vmatpush2.bf16.msra.mxu0 0
        %2661 = vmatprep.subr.bf16.mxu0 0
        %2662 = vmatpush2.bf16.msra.mxu0 0
        %2663 = vmatprep.subr.bf16.mxu0 0
        %2664 = vmatpush2.bf16.msra.mxu0 0
        %2665 = vmatprep.mubr.bf16.mxu0 0
        %2666 = vmatmul.mubr.bf16.gmra.mxu0 %v2590
        %v2667 = vpop.f32.mrf.mxu0
        %v2668 = vadd.f32 0.0, %v2667
        %v2669 = vpop.f32.mrf.mxu0
        %v2670 = vadd.f32 0.0, %v2669
        %v2671 = vpop.f32.mrf.mxu0
        %v2672 = vpop.f32.mrf.mxu0
        %2673 = vdwg.mxu0
        %v2674 = vadd.f32 %v2564, %v2627
        %v2675 = vadd.f32 %v2565, %v2629
        %v2676 = vadd.f32 %v2566, %v2668
        %v2677 = vadd.f32 %v2567, %v2670
        %s2678 = scalar_lea.vmem %s2, 88
        %v2679 = vld [vmem:[%s2678] sm:$0xf]
        %2680 = vrot.lane.b32.xlu0 %v270, 45
        %v2681 = vpop.permute.xlu0 %2680
        %2682 = vrot.lane.b32.xlu0 %v271, 45
        %v2683 = vpop.permute.xlu0 %2682
        %2684 = vrot.lane.b32.xlu0 %v272, 45
        %v2685 = vpop.permute.xlu0 %2684
        %2686 = vrot.lane.b32.xlu0 %v283, 45
        %v2687 = vpop.permute.xlu0 %2686
        %2688 = vrot.lane.b32.xlu0 %v284, 45
        %v2689 = vpop.permute.xlu0 %2688
        %vm2690 = vcmask 367616
        %v2691 = vsel %vm2690, %v2681, %v2683
        %v2692 = vsel %vm2690, %v2683, %v2685
        %v2693 = vsel %vm2690, %v2685, %v2687
        %v2694 = vsel %vm2690, %v2687, %v2689
        %v2700 = vsel %vm307, %v2679, 0
        %2702 = vmatprep.subr.bf16.mxu0 0
        %2703 = vmatpush1.bf16.msra.mxu0 0
        %2704 = vmatprep.subr.bf16.mxu0 0
        %2705 = vmatpush1.bf16.msra.mxu0 0
        %2706 = vmatprep.subr.bf16.mxu0 0
        %2707 = vmatpush1.bf16.msra.mxu0 0
        %2708 = vmatprep.subr.bf16.mxu0 0
        %2709 = vmatpush1.bf16.msra.mxu0 0
        %2710 = vmatprep.subr.bf16.mxu0 0
        %2711 = vmatpush1.bf16.msra.mxu0 0
        %2712 = vmatprep.subr.bf16.mxu0 0
        %2713 = vmatpush1.bf16.msra.mxu0 0
        %2714 = vmatprep.subr.bf16.mxu0 0
        %2715 = vmatpush1.bf16.msra.mxu0 0
        %2716 = vmatprep.subr.bf16.mxu0 %v2692
        %2717 = vmatpush1.bf16.msra.mxu0 %v2691
        %2718 = vmatprep.subr.bf16.mxu0 0
        %2719 = vmatpush2.bf16.msra.mxu0 0
        %2720 = vmatprep.subr.bf16.mxu0 0
        %2721 = vmatpush2.bf16.msra.mxu0 0
        %2722 = vmatprep.subr.bf16.mxu0 0
        %2723 = vmatpush2.bf16.msra.mxu0 0
        %2724 = vmatprep.subr.bf16.mxu0 0
        %2725 = vmatpush2.bf16.msra.mxu0 0
        %2726 = vmatprep.subr.bf16.mxu0 0
        %2727 = vmatpush2.bf16.msra.mxu0 0
        %2728 = vmatprep.subr.bf16.mxu0 0
        %2729 = vmatpush2.bf16.msra.mxu0 0
        %2730 = vmatprep.subr.bf16.mxu0 0
        %2731 = vmatpush2.bf16.msra.mxu0 0
        %2732 = vmatprep.subr.bf16.mxu0 0
        %2733 = vmatpush2.bf16.msra.mxu0 0
        %2734 = vmatprep.mubr.bf16.mxu0 0
        %2735 = vmatmul.mubr.bf16.gmra.mxu0 %v2700
        %v2736 = vpop.f32.mrf.mxu0
        %v2737 = vadd.f32 0.0, %v2736
        %v2738 = vpop.f32.mrf.mxu0
        %v2739 = vadd.f32 0.0, %v2738
        %v2740 = vpop.f32.mrf.mxu0
        %v2741 = vpop.f32.mrf.mxu0
        %2742 = vdwg.mxu0
        %2743 = vmatprep.subr.bf16.mxu0 0
        %2744 = vmatpush1.bf16.msra.mxu0 0
        %2745 = vmatprep.subr.bf16.mxu0 0
        %2746 = vmatpush1.bf16.msra.mxu0 0
        %2747 = vmatprep.subr.bf16.mxu0 0
        %2748 = vmatpush1.bf16.msra.mxu0 0
        %2749 = vmatprep.subr.bf16.mxu0 0
        %2750 = vmatpush1.bf16.msra.mxu0 0
        %2751 = vmatprep.subr.bf16.mxu0 0
        %2752 = vmatpush1.bf16.msra.mxu0 0
        %2753 = vmatprep.subr.bf16.mxu0 0
        %2754 = vmatpush1.bf16.msra.mxu0 0
        %2755 = vmatprep.subr.bf16.mxu0 0
        %2756 = vmatpush1.bf16.msra.mxu0 0
        %2757 = vmatprep.subr.bf16.mxu0 %v2694
        %2758 = vmatpush1.bf16.msra.mxu0 %v2693
        %2759 = vmatprep.subr.bf16.mxu0 0
        %2760 = vmatpush2.bf16.msra.mxu0 0
        %2761 = vmatprep.subr.bf16.mxu0 0
        %2762 = vmatpush2.bf16.msra.mxu0 0
        %2763 = vmatprep.subr.bf16.mxu0 0
        %2764 = vmatpush2.bf16.msra.mxu0 0
        %2765 = vmatprep.subr.bf16.mxu0 0
        %2766 = vmatpush2.bf16.msra.mxu0 0
        %2767 = vmatprep.subr.bf16.mxu0 0
        %2768 = vmatpush2.bf16.msra.mxu0 0
        %2769 = vmatprep.subr.bf16.mxu0 0
        %2770 = vmatpush2.bf16.msra.mxu0 0
        %2771 = vmatprep.subr.bf16.mxu0 0
        %2772 = vmatpush2.bf16.msra.mxu0 0
        %2773 = vmatprep.subr.bf16.mxu0 0
        %2774 = vmatpush2.bf16.msra.mxu0 0
        %2775 = vmatprep.mubr.bf16.mxu0 0
        %2776 = vmatmul.mubr.bf16.gmra.mxu0 %v2700
        %v2777 = vpop.f32.mrf.mxu0
        %v2778 = vadd.f32 0.0, %v2777
        %v2779 = vpop.f32.mrf.mxu0
        %v2780 = vadd.f32 0.0, %v2779
        %v2781 = vpop.f32.mrf.mxu0
        %v2782 = vpop.f32.mrf.mxu0
        %2783 = vdwg.mxu0
        %v2784 = vadd.f32 %v2674, %v2737
        %v2785 = vadd.f32 %v2675, %v2739
        %v2786 = vadd.f32 %v2676, %v2778
        %v2787 = vadd.f32 %v2677, %v2780
        %s2788 = scalar_lea.vmem %s2, 92
        %v2789 = vld [vmem:[%s2788] sm:$0xf]
        %2790 = vrot.lane.b32.xlu0 %v270, 44
        %v2791 = vpop.permute.xlu0 %2790
        %2792 = vrot.lane.b32.xlu0 %v271, 44
        %v2793 = vpop.permute.xlu0 %2792
        %2794 = vrot.lane.b32.xlu0 %v272, 44
        %v2795 = vpop.permute.xlu0 %2794
        %2796 = vrot.lane.b32.xlu0 %v283, 44
        %v2797 = vpop.permute.xlu0 %2796
        %2798 = vrot.lane.b32.xlu0 %v284, 44
        %v2799 = vpop.permute.xlu0 %2798
        %vm2800 = vcmask 359424
        %v2801 = vsel %vm2800, %v2791, %v2793
        %v2802 = vsel %vm2800, %v2793, %v2795
        %v2803 = vsel %vm2800, %v2795, %v2797
        %v2804 = vsel %vm2800, %v2797, %v2799
        %v2810 = vsel %vm307, %v2789, 0
        %2812 = vmatprep.subr.bf16.mxu0 0
        %2813 = vmatpush1.bf16.msra.mxu0 0
        %2814 = vmatprep.subr.bf16.mxu0 0
        %2815 = vmatpush1.bf16.msra.mxu0 0
        %2816 = vmatprep.subr.bf16.mxu0 0
        %2817 = vmatpush1.bf16.msra.mxu0 0
        %2818 = vmatprep.subr.bf16.mxu0 0
        %2819 = vmatpush1.bf16.msra.mxu0 0
        %2820 = vmatprep.subr.bf16.mxu0 0
        %2821 = vmatpush1.bf16.msra.mxu0 0
        %2822 = vmatprep.subr.bf16.mxu0 0
        %2823 = vmatpush1.bf16.msra.mxu0 0
        %2824 = vmatprep.subr.bf16.mxu0 0
        %2825 = vmatpush1.bf16.msra.mxu0 0
        %2826 = vmatprep.subr.bf16.mxu0 %v2802
        %2827 = vmatpush1.bf16.msra.mxu0 %v2801
        %2828 = vmatprep.subr.bf16.mxu0 0
        %2829 = vmatpush2.bf16.msra.mxu0 0
        %2830 = vmatprep.subr.bf16.mxu0 0
        %2831 = vmatpush2.bf16.msra.mxu0 0
        %2832 = vmatprep.subr.bf16.mxu0 0
        %2833 = vmatpush2.bf16.msra.mxu0 0
        %2834 = vmatprep.subr.bf16.mxu0 0
        %2835 = vmatpush2.bf16.msra.mxu0 0
        %2836 = vmatprep.subr.bf16.mxu0 0
        %2837 = vmatpush2.bf16.msra.mxu0 0
        %2838 = vmatprep.subr.bf16.mxu0 0
        %2839 = vmatpush2.bf16.msra.mxu0 0
        %2840 = vmatprep.subr.bf16.mxu0 0
        %2841 = vmatpush2.bf16.msra.mxu0 0
        %2842 = vmatprep.subr.bf16.mxu0 0
        %2843 = vmatpush2.bf16.msra.mxu0 0
        %2844 = vmatprep.mubr.bf16.mxu0 0
        %2845 = vmatmul.mubr.bf16.gmra.mxu0 %v2810
        %v2846 = vpop.f32.mrf.mxu0
        %v2847 = vadd.f32 0.0, %v2846
        %v2848 = vpop.f32.mrf.mxu0
        %v2849 = vadd.f32 0.0, %v2848
        %v2850 = vpop.f32.mrf.mxu0
        %v2851 = vpop.f32.mrf.mxu0
        %2852 = vdwg.mxu0
        %2853 = vmatprep.subr.bf16.mxu0 0
        %2854 = vmatpush1.bf16.msra.mxu0 0
        %2855 = vmatprep.subr.bf16.mxu0 0
        %2856 = vmatpush1.bf16.msra.mxu0 0
        %2857 = vmatprep.subr.bf16.mxu0 0
        %2858 = vmatpush1.bf16.msra.mxu0 0
        %2859 = vmatprep.subr.bf16.mxu0 0
        %2860 = vmatpush1.bf16.msra.mxu0 0
        %2861 = vmatprep.subr.bf16.mxu0 0
        %2862 = vmatpush1.bf16.msra.mxu0 0
        %2863 = vmatprep.subr.bf16.mxu0 0
        %2864 = vmatpush1.bf16.msra.mxu0 0
        %2865 = vmatprep.subr.bf16.mxu0 0
        %2866 = vmatpush1.bf16.msra.mxu0 0
        %2867 = vmatprep.subr.bf16.mxu0 %v2804
        %2868 = vmatpush1.bf16.msra.mxu0 %v2803
        %2869 = vmatprep.subr.bf16.mxu0 0
        %2870 = vmatpush2.bf16.msra.mxu0 0
        %2871 = vmatprep.subr.bf16.mxu0 0
        %2872 = vmatpush2.bf16.msra.mxu0 0
        %2873 = vmatprep.subr.bf16.mxu0 0
        %2874 = vmatpush2.bf16.msra.mxu0 0
        %2875 = vmatprep.subr.bf16.mxu0 0
        %2876 = vmatpush2.bf16.msra.mxu0 0
        %2877 = vmatprep.subr.bf16.mxu0 0
        %2878 = vmatpush2.bf16.msra.mxu0 0
        %2879 = vmatprep.subr.bf16.mxu0 0
        %2880 = vmatpush2.bf16.msra.mxu0 0
        %2881 = vmatprep.subr.bf16.mxu0 0
        %2882 = vmatpush2.bf16.msra.mxu0 0
        %2883 = vmatprep.subr.bf16.mxu0 0
        %2884 = vmatpush2.bf16.msra.mxu0 0
        %2885 = vmatprep.mubr.bf16.mxu0 0
        %2886 = vmatmul.mubr.bf16.gmra.mxu0 %v2810
        %v2887 = vpop.f32.mrf.mxu0
        %v2888 = vadd.f32 0.0, %v2887
        %v2889 = vpop.f32.mrf.mxu0
        %v2890 = vadd.f32 0.0, %v2889
        %v2891 = vpop.f32.mrf.mxu0
        %v2892 = vpop.f32.mrf.mxu0
        %2893 = vdwg.mxu0
        %v2894 = vadd.f32 %v2784, %v2847
        %v2895 = vadd.f32 %v2785, %v2849
        %v2896 = vadd.f32 %v2786, %v2888
        %v2897 = vadd.f32 %v2787, %v2890
        %s2898 = scalar_lea.vmem %s2, 96
        %v2899 = vld [vmem:[%s2898] sm:$0xf]
        %2900 = vrot.lane.b32.xlu0 %v270, 36
        %v2901 = vpop.permute.xlu0 %2900
        %2902 = vrot.lane.b32.xlu0 %v271, 36
        %v2903 = vpop.permute.xlu0 %2902
        %2904 = vrot.lane.b32.xlu0 %v272, 36
        %v2905 = vpop.permute.xlu0 %2904
        %2906 = vrot.lane.b32.xlu0 %v283, 36
        %v2907 = vpop.permute.xlu0 %2906
        %2908 = vrot.lane.b32.xlu0 %v284, 36
        %v2909 = vpop.permute.xlu0 %2908
        %vm2910 = vcmask 293888
        %v2911 = vsel %vm2910, %v2901, %v2903
        %v2912 = vsel %vm2910, %v2903, %v2905
        %v2913 = vsel %vm2910, %v2905, %v2907
        %v2914 = vsel %vm2910, %v2907, %v2909
        %v2920 = vsel %vm307, %v2899, 0
        %2922 = vmatprep.subr.bf16.mxu0 0
        %2923 = vmatpush1.bf16.msra.mxu0 0
        %2924 = vmatprep.subr.bf16.mxu0 0
        %2925 = vmatpush1.bf16.msra.mxu0 0
        %2926 = vmatprep.subr.bf16.mxu0 0
        %2927 = vmatpush1.bf16.msra.mxu0 0
        %2928 = vmatprep.subr.bf16.mxu0 0
        %2929 = vmatpush1.bf16.msra.mxu0 0
        %2930 = vmatprep.subr.bf16.mxu0 0
        %2931 = vmatpush1.bf16.msra.mxu0 0
        %2932 = vmatprep.subr.bf16.mxu0 0
        %2933 = vmatpush1.bf16.msra.mxu0 0
        %2934 = vmatprep.subr.bf16.mxu0 0
        %2935 = vmatpush1.bf16.msra.mxu0 0
        %2936 = vmatprep.subr.bf16.mxu0 %v2912
        %2937 = vmatpush1.bf16.msra.mxu0 %v2911
        %2938 = vmatprep.subr.bf16.mxu0 0
        %2939 = vmatpush2.bf16.msra.mxu0 0
        %2940 = vmatprep.subr.bf16.mxu0 0
        %2941 = vmatpush2.bf16.msra.mxu0 0
        %2942 = vmatprep.subr.bf16.mxu0 0
        %2943 = vmatpush2.bf16.msra.mxu0 0
        %2944 = vmatprep.subr.bf16.mxu0 0
        %2945 = vmatpush2.bf16.msra.mxu0 0
        %2946 = vmatprep.subr.bf16.mxu0 0
        %2947 = vmatpush2.bf16.msra.mxu0 0
        %2948 = vmatprep.subr.bf16.mxu0 0
        %2949 = vmatpush2.bf16.msra.mxu0 0
        %2950 = vmatprep.subr.bf16.mxu0 0
        %2951 = vmatpush2.bf16.msra.mxu0 0
        %2952 = vmatprep.subr.bf16.mxu0 0
        %2953 = vmatpush2.bf16.msra.mxu0 0
        %2954 = vmatprep.mubr.bf16.mxu0 0
        %2955 = vmatmul.mubr.bf16.gmra.mxu0 %v2920
        %v2956 = vpop.f32.mrf.mxu0
        %v2957 = vadd.f32 0.0, %v2956
        %v2958 = vpop.f32.mrf.mxu0
        %v2959 = vadd.f32 0.0, %v2958
        %v2960 = vpop.f32.mrf.mxu0
        %v2961 = vpop.f32.mrf.mxu0
        %2962 = vdwg.mxu0
        %2963 = vmatprep.subr.bf16.mxu0 0
        %2964 = vmatpush1.bf16.msra.mxu0 0
        %2965 = vmatprep.subr.bf16.mxu0 0
        %2966 = vmatpush1.bf16.msra.mxu0 0
        %2967 = vmatprep.subr.bf16.mxu0 0
        %2968 = vmatpush1.bf16.msra.mxu0 0
        %2969 = vmatprep.subr.bf16.mxu0 0
        %2970 = vmatpush1.bf16.msra.mxu0 0
        %2971 = vmatprep.subr.bf16.mxu0 0
        %2972 = vmatpush1.bf16.msra.mxu0 0
        %2973 = vmatprep.subr.bf16.mxu0 0
        %2974 = vmatpush1.bf16.msra.mxu0 0
        %2975 = vmatprep.subr.bf16.mxu0 0
        %2976 = vmatpush1.bf16.msra.mxu0 0
        %2977 = vmatprep.subr.bf16.mxu0 %v2914
        %2978 = vmatpush1.bf16.msra.mxu0 %v2913
        %2979 = vmatprep.subr.bf16.mxu0 0
        %2980 = vmatpush2.bf16.msra.mxu0 0
        %2981 = vmatprep.subr.bf16.mxu0 0
        %2982 = vmatpush2.bf16.msra.mxu0 0
        %2983 = vmatprep.subr.bf16.mxu0 0
        %2984 = vmatpush2.bf16.msra.mxu0 0
        %2985 = vmatprep.subr.bf16.mxu0 0
        %2986 = vmatpush2.bf16.msra.mxu0 0
        %2987 = vmatprep.subr.bf16.mxu0 0
        %2988 = vmatpush2.bf16.msra.mxu0 0
        %2989 = vmatprep.subr.bf16.mxu0 0
        %2990 = vmatpush2.bf16.msra.mxu0 0
        %2991 = vmatprep.subr.bf16.mxu0 0
        %2992 = vmatpush2.bf16.msra.mxu0 0
        %2993 = vmatprep.subr.bf16.mxu0 0
        %2994 = vmatpush2.bf16.msra.mxu0 0
        %2995 = vmatprep.mubr.bf16.mxu0 0
        %2996 = vmatmul.mubr.bf16.gmra.mxu0 %v2920
        %v2997 = vpop.f32.mrf.mxu0
        %v2998 = vadd.f32 0.0, %v2997
        %v2999 = vpop.f32.mrf.mxu0
        %v3000 = vadd.f32 0.0, %v2999
        %v3001 = vpop.f32.mrf.mxu0
        %v3002 = vpop.f32.mrf.mxu0
        %3003 = vdwg.mxu0
        %v3004 = vadd.f32 %v2894, %v2957
        %v3005 = vadd.f32 %v2895, %v2959
        %v3006 = vadd.f32 %v2896, %v2998
        %v3007 = vadd.f32 %v2897, %v3000
        %s3008 = scalar_lea.vmem %s2, 100
        %v3009 = vld [vmem:[%s3008] sm:$0xf]
        %3010 = vrot.lane.b32.xlu0 %v270, 35
        %v3011 = vpop.permute.xlu0 %3010
        %3012 = vrot.lane.b32.xlu0 %v271, 35
        %v3013 = vpop.permute.xlu0 %3012
        %3014 = vrot.lane.b32.xlu0 %v272, 35
        %v3015 = vpop.permute.xlu0 %3014
        %3016 = vrot.lane.b32.xlu0 %v283, 35
        %v3017 = vpop.permute.xlu0 %3016
        %3018 = vrot.lane.b32.xlu0 %v284, 35
        %v3019 = vpop.permute.xlu0 %3018
        %vm3020 = vcmask 285696
        %v3021 = vsel %vm3020, %v3011, %v3013
        %v3022 = vsel %vm3020, %v3013, %v3015
        %v3023 = vsel %vm3020, %v3015, %v3017
        %v3024 = vsel %vm3020, %v3017, %v3019
        %v3030 = vsel %vm307, %v3009, 0
        %3032 = vmatprep.subr.bf16.mxu0 0
        %3033 = vmatpush1.bf16.msra.mxu0 0
        %3034 = vmatprep.subr.bf16.mxu0 0
        %3035 = vmatpush1.bf16.msra.mxu0 0
        %3036 = vmatprep.subr.bf16.mxu0 0
        %3037 = vmatpush1.bf16.msra.mxu0 0
        %3038 = vmatprep.subr.bf16.mxu0 0
        %3039 = vmatpush1.bf16.msra.mxu0 0
        %3040 = vmatprep.subr.bf16.mxu0 0
        %3041 = vmatpush1.bf16.msra.mxu0 0
        %3042 = vmatprep.subr.bf16.mxu0 0
        %3043 = vmatpush1.bf16.msra.mxu0 0
        %3044 = vmatprep.subr.bf16.mxu0 0
        %3045 = vmatpush1.bf16.msra.mxu0 0
        %3046 = vmatprep.subr.bf16.mxu0 %v3022
        %3047 = vmatpush1.bf16.msra.mxu0 %v3021
        %3048 = vmatprep.subr.bf16.mxu0 0
        %3049 = vmatpush2.bf16.msra.mxu0 0
        %3050 = vmatprep.subr.bf16.mxu0 0
        %3051 = vmatpush2.bf16.msra.mxu0 0
        %3052 = vmatprep.subr.bf16.mxu0 0
        %3053 = vmatpush2.bf16.msra.mxu0 0
        %3054 = vmatprep.subr.bf16.mxu0 0
        %3055 = vmatpush2.bf16.msra.mxu0 0
        %3056 = vmatprep.subr.bf16.mxu0 0
        %3057 = vmatpush2.bf16.msra.mxu0 0
        %3058 = vmatprep.subr.bf16.mxu0 0
        %3059 = vmatpush2.bf16.msra.mxu0 0
        %3060 = vmatprep.subr.bf16.mxu0 0
        %3061 = vmatpush2.bf16.msra.mxu0 0
        %3062 = vmatprep.subr.bf16.mxu0 0
        %3063 = vmatpush2.bf16.msra.mxu0 0
        %3064 = vmatprep.mubr.bf16.mxu0 0
        %3065 = vmatmul.mubr.bf16.gmra.mxu0 %v3030
        %v3066 = vpop.f32.mrf.mxu0
        %v3067 = vadd.f32 0.0, %v3066
        %v3068 = vpop.f32.mrf.mxu0
        %v3069 = vadd.f32 0.0, %v3068
        %v3070 = vpop.f32.mrf.mxu0
        %v3071 = vpop.f32.mrf.mxu0
        %3072 = vdwg.mxu0
        %3073 = vmatprep.subr.bf16.mxu0 0
        %3074 = vmatpush1.bf16.msra.mxu0 0
        %3075 = vmatprep.subr.bf16.mxu0 0
        %3076 = vmatpush1.bf16.msra.mxu0 0
        %3077 = vmatprep.subr.bf16.mxu0 0
        %3078 = vmatpush1.bf16.msra.mxu0 0
        %3079 = vmatprep.subr.bf16.mxu0 0
        %3080 = vmatpush1.bf16.msra.mxu0 0
        %3081 = vmatprep.subr.bf16.mxu0 0
        %3082 = vmatpush1.bf16.msra.mxu0 0
        %3083 = vmatprep.subr.bf16.mxu0 0
        %3084 = vmatpush1.bf16.msra.mxu0 0
        %3085 = vmatprep.subr.bf16.mxu0 0
        %3086 = vmatpush1.bf16.msra.mxu0 0
        %3087 = vmatprep.subr.bf16.mxu0 %v3024
        %3088 = vmatpush1.bf16.msra.mxu0 %v3023
        %3089 = vmatprep.subr.bf16.mxu0 0
        %3090 = vmatpush2.bf16.msra.mxu0 0
        %3091 = vmatprep.subr.bf16.mxu0 0
        %3092 = vmatpush2.bf16.msra.mxu0 0
        %3093 = vmatprep.subr.bf16.mxu0 0
        %3094 = vmatpush2.bf16.msra.mxu0 0
        %3095 = vmatprep.subr.bf16.mxu0 0
        %3096 = vmatpush2.bf16.msra.mxu0 0
        %3097 = vmatprep.subr.bf16.mxu0 0
        %3098 = vmatpush2.bf16.msra.mxu0 0
        %3099 = vmatprep.subr.bf16.mxu0 0
        %3100 = vmatpush2.bf16.msra.mxu0 0
        %3101 = vmatprep.subr.bf16.mxu0 0
        %3102 = vmatpush2.bf16.msra.mxu0 0
        %3103 = vmatprep.subr.bf16.mxu0 0
        %3104 = vmatpush2.bf16.msra.mxu0 0
        %3105 = vmatprep.mubr.bf16.mxu0 0
        %3106 = vmatmul.mubr.bf16.gmra.mxu0 %v3030
        %v3107 = vpop.f32.mrf.mxu0
        %v3108 = vadd.f32 0.0, %v3107
        %v3109 = vpop.f32.mrf.mxu0
        %v3110 = vadd.f32 0.0, %v3109
        %v3111 = vpop.f32.mrf.mxu0
        %v3112 = vpop.f32.mrf.mxu0
        %3113 = vdwg.mxu0
        %v3114 = vadd.f32 %v3004, %v3067
        %v3115 = vadd.f32 %v3005, %v3069
        %v3116 = vadd.f32 %v3006, %v3108
        %v3117 = vadd.f32 %v3007, %v3110
        %s3118 = scalar_lea.vmem %s2, 104
        %v3119 = vld [vmem:[%s3118] sm:$0xf]
        %3120 = vrot.lane.b32.xlu0 %v270, 34
        %v3121 = vpop.permute.xlu0 %3120
        %3122 = vrot.lane.b32.xlu0 %v271, 34
        %v3123 = vpop.permute.xlu0 %3122
        %3124 = vrot.lane.b32.xlu0 %v272, 34
        %v3125 = vpop.permute.xlu0 %3124
        %3126 = vrot.lane.b32.xlu0 %v283, 34
        %v3127 = vpop.permute.xlu0 %3126
        %3128 = vrot.lane.b32.xlu0 %v284, 34
        %v3129 = vpop.permute.xlu0 %3128
        %vm3130 = vcmask 277504
        %v3131 = vsel %vm3130, %v3121, %v3123
        %v3132 = vsel %vm3130, %v3123, %v3125
        %v3133 = vsel %vm3130, %v3125, %v3127
        %v3134 = vsel %vm3130, %v3127, %v3129
        %v3140 = vsel %vm307, %v3119, 0
        %3142 = vmatprep.subr.bf16.mxu0 0
        %3143 = vmatpush1.bf16.msra.mxu0 0
        %3144 = vmatprep.subr.bf16.mxu0 0
        %3145 = vmatpush1.bf16.msra.mxu0 0
        %3146 = vmatprep.subr.bf16.mxu0 0
        %3147 = vmatpush1.bf16.msra.mxu0 0
        %3148 = vmatprep.subr.bf16.mxu0 0
        %3149 = vmatpush1.bf16.msra.mxu0 0
        %3150 = vmatprep.subr.bf16.mxu0 0
        %3151 = vmatpush1.bf16.msra.mxu0 0
        %3152 = vmatprep.subr.bf16.mxu0 0
        %3153 = vmatpush1.bf16.msra.mxu0 0
        %3154 = vmatprep.subr.bf16.mxu0 0
        %3155 = vmatpush1.bf16.msra.mxu0 0
        %3156 = vmatprep.subr.bf16.mxu0 %v3132
        %3157 = vmatpush1.bf16.msra.mxu0 %v3131
        %3158 = vmatprep.subr.bf16.mxu0 0
        %3159 = vmatpush2.bf16.msra.mxu0 0
        %3160 = vmatprep.subr.bf16.mxu0 0
        %3161 = vmatpush2.bf16.msra.mxu0 0
        %3162 = vmatprep.subr.bf16.mxu0 0
        %3163 = vmatpush2.bf16.msra.mxu0 0
        %3164 = vmatprep.subr.bf16.mxu0 0
        %3165 = vmatpush2.bf16.msra.mxu0 0
        %3166 = vmatprep.subr.bf16.mxu0 0
        %3167 = vmatpush2.bf16.msra.mxu0 0
        %3168 = vmatprep.subr.bf16.mxu0 0
        %3169 = vmatpush2.bf16.msra.mxu0 0
        %3170 = vmatprep.subr.bf16.mxu0 0
        %3171 = vmatpush2.bf16.msra.mxu0 0
        %3172 = vmatprep.subr.bf16.mxu0 0
        %3173 = vmatpush2.bf16.msra.mxu0 0
        %3174 = vmatprep.mubr.bf16.mxu0 0
        %3175 = vmatmul.mubr.bf16.gmra.mxu0 %v3140
        %v3176 = vpop.f32.mrf.mxu0
        %v3177 = vadd.f32 0.0, %v3176
        %v3178 = vpop.f32.mrf.mxu0
        %v3179 = vadd.f32 0.0, %v3178
        %v3180 = vpop.f32.mrf.mxu0
        %v3181 = vpop.f32.mrf.mxu0
        %3182 = vdwg.mxu0
        %3183 = vmatprep.subr.bf16.mxu0 0
        %3184 = vmatpush1.bf16.msra.mxu0 0
        %3185 = vmatprep.subr.bf16.mxu0 0
        %3186 = vmatpush1.bf16.msra.mxu0 0
        %3187 = vmatprep.subr.bf16.mxu0 0
        %3188 = vmatpush1.bf16.msra.mxu0 0
        %3189 = vmatprep.subr.bf16.mxu0 0
        %3190 = vmatpush1.bf16.msra.mxu0 0
        %3191 = vmatprep.subr.bf16.mxu0 0
        %3192 = vmatpush1.bf16.msra.mxu0 0
        %3193 = vmatprep.subr.bf16.mxu0 0
        %3194 = vmatpush1.bf16.msra.mxu0 0
        %3195 = vmatprep.subr.bf16.mxu0 0
        %3196 = vmatpush1.bf16.msra.mxu0 0
        %3197 = vmatprep.subr.bf16.mxu0 %v3134
        %3198 = vmatpush1.bf16.msra.mxu0 %v3133
        %3199 = vmatprep.subr.bf16.mxu0 0
        %3200 = vmatpush2.bf16.msra.mxu0 0
        %3201 = vmatprep.subr.bf16.mxu0 0
        %3202 = vmatpush2.bf16.msra.mxu0 0
        %3203 = vmatprep.subr.bf16.mxu0 0
        %3204 = vmatpush2.bf16.msra.mxu0 0
        %3205 = vmatprep.subr.bf16.mxu0 0
        %3206 = vmatpush2.bf16.msra.mxu0 0
        %3207 = vmatprep.subr.bf16.mxu0 0
        %3208 = vmatpush2.bf16.msra.mxu0 0
        %3209 = vmatprep.subr.bf16.mxu0 0
        %3210 = vmatpush2.bf16.msra.mxu0 0
        %3211 = vmatprep.subr.bf16.mxu0 0
        %3212 = vmatpush2.bf16.msra.mxu0 0
        %3213 = vmatprep.subr.bf16.mxu0 0
        %3214 = vmatpush2.bf16.msra.mxu0 0
        %3215 = vmatprep.mubr.bf16.mxu0 0
        %3216 = vmatmul.mubr.bf16.gmra.mxu0 %v3140
        %v3217 = vpop.f32.mrf.mxu0
        %v3218 = vadd.f32 0.0, %v3217
        %v3219 = vpop.f32.mrf.mxu0
        %v3220 = vadd.f32 0.0, %v3219
        %v3221 = vpop.f32.mrf.mxu0
        %v3222 = vpop.f32.mrf.mxu0
        %3223 = vdwg.mxu0
        %v3224 = vadd.f32 %v3114, %v3177
        %v3225 = vadd.f32 %v3115, %v3179
        %v3226 = vadd.f32 %v3116, %v3218
        %v3227 = vadd.f32 %v3117, %v3220
        %v3228 = vmax.f32 %v3224, 0.0
        %v3229 = vmax.f32 %v3225, 0.0
        %v3230 = vmax.f32 %v3226, 0.0
        %v3231 = vmax.f32 %v3227, 0.0
        %3232 = vst [vmem:[%s248] sm:$0xff] %v3228
        %3233 = vst [vmem:[%s248 + $0x8] sm:$0xff] %v3229
        %3234 = vst [vmem:[%s248 + $0x10] sm:$0xff] %v3230
        %3235 = vst [vmem:[%s248 + $0x18] sm:$0xff] %v3231
        %s3236 = smul.u32 4, %s14
        %p3237 = scmp.lt.s32.totalorder %s3236, 15
        %s3238 = scalar_select %p3237, %s3236, 15
        %s3239 = smul.addr %s3238, 8
        %s3240 = scalar_lea.vmem %s3, %s3239
        // Predicated region
        $region79: #{decoder_forward.7} parent=69 // pred_check
          %p3241 = pneg %p107
        $region80: #{decoder_forward.7} parent=69 // pred_check_branch
          %3243 = sbr.rel (%p3241) target = $region82
        $region81: #{decoder_forward.7} parent=69 // pred_region
          %s3244 = smul.u32 4, %s14
        $region82: #{decoder_forward.7} parent=69 // pred_fallthru
          _
      $region70: #{decoder_forward.7} parent=5 // pred_fallthru
        _
      %p3245 = scmp.le.s32.totalorder 2, %s9
      // Predicated region
      $region83: #{decoder_forward.7} parent=5 // pred_check
        %p3246 = pneg %p3245
      $region84: #{decoder_forward.7} parent=5 // pred_check_branch
        %3248 = sbr.rel (%p3246) target = $region86
      $region85: #{decoder_forward.7} parent=5 // pred_region
        %s3249 = ssub.s32 %s9, 2
        // Predicated region
        $region87: #{decoder_forward.7} parent=85 // pred_check
          %p3250 = pneg %p113
        $region88: #{decoder_forward.7} parent=85 // pred_check_branch
          %3252 = sbr.rel (%p3250) target = $region90
        $region89: #{decoder_forward.7} parent=85 // pred_region
          %s3253 = smul.u32 4, %s15
          %p3254 = scmp.lt.s32.totalorder %s3253, 15
          %s3255 = scalar_select %p3254, %s3253, 15
          %s3256 = smul.addr %s3255, 8
          %s3257 = scalar_lea.vmem %s3, %s3256
        $region90: #{decoder_forward.7} parent=85 // pred_fallthru
          _
      $region86: #{decoder_forward.7} parent=5 // pred_fallthru
        _
    $region6: #{decoder_forward.7} parent=1 // loop_footer
      %s13 = sadd.s32 1, %s9
    $region7: #{decoder_forward.7} parent=1 // loop_footer_branch
      %8 = sbr.rel target = $region3
    $region8: #{decoder_forward.7} parent=1 // loop_exit
      _

// kernel: decoder_forward.8
$region0: #{decoder_forward.8}
  #allocation0 [shape = 'u32[]', space=smem, size = 0x4, offset = 0x4, fixed_abs, tag = 'smem constant byte address 0x4 - core index']
  #allocation1 [shape = 'u32[144,128]{1,0:T(1,128)}', space=vmem, size = 0x12000, scoped, tag = 'internal scratch']
  %s0 = inlined_call_operand.vmem [shape: f32[2,8,1,512], index: 0, kind: input, shape index: {}]
  %s1 = inlined_call_operand.vmem [shape: f32[8,1,1], index: 1, kind: input, shape index: {}]
  %s2 = inlined_call_operand.vmem [shape: f32[8,1,1], index: 2, kind: input, shape index: {}]
  %s3 = inlined_call_operand.vmem [shape: f32[2,8,1,512], index: 3, kind: output, shape index: {}]
  %s4 = sld [smem:[#allocation0]]
  $region45: #{decoder_forward.8} parent=0
    _
  %s6 = ssub.s32 1, %s4
  %s7 = scalar_select 0, %s6, %s4
  loop: start=0, step=1, limit=18
  $region2: #{decoder_forward.8} parent=0 // loop_pre_header
    _
  $region3: #{decoder_forward.8} parent=0 // loop_header
    %s9 = sphi 0, %s13
    %p10 = scmp.ge.s32.totalorder %s9, 18
    %s16 = sphi 0, %s28
    %s17 = sphi 0, %s24
    %s18 = sphi 0, %s16
    %s19 = sphi 0, %s17
    %s20 = sphi 0, %s18
    %s21 = sphi 0, %s19
    %s33 = sphi 0, %s35
    %s36 = sphi 0, %s33
    %s37 = sphi 0, %s36
    %s53 = sphi 0, %s37
    %s59 = sphi 0, %s61
    %s62 = sphi 0, %s59
    %s63 = sphi 0, %s62
    %s79 = sphi 0, %s63
    %s85 = sphi 0, %s87
    %s88 = sphi 0, %s85
    %s89 = sphi 0, %s88
    %s105 = sphi 0, %s89
    %s113 = sphi 0, %s115
    %s116 = sphi 0, %s113
    %s117 = sphi 0, %s116
    %s133 = sphi 0, %s117
  $region4: #{decoder_forward.8} parent=0 // loop_header_branch
    %12 = sbr.rel (%p10) target = $region8
  $region5: #{decoder_forward.8} parent=0 // loop_body
    %s14 = ssub.s32 %s9, 1
    %s15 = ssub.s32 %s9, 2
    %s22 = sadd.s32 1, %s17
    %p23 = scmp.ge.s32.totalorder %s22, 8
    %s24 = scalar_select %p23, 0, %s22
    %s25 = sadd.s32 1, %s16
    %s26 = scalar_select %p23, %s25, %s16
    %p27 = scmp.ge.s32.totalorder %s26, 2
    %s28 = scalar_select %p27, 0, %s26
    %s29 = ssub.s32 %s16, %s28
    %s30 = ssub.s32 %s17, %s24
    %s31 = sor.u32 %s29, %s30
    %p32 = scmp.eq.s32.totalorder %s31, 0
    %s34 = sadd.s32 %s33, 1
    %s35 = scalar_select %p32, %s33, %s34
    %p38 = pneg %p32
    %p39 = scmp.eq.s32.totalorder %s9, 15
    %p40 = por %p38, %p39
    %p41 = scmp.ne.s32.totalorder %s33, %s36
    %p42 = scmp.eq.s32.totalorder %s9, 0
    %p43 = por %p41, %p42
    %p44 = scmp.ne.s32.totalorder %s33, %s36
    %p45 = scmp.eq.s32.totalorder %s14, 15
    %p46 = por %p44, %p45
    %p47 = scmp.ne.s32.totalorder %s36, %s37
    %p48 = scmp.eq.s32.totalorder %s14, 0
    %p49 = por %p47, %p48
    %p50 = scmp.ne.s32.totalorder %s36, %s37
    %p51 = scmp.eq.s32.totalorder %s15, 15
    %p52 = por %p50, %p51
    %p54 = scmp.ne.s32.totalorder %s37, %s53
    %p55 = scmp.eq.s32.totalorder %s15, 0
    %p56 = por %p54, %p55
    %s57 = ssub.s32 %s17, %s24
    %p58 = scmp.eq.s32.totalorder %s57, 0
    %s60 = sadd.s32 %s59, 1
    %s61 = scalar_select %p58, %s59, %s60
    %p64 = pneg %p58
    %p65 = scmp.eq.s32.totalorder %s9, 15
    %p66 = por %p64, %p65
    %p67 = scmp.ne.s32.totalorder %s59, %s62
    %p68 = scmp.eq.s32.totalorder %s9, 0
    %p69 = por %p67, %p68
    %p70 = scmp.ne.s32.totalorder %s59, %s62
    %p71 = scmp.eq.s32.totalorder %s14, 15
    %p72 = por %p70, %p71
    %p73 = scmp.ne.s32.totalorder %s62, %s63
    %p74 = scmp.eq.s32.totalorder %s14, 0
    %p75 = por %p73, %p74
    %p76 = scmp.ne.s32.totalorder %s62, %s63
    %p77 = scmp.eq.s32.totalorder %s15, 15
    %p78 = por %p76, %p77
    %p80 = scmp.ne.s32.totalorder %s63, %s79
    %p81 = scmp.eq.s32.totalorder %s15, 0
    %p82 = por %p80, %p81
    %s83 = ssub.s32 %s17, %s24
    %p84 = scmp.eq.s32.totalorder %s83, 0
    %s86 = sadd.s32 %s85, 1
    %s87 = scalar_select %p84, %s85, %s86
    %p90 = pneg %p84
    %p91 = scmp.eq.s32.totalorder %s9, 15
    %p92 = por %p90, %p91
    %p93 = scmp.ne.s32.totalorder %s85, %s88
    %p94 = scmp.eq.s32.totalorder %s9, 0
    %p95 = por %p93, %p94
    %p96 = scmp.ne.s32.totalorder %s85, %s88
    %p97 = scmp.eq.s32.totalorder %s14, 15
    %p98 = por %p96, %p97
    %p99 = scmp.ne.s32.totalorder %s88, %s89
    %p100 = scmp.eq.s32.totalorder %s14, 0
    %p101 = por %p99, %p100
    %p102 = scmp.ne.s32.totalorder %s88, %s89
    %p103 = scmp.eq.s32.totalorder %s15, 15
    %p104 = por %p102, %p103
    %p106 = scmp.ne.s32.totalorder %s89, %s105
    %p107 = scmp.eq.s32.totalorder %s15, 0
    %p108 = por %p106, %p107
    %s109 = ssub.s32 %s16, %s28
    %s110 = ssub.s32 %s17, %s24
    %s111 = sor.u32 %s109, %s110
    %p112 = scmp.eq.s32.totalorder %s111, 0
    %s114 = sadd.s32 %s113, 1
    %s115 = scalar_select %p112, %s113, %s114
    %p118 = pneg %p112
    %p119 = scmp.eq.s32.totalorder %s9, 15
    %p120 = por %p118, %p119
    %p121 = scmp.ne.s32.totalorder %s113, %s116
    %p122 = scmp.eq.s32.totalorder %s9, 0
    %p123 = por %p121, %p122
    %p124 = scmp.ne.s32.totalorder %s113, %s116
    %p125 = scmp.eq.s32.totalorder %s14, 15
    %p126 = por %p124, %p125
    %p127 = scmp.ne.s32.totalorder %s116, %s117
    %p128 = scmp.eq.s32.totalorder %s14, 0
    %p129 = por %p127, %p128
    %p130 = scmp.ne.s32.totalorder %s116, %s117
    %p131 = scmp.eq.s32.totalorder %s15, 15
    %p132 = por %p130, %p131
    %p134 = scmp.ne.s32.totalorder %s117, %s133
    %p135 = scmp.eq.s32.totalorder %s15, 0
    %p136 = por %p134, %p135
    %p137 = scmp.le.s32.totalorder 1, %s9
    %p138 = scmp.lt.s32.totalorder %s9, 17
    %p139 = pnand %p137, %p138
    %p140 = pneg %p139
    // Predicated region
    $region9: #{decoder_forward.8} parent=5 // pred_check
      _
    $region10: #{decoder_forward.8} parent=5 // pred_check_branch
      %142 = sbr.rel (%p139) target = $region12
    $region11: #{decoder_forward.8} parent=5 // pred_region
      %s143 = ssub.s32 %s9, 1
    $region12: #{decoder_forward.8} parent=5 // pred_fallthru
      _
    %p144 = scmp.lt.s32.totalorder %s9, 16
    // Predicated region
    $region13: #{decoder_forward.8} parent=5 // pred_check
      %p145 = pneg %p144
    $region14: #{decoder_forward.8} parent=5 // pred_check_branch
      %147 = sbr.rel (%p145) target = $region16
    $region15: #{decoder_forward.8} parent=5 // pred_region
      // Predicated region
      $region17: #{decoder_forward.8} parent=15 // pred_check
        %p148 = pneg %p43
      $region18: #{decoder_forward.8} parent=15 // pred_check_branch
        %150 = sbr.rel (%p148) target = $region20
      $region19: #{decoder_forward.8} parent=15 // pred_region
        %p151 = scmp.lt.s32.totalorder %s16, 1
        %s152 = scalar_select %p151, %s16, 1
        %p153 = scmp.lt.s32.totalorder %s17, 7
        %s154 = scalar_select %p153, %s17, 7
        %s155 = smul.addr %s154, 4
        %s156 = smul.addr %s152, 32
        %s157 = sadd.s32 %s155, %s156
        %s158 = scalar_lea.vmem %s0, %s157
      $region20: #{decoder_forward.8} parent=15 // pred_fallthru
        _
      // Predicated region
      $region21: #{decoder_forward.8} parent=15 // pred_check
        %p159 = pneg %p69
      $region22: #{decoder_forward.8} parent=15 // pred_check_branch
        %161 = sbr.rel (%p159) target = $region24
      $region23: #{decoder_forward.8} parent=15 // pred_region
        %p162 = scmp.lt.s32.totalorder %s17, 7
        %s163 = scalar_select %p162, %s17, 7
        %s164 = scalar_lea.vmem %s1, %s163
      $region24: #{decoder_forward.8} parent=15 // pred_fallthru
        _
      // Predicated region
      $region25: #{decoder_forward.8} parent=15 // pred_check
        %p165 = pneg %p95
      $region26: #{decoder_forward.8} parent=15 // pred_check_branch
        %167 = sbr.rel (%p165) target = $region28
      $region27: #{decoder_forward.8} parent=15 // pred_region
        %p168 = scmp.lt.s32.totalorder %s17, 7
        %s169 = scalar_select %p168, %s17, 7
        %s170 = scalar_lea.vmem %s2, %s169
      $region28: #{decoder_forward.8} parent=15 // pred_fallthru
        _
    $region16: #{decoder_forward.8} parent=5 // pred_fallthru
      _
    %p171 = scmp.le.s32.totalorder 1, %s9
    %p172 = scmp.lt.s32.totalorder %s9, 17
    %p173 = pnand %p171, %p172
    %p174 = pneg %p173
    // Predicated region
    $region29: #{decoder_forward.8} parent=5 // pred_check
      _
    $region30: #{decoder_forward.8} parent=5 // pred_check_branch
      %176 = sbr.rel (%p173) target = $region32
    $region31: #{decoder_forward.8} parent=5 // pred_region
      %s177 = ssub.s32 %s9, 1
      %p178 = scmp.lt.s32.totalorder %s18, 1
      %s179 = scalar_select %p178, %s18, 1
      %p180 = scmp.lt.s32.totalorder %s19, 7
      %s181 = scalar_select %p180, %s19, 7
      %s182 = smul.addr %s181, 4
      %s183 = smul.addr %s179, 32
      %s184 = sadd.s32 %s182, %s183
      %s185 = scalar_lea.vmem %s0, %s184
      %p186 = pneg %p49
      %p187 = pneg %p46
      %p188 = scmp.lt.s32.totalorder %s19, 7
      %s189 = scalar_select %p188, %s19, 7
      %s190 = scalar_lea.vmem %s1, %s189
      %p191 = pneg %p75
      %p192 = pneg %p72
      %p193 = scmp.lt.s32.totalorder %s19, 7
      %s194 = scalar_select %p193, %s19, 7
      %s195 = scalar_lea.vmem %s2, %s194
      %p196 = pneg %p101
      %p197 = pneg %p98
      %p198 = pneg %p129
      %p199 = pneg %p126
      %p200 = scmp.lt.s32.totalorder %s18, 1
      %s201 = scalar_select %p200, %s18, 1
      %p202 = scmp.lt.s32.totalorder %s19, 7
      %s203 = scalar_select %p202, %s19, 7
      %s204 = smul.addr %s203, 4
      %s205 = smul.addr %s201, 32
      %s206 = sadd.s32 %s204, %s205
      %s207 = scalar_lea.vmem %s3, %s206
      %p208 = scmp.lt.s32.totalorder %s18, 1
      %s209 = scalar_select %p208, %s18, 1
      %p210 = scmp.lt.s32.totalorder %s19, 7
      %s211 = scalar_select %p210, %s19, 7
      %s212 = smul.addr %s211, 4
      %s213 = smul.addr %s209, 32
      %s214 = sadd.s32 %s212, %s213
      %s215 = scalar_lea.vmem %s0, %s214
      %p216 = scmp.lt.s32.totalorder %s19, 7
      %s217 = scalar_select %p216, %s19, 7
      %s218 = scalar_lea.vmem %s1, %s217
      %p219 = scmp.lt.s32.totalorder %s19, 7
      %s220 = scalar_select %p219, %s19, 7
      %s221 = scalar_lea.vmem %s2, %s220
      %p222 = scmp.lt.s32.totalorder %s18, 1
      %s223 = scalar_select %p222, %s18, 1
      %p224 = scmp.lt.s32.totalorder %s19, 7
      %s225 = scalar_select %p224, %s19, 7
      %s226 = smul.addr %s225, 4
      %s227 = smul.addr %s223, 32
      %s228 = sadd.s32 %s226, %s227
      %s229 = scalar_lea.vmem %s3, %s228
      %v230 = vld [vmem:[%s215] sm:$0xf]
      %v232 = vlaneseq
      %v233 = vshrl.u32 %v232, 7
      %v234 = vsub.s32 0, %v233
      %v235 = vrot.slane %v230, %v234
      %v236 = vlaneseq
      %v237 = vshrl.u32 %v236, 7
      %v238 = vsub.s32 1, %v237
      %v239 = vrot.slane %v230, %v238
      %v240 = vlaneseq
      %v241 = vshrl.u32 %v240, 7
      %v242 = vsub.s32 2, %v241
      %v243 = vrot.slane %v230, %v242
      %v244 = vlaneseq
      %v245 = vshrl.u32 %v244, 7
      %v246 = vsub.s32 3, %v245
      %v247 = vrot.slane %v230, %v246
      %vm252 = vcmask 1040384
      %v253 = vsel %vm252, %v235, 0.0
      %v254 = vsel %vm252, %v239, 0.0
      %v255 = vadd.f32 %v253, %v254
      %v256 = vsel %vm252, %v243, 0.0
      %v257 = vadd.f32 %v255, %v256
      %v258 = vsel %vm252, %v247, 0.0
      %v259 = vadd.f32 %v257, %v258
      %260 = vadd.xlane.f32.xlu0 %v259
      %v261 = vpop.xlane.xlu0 %260
      %v262 = vrot.slane %v261, 4
      %v263 = vadd.f32 %v261, %v262
      %v264 = vrot.slane %v263, 2
      %v265 = vadd.f32 %v263, %v264
      %v266 = vrot.slane %v265, 1
      %v267 = vadd.f32 %v265, %v266
      %v268 = vrcp.pop 512.0
      %v269 = vmul.f32 %v267, %v268
      %v270 = vsub.f32 %v230, %v269
      %v271 = vmul.f32 %v270, %v270
      %v273 = vlaneseq
      %v274 = vshrl.u32 %v273, 7
      %v275 = vsub.s32 0, %v274
      %v276 = vrot.slane %v271, %v275
      %v277 = vlaneseq
      %v278 = vshrl.u32 %v277, 7
      %v279 = vsub.s32 1, %v278
      %v280 = vrot.slane %v271, %v279
      %v281 = vlaneseq
      %v282 = vshrl.u32 %v281, 7
      %v283 = vsub.s32 2, %v282
      %v284 = vrot.slane %v271, %v283
      %v285 = vlaneseq
      %v286 = vshrl.u32 %v285, 7
      %v287 = vsub.s32 3, %v286
      %v288 = vrot.slane %v271, %v287
      %v293 = vsel %vm252, %v276, 0.0
      %v294 = vsel %vm252, %v280, 0.0
      %v295 = vadd.f32 %v293, %v294
      %v296 = vsel %vm252, %v284, 0.0
      %v297 = vadd.f32 %v295, %v296
      %v298 = vsel %vm252, %v288, 0.0
      %v299 = vadd.f32 %v297, %v298
      %300 = vadd.xlane.f32.xlu0 %v299
      %v301 = vpop.xlane.xlu0 %300
      %v302 = vrot.slane %v301, 4
      %v303 = vadd.f32 %v301, %v302
      %v304 = vrot.slane %v303, 2
      %v305 = vadd.f32 %v303, %v304
      %v306 = vrot.slane %v305, 1
      %v307 = vadd.f32 %v305, %v306
      %v308 = vmul.f32 %v307, %v268
      %v309 = vadd.f32 %v308, 1e-05
      %v310 = vrsqrt.pop %v309
      %v311 = vmul.f32 %v270, %v310
      %v312 = vld [vmem:[%s218] sm:$0x1]
      %314 = vset.pattern.permute.xlu0 0
      %315 = vperm.xlu0 %314, %v312
      %v316 = vpop.permute.xlu0 %315
      %v318 = vlaneseq
      %v319 = vshrl.u32 %v318, 7
      %v320 = vsub.s32 0, %v319
      %v321 = vrot.slane %v316, %v320
      %v322 = vmul.f32 %v311, %v321
      %v323 = vld [vmem:[%s221] sm:$0x1]
      %325 = vset.pattern.permute.xlu0 0
      %326 = vperm.xlu0 %325, %v323
      %v327 = vpop.permute.xlu0 %326
      %v329 = vlaneseq
      %v330 = vshrl.u32 %v329, 7
      %v331 = vsub.s32 0, %v330
      %v332 = vrot.slane %v327, %v331
      %v333 = vadd.f32 %v322, %v332
      %v334 = vlaneseq
      %vm335 = vcmp.ge.s32.totalorder %v334, 0
      %vm336 = vcmp.lt.s32.totalorder %v334, 512
      %vm337 = vmand %vm335, %vm336
      %338 = vst.msk [vmem:[%s229] sm:$0xf] %vm337, %v333
      %p339 = scmp.lt.s32.totalorder %s18, 1
      %s340 = scalar_select %p339, %s18, 1
      %p341 = scmp.lt.s32.totalorder %s19, 7
      %s342 = scalar_select %p341, %s19, 7
      %s343 = smul.addr %s342, 4
      %s344 = smul.addr %s340, 32
      %s345 = sadd.s32 %s343, %s344
      %s346 = scalar_lea.vmem %s3, %s345
      // Predicated region
      $region33: #{decoder_forward.8} parent=31 // pred_check
        %p347 = pneg %p126
      $region34: #{decoder_forward.8} parent=31 // pred_check_branch
        %349 = sbr.rel (%p347) target = $region36
      $region35: #{decoder_forward.8} parent=31 // pred_region
        _
      $region36: #{decoder_forward.8} parent=31 // pred_fallthru
        _
    $region32: #{decoder_forward.8} parent=5 // pred_fallthru
      _
    %p350 = scmp.le.s32.totalorder 2, %s9
    // Predicated region
    $region37: #{decoder_forward.8} parent=5 // pred_check
      %p351 = pneg %p350
    $region38: #{decoder_forward.8} parent=5 // pred_check_branch
      %353 = sbr.rel (%p351) target = $region40
    $region39: #{decoder_forward.8} parent=5 // pred_region
      %s354 = ssub.s32 %s9, 2
      // Predicated region
      $region41: #{decoder_forward.8} parent=39 // pred_check
        %p355 = pneg %p132
      $region42: #{decoder_forward.8} parent=39 // pred_check_branch
        %357 = sbr.rel (%p355) target = $region44
      $region43: #{decoder_forward.8} parent=39 // pred_region
        %p358 = scmp.lt.s32.totalorder %s20, 1
        %s359 = scalar_select %p358, %s20, 1
        %p360 = scmp.lt.s32.totalorder %s21, 7
        %s361 = scalar_select %p360, %s21, 7
        %s362 = smul.addr %s361, 4
        %s363 = smul.addr %s359, 32
        %s364 = sadd.s32 %s362, %s363
        %s365 = scalar_lea.vmem %s3, %s364
      $region44: #{decoder_forward.8} parent=39 // pred_fallthru
        _
    $region40: #{decoder_forward.8} parent=5 // pred_fallthru
      _
  $region6: #{decoder_forward.8} parent=0 // loop_footer
    %s13 = sadd.s32 1, %s9
  $region7: #{decoder_forward.8} parent=0 // loop_footer_branch
    %8 = sbr.rel target = $region3
  $region8: #{decoder_forward.8} parent=0 // loop_exit
    _

// kernel: decoder_forward.9
$region0: #{decoder_forward.9}
  #allocation0 [shape = 'u32[]', space=smem, size = 0x4, offset = 0x4, fixed_abs, tag = 'smem constant byte address 0x4 - core index']
  #allocation1 [shape = 'u32[144,128]{1,0:T(1,128)}', space=vmem, size = 0x12000, scoped, tag = 'internal scratch']
  %s0 = inlined_call_operand.vmem [shape: bf16[8,2560], index: 0, kind: input, shape index: {}, may-alias: {0,1}]
  %s1 = inlined_call_operand.vmem [shape: bf16[8,2560], index: 1, kind: input, shape index: {}, may-alias: {0,1}]
  %s2 = inlined_call_operand.vmem [shape: bf16[27,8,8], index: 2, kind: input, shape index: {}]
  %s3 = inlined_call_operand.vmem [shape: f32[8,2048], index: 3, kind: output, shape index: {}]
  %s4 = sld [smem:[#allocation0]]
  $region45: #{decoder_forward.9} parent=0
    _
  %s6 = ssub.s32 1, %s4
  %s7 = scalar_select 0, %s6, %s4
  loop: start=0, step=1, limit=6
  $region2: #{decoder_forward.9} parent=0 // loop_pre_header
    _
  $region3: #{decoder_forward.9} parent=0 // loop_header
    %s9 = sphi 0, %s13
    %p10 = scmp.ge.s32.totalorder %s9, 6
    %s19 = sphi 0, %s21
    %s22 = sphi 0, %s19
    %s23 = sphi 0, %s22
    %s39 = sphi 0, %s23
    %s47 = sphi 0, %s49
    %s50 = sphi 0, %s47
    %s51 = sphi 0, %s50
    %s67 = sphi 0, %s51
    %s71 = sphi 0, %s71
    %s73 = sphi 0, %s71
    %s74 = sphi 0, %s73
    %s88 = sphi 0, %s74
    %s94 = sphi 0, %s96
    %s97 = sphi 0, %s94
    %s98 = sphi 0, %s97
    %s114 = sphi 0, %s98
  $region4: #{decoder_forward.9} parent=0 // loop_header_branch
    %12 = sbr.rel (%p10) target = $region8
  $region5: #{decoder_forward.9} parent=0 // loop_body
    %s14 = ssub.s32 %s9, 1
    %s15 = ssub.s32 %s9, 2
    %s16 = sadd.s32 %s9, 1
    %s17 = ssub.s32 %s9, %s16
    %p18 = scmp.eq.s32.totalorder %s17, 0
    %s20 = sadd.s32 %s19, 1
    %s21 = scalar_select %p18, %s19, %s20
    %p24 = pneg %p18
    %p25 = scmp.eq.s32.totalorder %s9, 3
    %p26 = por %p24, %p25
    %p27 = scmp.ne.s32.totalorder %s19, %s22
    %p28 = scmp.eq.s32.totalorder %s9, 0
    %p29 = por %p27, %p28
    %p30 = scmp.ne.s32.totalorder %s19, %s22
    %p31 = scmp.eq.s32.totalorder %s14, 3
    %p32 = por %p30, %p31
    %p33 = scmp.ne.s32.totalorder %s22, %s23
    %p34 = scmp.eq.s32.totalorder %s14, 0
    %p35 = por %p33, %p34
    %p36 = scmp.ne.s32.totalorder %s22, %s23
    %p37 = scmp.eq.s32.totalorder %s15, 3
    %p38 = por %p36, %p37
    %p40 = scmp.ne.s32.totalorder %s23, %s39
    %p41 = scmp.eq.s32.totalorder %s15, 0
    %p42 = por %p40, %p41
    %s43 = sadd.s32 %s9, 1
    %s44 = sadd.s32 %s16, 1
    %s45 = ssub.s32 %s43, %s44
    %p46 = scmp.eq.s32.totalorder %s45, 0
    %s48 = sadd.s32 %s47, 1
    %s49 = scalar_select %p46, %s47, %s48
    %p52 = pneg %p46
    %p53 = scmp.eq.s32.totalorder %s9, 3
    %p54 = por %p52, %p53
    %p55 = scmp.ne.s32.totalorder %s47, %s50
    %p56 = scmp.eq.s32.totalorder %s9, 0
    %p57 = por %p55, %p56
    %p58 = scmp.ne.s32.totalorder %s47, %s50
    %p59 = scmp.eq.s32.totalorder %s14, 3
    %p60 = por %p58, %p59
    %p61 = scmp.ne.s32.totalorder %s50, %s51
    %p62 = scmp.eq.s32.totalorder %s14, 0
    %p63 = por %p61, %p62
    %p64 = scmp.ne.s32.totalorder %s50, %s51
    %p65 = scmp.eq.s32.totalorder %s15, 3
    %p66 = por %p64, %p65
    %p68 = scmp.ne.s32.totalorder %s51, %s67
    %p69 = scmp.eq.s32.totalorder %s15, 0
    %p70 = por %p68, %p69
    %s72 = sadd.s32 %s71, 1
    %p75 = scmp.eq.s32.totalorder %s9, 3
    %p76 = scmp.ne.s32.totalorder %s71, %s73
    %p77 = scmp.eq.s32.totalorder %s9, 0
    %p78 = por %p76, %p77
    %p79 = scmp.ne.s32.totalorder %s71, %s73
    %p80 = scmp.eq.s32.totalorder %s14, 3
    %p81 = por %p79, %p80
    %p82 = scmp.ne.s32.totalorder %s73, %s74
    %p83 = scmp.eq.s32.totalorder %s14, 0
    %p84 = por %p82, %p83
    %p85 = scmp.ne.s32.totalorder %s73, %s74
    %p86 = scmp.eq.s32.totalorder %s15, 3
    %p87 = por %p85, %p86
    %p89 = scmp.ne.s32.totalorder %s74, %s88
    %p90 = scmp.eq.s32.totalorder %s15, 0
    %p91 = por %p89, %p90
    %s92 = ssub.s32 %s9, %s16
    %p93 = scmp.eq.s32.totalorder %s92, 0
    %s95 = sadd.s32 %s94, 1
    %s96 = scalar_select %p93, %s94, %s95
    %p99 = pneg %p93
    %p100 = scmp.eq.s32.totalorder %s9, 3
    %p101 = por %p99, %p100
    %p102 = scmp.ne.s32.totalorder %s94, %s97
    %p103 = scmp.eq.s32.totalorder %s9, 0
    %p104 = por %p102, %p103
    %p105 = scmp.ne.s32.totalorder %s94, %s97
    %p106 = scmp.eq.s32.totalorder %s14, 3
    %p107 = por %p105, %p106
    %p108 = scmp.ne.s32.totalorder %s97, %s98
    %p109 = scmp.eq.s32.totalorder %s14, 0
    %p110 = por %p108, %p109
    %p111 = scmp.ne.s32.totalorder %s97, %s98
    %p112 = scmp.eq.s32.totalorder %s15, 3
    %p113 = por %p111, %p112
    %p115 = scmp.ne.s32.totalorder %s98, %s114
    %p116 = scmp.eq.s32.totalorder %s15, 0
    %p117 = por %p115, %p116
    %p118 = scmp.le.s32.totalorder 1, %s9
    %p119 = scmp.lt.s32.totalorder %s9, 5
    %p120 = pnand %p118, %p119
    %p121 = pneg %p120
    // Predicated region
    $region9: #{decoder_forward.9} parent=5 // pred_check
      _
    $region10: #{decoder_forward.9} parent=5 // pred_check_branch
      %123 = sbr.rel (%p120) target = $region12
    $region11: #{decoder_forward.9} parent=5 // pred_region
      %s124 = ssub.s32 %s9, 1
      // Predicated region
      $region13: #{decoder_forward.9} parent=11 // pred_check
        %p125 = pneg %p84
      $region14: #{decoder_forward.9} parent=11 // pred_check_branch
        %127 = sbr.rel (%p125) target = $region16
      $region15: #{decoder_forward.9} parent=11 // pred_region
        _
      $region16: #{decoder_forward.9} parent=11 // pred_fallthru
        _
    $region12: #{decoder_forward.9} parent=5 // pred_fallthru
      _
    %p128 = scmp.lt.s32.totalorder %s9, 4
    // Predicated region
    $region17: #{decoder_forward.9} parent=5 // pred_check
      %p129 = pneg %p128
    $region18: #{decoder_forward.9} parent=5 // pred_check_branch
      %131 = sbr.rel (%p129) target = $region20
    $region19: #{decoder_forward.9} parent=5 // pred_region
      // Predicated region
      $region21: #{decoder_forward.9} parent=19 // pred_check
        %p132 = pneg %p29
      $region22: #{decoder_forward.9} parent=19 // pred_check_branch
        %134 = sbr.rel (%p132) target = $region24
      $region23: #{decoder_forward.9} parent=19 // pred_region
        %s135 = smul.u32 4, %s9
        %p136 = scmp.lt.s32.totalorder %s135, 19
        %s137 = scalar_select %p136, %s135, 19
        %s138 = smul.addr %s137, 4
        %s139 = scalar_lea.vmem %s0, %s138
        %s140 = smul.u32 4, %s9
      $region24: #{decoder_forward.9} parent=19 // pred_fallthru
        _
      // Predicated region
      $region25: #{decoder_forward.9} parent=19 // pred_check
        %p141 = pneg %p57
      $region26: #{decoder_forward.9} parent=19 // pred_check_branch
        %143 = sbr.rel (%p141) target = $region28
      $region27: #{decoder_forward.9} parent=19 // pred_region
        %s144 = sadd.s32 %s9, 1
        %s145 = smul.u32 4, %s144
        %p146 = scmp.lt.s32.totalorder %s145, 19
        %s147 = scalar_select %p146, %s145, 19
        %s148 = smul.addr %s147, 4
        %s149 = scalar_lea.vmem %s1, %s148
        %s150 = sadd.s32 %s9, 1
        %s151 = smul.u32 4, %s150
      $region28: #{decoder_forward.9} parent=19 // pred_fallthru
        _
    $region20: #{decoder_forward.9} parent=5 // pred_fallthru
      _
    %p152 = scmp.le.s32.totalorder 1, %s9
    %p153 = scmp.lt.s32.totalorder %s9, 5
    %p154 = pnand %p152, %p153
    %p155 = pneg %p154
    // Predicated region
    $region29: #{decoder_forward.9} parent=5 // pred_check
      _
    $region30: #{decoder_forward.9} parent=5 // pred_check_branch
      %157 = sbr.rel (%p154) target = $region32
    $region31: #{decoder_forward.9} parent=5 // pred_region
      %s158 = ssub.s32 %s9, 1
      %s159 = smul.u32 4, %s14
      %p160 = scmp.lt.s32.totalorder %s159, 19
      %s161 = scalar_select %p160, %s159, 19
      %s162 = smul.addr %s161, 4
      %s163 = scalar_lea.vmem %s0, %s162
      %p164 = pneg %p35
      %p165 = pneg %p32
      %s166 = sadd.s32 %s14, 1
      %s167 = smul.u32 4, %s166
      %p168 = scmp.lt.s32.totalorder %s167, 19
      %s169 = scalar_select %p168, %s167, 19
      %s170 = smul.addr %s169, 4
      %s171 = scalar_lea.vmem %s1, %s170
      %p172 = pneg %p63
      %p173 = pneg %p60
      %p174 = pneg %p84
      %p175 = pneg %p81
      %p176 = pneg %p110
      %p177 = pneg %p107
      %s178 = smul.u32 4, %s14
      %p179 = scmp.lt.s32.totalorder %s178, 15
      %s180 = scalar_select %p179, %s178, 15
      %s181 = smul.addr %s180, 8
      %s182 = scalar_lea.vmem %s3, %s181
      %s183 = smul.u32 4, %s14
      %p184 = scmp.lt.s32.totalorder %s183, 19
      %s185 = scalar_select %p184, %s183, 19
      %s186 = smul.addr %s185, 4
      %s187 = scalar_lea.vmem %s0, %s186
      %s188 = smul.u32 4, %s14
      %s189 = sadd.s32 %s14, 1
      %s190 = smul.u32 4, %s189
      %p191 = scmp.lt.s32.totalorder %s190, 19
      %s192 = scalar_select %p191, %s190, 19
      %s193 = smul.addr %s192, 4
      %s194 = scalar_lea.vmem %s1, %s193
      %s195 = sadd.s32 %s14, 1
      %s196 = smul.u32 4, %s195
      %s197 = smul.u32 4, %s14
      %p198 = scmp.lt.s32.totalorder %s197, 15
      %s199 = scalar_select %p198, %s197, 15
      %s200 = smul.addr %s199, 8
      %s201 = scalar_lea.vmem %s3, %s200
      %s202 = smul.u32 4, %s14
      %v204 = vld [vmem:[%s187] sm:$0xff]
      %v205 = vld [vmem:[%s187 + $0x8] sm:$0xff]
      %v206 = vld [vmem:[%s194] sm:$0xff]
      %v209 = vunpack.c.l.b16 %v204
      %v210 = vunpack.c.h.b16 %v204
      %v211 = vunpack.c.l.b16 %v205
      %v212 = vunpack.c.h.b16 %v205
      %v213 = vpack.c.b16 %v209, %v209
      %v214 = vpack.c.b16 %v210, %v210
      %v215 = vpack.c.b16 %v211, %v211
      %v216 = vpack.c.b16 %v212, %v212
      %v218 = vunpack.c.l.b16 %v206
      %v219 = vunpack.c.h.b16 %v206
      %v220 = vpack.c.b16 %v218, %v218
      %v221 = vpack.c.b16 %v219, %v219
      %v222 = vld [vmem:[%s2] sm:$0xf]
      %s223 = scalar_lea.vmem %s2, 4
      %v224 = vld [vmem:[%s223] sm:$0xf]
      %225 = vrot.lane.b32.xlu0 %v213, 127
      %v226 = vpop.permute.xlu0 %225
      %227 = vrot.lane.b32.xlu0 %v214, 127
      %v228 = vpop.permute.xlu0 %227
      %229 = vrot.lane.b32.xlu0 %v215, 127
      %v230 = vpop.permute.xlu0 %229
      %231 = vrot.lane.b32.xlu0 %v216, 127
      %v232 = vpop.permute.xlu0 %231
      %233 = vrot.lane.b32.xlu0 %v220, 127
      %v234 = vpop.permute.xlu0 %233
      %vm235 = vcmask 1039360
      %v236 = vsel %vm235, %v226, %v228
      %v237 = vsel %vm235, %v228, %v230
      %v238 = vsel %vm235, %v230, %v232
      %v239 = vsel %vm235, %v232, %v234
      %vm240 = vcmask 64512
      %v242 = vsel %vm240, %v224, 0
      %vm244 = vcmask 1043456
      %v246 = vsel %vm244, %v236, 0
      %v249 = vsel %vm244, %v237, 0
      %v252 = vsel %vm244, %v238, 0
      %v255 = vsel %vm244, %v239, 0
      %257 = vmatprep.subr.bf16.mxu0 0
      %258 = vmatpush1.bf16.msra.mxu0 0
      %259 = vmatprep.subr.bf16.mxu0 0
      %260 = vmatpush1.bf16.msra.mxu0 0
      %261 = vmatprep.subr.bf16.mxu0 0
      %262 = vmatpush1.bf16.msra.mxu0 0
      %263 = vmatprep.subr.bf16.mxu0 0
      %264 = vmatpush1.bf16.msra.mxu0 0
      %265 = vmatprep.subr.bf16.mxu0 0
      %266 = vmatpush1.bf16.msra.mxu0 0
      %267 = vmatprep.subr.bf16.mxu0 0
      %268 = vmatpush1.bf16.msra.mxu0 0
      %269 = vmatprep.subr.bf16.mxu0 0
      %270 = vmatpush1.bf16.msra.mxu0 0
      %271 = vmatprep.subr.bf16.mxu0 %v249
      %272 = vmatpush1.bf16.msra.mxu0 %v246
      %273 = vmatprep.subr.bf16.mxu0 0
      %274 = vmatpush2.bf16.msra.mxu0 0
      %275 = vmatprep.subr.bf16.mxu0 0
      %276 = vmatpush2.bf16.msra.mxu0 0
      %277 = vmatprep.subr.bf16.mxu0 0
      %278 = vmatpush2.bf16.msra.mxu0 0
      %279 = vmatprep.subr.bf16.mxu0 0
      %280 = vmatpush2.bf16.msra.mxu0 0
      %281 = vmatprep.subr.bf16.mxu0 0
      %282 = vmatpush2.bf16.msra.mxu0 0
      %283 = vmatprep.subr.bf16.mxu0 0
      %284 = vmatpush2.bf16.msra.mxu0 0
      %285 = vmatprep.subr.bf16.mxu0 0
      %286 = vmatpush2.bf16.msra.mxu0 0
      %287 = vmatprep.subr.bf16.mxu0 0
      %288 = vmatpush2.bf16.msra.mxu0 0
      %289 = vmatprep.mubr.bf16.mxu0 0
      %290 = vmatmul.mubr.bf16.gmra.mxu0 %v242
      %v291 = vpop.f32.mrf.mxu0
      %v292 = vadd.f32 0.0, %v291
      %v293 = vpop.f32.mrf.mxu0
      %v294 = vadd.f32 0.0, %v293
      %v295 = vpop.f32.mrf.mxu0
      %v296 = vpop.f32.mrf.mxu0
      %297 = vdwg.mxu0
      %298 = vmatprep.subr.bf16.mxu0 0
      %299 = vmatpush1.bf16.msra.mxu0 0
      %300 = vmatprep.subr.bf16.mxu0 0
      %301 = vmatpush1.bf16.msra.mxu0 0
      %302 = vmatprep.subr.bf16.mxu0 0
      %303 = vmatpush1.bf16.msra.mxu0 0
      %304 = vmatprep.subr.bf16.mxu0 0
      %305 = vmatpush1.bf16.msra.mxu0 0
      %306 = vmatprep.subr.bf16.mxu0 0
      %307 = vmatpush1.bf16.msra.mxu0 0
      %308 = vmatprep.subr.bf16.mxu0 0
      %309 = vmatpush1.bf16.msra.mxu0 0
      %310 = vmatprep.subr.bf16.mxu0 0
      %311 = vmatpush1.bf16.msra.mxu0 0
      %312 = vmatprep.subr.bf16.mxu0 %v255
      %313 = vmatpush1.bf16.msra.mxu0 %v252
      %314 = vmatprep.subr.bf16.mxu0 0
      %315 = vmatpush2.bf16.msra.mxu0 0
      %316 = vmatprep.subr.bf16.mxu0 0
      %317 = vmatpush2.bf16.msra.mxu0 0
      %318 = vmatprep.subr.bf16.mxu0 0
      %319 = vmatpush2.bf16.msra.mxu0 0
      %320 = vmatprep.subr.bf16.mxu0 0
      %321 = vmatpush2.bf16.msra.mxu0 0
      %322 = vmatprep.subr.bf16.mxu0 0
      %323 = vmatpush2.bf16.msra.mxu0 0
      %324 = vmatprep.subr.bf16.mxu0 0
      %325 = vmatpush2.bf16.msra.mxu0 0
      %326 = vmatprep.subr.bf16.mxu0 0
      %327 = vmatpush2.bf16.msra.mxu0 0
      %328 = vmatprep.subr.bf16.mxu0 0
      %329 = vmatpush2.bf16.msra.mxu0 0
      %330 = vmatprep.mubr.bf16.mxu0 0
      %331 = vmatmul.mubr.bf16.gmra.mxu0 %v242
      %v332 = vpop.f32.mrf.mxu0
      %v333 = vadd.f32 0.0, %v332
      %v334 = vpop.f32.mrf.mxu0
      %v335 = vadd.f32 0.0, %v334
      %v336 = vpop.f32.mrf.mxu0
      %v337 = vpop.f32.mrf.mxu0
      %338 = vdwg.mxu0
      %v340 = vsel %vm240, %v222, 0
      %v343 = vsel %vm244, %v213, 0
      %v346 = vsel %vm244, %v214, 0
      %v349 = vsel %vm244, %v215, 0
      %v352 = vsel %vm244, %v216, 0
      %354 = vmatprep.subr.bf16.mxu0 0
      %355 = vmatpush1.bf16.msra.mxu0 0
      %356 = vmatprep.subr.bf16.mxu0 0
      %357 = vmatpush1.bf16.msra.mxu0 0
      %358 = vmatprep.subr.bf16.mxu0 0
      %359 = vmatpush1.bf16.msra.mxu0 0
      %360 = vmatprep.subr.bf16.mxu0 0
      %361 = vmatpush1.bf16.msra.mxu0 0
      %362 = vmatprep.subr.bf16.mxu0 0
      %363 = vmatpush1.bf16.msra.mxu0 0
      %364 = vmatprep.subr.bf16.mxu0 0
      %365 = vmatpush1.bf16.msra.mxu0 0
      %366 = vmatprep.subr.bf16.mxu0 0
      %367 = vmatpush1.bf16.msra.mxu0 0
      %368 = vmatprep.subr.bf16.mxu0 %v346
      %369 = vmatpush1.bf16.msra.mxu0 %v343
      %370 = vmatprep.subr.bf16.mxu0 0
      %371 = vmatpush2.bf16.msra.mxu0 0
      %372 = vmatprep.subr.bf16.mxu0 0
      %373 = vmatpush2.bf16.msra.mxu0 0
      %374 = vmatprep.subr.bf16.mxu0 0
      %375 = vmatpush2.bf16.msra.mxu0 0
      %376 = vmatprep.subr.bf16.mxu0 0
      %377 = vmatpush2.bf16.msra.mxu0 0
      %378 = vmatprep.subr.bf16.mxu0 0
      %379 = vmatpush2.bf16.msra.mxu0 0
      %380 = vmatprep.subr.bf16.mxu0 0
      %381 = vmatpush2.bf16.msra.mxu0 0
      %382 = vmatprep.subr.bf16.mxu0 0
      %383 = vmatpush2.bf16.msra.mxu0 0
      %384 = vmatprep.subr.bf16.mxu0 0
      %385 = vmatpush2.bf16.msra.mxu0 0
      %386 = vmatprep.mubr.bf16.mxu0 0
      %387 = vmatmul.mubr.bf16.gmra.mxu0 %v340
      %v388 = vpop.f32.mrf.mxu0
      %v389 = vadd.f32 %v292, %v388
      %v390 = vpop.f32.mrf.mxu0
      %v391 = vadd.f32 %v294, %v390
      %v392 = vpop.f32.mrf.mxu0
      %v393 = vpop.f32.mrf.mxu0
      %394 = vdwg.mxu0
      %395 = vmatprep.subr.bf16.mxu0 0
      %396 = vmatpush1.bf16.msra.mxu0 0
      %397 = vmatprep.subr.bf16.mxu0 0
      %398 = vmatpush1.bf16.msra.mxu0 0
      %399 = vmatprep.subr.bf16.mxu0 0
      %400 = vmatpush1.bf16.msra.mxu0 0
      %401 = vmatprep.subr.bf16.mxu0 0
      %402 = vmatpush1.bf16.msra.mxu0 0
      %403 = vmatprep.subr.bf16.mxu0 0
      %404 = vmatpush1.bf16.msra.mxu0 0
      %405 = vmatprep.subr.bf16.mxu0 0
      %406 = vmatpush1.bf16.msra.mxu0 0
      %407 = vmatprep.subr.bf16.mxu0 0
      %408 = vmatpush1.bf16.msra.mxu0 0
      %409 = vmatprep.subr.bf16.mxu0 %v352
      %410 = vmatpush1.bf16.msra.mxu0 %v349
      %411 = vmatprep.subr.bf16.mxu0 0
      %412 = vmatpush2.bf16.msra.mxu0 0
      %413 = vmatprep.subr.bf16.mxu0 0
      %414 = vmatpush2.bf16.msra.mxu0 0
      %415 = vmatprep.subr.bf16.mxu0 0
      %416 = vmatpush2.bf16.msra.mxu0 0
      %417 = vmatprep.subr.bf16.mxu0 0
      %418 = vmatpush2.bf16.msra.mxu0 0
      %419 = vmatprep.subr.bf16.mxu0 0
      %420 = vmatpush2.bf16.msra.mxu0 0
      %421 = vmatprep.subr.bf16.mxu0 0
      %422 = vmatpush2.bf16.msra.mxu0 0
      %423 = vmatprep.subr.bf16.mxu0 0
      %424 = vmatpush2.bf16.msra.mxu0 0
      %425 = vmatprep.subr.bf16.mxu0 0
      %426 = vmatpush2.bf16.msra.mxu0 0
      %427 = vmatprep.mubr.bf16.mxu0 0
      %428 = vmatmul.mubr.bf16.gmra.mxu0 %v340
      %v429 = vpop.f32.mrf.mxu0
      %v430 = vadd.f32 %v333, %v429
      %v431 = vpop.f32.mrf.mxu0
      %v432 = vadd.f32 %v335, %v431
      %v433 = vpop.f32.mrf.mxu0
      %v434 = vpop.f32.mrf.mxu0
      %435 = vdwg.mxu0
      %s436 = scalar_lea.vmem %s2, 8
      %v437 = vld [vmem:[%s436] sm:$0xf]
      %438 = vrot.lane.b32.xlu0 %v213, 126
      %v439 = vpop.permute.xlu0 %438
      %440 = vrot.lane.b32.xlu0 %v214, 126
      %v441 = vpop.permute.xlu0 %440
      %442 = vrot.lane.b32.xlu0 %v215, 126
      %v443 = vpop.permute.xlu0 %442
      %444 = vrot.lane.b32.xlu0 %v216, 126
      %v445 = vpop.permute.xlu0 %444
      %446 = vrot.lane.b32.xlu0 %v220, 126
      %v447 = vpop.permute.xlu0 %446
      %vm448 = vcmask 1031168
      %v449 = vsel %vm448, %v439, %v441
      %v450 = vsel %vm448, %v441, %v443
      %v451 = vsel %vm448, %v443, %v445
      %v452 = vsel %vm448, %v445, %v447
      %v454 = vsel %vm240, %v437, 0
      %v457 = vsel %vm244, %v449, 0
      %v460 = vsel %vm244, %v450, 0
      %v463 = vsel %vm244, %v451, 0
      %v466 = vsel %vm244, %v452, 0
      %468 = vmatprep.subr.bf16.mxu0 0
      %469 = vmatpush1.bf16.msra.mxu0 0
      %470 = vmatprep.subr.bf16.mxu0 0
      %471 = vmatpush1.bf16.msra.mxu0 0
      %472 = vmatprep.subr.bf16.mxu0 0
      %473 = vmatpush1.bf16.msra.mxu0 0
      %474 = vmatprep.subr.bf16.mxu0 0
      %475 = vmatpush1.bf16.msra.mxu0 0
      %476 = vmatprep.subr.bf16.mxu0 0
      %477 = vmatpush1.bf16.msra.mxu0 0
      %478 = vmatprep.subr.bf16.mxu0 0
      %479 = vmatpush1.bf16.msra.mxu0 0
      %480 = vmatprep.subr.bf16.mxu0 0
      %481 = vmatpush1.bf16.msra.mxu0 0
      %482 = vmatprep.subr.bf16.mxu0 %v460
      %483 = vmatpush1.bf16.msra.mxu0 %v457
      %484 = vmatprep.subr.bf16.mxu0 0
      %485 = vmatpush2.bf16.msra.mxu0 0
      %486 = vmatprep.subr.bf16.mxu0 0
      %487 = vmatpush2.bf16.msra.mxu0 0
      %488 = vmatprep.subr.bf16.mxu0 0
      %489 = vmatpush2.bf16.msra.mxu0 0
      %490 = vmatprep.subr.bf16.mxu0 0
      %491 = vmatpush2.bf16.msra.mxu0 0
      %492 = vmatprep.subr.bf16.mxu0 0
      %493 = vmatpush2.bf16.msra.mxu0 0
      %494 = vmatprep.subr.bf16.mxu0 0
      %495 = vmatpush2.bf16.msra.mxu0 0
      %496 = vmatprep.subr.bf16.mxu0 0
      %497 = vmatpush2.bf16.msra.mxu0 0
      %498 = vmatprep.subr.bf16.mxu0 0
      %499 = vmatpush2.bf16.msra.mxu0 0
      %500 = vmatprep.mubr.bf16.mxu0 0
      %501 = vmatmul.mubr.bf16.gmra.mxu0 %v454
      %v502 = vpop.f32.mrf.mxu0
      %v503 = vadd.f32 0.0, %v502
      %v504 = vpop.f32.mrf.mxu0
      %v505 = vadd.f32 0.0, %v504
      %v506 = vpop.f32.mrf.mxu0
      %v507 = vpop.f32.mrf.mxu0
      %508 = vdwg.mxu0
      %509 = vmatprep.subr.bf16.mxu0 0
      %510 = vmatpush1.bf16.msra.mxu0 0
      %511 = vmatprep.subr.bf16.mxu0 0
      %512 = vmatpush1.bf16.msra.mxu0 0
      %513 = vmatprep.subr.bf16.mxu0 0
      %514 = vmatpush1.bf16.msra.mxu0 0
      %515 = vmatprep.subr.bf16.mxu0 0
      %516 = vmatpush1.bf16.msra.mxu0 0
      %517 = vmatprep.subr.bf16.mxu0 0
      %518 = vmatpush1.bf16.msra.mxu0 0
      %519 = vmatprep.subr.bf16.mxu0 0
      %520 = vmatpush1.bf16.msra.mxu0 0
      %521 = vmatprep.subr.bf16.mxu0 0
      %522 = vmatpush1.bf16.msra.mxu0 0
      %523 = vmatprep.subr.bf16.mxu0 %v466
      %524 = vmatpush1.bf16.msra.mxu0 %v463
      %525 = vmatprep.subr.bf16.mxu0 0
      %526 = vmatpush2.bf16.msra.mxu0 0
      %527 = vmatprep.subr.bf16.mxu0 0
      %528 = vmatpush2.bf16.msra.mxu0 0
      %529 = vmatprep.subr.bf16.mxu0 0
      %530 = vmatpush2.bf16.msra.mxu0 0
      %531 = vmatprep.subr.bf16.mxu0 0
      %532 = vmatpush2.bf16.msra.mxu0 0
      %533 = vmatprep.subr.bf16.mxu0 0
      %534 = vmatpush2.bf16.msra.mxu0 0
      %535 = vmatprep.subr.bf16.mxu0 0
      %536 = vmatpush2.bf16.msra.mxu0 0
      %537 = vmatprep.subr.bf16.mxu0 0
      %538 = vmatpush2.bf16.msra.mxu0 0
      %539 = vmatprep.subr.bf16.mxu0 0
      %540 = vmatpush2.bf16.msra.mxu0 0
      %541 = vmatprep.mubr.bf16.mxu0 0
      %542 = vmatmul.mubr.bf16.gmra.mxu0 %v454
      %v543 = vpop.f32.mrf.mxu0
      %v544 = vadd.f32 0.0, %v543
      %v545 = vpop.f32.mrf.mxu0
      %v546 = vadd.f32 0.0, %v545
      %v547 = vpop.f32.mrf.mxu0
      %v548 = vpop.f32.mrf.mxu0
      %549 = vdwg.mxu0
      %v550 = vadd.f32 %v389, %v503
      %v551 = vadd.f32 %v391, %v505
      %v552 = vadd.f32 %v430, %v544
      %v553 = vadd.f32 %v432, %v546
      %s554 = scalar_lea.vmem %s2, 12
      %v555 = vld [vmem:[%s554] sm:$0xf]
      %556 = vrot.lane.b32.xlu0 %v213, 118
      %v557 = vpop.permute.xlu0 %556
      %558 = vrot.lane.b32.xlu0 %v214, 118
      %v559 = vpop.permute.xlu0 %558
      %560 = vrot.lane.b32.xlu0 %v215, 118
      %v561 = vpop.permute.xlu0 %560
      %562 = vrot.lane.b32.xlu0 %v216, 118
      %v563 = vpop.permute.xlu0 %562
      %564 = vrot.lane.b32.xlu0 %v220, 118
      %v565 = vpop.permute.xlu0 %564
      %vm566 = vcmask 965632
      %v567 = vsel %vm566, %v557, %v559
      %v568 = vsel %vm566, %v559, %v561
      %v569 = vsel %vm566, %v561, %v563
      %v570 = vsel %vm566, %v563, %v565
      %v572 = vsel %vm240, %v555, 0
      %v575 = vsel %vm244, %v567, 0
      %v578 = vsel %vm244, %v568, 0
      %v581 = vsel %vm244, %v569, 0
      %v584 = vsel %vm244, %v570, 0
      %586 = vmatprep.subr.bf16.mxu0 0
      %587 = vmatpush1.bf16.msra.mxu0 0
      %588 = vmatprep.subr.bf16.mxu0 0
      %589 = vmatpush1.bf16.msra.mxu0 0
      %590 = vmatprep.subr.bf16.mxu0 0
      %591 = vmatpush1.bf16.msra.mxu0 0
      %592 = vmatprep.subr.bf16.mxu0 0
      %593 = vmatpush1.bf16.msra.mxu0 0
      %594 = vmatprep.subr.bf16.mxu0 0
      %595 = vmatpush1.bf16.msra.mxu0 0
      %596 = vmatprep.subr.bf16.mxu0 0
      %597 = vmatpush1.bf16.msra.mxu0 0
      %598 = vmatprep.subr.bf16.mxu0 0
      %599 = vmatpush1.bf16.msra.mxu0 0
      %600 = vmatprep.subr.bf16.mxu0 %v578
      %601 = vmatpush1.bf16.msra.mxu0 %v575
      %602 = vmatprep.subr.bf16.mxu0 0
      %603 = vmatpush2.bf16.msra.mxu0 0
      %604 = vmatprep.subr.bf16.mxu0 0
      %605 = vmatpush2.bf16.msra.mxu0 0
      %606 = vmatprep.subr.bf16.mxu0 0
      %607 = vmatpush2.bf16.msra.mxu0 0
      %608 = vmatprep.subr.bf16.mxu0 0
      %609 = vmatpush2.bf16.msra.mxu0 0
      %610 = vmatprep.subr.bf16.mxu0 0
      %611 = vmatpush2.bf16.msra.mxu0 0
      %612 = vmatprep.subr.bf16.mxu0 0
      %613 = vmatpush2.bf16.msra.mxu0 0
      %614 = vmatprep.subr.bf16.mxu0 0
      %615 = vmatpush2.bf16.msra.mxu0 0
      %616 = vmatprep.subr.bf16.mxu0 0
      %617 = vmatpush2.bf16.msra.mxu0 0
      %618 = vmatprep.mubr.bf16.mxu0 0
      %619 = vmatmul.mubr.bf16.gmra.mxu0 %v572
      %v620 = vpop.f32.mrf.mxu0
      %v621 = vadd.f32 0.0, %v620
      %v622 = vpop.f32.mrf.mxu0
      %v623 = vadd.f32 0.0, %v622
      %v624 = vpop.f32.mrf.mxu0
      %v625 = vpop.f32.mrf.mxu0
      %626 = vdwg.mxu0
      %627 = vmatprep.subr.bf16.mxu0 0
      %628 = vmatpush1.bf16.msra.mxu0 0
      %629 = vmatprep.subr.bf16.mxu0 0
      %630 = vmatpush1.bf16.msra.mxu0 0
      %631 = vmatprep.subr.bf16.mxu0 0
      %632 = vmatpush1.bf16.msra.mxu0 0
      %633 = vmatprep.subr.bf16.mxu0 0
      %634 = vmatpush1.bf16.msra.mxu0 0
      %635 = vmatprep.subr.bf16.mxu0 0
      %636 = vmatpush1.bf16.msra.mxu0 0
      %637 = vmatprep.subr.bf16.mxu0 0
      %638 = vmatpush1.bf16.msra.mxu0 0
      %639 = vmatprep.subr.bf16.mxu0 0
      %640 = vmatpush1.bf16.msra.mxu0 0
      %641 = vmatprep.subr.bf16.mxu0 %v584
      %642 = vmatpush1.bf16.msra.mxu0 %v581
      %643 = vmatprep.subr.bf16.mxu0 0
      %644 = vmatpush2.bf16.msra.mxu0 0
      %645 = vmatprep.subr.bf16.mxu0 0
      %646 = vmatpush2.bf16.msra.mxu0 0
      %647 = vmatprep.subr.bf16.mxu0 0
      %648 = vmatpush2.bf16.msra.mxu0 0
      %649 = vmatprep.subr.bf16.mxu0 0
      %650 = vmatpush2.bf16.msra.mxu0 0
      %651 = vmatprep.subr.bf16.mxu0 0
      %652 = vmatpush2.bf16.msra.mxu0 0
      %653 = vmatprep.subr.bf16.mxu0 0
      %654 = vmatpush2.bf16.msra.mxu0 0
      %655 = vmatprep.subr.bf16.mxu0 0
      %656 = vmatpush2.bf16.msra.mxu0 0
      %657 = vmatprep.subr.bf16.mxu0 0
      %658 = vmatpush2.bf16.msra.mxu0 0
      %659 = vmatprep.mubr.bf16.mxu0 0
      %660 = vmatmul.mubr.bf16.gmra.mxu0 %v572
      %v661 = vpop.f32.mrf.mxu0
      %v662 = vadd.f32 0.0, %v661
      %v663 = vpop.f32.mrf.mxu0
      %v664 = vadd.f32 0.0, %v663
      %v665 = vpop.f32.mrf.mxu0
      %v666 = vpop.f32.mrf.mxu0
      %667 = vdwg.mxu0
      %v668 = vadd.f32 %v550, %v621
      %v669 = vadd.f32 %v551, %v623
      %v670 = vadd.f32 %v552, %v662
      %v671 = vadd.f32 %v553, %v664
      %s672 = scalar_lea.vmem %s2, 16
      %v673 = vld [vmem:[%s672] sm:$0xf]
      %674 = vrot.lane.b32.xlu0 %v213, 117
      %v675 = vpop.permute.xlu0 %674
      %676 = vrot.lane.b32.xlu0 %v214, 117
      %v677 = vpop.permute.xlu0 %676
      %678 = vrot.lane.b32.xlu0 %v215, 117
      %v679 = vpop.permute.xlu0 %678
      %680 = vrot.lane.b32.xlu0 %v216, 117
      %v681 = vpop.permute.xlu0 %680
      %682 = vrot.lane.b32.xlu0 %v220, 117
      %v683 = vpop.permute.xlu0 %682
      %vm684 = vcmask 957440
      %v685 = vsel %vm684, %v675, %v677
      %v686 = vsel %vm684, %v677, %v679
      %v687 = vsel %vm684, %v679, %v681
      %v688 = vsel %vm684, %v681, %v683
      %v690 = vsel %vm240, %v673, 0
      %v693 = vsel %vm244, %v685, 0
      %v696 = vsel %vm244, %v686, 0
      %v699 = vsel %vm244, %v687, 0
      %v702 = vsel %vm244, %v688, 0
      %704 = vmatprep.subr.bf16.mxu0 0
      %705 = vmatpush1.bf16.msra.mxu0 0
      %706 = vmatprep.subr.bf16.mxu0 0
      %707 = vmatpush1.bf16.msra.mxu0 0
      %708 = vmatprep.subr.bf16.mxu0 0
      %709 = vmatpush1.bf16.msra.mxu0 0
      %710 = vmatprep.subr.bf16.mxu0 0
      %711 = vmatpush1.bf16.msra.mxu0 0
      %712 = vmatprep.subr.bf16.mxu0 0
      %713 = vmatpush1.bf16.msra.mxu0 0
      %714 = vmatprep.subr.bf16.mxu0 0
      %715 = vmatpush1.bf16.msra.mxu0 0
      %716 = vmatprep.subr.bf16.mxu0 0
      %717 = vmatpush1.bf16.msra.mxu0 0
      %718 = vmatprep.subr.bf16.mxu0 %v696
      %719 = vmatpush1.bf16.msra.mxu0 %v693
      %720 = vmatprep.subr.bf16.mxu0 0
      %721 = vmatpush2.bf16.msra.mxu0 0
      %722 = vmatprep.subr.bf16.mxu0 0
      %723 = vmatpush2.bf16.msra.mxu0 0
      %724 = vmatprep.subr.bf16.mxu0 0
      %725 = vmatpush2.bf16.msra.mxu0 0
      %726 = vmatprep.subr.bf16.mxu0 0
      %727 = vmatpush2.bf16.msra.mxu0 0
      %728 = vmatprep.subr.bf16.mxu0 0
      %729 = vmatpush2.bf16.msra.mxu0 0
      %730 = vmatprep.subr.bf16.mxu0 0
      %731 = vmatpush2.bf16.msra.mxu0 0
      %732 = vmatprep.subr.bf16.mxu0 0
      %733 = vmatpush2.bf16.msra.mxu0 0
      %734 = vmatprep.subr.bf16.mxu0 0
      %735 = vmatpush2.bf16.msra.mxu0 0
      %736 = vmatprep.mubr.bf16.mxu0 0
      %737 = vmatmul.mubr.bf16.gmra.mxu0 %v690
      %v738 = vpop.f32.mrf.mxu0
      %v739 = vadd.f32 0.0, %v738
      %v740 = vpop.f32.mrf.mxu0
      %v741 = vadd.f32 0.0, %v740
      %v742 = vpop.f32.mrf.mxu0
      %v743 = vpop.f32.mrf.mxu0
      %744 = vdwg.mxu0
      %745 = vmatprep.subr.bf16.mxu0 0
      %746 = vmatpush1.bf16.msra.mxu0 0
      %747 = vmatprep.subr.bf16.mxu0 0
      %748 = vmatpush1.bf16.msra.mxu0 0
      %749 = vmatprep.subr.bf16.mxu0 0
      %750 = vmatpush1.bf16.msra.mxu0 0
      %751 = vmatprep.subr.bf16.mxu0 0
      %752 = vmatpush1.bf16.msra.mxu0 0
      %753 = vmatprep.subr.bf16.mxu0 0
      %754 = vmatpush1.bf16.msra.mxu0 0
      %755 = vmatprep.subr.bf16.mxu0 0
      %756 = vmatpush1.bf16.msra.mxu0 0
      %757 = vmatprep.subr.bf16.mxu0 0
      %758 = vmatpush1.bf16.msra.mxu0 0
      %759 = vmatprep.subr.bf16.mxu0 %v702
      %760 = vmatpush1.bf16.msra.mxu0 %v699
      %761 = vmatprep.subr.bf16.mxu0 0
      %762 = vmatpush2.bf16.msra.mxu0 0
      %763 = vmatprep.subr.bf16.mxu0 0
      %764 = vmatpush2.bf16.msra.mxu0 0
      %765 = vmatprep.subr.bf16.mxu0 0
      %766 = vmatpush2.bf16.msra.mxu0 0
      %767 = vmatprep.subr.bf16.mxu0 0
      %768 = vmatpush2.bf16.msra.mxu0 0
      %769 = vmatprep.subr.bf16.mxu0 0
      %770 = vmatpush2.bf16.msra.mxu0 0
      %771 = vmatprep.subr.bf16.mxu0 0
      %772 = vmatpush2.bf16.msra.mxu0 0
      %773 = vmatprep.subr.bf16.mxu0 0
      %774 = vmatpush2.bf16.msra.mxu0 0
      %775 = vmatprep.subr.bf16.mxu0 0
      %776 = vmatpush2.bf16.msra.mxu0 0
      %777 = vmatprep.mubr.bf16.mxu0 0
      %778 = vmatmul.mubr.bf16.gmra.mxu0 %v690
      %v779 = vpop.f32.mrf.mxu0
      %v780 = vadd.f32 0.0, %v779
      %v781 = vpop.f32.mrf.mxu0
      %v782 = vadd.f32 0.0, %v781
      %v783 = vpop.f32.mrf.mxu0
      %v784 = vpop.f32.mrf.mxu0
      %785 = vdwg.mxu0
      %v786 = vadd.f32 %v668, %v739
      %v787 = vadd.f32 %v669, %v741
      %v788 = vadd.f32 %v670, %v780
      %v789 = vadd.f32 %v671, %v782
      %s790 = scalar_lea.vmem %s2, 20
      %v791 = vld [vmem:[%s790] sm:$0xf]
      %792 = vrot.lane.b32.xlu0 %v213, 116
      %v793 = vpop.permute.xlu0 %792
      %794 = vrot.lane.b32.xlu0 %v214, 116
      %v795 = vpop.permute.xlu0 %794
      %796 = vrot.lane.b32.xlu0 %v215, 116
      %v797 = vpop.permute.xlu0 %796
      %798 = vrot.lane.b32.xlu0 %v216, 116
      %v799 = vpop.permute.xlu0 %798
      %800 = vrot.lane.b32.xlu0 %v220, 116
      %v801 = vpop.permute.xlu0 %800
      %vm802 = vcmask 949248
      %v803 = vsel %vm802, %v793, %v795
      %v804 = vsel %vm802, %v795, %v797
      %v805 = vsel %vm802, %v797, %v799
      %v806 = vsel %vm802, %v799, %v801
      %v808 = vsel %vm240, %v791, 0
      %v811 = vsel %vm244, %v803, 0
      %v814 = vsel %vm244, %v804, 0
      %v817 = vsel %vm244, %v805, 0
      %v820 = vsel %vm244, %v806, 0
      %822 = vmatprep.subr.bf16.mxu0 0
      %823 = vmatpush1.bf16.msra.mxu0 0
      %824 = vmatprep.subr.bf16.mxu0 0
      %825 = vmatpush1.bf16.msra.mxu0 0
      %826 = vmatprep.subr.bf16.mxu0 0
      %827 = vmatpush1.bf16.msra.mxu0 0
      %828 = vmatprep.subr.bf16.mxu0 0
      %829 = vmatpush1.bf16.msra.mxu0 0
      %830 = vmatprep.subr.bf16.mxu0 0
      %831 = vmatpush1.bf16.msra.mxu0 0
      %832 = vmatprep.subr.bf16.mxu0 0
      %833 = vmatpush1.bf16.msra.mxu0 0
      %834 = vmatprep.subr.bf16.mxu0 0
      %835 = vmatpush1.bf16.msra.mxu0 0
      %836 = vmatprep.subr.bf16.mxu0 %v814
      %837 = vmatpush1.bf16.msra.mxu0 %v811
      %838 = vmatprep.subr.bf16.mxu0 0
      %839 = vmatpush2.bf16.msra.mxu0 0
      %840 = vmatprep.subr.bf16.mxu0 0
      %841 = vmatpush2.bf16.msra.mxu0 0
      %842 = vmatprep.subr.bf16.mxu0 0
      %843 = vmatpush2.bf16.msra.mxu0 0
      %844 = vmatprep.subr.bf16.mxu0 0
      %845 = vmatpush2.bf16.msra.mxu0 0
      %846 = vmatprep.subr.bf16.mxu0 0
      %847 = vmatpush2.bf16.msra.mxu0 0
      %848 = vmatprep.subr.bf16.mxu0 0
      %849 = vmatpush2.bf16.msra.mxu0 0
      %850 = vmatprep.subr.bf16.mxu0 0
      %851 = vmatpush2.bf16.msra.mxu0 0
      %852 = vmatprep.subr.bf16.mxu0 0
      %853 = vmatpush2.bf16.msra.mxu0 0
      %854 = vmatprep.mubr.bf16.mxu0 0
      %855 = vmatmul.mubr.bf16.gmra.mxu0 %v808
      %v856 = vpop.f32.mrf.mxu0
      %v857 = vadd.f32 0.0, %v856
      %v858 = vpop.f32.mrf.mxu0
      %v859 = vadd.f32 0.0, %v858
      %v860 = vpop.f32.mrf.mxu0
      %v861 = vpop.f32.mrf.mxu0
      %862 = vdwg.mxu0
      %863 = vmatprep.subr.bf16.mxu0 0
      %864 = vmatpush1.bf16.msra.mxu0 0
      %865 = vmatprep.subr.bf16.mxu0 0
      %866 = vmatpush1.bf16.msra.mxu0 0
      %867 = vmatprep.subr.bf16.mxu0 0
      %868 = vmatpush1.bf16.msra.mxu0 0
      %869 = vmatprep.subr.bf16.mxu0 0
      %870 = vmatpush1.bf16.msra.mxu0 0
      %871 = vmatprep.subr.bf16.mxu0 0
      %872 = vmatpush1.bf16.msra.mxu0 0
      %873 = vmatprep.subr.bf16.mxu0 0
      %874 = vmatpush1.bf16.msra.mxu0 0
      %875 = vmatprep.subr.bf16.mxu0 0
      %876 = vmatpush1.bf16.msra.mxu0 0
      %877 = vmatprep.subr.bf16.mxu0 %v820
      %878 = vmatpush1.bf16.msra.mxu0 %v817
      %879 = vmatprep.subr.bf16.mxu0 0
      %880 = vmatpush2.bf16.msra.mxu0 0
      %881 = vmatprep.subr.bf16.mxu0 0
      %882 = vmatpush2.bf16.msra.mxu0 0
      %883 = vmatprep.subr.bf16.mxu0 0
      %884 = vmatpush2.bf16.msra.mxu0 0
      %885 = vmatprep.subr.bf16.mxu0 0
      %886 = vmatpush2.bf16.msra.mxu0 0
      %887 = vmatprep.subr.bf16.mxu0 0
      %888 = vmatpush2.bf16.msra.mxu0 0
      %889 = vmatprep.subr.bf16.mxu0 0
      %890 = vmatpush2.bf16.msra.mxu0 0
      %891 = vmatprep.subr.bf16.mxu0 0
      %892 = vmatpush2.bf16.msra.mxu0 0
      %893 = vmatprep.subr.bf16.mxu0 0
      %894 = vmatpush2.bf16.msra.mxu0 0
      %895 = vmatprep.mubr.bf16.mxu0 0
      %896 = vmatmul.mubr.bf16.gmra.mxu0 %v808
      %v897 = vpop.f32.mrf.mxu0
      %v898 = vadd.f32 0.0, %v897
      %v899 = vpop.f32.mrf.mxu0
      %v900 = vadd.f32 0.0, %v899
      %v901 = vpop.f32.mrf.mxu0
      %v902 = vpop.f32.mrf.mxu0
      %903 = vdwg.mxu0
      %v904 = vadd.f32 %v786, %v857
      %v905 = vadd.f32 %v787, %v859
      %v906 = vadd.f32 %v788, %v898
      %v907 = vadd.f32 %v789, %v900
      %s908 = scalar_lea.vmem %s2, 24
      %v909 = vld [vmem:[%s908] sm:$0xf]
      %910 = vrot.lane.b32.xlu0 %v213, 108
      %v911 = vpop.permute.xlu0 %910
      %912 = vrot.lane.b32.xlu0 %v214, 108
      %v913 = vpop.permute.xlu0 %912
      %914 = vrot.lane.b32.xlu0 %v215, 108
      %v915 = vpop.permute.xlu0 %914
      %916 = vrot.lane.b32.xlu0 %v216, 108
      %v917 = vpop.permute.xlu0 %916
      %918 = vrot.lane.b32.xlu0 %v220, 108
      %v919 = vpop.permute.xlu0 %918
      %vm920 = vcmask 883712
      %v921 = vsel %vm920, %v911, %v913
      %v922 = vsel %vm920, %v913, %v915
      %v923 = vsel %vm920, %v915, %v917
      %v924 = vsel %vm920, %v917, %v919
      %v926 = vsel %vm240, %v909, 0
      %v929 = vsel %vm244, %v921, 0
      %v932 = vsel %vm244, %v922, 0
      %v935 = vsel %vm244, %v923, 0
      %v938 = vsel %vm244, %v924, 0
      %940 = vmatprep.subr.bf16.mxu0 0
      %941 = vmatpush1.bf16.msra.mxu0 0
      %942 = vmatprep.subr.bf16.mxu0 0
      %943 = vmatpush1.bf16.msra.mxu0 0
      %944 = vmatprep.subr.bf16.mxu0 0
      %945 = vmatpush1.bf16.msra.mxu0 0
      %946 = vmatprep.subr.bf16.mxu0 0
      %947 = vmatpush1.bf16.msra.mxu0 0
      %948 = vmatprep.subr.bf16.mxu0 0
      %949 = vmatpush1.bf16.msra.mxu0 0
      %950 = vmatprep.subr.bf16.mxu0 0
      %951 = vmatpush1.bf16.msra.mxu0 0
      %952 = vmatprep.subr.bf16.mxu0 0
      %953 = vmatpush1.bf16.msra.mxu0 0
      %954 = vmatprep.subr.bf16.mxu0 %v932
      %955 = vmatpush1.bf16.msra.mxu0 %v929
      %956 = vmatprep.subr.bf16.mxu0 0
      %957 = vmatpush2.bf16.msra.mxu0 0
      %958 = vmatprep.subr.bf16.mxu0 0
      %959 = vmatpush2.bf16.msra.mxu0 0
      %960 = vmatprep.subr.bf16.mxu0 0
      %961 = vmatpush2.bf16.msra.mxu0 0
      %962 = vmatprep.subr.bf16.mxu0 0
      %963 = vmatpush2.bf16.msra.mxu0 0
      %964 = vmatprep.subr.bf16.mxu0 0
      %965 = vmatpush2.bf16.msra.mxu0 0
      %966 = vmatprep.subr.bf16.mxu0 0
      %967 = vmatpush2.bf16.msra.mxu0 0
      %968 = vmatprep.subr.bf16.mxu0 0
      %969 = vmatpush2.bf16.msra.mxu0 0
      %970 = vmatprep.subr.bf16.mxu0 0
      %971 = vmatpush2.bf16.msra.mxu0 0
      %972 = vmatprep.mubr.bf16.mxu0 0
      %973 = vmatmul.mubr.bf16.gmra.mxu0 %v926
      %v974 = vpop.f32.mrf.mxu0
      %v975 = vadd.f32 0.0, %v974
      %v976 = vpop.f32.mrf.mxu0
      %v977 = vadd.f32 0.0, %v976
      %v978 = vpop.f32.mrf.mxu0
      %v979 = vpop.f32.mrf.mxu0
      %980 = vdwg.mxu0
      %981 = vmatprep.subr.bf16.mxu0 0
      %982 = vmatpush1.bf16.msra.mxu0 0
      %983 = vmatprep.subr.bf16.mxu0 0
      %984 = vmatpush1.bf16.msra.mxu0 0
      %985 = vmatprep.subr.bf16.mxu0 0
      %986 = vmatpush1.bf16.msra.mxu0 0
      %987 = vmatprep.subr.bf16.mxu0 0
      %988 = vmatpush1.bf16.msra.mxu0 0
      %989 = vmatprep.subr.bf16.mxu0 0
      %990 = vmatpush1.bf16.msra.mxu0 0
      %991 = vmatprep.subr.bf16.mxu0 0
      %992 = vmatpush1.bf16.msra.mxu0 0
      %993 = vmatprep.subr.bf16.mxu0 0
      %994 = vmatpush1.bf16.msra.mxu0 0
      %995 = vmatprep.subr.bf16.mxu0 %v938
      %996 = vmatpush1.bf16.msra.mxu0 %v935
      %997 = vmatprep.subr.bf16.mxu0 0
      %998 = vmatpush2.bf16.msra.mxu0 0
      %999 = vmatprep.subr.bf16.mxu0 0
      %1000 = vmatpush2.bf16.msra.mxu0 0
      %1001 = vmatprep.subr.bf16.mxu0 0
      %1002 = vmatpush2.bf16.msra.mxu0 0
      %1003 = vmatprep.subr.bf16.mxu0 0
      %1004 = vmatpush2.bf16.msra.mxu0 0
      %1005 = vmatprep.subr.bf16.mxu0 0
      %1006 = vmatpush2.bf16.msra.mxu0 0
      %1007 = vmatprep.subr.bf16.mxu0 0
      %1008 = vmatpush2.bf16.msra.mxu0 0
      %1009 = vmatprep.subr.bf16.mxu0 0
      %1010 = vmatpush2.bf16.msra.mxu0 0
      %1011 = vmatprep.subr.bf16.mxu0 0
      %1012 = vmatpush2.bf16.msra.mxu0 0
      %1013 = vmatprep.mubr.bf16.mxu0 0
      %1014 = vmatmul.mubr.bf16.gmra.mxu0 %v926
      %v1015 = vpop.f32.mrf.mxu0
      %v1016 = vadd.f32 0.0, %v1015
      %v1017 = vpop.f32.mrf.mxu0
      %v1018 = vadd.f32 0.0, %v1017
      %v1019 = vpop.f32.mrf.mxu0
      %v1020 = vpop.f32.mrf.mxu0
      %1021 = vdwg.mxu0
      %v1022 = vadd.f32 %v904, %v975
      %v1023 = vadd.f32 %v905, %v977
      %v1024 = vadd.f32 %v906, %v1016
      %v1025 = vadd.f32 %v907, %v1018
      %s1026 = scalar_lea.vmem %s2, 28
      %v1027 = vld [vmem:[%s1026] sm:$0xf]
      %1028 = vrot.lane.b32.xlu0 %v213, 107
      %v1029 = vpop.permute.xlu0 %1028
      %1030 = vrot.lane.b32.xlu0 %v214, 107
      %v1031 = vpop.permute.xlu0 %1030
      %1032 = vrot.lane.b32.xlu0 %v215, 107
      %v1033 = vpop.permute.xlu0 %1032
      %1034 = vrot.lane.b32.xlu0 %v216, 107
      %v1035 = vpop.permute.xlu0 %1034
      %1036 = vrot.lane.b32.xlu0 %v220, 107
      %v1037 = vpop.permute.xlu0 %1036
      %vm1038 = vcmask 875520
      %v1039 = vsel %vm1038, %v1029, %v1031
      %v1040 = vsel %vm1038, %v1031, %v1033
      %v1041 = vsel %vm1038, %v1033, %v1035
      %v1042 = vsel %vm1038, %v1035, %v1037
      %v1044 = vsel %vm240, %v1027, 0
      %v1047 = vsel %vm244, %v1039, 0
      %v1050 = vsel %vm244, %v1040, 0
      %v1053 = vsel %vm244, %v1041, 0
      %v1056 = vsel %vm244, %v1042, 0
      %1058 = vmatprep.subr.bf16.mxu0 0
      %1059 = vmatpush1.bf16.msra.mxu0 0
      %1060 = vmatprep.subr.bf16.mxu0 0
      %1061 = vmatpush1.bf16.msra.mxu0 0
      %1062 = vmatprep.subr.bf16.mxu0 0
      %1063 = vmatpush1.bf16.msra.mxu0 0
      %1064 = vmatprep.subr.bf16.mxu0 0
      %1065 = vmatpush1.bf16.msra.mxu0 0
      %1066 = vmatprep.subr.bf16.mxu0 0
      %1067 = vmatpush1.bf16.msra.mxu0 0
      %1068 = vmatprep.subr.bf16.mxu0 0
      %1069 = vmatpush1.bf16.msra.mxu0 0
      %1070 = vmatprep.subr.bf16.mxu0 0
      %1071 = vmatpush1.bf16.msra.mxu0 0
      %1072 = vmatprep.subr.bf16.mxu0 %v1050
      %1073 = vmatpush1.bf16.msra.mxu0 %v1047
      %1074 = vmatprep.subr.bf16.mxu0 0
      %1075 = vmatpush2.bf16.msra.mxu0 0
      %1076 = vmatprep.subr.bf16.mxu0 0
      %1077 = vmatpush2.bf16.msra.mxu0 0
      %1078 = vmatprep.subr.bf16.mxu0 0
      %1079 = vmatpush2.bf16.msra.mxu0 0
      %1080 = vmatprep.subr.bf16.mxu0 0
      %1081 = vmatpush2.bf16.msra.mxu0 0
      %1082 = vmatprep.subr.bf16.mxu0 0
      %1083 = vmatpush2.bf16.msra.mxu0 0
      %1084 = vmatprep.subr.bf16.mxu0 0
      %1085 = vmatpush2.bf16.msra.mxu0 0
      %1086 = vmatprep.subr.bf16.mxu0 0
      %1087 = vmatpush2.bf16.msra.mxu0 0
      %1088 = vmatprep.subr.bf16.mxu0 0
      %1089 = vmatpush2.bf16.msra.mxu0 0
      %1090 = vmatprep.mubr.bf16.mxu0 0
      %1091 = vmatmul.mubr.bf16.gmra.mxu0 %v1044
      %v1092 = vpop.f32.mrf.mxu0
      %v1093 = vadd.f32 0.0, %v1092
      %v1094 = vpop.f32.mrf.mxu0
      %v1095 = vadd.f32 0.0, %v1094
      %v1096 = vpop.f32.mrf.mxu0
      %v1097 = vpop.f32.mrf.mxu0
      %1098 = vdwg.mxu0
      %1099 = vmatprep.subr.bf16.mxu0 0
      %1100 = vmatpush1.bf16.msra.mxu0 0
      %1101 = vmatprep.subr.bf16.mxu0 0
      %1102 = vmatpush1.bf16.msra.mxu0 0
      %1103 = vmatprep.subr.bf16.mxu0 0
      %1104 = vmatpush1.bf16.msra.mxu0 0
      %1105 = vmatprep.subr.bf16.mxu0 0
      %1106 = vmatpush1.bf16.msra.mxu0 0
      %1107 = vmatprep.subr.bf16.mxu0 0
      %1108 = vmatpush1.bf16.msra.mxu0 0
      %1109 = vmatprep.subr.bf16.mxu0 0
      %1110 = vmatpush1.bf16.msra.mxu0 0
      %1111 = vmatprep.subr.bf16.mxu0 0
      %1112 = vmatpush1.bf16.msra.mxu0 0
      %1113 = vmatprep.subr.bf16.mxu0 %v1056
      %1114 = vmatpush1.bf16.msra.mxu0 %v1053
      %1115 = vmatprep.subr.bf16.mxu0 0
      %1116 = vmatpush2.bf16.msra.mxu0 0
      %1117 = vmatprep.subr.bf16.mxu0 0
      %1118 = vmatpush2.bf16.msra.mxu0 0
      %1119 = vmatprep.subr.bf16.mxu0 0
      %1120 = vmatpush2.bf16.msra.mxu0 0
      %1121 = vmatprep.subr.bf16.mxu0 0
      %1122 = vmatpush2.bf16.msra.mxu0 0
      %1123 = vmatprep.subr.bf16.mxu0 0
      %1124 = vmatpush2.bf16.msra.mxu0 0
      %1125 = vmatprep.subr.bf16.mxu0 0
      %1126 = vmatpush2.bf16.msra.mxu0 0
      %1127 = vmatprep.subr.bf16.mxu0 0
      %1128 = vmatpush2.bf16.msra.mxu0 0
      %1129 = vmatprep.subr.bf16.mxu0 0
      %1130 = vmatpush2.bf16.msra.mxu0 0
      %1131 = vmatprep.mubr.bf16.mxu0 0
      %1132 = vmatmul.mubr.bf16.gmra.mxu0 %v1044
      %v1133 = vpop.f32.mrf.mxu0
      %v1134 = vadd.f32 0.0, %v1133
      %v1135 = vpop.f32.mrf.mxu0
      %v1136 = vadd.f32 0.0, %v1135
      %v1137 = vpop.f32.mrf.mxu0
      %v1138 = vpop.f32.mrf.mxu0
      %1139 = vdwg.mxu0
      %v1140 = vadd.f32 %v1022, %v1093
      %v1141 = vadd.f32 %v1023, %v1095
      %v1142 = vadd.f32 %v1024, %v1134
      %v1143 = vadd.f32 %v1025, %v1136
      %s1144 = scalar_lea.vmem %s2, 32
      %v1145 = vld [vmem:[%s1144] sm:$0xf]
      %1146 = vrot.lane.b32.xlu0 %v213, 106
      %v1147 = vpop.permute.xlu0 %1146
      %1148 = vrot.lane.b32.xlu0 %v214, 106
      %v1149 = vpop.permute.xlu0 %1148
      %1150 = vrot.lane.b32.xlu0 %v215, 106
      %v1151 = vpop.permute.xlu0 %1150
      %1152 = vrot.lane.b32.xlu0 %v216, 106
      %v1153 = vpop.permute.xlu0 %1152
      %1154 = vrot.lane.b32.xlu0 %v220, 106
      %v1155 = vpop.permute.xlu0 %1154
      %vm1156 = vcmask 867328
      %v1157 = vsel %vm1156, %v1147, %v1149
      %v1158 = vsel %vm1156, %v1149, %v1151
      %v1159 = vsel %vm1156, %v1151, %v1153
      %v1160 = vsel %vm1156, %v1153, %v1155
      %v1162 = vsel %vm240, %v1145, 0
      %v1165 = vsel %vm244, %v1157, 0
      %v1168 = vsel %vm244, %v1158, 0
      %v1171 = vsel %vm244, %v1159, 0
      %v1174 = vsel %vm244, %v1160, 0
      %1176 = vmatprep.subr.bf16.mxu0 0
      %1177 = vmatpush1.bf16.msra.mxu0 0
      %1178 = vmatprep.subr.bf16.mxu0 0
      %1179 = vmatpush1.bf16.msra.mxu0 0
      %1180 = vmatprep.subr.bf16.mxu0 0
      %1181 = vmatpush1.bf16.msra.mxu0 0
      %1182 = vmatprep.subr.bf16.mxu0 0
      %1183 = vmatpush1.bf16.msra.mxu0 0
      %1184 = vmatprep.subr.bf16.mxu0 0
      %1185 = vmatpush1.bf16.msra.mxu0 0
      %1186 = vmatprep.subr.bf16.mxu0 0
      %1187 = vmatpush1.bf16.msra.mxu0 0
      %1188 = vmatprep.subr.bf16.mxu0 0
      %1189 = vmatpush1.bf16.msra.mxu0 0
      %1190 = vmatprep.subr.bf16.mxu0 %v1168
      %1191 = vmatpush1.bf16.msra.mxu0 %v1165
      %1192 = vmatprep.subr.bf16.mxu0 0
      %1193 = vmatpush2.bf16.msra.mxu0 0
      %1194 = vmatprep.subr.bf16.mxu0 0
      %1195 = vmatpush2.bf16.msra.mxu0 0
      %1196 = vmatprep.subr.bf16.mxu0 0
      %1197 = vmatpush2.bf16.msra.mxu0 0
      %1198 = vmatprep.subr.bf16.mxu0 0
      %1199 = vmatpush2.bf16.msra.mxu0 0
      %1200 = vmatprep.subr.bf16.mxu0 0
      %1201 = vmatpush2.bf16.msra.mxu0 0
      %1202 = vmatprep.subr.bf16.mxu0 0
      %1203 = vmatpush2.bf16.msra.mxu0 0
      %1204 = vmatprep.subr.bf16.mxu0 0
      %1205 = vmatpush2.bf16.msra.mxu0 0
      %1206 = vmatprep.subr.bf16.mxu0 0
      %1207 = vmatpush2.bf16.msra.mxu0 0
      %1208 = vmatprep.mubr.bf16.mxu0 0
      %1209 = vmatmul.mubr.bf16.gmra.mxu0 %v1162
      %v1210 = vpop.f32.mrf.mxu0
      %v1211 = vadd.f32 0.0, %v1210
      %v1212 = vpop.f32.mrf.mxu0
      %v1213 = vadd.f32 0.0, %v1212
      %v1214 = vpop.f32.mrf.mxu0
      %v1215 = vpop.f32.mrf.mxu0
      %1216 = vdwg.mxu0
      %1217 = vmatprep.subr.bf16.mxu0 0
      %1218 = vmatpush1.bf16.msra.mxu0 0
      %1219 = vmatprep.subr.bf16.mxu0 0
      %1220 = vmatpush1.bf16.msra.mxu0 0
      %1221 = vmatprep.subr.bf16.mxu0 0
      %1222 = vmatpush1.bf16.msra.mxu0 0
      %1223 = vmatprep.subr.bf16.mxu0 0
      %1224 = vmatpush1.bf16.msra.mxu0 0
      %1225 = vmatprep.subr.bf16.mxu0 0
      %1226 = vmatpush1.bf16.msra.mxu0 0
      %1227 = vmatprep.subr.bf16.mxu0 0
      %1228 = vmatpush1.bf16.msra.mxu0 0
      %1229 = vmatprep.subr.bf16.mxu0 0
      %1230 = vmatpush1.bf16.msra.mxu0 0
      %1231 = vmatprep.subr.bf16.mxu0 %v1174
      %1232 = vmatpush1.bf16.msra.mxu0 %v1171
      %1233 = vmatprep.subr.bf16.mxu0 0
      %1234 = vmatpush2.bf16.msra.mxu0 0
      %1235 = vmatprep.subr.bf16.mxu0 0
      %1236 = vmatpush2.bf16.msra.mxu0 0
      %1237 = vmatprep.subr.bf16.mxu0 0
      %1238 = vmatpush2.bf16.msra.mxu0 0
      %1239 = vmatprep.subr.bf16.mxu0 0
      %1240 = vmatpush2.bf16.msra.mxu0 0
      %1241 = vmatprep.subr.bf16.mxu0 0
      %1242 = vmatpush2.bf16.msra.mxu0 0
      %1243 = vmatprep.subr.bf16.mxu0 0
      %1244 = vmatpush2.bf16.msra.mxu0 0
      %1245 = vmatprep.subr.bf16.mxu0 0
      %1246 = vmatpush2.bf16.msra.mxu0 0
      %1247 = vmatprep.subr.bf16.mxu0 0
      %1248 = vmatpush2.bf16.msra.mxu0 0
      %1249 = vmatprep.mubr.bf16.mxu0 0
      %1250 = vmatmul.mubr.bf16.gmra.mxu0 %v1162
      %v1251 = vpop.f32.mrf.mxu0
      %v1252 = vadd.f32 0.0, %v1251
      %v1253 = vpop.f32.mrf.mxu0
      %v1254 = vadd.f32 0.0, %v1253
      %v1255 = vpop.f32.mrf.mxu0
      %v1256 = vpop.f32.mrf.mxu0
      %1257 = vdwg.mxu0
      %v1258 = vadd.f32 %v1140, %v1211
      %v1259 = vadd.f32 %v1141, %v1213
      %v1260 = vadd.f32 %v1142, %v1252
      %v1261 = vadd.f32 %v1143, %v1254
      %s1262 = scalar_lea.vmem %s2, 36
      %v1263 = vld [vmem:[%s1262] sm:$0xf]
      %1264 = vrot.lane.b32.xlu0 %v213, 28
      %v1265 = vpop.permute.xlu0 %1264
      %1266 = vrot.lane.b32.xlu0 %v214, 28
      %v1267 = vpop.permute.xlu0 %1266
      %1268 = vrot.lane.b32.xlu0 %v215, 28
      %v1269 = vpop.permute.xlu0 %1268
      %1270 = vrot.lane.b32.xlu0 %v216, 28
      %v1271 = vpop.permute.xlu0 %1270
      %1272 = vrot.lane.b32.xlu0 %v220, 28
      %v1273 = vpop.permute.xlu0 %1272
      %vm1274 = vcmask 228352
      %v1275 = vsel %vm1274, %v1265, %v1267
      %v1276 = vsel %vm1274, %v1267, %v1269
      %v1277 = vsel %vm1274, %v1269, %v1271
      %v1278 = vsel %vm1274, %v1271, %v1273
      %v1280 = vsel %vm240, %v1263, 0
      %v1283 = vsel %vm244, %v1275, 0
      %v1286 = vsel %vm244, %v1276, 0
      %v1289 = vsel %vm244, %v1277, 0
      %v1292 = vsel %vm244, %v1278, 0
      %1294 = vmatprep.subr.bf16.mxu0 0
      %1295 = vmatpush1.bf16.msra.mxu0 0
      %1296 = vmatprep.subr.bf16.mxu0 0
      %1297 = vmatpush1.bf16.msra.mxu0 0
      %1298 = vmatprep.subr.bf16.mxu0 0
      %1299 = vmatpush1.bf16.msra.mxu0 0
      %1300 = vmatprep.subr.bf16.mxu0 0
      %1301 = vmatpush1.bf16.msra.mxu0 0
      %1302 = vmatprep.subr.bf16.mxu0 0
      %1303 = vmatpush1.bf16.msra.mxu0 0
      %1304 = vmatprep.subr.bf16.mxu0 0
      %1305 = vmatpush1.bf16.msra.mxu0 0
      %1306 = vmatprep.subr.bf16.mxu0 0
      %1307 = vmatpush1.bf16.msra.mxu0 0
      %1308 = vmatprep.subr.bf16.mxu0 %v1286
      %1309 = vmatpush1.bf16.msra.mxu0 %v1283
      %1310 = vmatprep.subr.bf16.mxu0 0
      %1311 = vmatpush2.bf16.msra.mxu0 0
      %1312 = vmatprep.subr.bf16.mxu0 0
      %1313 = vmatpush2.bf16.msra.mxu0 0
      %1314 = vmatprep.subr.bf16.mxu0 0
      %1315 = vmatpush2.bf16.msra.mxu0 0
      %1316 = vmatprep.subr.bf16.mxu0 0
      %1317 = vmatpush2.bf16.msra.mxu0 0
      %1318 = vmatprep.subr.bf16.mxu0 0
      %1319 = vmatpush2.bf16.msra.mxu0 0
      %1320 = vmatprep.subr.bf16.mxu0 0
      %1321 = vmatpush2.bf16.msra.mxu0 0
      %1322 = vmatprep.subr.bf16.mxu0 0
      %1323 = vmatpush2.bf16.msra.mxu0 0
      %1324 = vmatprep.subr.bf16.mxu0 0
      %1325 = vmatpush2.bf16.msra.mxu0 0
      %1326 = vmatprep.mubr.bf16.mxu0 0
      %1327 = vmatmul.mubr.bf16.gmra.mxu0 %v1280
      %v1328 = vpop.f32.mrf.mxu0
      %v1329 = vadd.f32 0.0, %v1328
      %v1330 = vpop.f32.mrf.mxu0
      %v1331 = vadd.f32 0.0, %v1330
      %v1332 = vpop.f32.mrf.mxu0
      %v1333 = vpop.f32.mrf.mxu0
      %1334 = vdwg.mxu0
      %1335 = vmatprep.subr.bf16.mxu0 0
      %1336 = vmatpush1.bf16.msra.mxu0 0
      %1337 = vmatprep.subr.bf16.mxu0 0
      %1338 = vmatpush1.bf16.msra.mxu0 0
      %1339 = vmatprep.subr.bf16.mxu0 0
      %1340 = vmatpush1.bf16.msra.mxu0 0
      %1341 = vmatprep.subr.bf16.mxu0 0
      %1342 = vmatpush1.bf16.msra.mxu0 0
      %1343 = vmatprep.subr.bf16.mxu0 0
      %1344 = vmatpush1.bf16.msra.mxu0 0
      %1345 = vmatprep.subr.bf16.mxu0 0
      %1346 = vmatpush1.bf16.msra.mxu0 0
      %1347 = vmatprep.subr.bf16.mxu0 0
      %1348 = vmatpush1.bf16.msra.mxu0 0
      %1349 = vmatprep.subr.bf16.mxu0 %v1292
      %1350 = vmatpush1.bf16.msra.mxu0 %v1289
      %1351 = vmatprep.subr.bf16.mxu0 0
      %1352 = vmatpush2.bf16.msra.mxu0 0
      %1353 = vmatprep.subr.bf16.mxu0 0
      %1354 = vmatpush2.bf16.msra.mxu0 0
      %1355 = vmatprep.subr.bf16.mxu0 0
      %1356 = vmatpush2.bf16.msra.mxu0 0
      %1357 = vmatprep.subr.bf16.mxu0 0
      %1358 = vmatpush2.bf16.msra.mxu0 0
      %1359 = vmatprep.subr.bf16.mxu0 0
      %1360 = vmatpush2.bf16.msra.mxu0 0
      %1361 = vmatprep.subr.bf16.mxu0 0
      %1362 = vmatpush2.bf16.msra.mxu0 0
      %1363 = vmatprep.subr.bf16.mxu0 0
      %1364 = vmatpush2.bf16.msra.mxu0 0
      %1365 = vmatprep.subr.bf16.mxu0 0
      %1366 = vmatpush2.bf16.msra.mxu0 0
      %1367 = vmatprep.mubr.bf16.mxu0 0
      %1368 = vmatmul.mubr.bf16.gmra.mxu0 %v1280
      %v1369 = vpop.f32.mrf.mxu0
      %v1370 = vadd.f32 0.0, %v1369
      %v1371 = vpop.f32.mrf.mxu0
      %v1372 = vadd.f32 0.0, %v1371
      %v1373 = vpop.f32.mrf.mxu0
      %v1374 = vpop.f32.mrf.mxu0
      %1375 = vdwg.mxu0
      %v1376 = vadd.f32 %v1258, %v1329
      %v1377 = vadd.f32 %v1259, %v1331
      %v1378 = vadd.f32 %v1260, %v1370
      %v1379 = vadd.f32 %v1261, %v1372
      %s1380 = scalar_lea.vmem %s2, 40
      %v1381 = vld [vmem:[%s1380] sm:$0xf]
      %1382 = vrot.lane.b32.xlu0 %v213, 27
      %v1383 = vpop.permute.xlu0 %1382
      %1384 = vrot.lane.b32.xlu0 %v214, 27
      %v1385 = vpop.permute.xlu0 %1384
      %1386 = vrot.lane.b32.xlu0 %v215, 27
      %v1387 = vpop.permute.xlu0 %1386
      %1388 = vrot.lane.b32.xlu0 %v216, 27
      %v1389 = vpop.permute.xlu0 %1388
      %1390 = vrot.lane.b32.xlu0 %v220, 27
      %v1391 = vpop.permute.xlu0 %1390
      %vm1392 = vcmask 220160
      %v1393 = vsel %vm1392, %v1383, %v1385
      %v1394 = vsel %vm1392, %v1385, %v1387
      %v1395 = vsel %vm1392, %v1387, %v1389
      %v1396 = vsel %vm1392, %v1389, %v1391
      %v1398 = vsel %vm240, %v1381, 0
      %v1401 = vsel %vm244, %v1393, 0
      %v1404 = vsel %vm244, %v1394, 0
      %v1407 = vsel %vm244, %v1395, 0
      %v1410 = vsel %vm244, %v1396, 0
      %1412 = vmatprep.subr.bf16.mxu0 0
      %1413 = vmatpush1.bf16.msra.mxu0 0
      %1414 = vmatprep.subr.bf16.mxu0 0
      %1415 = vmatpush1.bf16.msra.mxu0 0
      %1416 = vmatprep.subr.bf16.mxu0 0
      %1417 = vmatpush1.bf16.msra.mxu0 0
      %1418 = vmatprep.subr.bf16.mxu0 0
      %1419 = vmatpush1.bf16.msra.mxu0 0
      %1420 = vmatprep.subr.bf16.mxu0 0
      %1421 = vmatpush1.bf16.msra.mxu0 0
      %1422 = vmatprep.subr.bf16.mxu0 0
      %1423 = vmatpush1.bf16.msra.mxu0 0
      %1424 = vmatprep.subr.bf16.mxu0 0
      %1425 = vmatpush1.bf16.msra.mxu0 0
      %1426 = vmatprep.subr.bf16.mxu0 %v1404
      %1427 = vmatpush1.bf16.msra.mxu0 %v1401
      %1428 = vmatprep.subr.bf16.mxu0 0
      %1429 = vmatpush2.bf16.msra.mxu0 0
      %1430 = vmatprep.subr.bf16.mxu0 0
      %1431 = vmatpush2.bf16.msra.mxu0 0
      %1432 = vmatprep.subr.bf16.mxu0 0
      %1433 = vmatpush2.bf16.msra.mxu0 0
      %1434 = vmatprep.subr.bf16.mxu0 0
      %1435 = vmatpush2.bf16.msra.mxu0 0
      %1436 = vmatprep.subr.bf16.mxu0 0
      %1437 = vmatpush2.bf16.msra.mxu0 0
      %1438 = vmatprep.subr.bf16.mxu0 0
      %1439 = vmatpush2.bf16.msra.mxu0 0
      %1440 = vmatprep.subr.bf16.mxu0 0
      %1441 = vmatpush2.bf16.msra.mxu0 0
      %1442 = vmatprep.subr.bf16.mxu0 0
      %1443 = vmatpush2.bf16.msra.mxu0 0
      %1444 = vmatprep.mubr.bf16.mxu0 0
      %1445 = vmatmul.mubr.bf16.gmra.mxu0 %v1398
      %v1446 = vpop.f32.mrf.mxu0
      %v1447 = vadd.f32 0.0, %v1446
      %v1448 = vpop.f32.mrf.mxu0
      %v1449 = vadd.f32 0.0, %v1448
      %v1450 = vpop.f32.mrf.mxu0
      %v1451 = vpop.f32.mrf.mxu0
      %1452 = vdwg.mxu0
      %1453 = vmatprep.subr.bf16.mxu0 0
      %1454 = vmatpush1.bf16.msra.mxu0 0
      %1455 = vmatprep.subr.bf16.mxu0 0
      %1456 = vmatpush1.bf16.msra.mxu0 0
      %1457 = vmatprep.subr.bf16.mxu0 0
      %1458 = vmatpush1.bf16.msra.mxu0 0
      %1459 = vmatprep.subr.bf16.mxu0 0
      %1460 = vmatpush1.bf16.msra.mxu0 0
      %1461 = vmatprep.subr.bf16.mxu0 0
      %1462 = vmatpush1.bf16.msra.mxu0 0
      %1463 = vmatprep.subr.bf16.mxu0 0
      %1464 = vmatpush1.bf16.msra.mxu0 0
      %1465 = vmatprep.subr.bf16.mxu0 0
      %1466 = vmatpush1.bf16.msra.mxu0 0
      %1467 = vmatprep.subr.bf16.mxu0 %v1410
      %1468 = vmatpush1.bf16.msra.mxu0 %v1407
      %1469 = vmatprep.subr.bf16.mxu0 0
      %1470 = vmatpush2.bf16.msra.mxu0 0
      %1471 = vmatprep.subr.bf16.mxu0 0
      %1472 = vmatpush2.bf16.msra.mxu0 0
      %1473 = vmatprep.subr.bf16.mxu0 0
      %1474 = vmatpush2.bf16.msra.mxu0 0
      %1475 = vmatprep.subr.bf16.mxu0 0
      %1476 = vmatpush2.bf16.msra.mxu0 0
      %1477 = vmatprep.subr.bf16.mxu0 0
      %1478 = vmatpush2.bf16.msra.mxu0 0
      %1479 = vmatprep.subr.bf16.mxu0 0
      %1480 = vmatpush2.bf16.msra.mxu0 0
      %1481 = vmatprep.subr.bf16.mxu0 0
      %1482 = vmatpush2.bf16.msra.mxu0 0
      %1483 = vmatprep.subr.bf16.mxu0 0
      %1484 = vmatpush2.bf16.msra.mxu0 0
      %1485 = vmatprep.mubr.bf16.mxu0 0
      %1486 = vmatmul.mubr.bf16.gmra.mxu0 %v1398
      %v1487 = vpop.f32.mrf.mxu0
      %v1488 = vadd.f32 0.0, %v1487
      %v1489 = vpop.f32.mrf.mxu0
      %v1490 = vadd.f32 0.0, %v1489
      %v1491 = vpop.f32.mrf.mxu0
      %v1492 = vpop.f32.mrf.mxu0
      %1493 = vdwg.mxu0
      %v1494 = vadd.f32 %v1376, %v1447
      %v1495 = vadd.f32 %v1377, %v1449
      %v1496 = vadd.f32 %v1378, %v1488
      %v1497 = vadd.f32 %v1379, %v1490
      %s1498 = scalar_lea.vmem %s2, 44
      %v1499 = vld [vmem:[%s1498] sm:$0xf]
      %1500 = vrot.lane.b32.xlu0 %v213, 26
      %v1501 = vpop.permute.xlu0 %1500
      %1502 = vrot.lane.b32.xlu0 %v214, 26
      %v1503 = vpop.permute.xlu0 %1502
      %1504 = vrot.lane.b32.xlu0 %v215, 26
      %v1505 = vpop.permute.xlu0 %1504
      %1506 = vrot.lane.b32.xlu0 %v216, 26
      %v1507 = vpop.permute.xlu0 %1506
      %1508 = vrot.lane.b32.xlu0 %v220, 26
      %v1509 = vpop.permute.xlu0 %1508
      %vm1510 = vcmask 211968
      %v1511 = vsel %vm1510, %v1501, %v1503
      %v1512 = vsel %vm1510, %v1503, %v1505
      %v1513 = vsel %vm1510, %v1505, %v1507
      %v1514 = vsel %vm1510, %v1507, %v1509
      %v1516 = vsel %vm240, %v1499, 0
      %v1519 = vsel %vm244, %v1511, 0
      %v1522 = vsel %vm244, %v1512, 0
      %v1525 = vsel %vm244, %v1513, 0
      %v1528 = vsel %vm244, %v1514, 0
      %1530 = vmatprep.subr.bf16.mxu0 0
      %1531 = vmatpush1.bf16.msra.mxu0 0
      %1532 = vmatprep.subr.bf16.mxu0 0
      %1533 = vmatpush1.bf16.msra.mxu0 0
      %1534 = vmatprep.subr.bf16.mxu0 0
      %1535 = vmatpush1.bf16.msra.mxu0 0
      %1536 = vmatprep.subr.bf16.mxu0 0
      %1537 = vmatpush1.bf16.msra.mxu0 0
      %1538 = vmatprep.subr.bf16.mxu0 0
      %1539 = vmatpush1.bf16.msra.mxu0 0
      %1540 = vmatprep.subr.bf16.mxu0 0
      %1541 = vmatpush1.bf16.msra.mxu0 0
      %1542 = vmatprep.subr.bf16.mxu0 0
      %1543 = vmatpush1.bf16.msra.mxu0 0
      %1544 = vmatprep.subr.bf16.mxu0 %v1522
      %1545 = vmatpush1.bf16.msra.mxu0 %v1519
      %1546 = vmatprep.subr.bf16.mxu0 0
      %1547 = vmatpush2.bf16.msra.mxu0 0
      %1548 = vmatprep.subr.bf16.mxu0 0
      %1549 = vmatpush2.bf16.msra.mxu0 0
      %1550 = vmatprep.subr.bf16.mxu0 0
      %1551 = vmatpush2.bf16.msra.mxu0 0
      %1552 = vmatprep.subr.bf16.mxu0 0
      %1553 = vmatpush2.bf16.msra.mxu0 0
      %1554 = vmatprep.subr.bf16.mxu0 0
      %1555 = vmatpush2.bf16.msra.mxu0 0
      %1556 = vmatprep.subr.bf16.mxu0 0
      %1557 = vmatpush2.bf16.msra.mxu0 0
      %1558 = vmatprep.subr.bf16.mxu0 0
      %1559 = vmatpush2.bf16.msra.mxu0 0
      %1560 = vmatprep.subr.bf16.mxu0 0
      %1561 = vmatpush2.bf16.msra.mxu0 0
      %1562 = vmatprep.mubr.bf16.mxu0 0
      %1563 = vmatmul.mubr.bf16.gmra.mxu0 %v1516
      %v1564 = vpop.f32.mrf.mxu0
      %v1565 = vadd.f32 0.0, %v1564
      %v1566 = vpop.f32.mrf.mxu0
      %v1567 = vadd.f32 0.0, %v1566
      %v1568 = vpop.f32.mrf.mxu0
      %v1569 = vpop.f32.mrf.mxu0
      %1570 = vdwg.mxu0
      %1571 = vmatprep.subr.bf16.mxu0 0
      %1572 = vmatpush1.bf16.msra.mxu0 0
      %1573 = vmatprep.subr.bf16.mxu0 0
      %1574 = vmatpush1.bf16.msra.mxu0 0
      %1575 = vmatprep.subr.bf16.mxu0 0
      %1576 = vmatpush1.bf16.msra.mxu0 0
      %1577 = vmatprep.subr.bf16.mxu0 0
      %1578 = vmatpush1.bf16.msra.mxu0 0
      %1579 = vmatprep.subr.bf16.mxu0 0
      %1580 = vmatpush1.bf16.msra.mxu0 0
      %1581 = vmatprep.subr.bf16.mxu0 0
      %1582 = vmatpush1.bf16.msra.mxu0 0
      %1583 = vmatprep.subr.bf16.mxu0 0
      %1584 = vmatpush1.bf16.msra.mxu0 0
      %1585 = vmatprep.subr.bf16.mxu0 %v1528
      %1586 = vmatpush1.bf16.msra.mxu0 %v1525
      %1587 = vmatprep.subr.bf16.mxu0 0
      %1588 = vmatpush2.bf16.msra.mxu0 0
      %1589 = vmatprep.subr.bf16.mxu0 0
      %1590 = vmatpush2.bf16.msra.mxu0 0
      %1591 = vmatprep.subr.bf16.mxu0 0
      %1592 = vmatpush2.bf16.msra.mxu0 0
      %1593 = vmatprep.subr.bf16.mxu0 0
      %1594 = vmatpush2.bf16.msra.mxu0 0
      %1595 = vmatprep.subr.bf16.mxu0 0
      %1596 = vmatpush2.bf16.msra.mxu0 0
      %1597 = vmatprep.subr.bf16.mxu0 0
      %1598 = vmatpush2.bf16.msra.mxu0 0
      %1599 = vmatprep.subr.bf16.mxu0 0
      %1600 = vmatpush2.bf16.msra.mxu0 0
      %1601 = vmatprep.subr.bf16.mxu0 0
      %1602 = vmatpush2.bf16.msra.mxu0 0
      %1603 = vmatprep.mubr.bf16.mxu0 0
      %1604 = vmatmul.mubr.bf16.gmra.mxu0 %v1516
      %v1605 = vpop.f32.mrf.mxu0
      %v1606 = vadd.f32 0.0, %v1605
      %v1607 = vpop.f32.mrf.mxu0
      %v1608 = vadd.f32 0.0, %v1607
      %v1609 = vpop.f32.mrf.mxu0
      %v1610 = vpop.f32.mrf.mxu0
      %1611 = vdwg.mxu0
      %v1612 = vadd.f32 %v1494, %v1565
      %v1613 = vadd.f32 %v1495, %v1567
      %v1614 = vadd.f32 %v1496, %v1606
      %v1615 = vadd.f32 %v1497, %v1608
      %s1616 = scalar_lea.vmem %s2, 48
      %v1617 = vld [vmem:[%s1616] sm:$0xf]
      %1618 = vrot.lane.b32.xlu0 %v213, 18
      %v1619 = vpop.permute.xlu0 %1618
      %1620 = vrot.lane.b32.xlu0 %v214, 18
      %v1621 = vpop.permute.xlu0 %1620
      %1622 = vrot.lane.b32.xlu0 %v215, 18
      %v1623 = vpop.permute.xlu0 %1622
      %1624 = vrot.lane.b32.xlu0 %v216, 18
      %v1625 = vpop.permute.xlu0 %1624
      %1626 = vrot.lane.b32.xlu0 %v220, 18
      %v1627 = vpop.permute.xlu0 %1626
      %vm1628 = vcmask 146432
      %v1629 = vsel %vm1628, %v1619, %v1621
      %v1630 = vsel %vm1628, %v1621, %v1623
      %v1631 = vsel %vm1628, %v1623, %v1625
      %v1632 = vsel %vm1628, %v1625, %v1627
      %v1634 = vsel %vm240, %v1617, 0
      %v1637 = vsel %vm244, %v1629, 0
      %v1640 = vsel %vm244, %v1630, 0
      %v1643 = vsel %vm244, %v1631, 0
      %v1646 = vsel %vm244, %v1632, 0
      %1648 = vmatprep.subr.bf16.mxu0 0
      %1649 = vmatpush1.bf16.msra.mxu0 0
      %1650 = vmatprep.subr.bf16.mxu0 0
      %1651 = vmatpush1.bf16.msra.mxu0 0
      %1652 = vmatprep.subr.bf16.mxu0 0
      %1653 = vmatpush1.bf16.msra.mxu0 0
      %1654 = vmatprep.subr.bf16.mxu0 0
      %1655 = vmatpush1.bf16.msra.mxu0 0
      %1656 = vmatprep.subr.bf16.mxu0 0
      %1657 = vmatpush1.bf16.msra.mxu0 0
      %1658 = vmatprep.subr.bf16.mxu0 0
      %1659 = vmatpush1.bf16.msra.mxu0 0
      %1660 = vmatprep.subr.bf16.mxu0 0
      %1661 = vmatpush1.bf16.msra.mxu0 0
      %1662 = vmatprep.subr.bf16.mxu0 %v1640
      %1663 = vmatpush1.bf16.msra.mxu0 %v1637
      %1664 = vmatprep.subr.bf16.mxu0 0
      %1665 = vmatpush2.bf16.msra.mxu0 0
      %1666 = vmatprep.subr.bf16.mxu0 0
      %1667 = vmatpush2.bf16.msra.mxu0 0
      %1668 = vmatprep.subr.bf16.mxu0 0
      %1669 = vmatpush2.bf16.msra.mxu0 0
      %1670 = vmatprep.subr.bf16.mxu0 0
      %1671 = vmatpush2.bf16.msra.mxu0 0
      %1672 = vmatprep.subr.bf16.mxu0 0
      %1673 = vmatpush2.bf16.msra.mxu0 0
      %1674 = vmatprep.subr.bf16.mxu0 0
      %1675 = vmatpush2.bf16.msra.mxu0 0
      %1676 = vmatprep.subr.bf16.mxu0 0
      %1677 = vmatpush2.bf16.msra.mxu0 0
      %1678 = vmatprep.subr.bf16.mxu0 0
      %1679 = vmatpush2.bf16.msra.mxu0 0
      %1680 = vmatprep.mubr.bf16.mxu0 0
      %1681 = vmatmul.mubr.bf16.gmra.mxu0 %v1634
      %v1682 = vpop.f32.mrf.mxu0
      %v1683 = vadd.f32 0.0, %v1682
      %v1684 = vpop.f32.mrf.mxu0
      %v1685 = vadd.f32 0.0, %v1684
      %v1686 = vpop.f32.mrf.mxu0
      %v1687 = vpop.f32.mrf.mxu0
      %1688 = vdwg.mxu0
      %1689 = vmatprep.subr.bf16.mxu0 0
      %1690 = vmatpush1.bf16.msra.mxu0 0
      %1691 = vmatprep.subr.bf16.mxu0 0
      %1692 = vmatpush1.bf16.msra.mxu0 0
      %1693 = vmatprep.subr.bf16.mxu0 0
      %1694 = vmatpush1.bf16.msra.mxu0 0
      %1695 = vmatprep.subr.bf16.mxu0 0
      %1696 = vmatpush1.bf16.msra.mxu0 0
      %1697 = vmatprep.subr.bf16.mxu0 0
      %1698 = vmatpush1.bf16.msra.mxu0 0
      %1699 = vmatprep.subr.bf16.mxu0 0
      %1700 = vmatpush1.bf16.msra.mxu0 0
      %1701 = vmatprep.subr.bf16.mxu0 0
      %1702 = vmatpush1.bf16.msra.mxu0 0
      %1703 = vmatprep.subr.bf16.mxu0 %v1646
      %1704 = vmatpush1.bf16.msra.mxu0 %v1643
      %1705 = vmatprep.subr.bf16.mxu0 0
      %1706 = vmatpush2.bf16.msra.mxu0 0
      %1707 = vmatprep.subr.bf16.mxu0 0
      %1708 = vmatpush2.bf16.msra.mxu0 0
      %1709 = vmatprep.subr.bf16.mxu0 0
      %1710 = vmatpush2.bf16.msra.mxu0 0
      %1711 = vmatprep.subr.bf16.mxu0 0
      %1712 = vmatpush2.bf16.msra.mxu0 0
      %1713 = vmatprep.subr.bf16.mxu0 0
      %1714 = vmatpush2.bf16.msra.mxu0 0
      %1715 = vmatprep.subr.bf16.mxu0 0
      %1716 = vmatpush2.bf16.msra.mxu0 0
      %1717 = vmatprep.subr.bf16.mxu0 0
      %1718 = vmatpush2.bf16.msra.mxu0 0
      %1719 = vmatprep.subr.bf16.mxu0 0
      %1720 = vmatpush2.bf16.msra.mxu0 0
      %1721 = vmatprep.mubr.bf16.mxu0 0
      %1722 = vmatmul.mubr.bf16.gmra.mxu0 %v1634
      %v1723 = vpop.f32.mrf.mxu0
      %v1724 = vadd.f32 0.0, %v1723
      %v1725 = vpop.f32.mrf.mxu0
      %v1726 = vadd.f32 0.0, %v1725
      %v1727 = vpop.f32.mrf.mxu0
      %v1728 = vpop.f32.mrf.mxu0
      %1729 = vdwg.mxu0
      %v1730 = vadd.f32 %v1612, %v1683
      %v1731 = vadd.f32 %v1613, %v1685
      %v1732 = vadd.f32 %v1614, %v1724
      %v1733 = vadd.f32 %v1615, %v1726
      %s1734 = scalar_lea.vmem %s2, 52
      %v1735 = vld [vmem:[%s1734] sm:$0xf]
      %1736 = vrot.lane.b32.xlu0 %v213, 17
      %v1737 = vpop.permute.xlu0 %1736
      %1738 = vrot.lane.b32.xlu0 %v214, 17
      %v1739 = vpop.permute.xlu0 %1738
      %1740 = vrot.lane.b32.xlu0 %v215, 17
      %v1741 = vpop.permute.xlu0 %1740
      %1742 = vrot.lane.b32.xlu0 %v216, 17
      %v1743 = vpop.permute.xlu0 %1742
      %1744 = vrot.lane.b32.xlu0 %v220, 17
      %v1745 = vpop.permute.xlu0 %1744
      %vm1746 = vcmask 138240
      %v1747 = vsel %vm1746, %v1737, %v1739
      %v1748 = vsel %vm1746, %v1739, %v1741
      %v1749 = vsel %vm1746, %v1741, %v1743
      %v1750 = vsel %vm1746, %v1743, %v1745
      %v1752 = vsel %vm240, %v1735, 0
      %v1755 = vsel %vm244, %v1747, 0
      %v1758 = vsel %vm244, %v1748, 0
      %v1761 = vsel %vm244, %v1749, 0
      %v1764 = vsel %vm244, %v1750, 0
      %1766 = vmatprep.subr.bf16.mxu0 0
      %1767 = vmatpush1.bf16.msra.mxu0 0
      %1768 = vmatprep.subr.bf16.mxu0 0
      %1769 = vmatpush1.bf16.msra.mxu0 0
      %1770 = vmatprep.subr.bf16.mxu0 0
      %1771 = vmatpush1.bf16.msra.mxu0 0
      %1772 = vmatprep.subr.bf16.mxu0 0
      %1773 = vmatpush1.bf16.msra.mxu0 0
      %1774 = vmatprep.subr.bf16.mxu0 0
      %1775 = vmatpush1.bf16.msra.mxu0 0
      %1776 = vmatprep.subr.bf16.mxu0 0
      %1777 = vmatpush1.bf16.msra.mxu0 0
      %1778 = vmatprep.subr.bf16.mxu0 0
      %1779 = vmatpush1.bf16.msra.mxu0 0
      %1780 = vmatprep.subr.bf16.mxu0 %v1758
      %1781 = vmatpush1.bf16.msra.mxu0 %v1755
      %1782 = vmatprep.subr.bf16.mxu0 0
      %1783 = vmatpush2.bf16.msra.mxu0 0
      %1784 = vmatprep.subr.bf16.mxu0 0
      %1785 = vmatpush2.bf16.msra.mxu0 0
      %1786 = vmatprep.subr.bf16.mxu0 0
      %1787 = vmatpush2.bf16.msra.mxu0 0
      %1788 = vmatprep.subr.bf16.mxu0 0
      %1789 = vmatpush2.bf16.msra.mxu0 0
      %1790 = vmatprep.subr.bf16.mxu0 0
      %1791 = vmatpush2.bf16.msra.mxu0 0
      %1792 = vmatprep.subr.bf16.mxu0 0
      %1793 = vmatpush2.bf16.msra.mxu0 0
      %1794 = vmatprep.subr.bf16.mxu0 0
      %1795 = vmatpush2.bf16.msra.mxu0 0
      %1796 = vmatprep.subr.bf16.mxu0 0
      %1797 = vmatpush2.bf16.msra.mxu0 0
      %1798 = vmatprep.mubr.bf16.mxu0 0
      %1799 = vmatmul.mubr.bf16.gmra.mxu0 %v1752
      %v1800 = vpop.f32.mrf.mxu0
      %v1801 = vadd.f32 0.0, %v1800
      %v1802 = vpop.f32.mrf.mxu0
      %v1803 = vadd.f32 0.0, %v1802
      %v1804 = vpop.f32.mrf.mxu0
      %v1805 = vpop.f32.mrf.mxu0
      %1806 = vdwg.mxu0
      %1807 = vmatprep.subr.bf16.mxu0 0
      %1808 = vmatpush1.bf16.msra.mxu0 0
      %1809 = vmatprep.subr.bf16.mxu0 0
      %1810 = vmatpush1.bf16.msra.mxu0 0
      %1811 = vmatprep.subr.bf16.mxu0 0
      %1812 = vmatpush1.bf16.msra.mxu0 0
      %1813 = vmatprep.subr.bf16.mxu0 0
      %1814 = vmatpush1.bf16.msra.mxu0 0
      %1815 = vmatprep.subr.bf16.mxu0 0
      %1816 = vmatpush1.bf16.msra.mxu0 0
      %1817 = vmatprep.subr.bf16.mxu0 0
      %1818 = vmatpush1.bf16.msra.mxu0 0
      %1819 = vmatprep.subr.bf16.mxu0 0
      %1820 = vmatpush1.bf16.msra.mxu0 0
      %1821 = vmatprep.subr.bf16.mxu0 %v1764
      %1822 = vmatpush1.bf16.msra.mxu0 %v1761
      %1823 = vmatprep.subr.bf16.mxu0 0
      %1824 = vmatpush2.bf16.msra.mxu0 0
      %1825 = vmatprep.subr.bf16.mxu0 0
      %1826 = vmatpush2.bf16.msra.mxu0 0
      %1827 = vmatprep.subr.bf16.mxu0 0
      %1828 = vmatpush2.bf16.msra.mxu0 0
      %1829 = vmatprep.subr.bf16.mxu0 0
      %1830 = vmatpush2.bf16.msra.mxu0 0
      %1831 = vmatprep.subr.bf16.mxu0 0
      %1832 = vmatpush2.bf16.msra.mxu0 0
      %1833 = vmatprep.subr.bf16.mxu0 0
      %1834 = vmatpush2.bf16.msra.mxu0 0
      %1835 = vmatprep.subr.bf16.mxu0 0
      %1836 = vmatpush2.bf16.msra.mxu0 0
      %1837 = vmatprep.subr.bf16.mxu0 0
      %1838 = vmatpush2.bf16.msra.mxu0 0
      %1839 = vmatprep.mubr.bf16.mxu0 0
      %1840 = vmatmul.mubr.bf16.gmra.mxu0 %v1752
      %v1841 = vpop.f32.mrf.mxu0
      %v1842 = vadd.f32 0.0, %v1841
      %v1843 = vpop.f32.mrf.mxu0
      %v1844 = vadd.f32 0.0, %v1843
      %v1845 = vpop.f32.mrf.mxu0
      %v1846 = vpop.f32.mrf.mxu0
      %1847 = vdwg.mxu0
      %v1848 = vadd.f32 %v1730, %v1801
      %v1849 = vadd.f32 %v1731, %v1803
      %v1850 = vadd.f32 %v1732, %v1842
      %v1851 = vadd.f32 %v1733, %v1844
      %s1852 = scalar_lea.vmem %s2, 56
      %v1853 = vld [vmem:[%s1852] sm:$0xf]
      %1854 = vrot.lane.b32.xlu0 %v213, 16
      %v1855 = vpop.permute.xlu0 %1854
      %1856 = vrot.lane.b32.xlu0 %v214, 16
      %v1857 = vpop.permute.xlu0 %1856
      %1858 = vrot.lane.b32.xlu0 %v215, 16
      %v1859 = vpop.permute.xlu0 %1858
      %1860 = vrot.lane.b32.xlu0 %v216, 16
      %v1861 = vpop.permute.xlu0 %1860
      %1862 = vrot.lane.b32.xlu0 %v220, 16
      %v1863 = vpop.permute.xlu0 %1862
      %vm1864 = vcmask 130048
      %v1865 = vsel %vm1864, %v1855, %v1857
      %v1866 = vsel %vm1864, %v1857, %v1859
      %v1867 = vsel %vm1864, %v1859, %v1861
      %v1868 = vsel %vm1864, %v1861, %v1863
      %v1870 = vsel %vm240, %v1853, 0
      %v1873 = vsel %vm244, %v1865, 0
      %v1876 = vsel %vm244, %v1866, 0
      %v1879 = vsel %vm244, %v1867, 0
      %v1882 = vsel %vm244, %v1868, 0
      %1884 = vmatprep.subr.bf16.mxu0 0
      %1885 = vmatpush1.bf16.msra.mxu0 0
      %1886 = vmatprep.subr.bf16.mxu0 0
      %1887 = vmatpush1.bf16.msra.mxu0 0
      %1888 = vmatprep.subr.bf16.mxu0 0
      %1889 = vmatpush1.bf16.msra.mxu0 0
      %1890 = vmatprep.subr.bf16.mxu0 0
      %1891 = vmatpush1.bf16.msra.mxu0 0
      %1892 = vmatprep.subr.bf16.mxu0 0
      %1893 = vmatpush1.bf16.msra.mxu0 0
      %1894 = vmatprep.subr.bf16.mxu0 0
      %1895 = vmatpush1.bf16.msra.mxu0 0
      %1896 = vmatprep.subr.bf16.mxu0 0
      %1897 = vmatpush1.bf16.msra.mxu0 0
      %1898 = vmatprep.subr.bf16.mxu0 %v1876
      %1899 = vmatpush1.bf16.msra.mxu0 %v1873
      %1900 = vmatprep.subr.bf16.mxu0 0
      %1901 = vmatpush2.bf16.msra.mxu0 0
      %1902 = vmatprep.subr.bf16.mxu0 0
      %1903 = vmatpush2.bf16.msra.mxu0 0
      %1904 = vmatprep.subr.bf16.mxu0 0
      %1905 = vmatpush2.bf16.msra.mxu0 0
      %1906 = vmatprep.subr.bf16.mxu0 0
      %1907 = vmatpush2.bf16.msra.mxu0 0
      %1908 = vmatprep.subr.bf16.mxu0 0
      %1909 = vmatpush2.bf16.msra.mxu0 0
      %1910 = vmatprep.subr.bf16.mxu0 0
      %1911 = vmatpush2.bf16.msra.mxu0 0
      %1912 = vmatprep.subr.bf16.mxu0 0
      %1913 = vmatpush2.bf16.msra.mxu0 0
      %1914 = vmatprep.subr.bf16.mxu0 0
      %1915 = vmatpush2.bf16.msra.mxu0 0
      %1916 = vmatprep.mubr.bf16.mxu0 0
      %1917 = vmatmul.mubr.bf16.gmra.mxu0 %v1870
      %v1918 = vpop.f32.mrf.mxu0
      %v1919 = vadd.f32 0.0, %v1918
      %v1920 = vpop.f32.mrf.mxu0
      %v1921 = vadd.f32 0.0, %v1920
      %v1922 = vpop.f32.mrf.mxu0
      %v1923 = vpop.f32.mrf.mxu0
      %1924 = vdwg.mxu0
      %1925 = vmatprep.subr.bf16.mxu0 0
      %1926 = vmatpush1.bf16.msra.mxu0 0
      %1927 = vmatprep.subr.bf16.mxu0 0
      %1928 = vmatpush1.bf16.msra.mxu0 0
      %1929 = vmatprep.subr.bf16.mxu0 0
      %1930 = vmatpush1.bf16.msra.mxu0 0
      %1931 = vmatprep.subr.bf16.mxu0 0
      %1932 = vmatpush1.bf16.msra.mxu0 0
      %1933 = vmatprep.subr.bf16.mxu0 0
      %1934 = vmatpush1.bf16.msra.mxu0 0
      %1935 = vmatprep.subr.bf16.mxu0 0
      %1936 = vmatpush1.bf16.msra.mxu0 0
      %1937 = vmatprep.subr.bf16.mxu0 0
      %1938 = vmatpush1.bf16.msra.mxu0 0
      %1939 = vmatprep.subr.bf16.mxu0 %v1882
      %1940 = vmatpush1.bf16.msra.mxu0 %v1879
      %1941 = vmatprep.subr.bf16.mxu0 0
      %1942 = vmatpush2.bf16.msra.mxu0 0
      %1943 = vmatprep.subr.bf16.mxu0 0
      %1944 = vmatpush2.bf16.msra.mxu0 0
      %1945 = vmatprep.subr.bf16.mxu0 0
      %1946 = vmatpush2.bf16.msra.mxu0 0
      %1947 = vmatprep.subr.bf16.mxu0 0
      %1948 = vmatpush2.bf16.msra.mxu0 0
      %1949 = vmatprep.subr.bf16.mxu0 0
      %1950 = vmatpush2.bf16.msra.mxu0 0
      %1951 = vmatprep.subr.bf16.mxu0 0
      %1952 = vmatpush2.bf16.msra.mxu0 0
      %1953 = vmatprep.subr.bf16.mxu0 0
      %1954 = vmatpush2.bf16.msra.mxu0 0
      %1955 = vmatprep.subr.bf16.mxu0 0
      %1956 = vmatpush2.bf16.msra.mxu0 0
      %1957 = vmatprep.mubr.bf16.mxu0 0
      %1958 = vmatmul.mubr.bf16.gmra.mxu0 %v1870
      %v1959 = vpop.f32.mrf.mxu0
      %v1960 = vadd.f32 0.0, %v1959
      %v1961 = vpop.f32.mrf.mxu0
      %v1962 = vadd.f32 0.0, %v1961
      %v1963 = vpop.f32.mrf.mxu0
      %v1964 = vpop.f32.mrf.mxu0
      %1965 = vdwg.mxu0
      %v1966 = vadd.f32 %v1848, %v1919
      %v1967 = vadd.f32 %v1849, %v1921
      %v1968 = vadd.f32 %v1850, %v1960
      %v1969 = vadd.f32 %v1851, %v1962
      %s1970 = scalar_lea.vmem %s2, 60
      %v1971 = vld [vmem:[%s1970] sm:$0xf]
      %1972 = vrot.lane.b32.xlu0 %v213, 8
      %v1973 = vpop.permute.xlu0 %1972
      %1974 = vrot.lane.b32.xlu0 %v214, 8
      %v1975 = vpop.permute.xlu0 %1974
      %1976 = vrot.lane.b32.xlu0 %v215, 8
      %v1977 = vpop.permute.xlu0 %1976
      %1978 = vrot.lane.b32.xlu0 %v216, 8
      %v1979 = vpop.permute.xlu0 %1978
      %1980 = vrot.lane.b32.xlu0 %v220, 8
      %v1981 = vpop.permute.xlu0 %1980
      %vm1982 = vcmask 64512
      %v1983 = vsel %vm1982, %v1973, %v1975
      %v1984 = vsel %vm1982, %v1975, %v1977
      %v1985 = vsel %vm1982, %v1977, %v1979
      %v1986 = vsel %vm1982, %v1979, %v1981
      %v1988 = vsel %vm240, %v1971, 0
      %v1991 = vsel %vm244, %v1983, 0
      %v1994 = vsel %vm244, %v1984, 0
      %v1997 = vsel %vm244, %v1985, 0
      %v2000 = vsel %vm244, %v1986, 0
      %2002 = vmatprep.subr.bf16.mxu0 0
      %2003 = vmatpush1.bf16.msra.mxu0 0
      %2004 = vmatprep.subr.bf16.mxu0 0
      %2005 = vmatpush1.bf16.msra.mxu0 0
      %2006 = vmatprep.subr.bf16.mxu0 0
      %2007 = vmatpush1.bf16.msra.mxu0 0
      %2008 = vmatprep.subr.bf16.mxu0 0
      %2009 = vmatpush1.bf16.msra.mxu0 0
      %2010 = vmatprep.subr.bf16.mxu0 0
      %2011 = vmatpush1.bf16.msra.mxu0 0
      %2012 = vmatprep.subr.bf16.mxu0 0
      %2013 = vmatpush1.bf16.msra.mxu0 0
      %2014 = vmatprep.subr.bf16.mxu0 0
      %2015 = vmatpush1.bf16.msra.mxu0 0
      %2016 = vmatprep.subr.bf16.mxu0 %v1994
      %2017 = vmatpush1.bf16.msra.mxu0 %v1991
      %2018 = vmatprep.subr.bf16.mxu0 0
      %2019 = vmatpush2.bf16.msra.mxu0 0
      %2020 = vmatprep.subr.bf16.mxu0 0
      %2021 = vmatpush2.bf16.msra.mxu0 0
      %2022 = vmatprep.subr.bf16.mxu0 0
      %2023 = vmatpush2.bf16.msra.mxu0 0
      %2024 = vmatprep.subr.bf16.mxu0 0
      %2025 = vmatpush2.bf16.msra.mxu0 0
      %2026 = vmatprep.subr.bf16.mxu0 0
      %2027 = vmatpush2.bf16.msra.mxu0 0
      %2028 = vmatprep.subr.bf16.mxu0 0
      %2029 = vmatpush2.bf16.msra.mxu0 0
      %2030 = vmatprep.subr.bf16.mxu0 0
      %2031 = vmatpush2.bf16.msra.mxu0 0
      %2032 = vmatprep.subr.bf16.mxu0 0
      %2033 = vmatpush2.bf16.msra.mxu0 0
      %2034 = vmatprep.mubr.bf16.mxu0 0
      %2035 = vmatmul.mubr.bf16.gmra.mxu0 %v1988
      %v2036 = vpop.f32.mrf.mxu0
      %v2037 = vadd.f32 0.0, %v2036
      %v2038 = vpop.f32.mrf.mxu0
      %v2039 = vadd.f32 0.0, %v2038
      %v2040 = vpop.f32.mrf.mxu0
      %v2041 = vpop.f32.mrf.mxu0
      %2042 = vdwg.mxu0
      %2043 = vmatprep.subr.bf16.mxu0 0
      %2044 = vmatpush1.bf16.msra.mxu0 0
      %2045 = vmatprep.subr.bf16.mxu0 0
      %2046 = vmatpush1.bf16.msra.mxu0 0
      %2047 = vmatprep.subr.bf16.mxu0 0
      %2048 = vmatpush1.bf16.msra.mxu0 0
      %2049 = vmatprep.subr.bf16.mxu0 0
      %2050 = vmatpush1.bf16.msra.mxu0 0
      %2051 = vmatprep.subr.bf16.mxu0 0
      %2052 = vmatpush1.bf16.msra.mxu0 0
      %2053 = vmatprep.subr.bf16.mxu0 0
      %2054 = vmatpush1.bf16.msra.mxu0 0
      %2055 = vmatprep.subr.bf16.mxu0 0
      %2056 = vmatpush1.bf16.msra.mxu0 0
      %2057 = vmatprep.subr.bf16.mxu0 %v2000
      %2058 = vmatpush1.bf16.msra.mxu0 %v1997
      %2059 = vmatprep.subr.bf16.mxu0 0
      %2060 = vmatpush2.bf16.msra.mxu0 0
      %2061 = vmatprep.subr.bf16.mxu0 0
      %2062 = vmatpush2.bf16.msra.mxu0 0
      %2063 = vmatprep.subr.bf16.mxu0 0
      %2064 = vmatpush2.bf16.msra.mxu0 0
      %2065 = vmatprep.subr.bf16.mxu0 0
      %2066 = vmatpush2.bf16.msra.mxu0 0
      %2067 = vmatprep.subr.bf16.mxu0 0
      %2068 = vmatpush2.bf16.msra.mxu0 0
      %2069 = vmatprep.subr.bf16.mxu0 0
      %2070 = vmatpush2.bf16.msra.mxu0 0
      %2071 = vmatprep.subr.bf16.mxu0 0
      %2072 = vmatpush2.bf16.msra.mxu0 0
      %2073 = vmatprep.subr.bf16.mxu0 0
      %2074 = vmatpush2.bf16.msra.mxu0 0
      %2075 = vmatprep.mubr.bf16.mxu0 0
      %2076 = vmatmul.mubr.bf16.gmra.mxu0 %v1988
      %v2077 = vpop.f32.mrf.mxu0
      %v2078 = vadd.f32 0.0, %v2077
      %v2079 = vpop.f32.mrf.mxu0
      %v2080 = vadd.f32 0.0, %v2079
      %v2081 = vpop.f32.mrf.mxu0
      %v2082 = vpop.f32.mrf.mxu0
      %2083 = vdwg.mxu0
      %v2084 = vadd.f32 %v1966, %v2037
      %v2085 = vadd.f32 %v1967, %v2039
      %v2086 = vadd.f32 %v1968, %v2078
      %v2087 = vadd.f32 %v1969, %v2080
      %s2088 = scalar_lea.vmem %s2, 64
      %v2089 = vld [vmem:[%s2088] sm:$0xf]
      %2090 = vrot.lane.b32.xlu0 %v213, 7
      %v2091 = vpop.permute.xlu0 %2090
      %2092 = vrot.lane.b32.xlu0 %v214, 7
      %v2093 = vpop.permute.xlu0 %2092
      %2094 = vrot.lane.b32.xlu0 %v215, 7
      %v2095 = vpop.permute.xlu0 %2094
      %2096 = vrot.lane.b32.xlu0 %v216, 7
      %v2097 = vpop.permute.xlu0 %2096
      %2098 = vrot.lane.b32.xlu0 %v220, 7
      %v2099 = vpop.permute.xlu0 %2098
      %vm2100 = vcmask 56320
      %v2101 = vsel %vm2100, %v2091, %v2093
      %v2102 = vsel %vm2100, %v2093, %v2095
      %v2103 = vsel %vm2100, %v2095, %v2097
      %v2104 = vsel %vm2100, %v2097, %v2099
      %v2106 = vsel %vm240, %v2089, 0
      %v2109 = vsel %vm244, %v2101, 0
      %v2112 = vsel %vm244, %v2102, 0
      %v2115 = vsel %vm244, %v2103, 0
      %v2118 = vsel %vm244, %v2104, 0
      %2120 = vmatprep.subr.bf16.mxu0 0
      %2121 = vmatpush1.bf16.msra.mxu0 0
      %2122 = vmatprep.subr.bf16.mxu0 0
      %2123 = vmatpush1.bf16.msra.mxu0 0
      %2124 = vmatprep.subr.bf16.mxu0 0
      %2125 = vmatpush1.bf16.msra.mxu0 0
      %2126 = vmatprep.subr.bf16.mxu0 0
      %2127 = vmatpush1.bf16.msra.mxu0 0
      %2128 = vmatprep.subr.bf16.mxu0 0
      %2129 = vmatpush1.bf16.msra.mxu0 0
      %2130 = vmatprep.subr.bf16.mxu0 0
      %2131 = vmatpush1.bf16.msra.mxu0 0
      %2132 = vmatprep.subr.bf16.mxu0 0
      %2133 = vmatpush1.bf16.msra.mxu0 0
      %2134 = vmatprep.subr.bf16.mxu0 %v2112
      %2135 = vmatpush1.bf16.msra.mxu0 %v2109
      %2136 = vmatprep.subr.bf16.mxu0 0
      %2137 = vmatpush2.bf16.msra.mxu0 0
      %2138 = vmatprep.subr.bf16.mxu0 0
      %2139 = vmatpush2.bf16.msra.mxu0 0
      %2140 = vmatprep.subr.bf16.mxu0 0
      %2141 = vmatpush2.bf16.msra.mxu0 0
      %2142 = vmatprep.subr.bf16.mxu0 0
      %2143 = vmatpush2.bf16.msra.mxu0 0
      %2144 = vmatprep.subr.bf16.mxu0 0
      %2145 = vmatpush2.bf16.msra.mxu0 0
      %2146 = vmatprep.subr.bf16.mxu0 0
      %2147 = vmatpush2.bf16.msra.mxu0 0
      %2148 = vmatprep.subr.bf16.mxu0 0
      %2149 = vmatpush2.bf16.msra.mxu0 0
      %2150 = vmatprep.subr.bf16.mxu0 0
      %2151 = vmatpush2.bf16.msra.mxu0 0
      %2152 = vmatprep.mubr.bf16.mxu0 0
      %2153 = vmatmul.mubr.bf16.gmra.mxu0 %v2106
      %v2154 = vpop.f32.mrf.mxu0
      %v2155 = vadd.f32 0.0, %v2154
      %v2156 = vpop.f32.mrf.mxu0
      %v2157 = vadd.f32 0.0, %v2156
      %v2158 = vpop.f32.mrf.mxu0
      %v2159 = vpop.f32.mrf.mxu0
      %2160 = vdwg.mxu0
      %2161 = vmatprep.subr.bf16.mxu0 0
      %2162 = vmatpush1.bf16.msra.mxu0 0
      %2163 = vmatprep.subr.bf16.mxu0 0
      %2164 = vmatpush1.bf16.msra.mxu0 0
      %2165 = vmatprep.subr.bf16.mxu0 0
      %2166 = vmatpush1.bf16.msra.mxu0 0
      %2167 = vmatprep.subr.bf16.mxu0 0
      %2168 = vmatpush1.bf16.msra.mxu0 0
      %2169 = vmatprep.subr.bf16.mxu0 0
      %2170 = vmatpush1.bf16.msra.mxu0 0
      %2171 = vmatprep.subr.bf16.mxu0 0
      %2172 = vmatpush1.bf16.msra.mxu0 0
      %2173 = vmatprep.subr.bf16.mxu0 0
      %2174 = vmatpush1.bf16.msra.mxu0 0
      %2175 = vmatprep.subr.bf16.mxu0 %v2118
      %2176 = vmatpush1.bf16.msra.mxu0 %v2115
      %2177 = vmatprep.subr.bf16.mxu0 0
      %2178 = vmatpush2.bf16.msra.mxu0 0
      %2179 = vmatprep.subr.bf16.mxu0 0
      %2180 = vmatpush2.bf16.msra.mxu0 0
      %2181 = vmatprep.subr.bf16.mxu0 0
      %2182 = vmatpush2.bf16.msra.mxu0 0
      %2183 = vmatprep.subr.bf16.mxu0 0
      %2184 = vmatpush2.bf16.msra.mxu0 0
      %2185 = vmatprep.subr.bf16.mxu0 0
      %2186 = vmatpush2.bf16.msra.mxu0 0
      %2187 = vmatprep.subr.bf16.mxu0 0
      %2188 = vmatpush2.bf16.msra.mxu0 0
      %2189 = vmatprep.subr.bf16.mxu0 0
      %2190 = vmatpush2.bf16.msra.mxu0 0
      %2191 = vmatprep.subr.bf16.mxu0 0
      %2192 = vmatpush2.bf16.msra.mxu0 0
      %2193 = vmatprep.mubr.bf16.mxu0 0
      %2194 = vmatmul.mubr.bf16.gmra.mxu0 %v2106
      %v2195 = vpop.f32.mrf.mxu0
      %v2196 = vadd.f32 0.0, %v2195
      %v2197 = vpop.f32.mrf.mxu0
      %v2198 = vadd.f32 0.0, %v2197
      %v2199 = vpop.f32.mrf.mxu0
      %v2200 = vpop.f32.mrf.mxu0
      %2201 = vdwg.mxu0
      %v2202 = vadd.f32 %v2084, %v2155
      %v2203 = vadd.f32 %v2085, %v2157
      %v2204 = vadd.f32 %v2086, %v2196
      %v2205 = vadd.f32 %v2087, %v2198
      %s2206 = scalar_lea.vmem %s2, 68
      %v2207 = vld [vmem:[%s2206] sm:$0xf]
      %2208 = vrot.lane.b32.xlu0 %v213, 6
      %v2209 = vpop.permute.xlu0 %2208
      %2210 = vrot.lane.b32.xlu0 %v214, 6
      %v2211 = vpop.permute.xlu0 %2210
      %2212 = vrot.lane.b32.xlu0 %v215, 6
      %v2213 = vpop.permute.xlu0 %2212
      %2214 = vrot.lane.b32.xlu0 %v216, 6
      %v2215 = vpop.permute.xlu0 %2214
      %2216 = vrot.lane.b32.xlu0 %v220, 6
      %v2217 = vpop.permute.xlu0 %2216
      %vm2218 = vcmask 48128
      %v2219 = vsel %vm2218, %v2209, %v2211
      %v2220 = vsel %vm2218, %v2211, %v2213
      %v2221 = vsel %vm2218, %v2213, %v2215
      %v2222 = vsel %vm2218, %v2215, %v2217
      %v2224 = vsel %vm240, %v2207, 0
      %v2227 = vsel %vm244, %v2219, 0
      %v2230 = vsel %vm244, %v2220, 0
      %v2233 = vsel %vm244, %v2221, 0
      %v2236 = vsel %vm244, %v2222, 0
      %2238 = vmatprep.subr.bf16.mxu0 0
      %2239 = vmatpush1.bf16.msra.mxu0 0
      %2240 = vmatprep.subr.bf16.mxu0 0
      %2241 = vmatpush1.bf16.msra.mxu0 0
      %2242 = vmatprep.subr.bf16.mxu0 0
      %2243 = vmatpush1.bf16.msra.mxu0 0
      %2244 = vmatprep.subr.bf16.mxu0 0
      %2245 = vmatpush1.bf16.msra.mxu0 0
      %2246 = vmatprep.subr.bf16.mxu0 0
      %2247 = vmatpush1.bf16.msra.mxu0 0
      %2248 = vmatprep.subr.bf16.mxu0 0
      %2249 = vmatpush1.bf16.msra.mxu0 0
      %2250 = vmatprep.subr.bf16.mxu0 0
      %2251 = vmatpush1.bf16.msra.mxu0 0
      %2252 = vmatprep.subr.bf16.mxu0 %v2230
      %2253 = vmatpush1.bf16.msra.mxu0 %v2227
      %2254 = vmatprep.subr.bf16.mxu0 0
      %2255 = vmatpush2.bf16.msra.mxu0 0
      %2256 = vmatprep.subr.bf16.mxu0 0
      %2257 = vmatpush2.bf16.msra.mxu0 0
      %2258 = vmatprep.subr.bf16.mxu0 0
      %2259 = vmatpush2.bf16.msra.mxu0 0
      %2260 = vmatprep.subr.bf16.mxu0 0
      %2261 = vmatpush2.bf16.msra.mxu0 0
      %2262 = vmatprep.subr.bf16.mxu0 0
      %2263 = vmatpush2.bf16.msra.mxu0 0
      %2264 = vmatprep.subr.bf16.mxu0 0
      %2265 = vmatpush2.bf16.msra.mxu0 0
      %2266 = vmatprep.subr.bf16.mxu0 0
      %2267 = vmatpush2.bf16.msra.mxu0 0
      %2268 = vmatprep.subr.bf16.mxu0 0
      %2269 = vmatpush2.bf16.msra.mxu0 0
      %2270 = vmatprep.mubr.bf16.mxu0 0
      %2271 = vmatmul.mubr.bf16.gmra.mxu0 %v2224
      %v2272 = vpop.f32.mrf.mxu0
      %v2273 = vadd.f32 0.0, %v2272
      %v2274 = vpop.f32.mrf.mxu0
      %v2275 = vadd.f32 0.0, %v2274
      %v2276 = vpop.f32.mrf.mxu0
      %v2277 = vpop.f32.mrf.mxu0
      %2278 = vdwg.mxu0
      %2279 = vmatprep.subr.bf16.mxu0 0
      %2280 = vmatpush1.bf16.msra.mxu0 0
      %2281 = vmatprep.subr.bf16.mxu0 0
      %2282 = vmatpush1.bf16.msra.mxu0 0
      %2283 = vmatprep.subr.bf16.mxu0 0
      %2284 = vmatpush1.bf16.msra.mxu0 0
      %2285 = vmatprep.subr.bf16.mxu0 0
      %2286 = vmatpush1.bf16.msra.mxu0 0
      %2287 = vmatprep.subr.bf16.mxu0 0
      %2288 = vmatpush1.bf16.msra.mxu0 0
      %2289 = vmatprep.subr.bf16.mxu0 0
      %2290 = vmatpush1.bf16.msra.mxu0 0
      %2291 = vmatprep.subr.bf16.mxu0 0
      %2292 = vmatpush1.bf16.msra.mxu0 0
      %2293 = vmatprep.subr.bf16.mxu0 %v2236
      %2294 = vmatpush1.bf16.msra.mxu0 %v2233
      %2295 = vmatprep.subr.bf16.mxu0 0
      %2296 = vmatpush2.bf16.msra.mxu0 0
      %2297 = vmatprep.subr.bf16.mxu0 0
      %2298 = vmatpush2.bf16.msra.mxu0 0
      %2299 = vmatprep.subr.bf16.mxu0 0
      %2300 = vmatpush2.bf16.msra.mxu0 0
      %2301 = vmatprep.subr.bf16.mxu0 0
      %2302 = vmatpush2.bf16.msra.mxu0 0
      %2303 = vmatprep.subr.bf16.mxu0 0
      %2304 = vmatpush2.bf16.msra.mxu0 0
      %2305 = vmatprep.subr.bf16.mxu0 0
      %2306 = vmatpush2.bf16.msra.mxu0 0
      %2307 = vmatprep.subr.bf16.mxu0 0
      %2308 = vmatpush2.bf16.msra.mxu0 0
      %2309 = vmatprep.subr.bf16.mxu0 0
      %2310 = vmatpush2.bf16.msra.mxu0 0
      %2311 = vmatprep.mubr.bf16.mxu0 0
      %2312 = vmatmul.mubr.bf16.gmra.mxu0 %v2224
      %v2313 = vpop.f32.mrf.mxu0
      %v2314 = vadd.f32 0.0, %v2313
      %v2315 = vpop.f32.mrf.mxu0
      %v2316 = vadd.f32 0.0, %v2315
      %v2317 = vpop.f32.mrf.mxu0
      %v2318 = vpop.f32.mrf.mxu0
      %2319 = vdwg.mxu0
      %v2320 = vadd.f32 %v2202, %v2273
      %v2321 = vadd.f32 %v2203, %v2275
      %v2322 = vadd.f32 %v2204, %v2314
      %v2323 = vadd.f32 %v2205, %v2316
      %s2324 = scalar_lea.vmem %s2, 72
      %v2325 = vld [vmem:[%s2324] sm:$0xf]
      %2326 = vrot.lane.b32.xlu0 %v214, 56
      %v2327 = vpop.permute.xlu0 %2326
      %2328 = vrot.lane.b32.xlu0 %v215, 56
      %v2329 = vpop.permute.xlu0 %2328
      %2330 = vrot.lane.b32.xlu0 %v216, 56
      %v2331 = vpop.permute.xlu0 %2330
      %2332 = vrot.lane.b32.xlu0 %v220, 56
      %v2333 = vpop.permute.xlu0 %2332
      %2334 = vrot.lane.b32.xlu0 %v221, 56
      %v2335 = vpop.permute.xlu0 %2334
      %vm2336 = vcmask 457728
      %v2337 = vsel %vm2336, %v2327, %v2329
      %v2338 = vsel %vm2336, %v2329, %v2331
      %v2339 = vsel %vm2336, %v2331, %v2333
      %v2340 = vsel %vm2336, %v2333, %v2335
      %v2342 = vsel %vm240, %v2325, 0
      %v2345 = vsel %vm244, %v2337, 0
      %v2348 = vsel %vm244, %v2338, 0
      %v2351 = vsel %vm244, %v2339, 0
      %v2354 = vsel %vm244, %v2340, 0
      %2356 = vmatprep.subr.bf16.mxu0 0
      %2357 = vmatpush1.bf16.msra.mxu0 0
      %2358 = vmatprep.subr.bf16.mxu0 0
      %2359 = vmatpush1.bf16.msra.mxu0 0
      %2360 = vmatprep.subr.bf16.mxu0 0
      %2361 = vmatpush1.bf16.msra.mxu0 0
      %2362 = vmatprep.subr.bf16.mxu0 0
      %2363 = vmatpush1.bf16.msra.mxu0 0
      %2364 = vmatprep.subr.bf16.mxu0 0
      %2365 = vmatpush1.bf16.msra.mxu0 0
      %2366 = vmatprep.subr.bf16.mxu0 0
      %2367 = vmatpush1.bf16.msra.mxu0 0
      %2368 = vmatprep.subr.bf16.mxu0 0
      %2369 = vmatpush1.bf16.msra.mxu0 0
      %2370 = vmatprep.subr.bf16.mxu0 %v2348
      %2371 = vmatpush1.bf16.msra.mxu0 %v2345
      %2372 = vmatprep.subr.bf16.mxu0 0
      %2373 = vmatpush2.bf16.msra.mxu0 0
      %2374 = vmatprep.subr.bf16.mxu0 0
      %2375 = vmatpush2.bf16.msra.mxu0 0
      %2376 = vmatprep.subr.bf16.mxu0 0
      %2377 = vmatpush2.bf16.msra.mxu0 0
      %2378 = vmatprep.subr.bf16.mxu0 0
      %2379 = vmatpush2.bf16.msra.mxu0 0
      %2380 = vmatprep.subr.bf16.mxu0 0
      %2381 = vmatpush2.bf16.msra.mxu0 0
      %2382 = vmatprep.subr.bf16.mxu0 0
      %2383 = vmatpush2.bf16.msra.mxu0 0
      %2384 = vmatprep.subr.bf16.mxu0 0
      %2385 = vmatpush2.bf16.msra.mxu0 0
      %2386 = vmatprep.subr.bf16.mxu0 0
      %2387 = vmatpush2.bf16.msra.mxu0 0
      %2388 = vmatprep.mubr.bf16.mxu0 0
      %2389 = vmatmul.mubr.bf16.gmra.mxu0 %v2342
      %v2390 = vpop.f32.mrf.mxu0
      %v2391 = vadd.f32 0.0, %v2390
      %v2392 = vpop.f32.mrf.mxu0
      %v2393 = vadd.f32 0.0, %v2392
      %v2394 = vpop.f32.mrf.mxu0
      %v2395 = vpop.f32.mrf.mxu0
      %2396 = vdwg.mxu0
      %2397 = vmatprep.subr.bf16.mxu0 0
      %2398 = vmatpush1.bf16.msra.mxu0 0
      %2399 = vmatprep.subr.bf16.mxu0 0
      %2400 = vmatpush1.bf16.msra.mxu0 0
      %2401 = vmatprep.subr.bf16.mxu0 0
      %2402 = vmatpush1.bf16.msra.mxu0 0
      %2403 = vmatprep.subr.bf16.mxu0 0
      %2404 = vmatpush1.bf16.msra.mxu0 0
      %2405 = vmatprep.subr.bf16.mxu0 0
      %2406 = vmatpush1.bf16.msra.mxu0 0
      %2407 = vmatprep.subr.bf16.mxu0 0
      %2408 = vmatpush1.bf16.msra.mxu0 0
      %2409 = vmatprep.subr.bf16.mxu0 0
      %2410 = vmatpush1.bf16.msra.mxu0 0
      %2411 = vmatprep.subr.bf16.mxu0 %v2354
      %2412 = vmatpush1.bf16.msra.mxu0 %v2351
      %2413 = vmatprep.subr.bf16.mxu0 0
      %2414 = vmatpush2.bf16.msra.mxu0 0
      %2415 = vmatprep.subr.bf16.mxu0 0
      %2416 = vmatpush2.bf16.msra.mxu0 0
      %2417 = vmatprep.subr.bf16.mxu0 0
      %2418 = vmatpush2.bf16.msra.mxu0 0
      %2419 = vmatprep.subr.bf16.mxu0 0
      %2420 = vmatpush2.bf16.msra.mxu0 0
      %2421 = vmatprep.subr.bf16.mxu0 0
      %2422 = vmatpush2.bf16.msra.mxu0 0
      %2423 = vmatprep.subr.bf16.mxu0 0
      %2424 = vmatpush2.bf16.msra.mxu0 0
      %2425 = vmatprep.subr.bf16.mxu0 0
      %2426 = vmatpush2.bf16.msra.mxu0 0
      %2427 = vmatprep.subr.bf16.mxu0 0
      %2428 = vmatpush2.bf16.msra.mxu0 0
      %2429 = vmatprep.mubr.bf16.mxu0 0
      %2430 = vmatmul.mubr.bf16.gmra.mxu0 %v2342
      %v2431 = vpop.f32.mrf.mxu0
      %v2432 = vadd.f32 0.0, %v2431
      %v2433 = vpop.f32.mrf.mxu0
      %v2434 = vadd.f32 0.0, %v2433
      %v2435 = vpop.f32.mrf.mxu0
      %v2436 = vpop.f32.mrf.mxu0
      %2437 = vdwg.mxu0
      %v2438 = vadd.f32 %v2320, %v2391
      %v2439 = vadd.f32 %v2321, %v2393
      %v2440 = vadd.f32 %v2322, %v2432
      %v2441 = vadd.f32 %v2323, %v2434
      %s2442 = scalar_lea.vmem %s2, 76
      %v2443 = vld [vmem:[%s2442] sm:$0xf]
      %2444 = vrot.lane.b32.xlu0 %v214, 55
      %v2445 = vpop.permute.xlu0 %2444
      %2446 = vrot.lane.b32.xlu0 %v215, 55
      %v2447 = vpop.permute.xlu0 %2446
      %2448 = vrot.lane.b32.xlu0 %v216, 55
      %v2449 = vpop.permute.xlu0 %2448
      %2450 = vrot.lane.b32.xlu0 %v220, 55
      %v2451 = vpop.permute.xlu0 %2450
      %2452 = vrot.lane.b32.xlu0 %v221, 55
      %v2453 = vpop.permute.xlu0 %2452
      %vm2454 = vcmask 449536
      %v2455 = vsel %vm2454, %v2445, %v2447
      %v2456 = vsel %vm2454, %v2447, %v2449
      %v2457 = vsel %vm2454, %v2449, %v2451
      %v2458 = vsel %vm2454, %v2451, %v2453
      %v2460 = vsel %vm240, %v2443, 0
      %v2463 = vsel %vm244, %v2455, 0
      %v2466 = vsel %vm244, %v2456, 0
      %v2469 = vsel %vm244, %v2457, 0
      %v2472 = vsel %vm244, %v2458, 0
      %2474 = vmatprep.subr.bf16.mxu0 0
      %2475 = vmatpush1.bf16.msra.mxu0 0
      %2476 = vmatprep.subr.bf16.mxu0 0
      %2477 = vmatpush1.bf16.msra.mxu0 0
      %2478 = vmatprep.subr.bf16.mxu0 0
      %2479 = vmatpush1.bf16.msra.mxu0 0
      %2480 = vmatprep.subr.bf16.mxu0 0
      %2481 = vmatpush1.bf16.msra.mxu0 0
      %2482 = vmatprep.subr.bf16.mxu0 0
      %2483 = vmatpush1.bf16.msra.mxu0 0
      %2484 = vmatprep.subr.bf16.mxu0 0
      %2485 = vmatpush1.bf16.msra.mxu0 0
      %2486 = vmatprep.subr.bf16.mxu0 0
      %2487 = vmatpush1.bf16.msra.mxu0 0
      %2488 = vmatprep.subr.bf16.mxu0 %v2466
      %2489 = vmatpush1.bf16.msra.mxu0 %v2463
      %2490 = vmatprep.subr.bf16.mxu0 0
      %2491 = vmatpush2.bf16.msra.mxu0 0
      %2492 = vmatprep.subr.bf16.mxu0 0
      %2493 = vmatpush2.bf16.msra.mxu0 0
      %2494 = vmatprep.subr.bf16.mxu0 0
      %2495 = vmatpush2.bf16.msra.mxu0 0
      %2496 = vmatprep.subr.bf16.mxu0 0
      %2497 = vmatpush2.bf16.msra.mxu0 0
      %2498 = vmatprep.subr.bf16.mxu0 0
      %2499 = vmatpush2.bf16.msra.mxu0 0
      %2500 = vmatprep.subr.bf16.mxu0 0
      %2501 = vmatpush2.bf16.msra.mxu0 0
      %2502 = vmatprep.subr.bf16.mxu0 0
      %2503 = vmatpush2.bf16.msra.mxu0 0
      %2504 = vmatprep.subr.bf16.mxu0 0
      %2505 = vmatpush2.bf16.msra.mxu0 0
      %2506 = vmatprep.mubr.bf16.mxu0 0
      %2507 = vmatmul.mubr.bf16.gmra.mxu0 %v2460
      %v2508 = vpop.f32.mrf.mxu0
      %v2509 = vadd.f32 0.0, %v2508
      %v2510 = vpop.f32.mrf.mxu0
      %v2511 = vadd.f32 0.0, %v2510
      %v2512 = vpop.f32.mrf.mxu0
      %v2513 = vpop.f32.mrf.mxu0
      %2514 = vdwg.mxu0
      %2515 = vmatprep.subr.bf16.mxu0 0
      %2516 = vmatpush1.bf16.msra.mxu0 0
      %2517 = vmatprep.subr.bf16.mxu0 0
      %2518 = vmatpush1.bf16.msra.mxu0 0
      %2519 = vmatprep.subr.bf16.mxu0 0
      %2520 = vmatpush1.bf16.msra.mxu0 0
      %2521 = vmatprep.subr.bf16.mxu0 0
      %2522 = vmatpush1.bf16.msra.mxu0 0
      %2523 = vmatprep.subr.bf16.mxu0 0
      %2524 = vmatpush1.bf16.msra.mxu0 0
      %2525 = vmatprep.subr.bf16.mxu0 0
      %2526 = vmatpush1.bf16.msra.mxu0 0
      %2527 = vmatprep.subr.bf16.mxu0 0
      %2528 = vmatpush1.bf16.msra.mxu0 0
      %2529 = vmatprep.subr.bf16.mxu0 %v2472
      %2530 = vmatpush1.bf16.msra.mxu0 %v2469
      %2531 = vmatprep.subr.bf16.mxu0 0
      %2532 = vmatpush2.bf16.msra.mxu0 0
      %2533 = vmatprep.subr.bf16.mxu0 0
      %2534 = vmatpush2.bf16.msra.mxu0 0
      %2535 = vmatprep.subr.bf16.mxu0 0
      %2536 = vmatpush2.bf16.msra.mxu0 0
      %2537 = vmatprep.subr.bf16.mxu0 0
      %2538 = vmatpush2.bf16.msra.mxu0 0
      %2539 = vmatprep.subr.bf16.mxu0 0
      %2540 = vmatpush2.bf16.msra.mxu0 0
      %2541 = vmatprep.subr.bf16.mxu0 0
      %2542 = vmatpush2.bf16.msra.mxu0 0
      %2543 = vmatprep.subr.bf16.mxu0 0
      %2544 = vmatpush2.bf16.msra.mxu0 0
      %2545 = vmatprep.subr.bf16.mxu0 0
      %2546 = vmatpush2.bf16.msra.mxu0 0
      %2547 = vmatprep.mubr.bf16.mxu0 0
      %2548 = vmatmul.mubr.bf16.gmra.mxu0 %v2460
      %v2549 = vpop.f32.mrf.mxu0
      %v2550 = vadd.f32 0.0, %v2549
      %v2551 = vpop.f32.mrf.mxu0
      %v2552 = vadd.f32 0.0, %v2551
      %v2553 = vpop.f32.mrf.mxu0
      %v2554 = vpop.f32.mrf.mxu0
      %2555 = vdwg.mxu0
      %v2556 = vadd.f32 %v2438, %v2509
      %v2557 = vadd.f32 %v2439, %v2511
      %v2558 = vadd.f32 %v2440, %v2550
      %v2559 = vadd.f32 %v2441, %v2552
      %s2560 = scalar_lea.vmem %s2, 80
      %v2561 = vld [vmem:[%s2560] sm:$0xf]
      %2562 = vrot.lane.b32.xlu0 %v214, 54
      %v2563 = vpop.permute.xlu0 %2562
      %2564 = vrot.lane.b32.xlu0 %v215, 54
      %v2565 = vpop.permute.xlu0 %2564
      %2566 = vrot.lane.b32.xlu0 %v216, 54
      %v2567 = vpop.permute.xlu0 %2566
      %2568 = vrot.lane.b32.xlu0 %v220, 54
      %v2569 = vpop.permute.xlu0 %2568
      %2570 = vrot.lane.b32.xlu0 %v221, 54
      %v2571 = vpop.permute.xlu0 %2570
      %vm2572 = vcmask 441344
      %v2573 = vsel %vm2572, %v2563, %v2565
      %v2574 = vsel %vm2572, %v2565, %v2567
      %v2575 = vsel %vm2572, %v2567, %v2569
      %v2576 = vsel %vm2572, %v2569, %v2571
      %v2578 = vsel %vm240, %v2561, 0
      %v2581 = vsel %vm244, %v2573, 0
      %v2584 = vsel %vm244, %v2574, 0
      %v2587 = vsel %vm244, %v2575, 0
      %v2590 = vsel %vm244, %v2576, 0
      %2592 = vmatprep.subr.bf16.mxu0 0
      %2593 = vmatpush1.bf16.msra.mxu0 0
      %2594 = vmatprep.subr.bf16.mxu0 0
      %2595 = vmatpush1.bf16.msra.mxu0 0
      %2596 = vmatprep.subr.bf16.mxu0 0
      %2597 = vmatpush1.bf16.msra.mxu0 0
      %2598 = vmatprep.subr.bf16.mxu0 0
      %2599 = vmatpush1.bf16.msra.mxu0 0
      %2600 = vmatprep.subr.bf16.mxu0 0
      %2601 = vmatpush1.bf16.msra.mxu0 0
      %2602 = vmatprep.subr.bf16.mxu0 0
      %2603 = vmatpush1.bf16.msra.mxu0 0
      %2604 = vmatprep.subr.bf16.mxu0 0
      %2605 = vmatpush1.bf16.msra.mxu0 0
      %2606 = vmatprep.subr.bf16.mxu0 %v2584
      %2607 = vmatpush1.bf16.msra.mxu0 %v2581
      %2608 = vmatprep.subr.bf16.mxu0 0
      %2609 = vmatpush2.bf16.msra.mxu0 0
      %2610 = vmatprep.subr.bf16.mxu0 0
      %2611 = vmatpush2.bf16.msra.mxu0 0
      %2612 = vmatprep.subr.bf16.mxu0 0
      %2613 = vmatpush2.bf16.msra.mxu0 0
      %2614 = vmatprep.subr.bf16.mxu0 0
      %2615 = vmatpush2.bf16.msra.mxu0 0
      %2616 = vmatprep.subr.bf16.mxu0 0
      %2617 = vmatpush2.bf16.msra.mxu0 0
      %2618 = vmatprep.subr.bf16.mxu0 0
      %2619 = vmatpush2.bf16.msra.mxu0 0
      %2620 = vmatprep.subr.bf16.mxu0 0
      %2621 = vmatpush2.bf16.msra.mxu0 0
      %2622 = vmatprep.subr.bf16.mxu0 0
      %2623 = vmatpush2.bf16.msra.mxu0 0
      %2624 = vmatprep.mubr.bf16.mxu0 0
      %2625 = vmatmul.mubr.bf16.gmra.mxu0 %v2578
      %v2626 = vpop.f32.mrf.mxu0
      %v2627 = vadd.f32 0.0, %v2626
      %v2628 = vpop.f32.mrf.mxu0
      %v2629 = vadd.f32 0.0, %v2628
      %v2630 = vpop.f32.mrf.mxu0
      %v2631 = vpop.f32.mrf.mxu0
      %2632 = vdwg.mxu0
      %2633 = vmatprep.subr.bf16.mxu0 0
      %2634 = vmatpush1.bf16.msra.mxu0 0
      %2635 = vmatprep.subr.bf16.mxu0 0
      %2636 = vmatpush1.bf16.msra.mxu0 0
      %2637 = vmatprep.subr.bf16.mxu0 0
      %2638 = vmatpush1.bf16.msra.mxu0 0
      %2639 = vmatprep.subr.bf16.mxu0 0
      %2640 = vmatpush1.bf16.msra.mxu0 0
      %2641 = vmatprep.subr.bf16.mxu0 0
      %2642 = vmatpush1.bf16.msra.mxu0 0
      %2643 = vmatprep.subr.bf16.mxu0 0
      %2644 = vmatpush1.bf16.msra.mxu0 0
      %2645 = vmatprep.subr.bf16.mxu0 0
      %2646 = vmatpush1.bf16.msra.mxu0 0
      %2647 = vmatprep.subr.bf16.mxu0 %v2590
      %2648 = vmatpush1.bf16.msra.mxu0 %v2587
      %2649 = vmatprep.subr.bf16.mxu0 0
      %2650 = vmatpush2.bf16.msra.mxu0 0
      %2651 = vmatprep.subr.bf16.mxu0 0
      %2652 = vmatpush2.bf16.msra.mxu0 0
      %2653 = vmatprep.subr.bf16.mxu0 0
      %2654 = vmatpush2.bf16.msra.mxu0 0
      %2655 = vmatprep.subr.bf16.mxu0 0
      %2656 = vmatpush2.bf16.msra.mxu0 0
      %2657 = vmatprep.subr.bf16.mxu0 0
      %2658 = vmatpush2.bf16.msra.mxu0 0
      %2659 = vmatprep.subr.bf16.mxu0 0
      %2660 = vmatpush2.bf16.msra.mxu0 0
      %2661 = vmatprep.subr.bf16.mxu0 0
      %2662 = vmatpush2.bf16.msra.mxu0 0
      %2663 = vmatprep.subr.bf16.mxu0 0
      %2664 = vmatpush2.bf16.msra.mxu0 0
      %2665 = vmatprep.mubr.bf16.mxu0 0
      %2666 = vmatmul.mubr.bf16.gmra.mxu0 %v2578
      %v2667 = vpop.f32.mrf.mxu0
      %v2668 = vadd.f32 0.0, %v2667
      %v2669 = vpop.f32.mrf.mxu0
      %v2670 = vadd.f32 0.0, %v2669
      %v2671 = vpop.f32.mrf.mxu0
      %v2672 = vpop.f32.mrf.mxu0
      %2673 = vdwg.mxu0
      %v2674 = vadd.f32 %v2556, %v2627
      %v2675 = vadd.f32 %v2557, %v2629
      %v2676 = vadd.f32 %v2558, %v2668
      %v2677 = vadd.f32 %v2559, %v2670
      %s2678 = scalar_lea.vmem %s2, 84
      %v2679 = vld [vmem:[%s2678] sm:$0xf]
      %2680 = vrot.lane.b32.xlu0 %v214, 46
      %v2681 = vpop.permute.xlu0 %2680
      %2682 = vrot.lane.b32.xlu0 %v215, 46
      %v2683 = vpop.permute.xlu0 %2682
      %2684 = vrot.lane.b32.xlu0 %v216, 46
      %v2685 = vpop.permute.xlu0 %2684
      %2686 = vrot.lane.b32.xlu0 %v220, 46
      %v2687 = vpop.permute.xlu0 %2686
      %2688 = vrot.lane.b32.xlu0 %v221, 46
      %v2689 = vpop.permute.xlu0 %2688
      %vm2690 = vcmask 375808
      %v2691 = vsel %vm2690, %v2681, %v2683
      %v2692 = vsel %vm2690, %v2683, %v2685
      %v2693 = vsel %vm2690, %v2685, %v2687
      %v2694 = vsel %vm2690, %v2687, %v2689
      %v2696 = vsel %vm240, %v2679, 0
      %v2699 = vsel %vm244, %v2691, 0
      %v2702 = vsel %vm244, %v2692, 0
      %v2705 = vsel %vm244, %v2693, 0
      %v2708 = vsel %vm244, %v2694, 0
      %2710 = vmatprep.subr.bf16.mxu0 0
      %2711 = vmatpush1.bf16.msra.mxu0 0
      %2712 = vmatprep.subr.bf16.mxu0 0
      %2713 = vmatpush1.bf16.msra.mxu0 0
      %2714 = vmatprep.subr.bf16.mxu0 0
      %2715 = vmatpush1.bf16.msra.mxu0 0
      %2716 = vmatprep.subr.bf16.mxu0 0
      %2717 = vmatpush1.bf16.msra.mxu0 0
      %2718 = vmatprep.subr.bf16.mxu0 0
      %2719 = vmatpush1.bf16.msra.mxu0 0
      %2720 = vmatprep.subr.bf16.mxu0 0
      %2721 = vmatpush1.bf16.msra.mxu0 0
      %2722 = vmatprep.subr.bf16.mxu0 0
      %2723 = vmatpush1.bf16.msra.mxu0 0
      %2724 = vmatprep.subr.bf16.mxu0 %v2702
      %2725 = vmatpush1.bf16.msra.mxu0 %v2699
      %2726 = vmatprep.subr.bf16.mxu0 0
      %2727 = vmatpush2.bf16.msra.mxu0 0
      %2728 = vmatprep.subr.bf16.mxu0 0
      %2729 = vmatpush2.bf16.msra.mxu0 0
      %2730 = vmatprep.subr.bf16.mxu0 0
      %2731 = vmatpush2.bf16.msra.mxu0 0
      %2732 = vmatprep.subr.bf16.mxu0 0
      %2733 = vmatpush2.bf16.msra.mxu0 0
      %2734 = vmatprep.subr.bf16.mxu0 0
      %2735 = vmatpush2.bf16.msra.mxu0 0
      %2736 = vmatprep.subr.bf16.mxu0 0
      %2737 = vmatpush2.bf16.msra.mxu0 0
      %2738 = vmatprep.subr.bf16.mxu0 0
      %2739 = vmatpush2.bf16.msra.mxu0 0
      %2740 = vmatprep.subr.bf16.mxu0 0
      %2741 = vmatpush2.bf16.msra.mxu0 0
      %2742 = vmatprep.mubr.bf16.mxu0 0
      %2743 = vmatmul.mubr.bf16.gmra.mxu0 %v2696
      %v2744 = vpop.f32.mrf.mxu0
      %v2745 = vadd.f32 0.0, %v2744
      %v2746 = vpop.f32.mrf.mxu0
      %v2747 = vadd.f32 0.0, %v2746
      %v2748 = vpop.f32.mrf.mxu0
      %v2749 = vpop.f32.mrf.mxu0
      %2750 = vdwg.mxu0
      %2751 = vmatprep.subr.bf16.mxu0 0
      %2752 = vmatpush1.bf16.msra.mxu0 0
      %2753 = vmatprep.subr.bf16.mxu0 0
      %2754 = vmatpush1.bf16.msra.mxu0 0
      %2755 = vmatprep.subr.bf16.mxu0 0
      %2756 = vmatpush1.bf16.msra.mxu0 0
      %2757 = vmatprep.subr.bf16.mxu0 0
      %2758 = vmatpush1.bf16.msra.mxu0 0
      %2759 = vmatprep.subr.bf16.mxu0 0
      %2760 = vmatpush1.bf16.msra.mxu0 0
      %2761 = vmatprep.subr.bf16.mxu0 0
      %2762 = vmatpush1.bf16.msra.mxu0 0
      %2763 = vmatprep.subr.bf16.mxu0 0
      %2764 = vmatpush1.bf16.msra.mxu0 0
      %2765 = vmatprep.subr.bf16.mxu0 %v2708
      %2766 = vmatpush1.bf16.msra.mxu0 %v2705
      %2767 = vmatprep.subr.bf16.mxu0 0
      %2768 = vmatpush2.bf16.msra.mxu0 0
      %2769 = vmatprep.subr.bf16.mxu0 0
      %2770 = vmatpush2.bf16.msra.mxu0 0
      %2771 = vmatprep.subr.bf16.mxu0 0
      %2772 = vmatpush2.bf16.msra.mxu0 0
      %2773 = vmatprep.subr.bf16.mxu0 0
      %2774 = vmatpush2.bf16.msra.mxu0 0
      %2775 = vmatprep.subr.bf16.mxu0 0
      %2776 = vmatpush2.bf16.msra.mxu0 0
      %2777 = vmatprep.subr.bf16.mxu0 0
      %2778 = vmatpush2.bf16.msra.mxu0 0
      %2779 = vmatprep.subr.bf16.mxu0 0
      %2780 = vmatpush2.bf16.msra.mxu0 0
      %2781 = vmatprep.subr.bf16.mxu0 0
      %2782 = vmatpush2.bf16.msra.mxu0 0
      %2783 = vmatprep.mubr.bf16.mxu0 0
      %2784 = vmatmul.mubr.bf16.gmra.mxu0 %v2696
      %v2785 = vpop.f32.mrf.mxu0
      %v2786 = vadd.f32 0.0, %v2785
      %v2787 = vpop.f32.mrf.mxu0
      %v2788 = vadd.f32 0.0, %v2787
      %v2789 = vpop.f32.mrf.mxu0
      %v2790 = vpop.f32.mrf.mxu0
      %2791 = vdwg.mxu0
      %v2792 = vadd.f32 %v2674, %v2745
      %v2793 = vadd.f32 %v2675, %v2747
      %v2794 = vadd.f32 %v2676, %v2786
      %v2795 = vadd.f32 %v2677, %v2788
      %s2796 = scalar_lea.vmem %s2, 88
      %v2797 = vld [vmem:[%s2796] sm:$0xf]
      %2798 = vrot.lane.b32.xlu0 %v214, 45
      %v2799 = vpop.permute.xlu0 %2798
      %2800 = vrot.lane.b32.xlu0 %v215, 45
      %v2801 = vpop.permute.xlu0 %2800
      %2802 = vrot.lane.b32.xlu0 %v216, 45
      %v2803 = vpop.permute.xlu0 %2802
      %2804 = vrot.lane.b32.xlu0 %v220, 45
      %v2805 = vpop.permute.xlu0 %2804
      %2806 = vrot.lane.b32.xlu0 %v221, 45
      %v2807 = vpop.permute.xlu0 %2806
      %vm2808 = vcmask 367616
      %v2809 = vsel %vm2808, %v2799, %v2801
      %v2810 = vsel %vm2808, %v2801, %v2803
      %v2811 = vsel %vm2808, %v2803, %v2805
      %v2812 = vsel %vm2808, %v2805, %v2807
      %v2814 = vsel %vm240, %v2797, 0
      %v2817 = vsel %vm244, %v2809, 0
      %v2820 = vsel %vm244, %v2810, 0
      %v2823 = vsel %vm244, %v2811, 0
      %v2826 = vsel %vm244, %v2812, 0
      %2828 = vmatprep.subr.bf16.mxu0 0
      %2829 = vmatpush1.bf16.msra.mxu0 0
      %2830 = vmatprep.subr.bf16.mxu0 0
      %2831 = vmatpush1.bf16.msra.mxu0 0
      %2832 = vmatprep.subr.bf16.mxu0 0
      %2833 = vmatpush1.bf16.msra.mxu0 0
      %2834 = vmatprep.subr.bf16.mxu0 0
      %2835 = vmatpush1.bf16.msra.mxu0 0
      %2836 = vmatprep.subr.bf16.mxu0 0
      %2837 = vmatpush1.bf16.msra.mxu0 0
      %2838 = vmatprep.subr.bf16.mxu0 0
      %2839 = vmatpush1.bf16.msra.mxu0 0
      %2840 = vmatprep.subr.bf16.mxu0 0
      %2841 = vmatpush1.bf16.msra.mxu0 0
      %2842 = vmatprep.subr.bf16.mxu0 %v2820
      %2843 = vmatpush1.bf16.msra.mxu0 %v2817
      %2844 = vmatprep.subr.bf16.mxu0 0
      %2845 = vmatpush2.bf16.msra.mxu0 0
      %2846 = vmatprep.subr.bf16.mxu0 0
      %2847 = vmatpush2.bf16.msra.mxu0 0
      %2848 = vmatprep.subr.bf16.mxu0 0
      %2849 = vmatpush2.bf16.msra.mxu0 0
      %2850 = vmatprep.subr.bf16.mxu0 0
      %2851 = vmatpush2.bf16.msra.mxu0 0
      %2852 = vmatprep.subr.bf16.mxu0 0
      %2853 = vmatpush2.bf16.msra.mxu0 0
      %2854 = vmatprep.subr.bf16.mxu0 0
      %2855 = vmatpush2.bf16.msra.mxu0 0
      %2856 = vmatprep.subr.bf16.mxu0 0
      %2857 = vmatpush2.bf16.msra.mxu0 0
      %2858 = vmatprep.subr.bf16.mxu0 0
      %2859 = vmatpush2.bf16.msra.mxu0 0
      %2860 = vmatprep.mubr.bf16.mxu0 0
      %2861 = vmatmul.mubr.bf16.gmra.mxu0 %v2814
      %v2862 = vpop.f32.mrf.mxu0
      %v2863 = vadd.f32 0.0, %v2862
      %v2864 = vpop.f32.mrf.mxu0
      %v2865 = vadd.f32 0.0, %v2864
      %v2866 = vpop.f32.mrf.mxu0
      %v2867 = vpop.f32.mrf.mxu0
      %2868 = vdwg.mxu0
      %2869 = vmatprep.subr.bf16.mxu0 0
      %2870 = vmatpush1.bf16.msra.mxu0 0
      %2871 = vmatprep.subr.bf16.mxu0 0
      %2872 = vmatpush1.bf16.msra.mxu0 0
      %2873 = vmatprep.subr.bf16.mxu0 0
      %2874 = vmatpush1.bf16.msra.mxu0 0
      %2875 = vmatprep.subr.bf16.mxu0 0
      %2876 = vmatpush1.bf16.msra.mxu0 0
      %2877 = vmatprep.subr.bf16.mxu0 0
      %2878 = vmatpush1.bf16.msra.mxu0 0
      %2879 = vmatprep.subr.bf16.mxu0 0
      %2880 = vmatpush1.bf16.msra.mxu0 0
      %2881 = vmatprep.subr.bf16.mxu0 0
      %2882 = vmatpush1.bf16.msra.mxu0 0
      %2883 = vmatprep.subr.bf16.mxu0 %v2826
      %2884 = vmatpush1.bf16.msra.mxu0 %v2823
      %2885 = vmatprep.subr.bf16.mxu0 0
      %2886 = vmatpush2.bf16.msra.mxu0 0
      %2887 = vmatprep.subr.bf16.mxu0 0
      %2888 = vmatpush2.bf16.msra.mxu0 0
      %2889 = vmatprep.subr.bf16.mxu0 0
      %2890 = vmatpush2.bf16.msra.mxu0 0
      %2891 = vmatprep.subr.bf16.mxu0 0
      %2892 = vmatpush2.bf16.msra.mxu0 0
      %2893 = vmatprep.subr.bf16.mxu0 0
      %2894 = vmatpush2.bf16.msra.mxu0 0
      %2895 = vmatprep.subr.bf16.mxu0 0
      %2896 = vmatpush2.bf16.msra.mxu0 0
      %2897 = vmatprep.subr.bf16.mxu0 0
      %2898 = vmatpush2.bf16.msra.mxu0 0
      %2899 = vmatprep.subr.bf16.mxu0 0
      %2900 = vmatpush2.bf16.msra.mxu0 0
      %2901 = vmatprep.mubr.bf16.mxu0 0
      %2902 = vmatmul.mubr.bf16.gmra.mxu0 %v2814
      %v2903 = vpop.f32.mrf.mxu0
      %v2904 = vadd.f32 0.0, %v2903
      %v2905 = vpop.f32.mrf.mxu0
      %v2906 = vadd.f32 0.0, %v2905
      %v2907 = vpop.f32.mrf.mxu0
      %v2908 = vpop.f32.mrf.mxu0
      %2909 = vdwg.mxu0
      %v2910 = vadd.f32 %v2792, %v2863
      %v2911 = vadd.f32 %v2793, %v2865
      %v2912 = vadd.f32 %v2794, %v2904
      %v2913 = vadd.f32 %v2795, %v2906
      %s2914 = scalar_lea.vmem %s2, 92
      %v2915 = vld [vmem:[%s2914] sm:$0xf]
      %2916 = vrot.lane.b32.xlu0 %v214, 44
      %v2917 = vpop.permute.xlu0 %2916
      %2918 = vrot.lane.b32.xlu0 %v215, 44
      %v2919 = vpop.permute.xlu0 %2918
      %2920 = vrot.lane.b32.xlu0 %v216, 44
      %v2921 = vpop.permute.xlu0 %2920
      %2922 = vrot.lane.b32.xlu0 %v220, 44
      %v2923 = vpop.permute.xlu0 %2922
      %2924 = vrot.lane.b32.xlu0 %v221, 44
      %v2925 = vpop.permute.xlu0 %2924
      %vm2926 = vcmask 359424
      %v2927 = vsel %vm2926, %v2917, %v2919
      %v2928 = vsel %vm2926, %v2919, %v2921
      %v2929 = vsel %vm2926, %v2921, %v2923
      %v2930 = vsel %vm2926, %v2923, %v2925
      %v2932 = vsel %vm240, %v2915, 0
      %v2935 = vsel %vm244, %v2927, 0
      %v2938 = vsel %vm244, %v2928, 0
      %v2941 = vsel %vm244, %v2929, 0
      %v2944 = vsel %vm244, %v2930, 0
      %2946 = vmatprep.subr.bf16.mxu0 0
      %2947 = vmatpush1.bf16.msra.mxu0 0
      %2948 = vmatprep.subr.bf16.mxu0 0
      %2949 = vmatpush1.bf16.msra.mxu0 0
      %2950 = vmatprep.subr.bf16.mxu0 0
      %2951 = vmatpush1.bf16.msra.mxu0 0
      %2952 = vmatprep.subr.bf16.mxu0 0
      %2953 = vmatpush1.bf16.msra.mxu0 0
      %2954 = vmatprep.subr.bf16.mxu0 0
      %2955 = vmatpush1.bf16.msra.mxu0 0
      %2956 = vmatprep.subr.bf16.mxu0 0
      %2957 = vmatpush1.bf16.msra.mxu0 0
      %2958 = vmatprep.subr.bf16.mxu0 0
      %2959 = vmatpush1.bf16.msra.mxu0 0
      %2960 = vmatprep.subr.bf16.mxu0 %v2938
      %2961 = vmatpush1.bf16.msra.mxu0 %v2935
      %2962 = vmatprep.subr.bf16.mxu0 0
      %2963 = vmatpush2.bf16.msra.mxu0 0
      %2964 = vmatprep.subr.bf16.mxu0 0
      %2965 = vmatpush2.bf16.msra.mxu0 0
      %2966 = vmatprep.subr.bf16.mxu0 0
      %2967 = vmatpush2.bf16.msra.mxu0 0
      %2968 = vmatprep.subr.bf16.mxu0 0
      %2969 = vmatpush2.bf16.msra.mxu0 0
      %2970 = vmatprep.subr.bf16.mxu0 0
      %2971 = vmatpush2.bf16.msra.mxu0 0
      %2972 = vmatprep.subr.bf16.mxu0 0
      %2973 = vmatpush2.bf16.msra.mxu0 0
      %2974 = vmatprep.subr.bf16.mxu0 0
      %2975 = vmatpush2.bf16.msra.mxu0 0
      %2976 = vmatprep.subr.bf16.mxu0 0
      %2977 = vmatpush2.bf16.msra.mxu0 0
      %2978 = vmatprep.mubr.bf16.mxu0 0
      %2979 = vmatmul.mubr.bf16.gmra.mxu0 %v2932
      %v2980 = vpop.f32.mrf.mxu0
      %v2981 = vadd.f32 0.0, %v2980
      %v2982 = vpop.f32.mrf.mxu0
      %v2983 = vadd.f32 0.0, %v2982
      %v2984 = vpop.f32.mrf.mxu0
      %v2985 = vpop.f32.mrf.mxu0
      %2986 = vdwg.mxu0
      %2987 = vmatprep.subr.bf16.mxu0 0
      %2988 = vmatpush1.bf16.msra.mxu0 0
      %2989 = vmatprep.subr.bf16.mxu0 0
      %2990 = vmatpush1.bf16.msra.mxu0 0
      %2991 = vmatprep.subr.bf16.mxu0 0
      %2992 = vmatpush1.bf16.msra.mxu0 0
      %2993 = vmatprep.subr.bf16.mxu0 0
      %2994 = vmatpush1.bf16.msra.mxu0 0
      %2995 = vmatprep.subr.bf16.mxu0 0
      %2996 = vmatpush1.bf16.msra.mxu0 0
      %2997 = vmatprep.subr.bf16.mxu0 0
      %2998 = vmatpush1.bf16.msra.mxu0 0
      %2999 = vmatprep.subr.bf16.mxu0 0
      %3000 = vmatpush1.bf16.msra.mxu0 0
      %3001 = vmatprep.subr.bf16.mxu0 %v2944
      %3002 = vmatpush1.bf16.msra.mxu0 %v2941
      %3003 = vmatprep.subr.bf16.mxu0 0
      %3004 = vmatpush2.bf16.msra.mxu0 0
      %3005 = vmatprep.subr.bf16.mxu0 0
      %3006 = vmatpush2.bf16.msra.mxu0 0
      %3007 = vmatprep.subr.bf16.mxu0 0
      %3008 = vmatpush2.bf16.msra.mxu0 0
      %3009 = vmatprep.subr.bf16.mxu0 0
      %3010 = vmatpush2.bf16.msra.mxu0 0
      %3011 = vmatprep.subr.bf16.mxu0 0
      %3012 = vmatpush2.bf16.msra.mxu0 0
      %3013 = vmatprep.subr.bf16.mxu0 0
      %3014 = vmatpush2.bf16.msra.mxu0 0
      %3015 = vmatprep.subr.bf16.mxu0 0
      %3016 = vmatpush2.bf16.msra.mxu0 0
      %3017 = vmatprep.subr.bf16.mxu0 0
      %3018 = vmatpush2.bf16.msra.mxu0 0
      %3019 = vmatprep.mubr.bf16.mxu0 0
      %3020 = vmatmul.mubr.bf16.gmra.mxu0 %v2932
      %v3021 = vpop.f32.mrf.mxu0
      %v3022 = vadd.f32 0.0, %v3021
      %v3023 = vpop.f32.mrf.mxu0
      %v3024 = vadd.f32 0.0, %v3023
      %v3025 = vpop.f32.mrf.mxu0
      %v3026 = vpop.f32.mrf.mxu0
      %3027 = vdwg.mxu0
      %v3028 = vadd.f32 %v2910, %v2981
      %v3029 = vadd.f32 %v2911, %v2983
      %v3030 = vadd.f32 %v2912, %v3022
      %v3031 = vadd.f32 %v2913, %v3024
      %s3032 = scalar_lea.vmem %s2, 96
      %v3033 = vld [vmem:[%s3032] sm:$0xf]
      %3034 = vrot.lane.b32.xlu0 %v214, 36
      %v3035 = vpop.permute.xlu0 %3034
      %3036 = vrot.lane.b32.xlu0 %v215, 36
      %v3037 = vpop.permute.xlu0 %3036
      %3038 = vrot.lane.b32.xlu0 %v216, 36
      %v3039 = vpop.permute.xlu0 %3038
      %3040 = vrot.lane.b32.xlu0 %v220, 36
      %v3041 = vpop.permute.xlu0 %3040
      %3042 = vrot.lane.b32.xlu0 %v221, 36
      %v3043 = vpop.permute.xlu0 %3042
      %vm3044 = vcmask 293888
      %v3045 = vsel %vm3044, %v3035, %v3037
      %v3046 = vsel %vm3044, %v3037, %v3039
      %v3047 = vsel %vm3044, %v3039, %v3041
      %v3048 = vsel %vm3044, %v3041, %v3043
      %v3050 = vsel %vm240, %v3033, 0
      %v3053 = vsel %vm244, %v3045, 0
      %v3056 = vsel %vm244, %v3046, 0
      %v3059 = vsel %vm244, %v3047, 0
      %v3062 = vsel %vm244, %v3048, 0
      %3064 = vmatprep.subr.bf16.mxu0 0
      %3065 = vmatpush1.bf16.msra.mxu0 0
      %3066 = vmatprep.subr.bf16.mxu0 0
      %3067 = vmatpush1.bf16.msra.mxu0 0
      %3068 = vmatprep.subr.bf16.mxu0 0
      %3069 = vmatpush1.bf16.msra.mxu0 0
      %3070 = vmatprep.subr.bf16.mxu0 0
      %3071 = vmatpush1.bf16.msra.mxu0 0
      %3072 = vmatprep.subr.bf16.mxu0 0
      %3073 = vmatpush1.bf16.msra.mxu0 0
      %3074 = vmatprep.subr.bf16.mxu0 0
      %3075 = vmatpush1.bf16.msra.mxu0 0
      %3076 = vmatprep.subr.bf16.mxu0 0
      %3077 = vmatpush1.bf16.msra.mxu0 0
      %3078 = vmatprep.subr.bf16.mxu0 %v3056
      %3079 = vmatpush1.bf16.msra.mxu0 %v3053
      %3080 = vmatprep.subr.bf16.mxu0 0
      %3081 = vmatpush2.bf16.msra.mxu0 0
      %3082 = vmatprep.subr.bf16.mxu0 0
      %3083 = vmatpush2.bf16.msra.mxu0 0
      %3084 = vmatprep.subr.bf16.mxu0 0
      %3085 = vmatpush2.bf16.msra.mxu0 0
      %3086 = vmatprep.subr.bf16.mxu0 0
      %3087 = vmatpush2.bf16.msra.mxu0 0
      %3088 = vmatprep.subr.bf16.mxu0 0
      %3089 = vmatpush2.bf16.msra.mxu0 0
      %3090 = vmatprep.subr.bf16.mxu0 0
      %3091 = vmatpush2.bf16.msra.mxu0 0
      %3092 = vmatprep.subr.bf16.mxu0 0
      %3093 = vmatpush2.bf16.msra.mxu0 0
      %3094 = vmatprep.subr.bf16.mxu0 0
      %3095 = vmatpush2.bf16.msra.mxu0 0
      %3096 = vmatprep.mubr.bf16.mxu0 0
      %3097 = vmatmul.mubr.bf16.gmra.mxu0 %v3050
      %v3098 = vpop.f32.mrf.mxu0
      %v3099 = vadd.f32 0.0, %v3098
      %v3100 = vpop.f32.mrf.mxu0
      %v3101 = vadd.f32 0.0, %v3100
      %v3102 = vpop.f32.mrf.mxu0
      %v3103 = vpop.f32.mrf.mxu0
      %3104 = vdwg.mxu0
      %3105 = vmatprep.subr.bf16.mxu0 0
      %3106 = vmatpush1.bf16.msra.mxu0 0
      %3107 = vmatprep.subr.bf16.mxu0 0
      %3108 = vmatpush1.bf16.msra.mxu0 0
      %3109 = vmatprep.subr.bf16.mxu0 0
      %3110 = vmatpush1.bf16.msra.mxu0 0
      %3111 = vmatprep.subr.bf16.mxu0 0
      %3112 = vmatpush1.bf16.msra.mxu0 0
      %3113 = vmatprep.subr.bf16.mxu0 0
      %3114 = vmatpush1.bf16.msra.mxu0 0
      %3115 = vmatprep.subr.bf16.mxu0 0
      %3116 = vmatpush1.bf16.msra.mxu0 0
      %3117 = vmatprep.subr.bf16.mxu0 0
      %3118 = vmatpush1.bf16.msra.mxu0 0
      %3119 = vmatprep.subr.bf16.mxu0 %v3062
      %3120 = vmatpush1.bf16.msra.mxu0 %v3059
      %3121 = vmatprep.subr.bf16.mxu0 0
      %3122 = vmatpush2.bf16.msra.mxu0 0
      %3123 = vmatprep.subr.bf16.mxu0 0
      %3124 = vmatpush2.bf16.msra.mxu0 0
      %3125 = vmatprep.subr.bf16.mxu0 0
      %3126 = vmatpush2.bf16.msra.mxu0 0
      %3127 = vmatprep.subr.bf16.mxu0 0
      %3128 = vmatpush2.bf16.msra.mxu0 0
      %3129 = vmatprep.subr.bf16.mxu0 0
      %3130 = vmatpush2.bf16.msra.mxu0 0
      %3131 = vmatprep.subr.bf16.mxu0 0
      %3132 = vmatpush2.bf16.msra.mxu0 0
      %3133 = vmatprep.subr.bf16.mxu0 0
      %3134 = vmatpush2.bf16.msra.mxu0 0
      %3135 = vmatprep.subr.bf16.mxu0 0
      %3136 = vmatpush2.bf16.msra.mxu0 0
      %3137 = vmatprep.mubr.bf16.mxu0 0
      %3138 = vmatmul.mubr.bf16.gmra.mxu0 %v3050
      %v3139 = vpop.f32.mrf.mxu0
      %v3140 = vadd.f32 0.0, %v3139
      %v3141 = vpop.f32.mrf.mxu0
      %v3142 = vadd.f32 0.0, %v3141
      %v3143 = vpop.f32.mrf.mxu0
      %v3144 = vpop.f32.mrf.mxu0
      %3145 = vdwg.mxu0
      %v3146 = vadd.f32 %v3028, %v3099
      %v3147 = vadd.f32 %v3029, %v3101
      %v3148 = vadd.f32 %v3030, %v3140
      %v3149 = vadd.f32 %v3031, %v3142
      %s3150 = scalar_lea.vmem %s2, 100
      %v3151 = vld [vmem:[%s3150] sm:$0xf]
      %3152 = vrot.lane.b32.xlu0 %v214, 35
      %v3153 = vpop.permute.xlu0 %3152
      %3154 = vrot.lane.b32.xlu0 %v215, 35
      %v3155 = vpop.permute.xlu0 %3154
      %3156 = vrot.lane.b32.xlu0 %v216, 35
      %v3157 = vpop.permute.xlu0 %3156
      %3158 = vrot.lane.b32.xlu0 %v220, 35
      %v3159 = vpop.permute.xlu0 %3158
      %3160 = vrot.lane.b32.xlu0 %v221, 35
      %v3161 = vpop.permute.xlu0 %3160
      %vm3162 = vcmask 285696
      %v3163 = vsel %vm3162, %v3153, %v3155
      %v3164 = vsel %vm3162, %v3155, %v3157
      %v3165 = vsel %vm3162, %v3157, %v3159
      %v3166 = vsel %vm3162, %v3159, %v3161
      %v3168 = vsel %vm240, %v3151, 0
      %v3171 = vsel %vm244, %v3163, 0
      %v3174 = vsel %vm244, %v3164, 0
      %v3177 = vsel %vm244, %v3165, 0
      %v3180 = vsel %vm244, %v3166, 0
      %3182 = vmatprep.subr.bf16.mxu0 0
      %3183 = vmatpush1.bf16.msra.mxu0 0
      %3184 = vmatprep.subr.bf16.mxu0 0
      %3185 = vmatpush1.bf16.msra.mxu0 0
      %3186 = vmatprep.subr.bf16.mxu0 0
      %3187 = vmatpush1.bf16.msra.mxu0 0
      %3188 = vmatprep.subr.bf16.mxu0 0
      %3189 = vmatpush1.bf16.msra.mxu0 0
      %3190 = vmatprep.subr.bf16.mxu0 0
      %3191 = vmatpush1.bf16.msra.mxu0 0
      %3192 = vmatprep.subr.bf16.mxu0 0
      %3193 = vmatpush1.bf16.msra.mxu0 0
      %3194 = vmatprep.subr.bf16.mxu0 0
      %3195 = vmatpush1.bf16.msra.mxu0 0
      %3196 = vmatprep.subr.bf16.mxu0 %v3174
      %3197 = vmatpush1.bf16.msra.mxu0 %v3171
      %3198 = vmatprep.subr.bf16.mxu0 0
      %3199 = vmatpush2.bf16.msra.mxu0 0
      %3200 = vmatprep.subr.bf16.mxu0 0
      %3201 = vmatpush2.bf16.msra.mxu0 0
      %3202 = vmatprep.subr.bf16.mxu0 0
      %3203 = vmatpush2.bf16.msra.mxu0 0
      %3204 = vmatprep.subr.bf16.mxu0 0
      %3205 = vmatpush2.bf16.msra.mxu0 0
      %3206 = vmatprep.subr.bf16.mxu0 0
      %3207 = vmatpush2.bf16.msra.mxu0 0
      %3208 = vmatprep.subr.bf16.mxu0 0
      %3209 = vmatpush2.bf16.msra.mxu0 0
      %3210 = vmatprep.subr.bf16.mxu0 0
      %3211 = vmatpush2.bf16.msra.mxu0 0
      %3212 = vmatprep.subr.bf16.mxu0 0
      %3213 = vmatpush2.bf16.msra.mxu0 0
      %3214 = vmatprep.mubr.bf16.mxu0 0
      %3215 = vmatmul.mubr.bf16.gmra.mxu0 %v3168
      %v3216 = vpop.f32.mrf.mxu0
      %v3217 = vadd.f32 0.0, %v3216
      %v3218 = vpop.f32.mrf.mxu0
      %v3219 = vadd.f32 0.0, %v3218
      %v3220 = vpop.f32.mrf.mxu0
      %v3221 = vpop.f32.mrf.mxu0
      %3222 = vdwg.mxu0
      %3223 = vmatprep.subr.bf16.mxu0 0
      %3224 = vmatpush1.bf16.msra.mxu0 0
      %3225 = vmatprep.subr.bf16.mxu0 0
      %3226 = vmatpush1.bf16.msra.mxu0 0
      %3227 = vmatprep.subr.bf16.mxu0 0
      %3228 = vmatpush1.bf16.msra.mxu0 0
      %3229 = vmatprep.subr.bf16.mxu0 0
      %3230 = vmatpush1.bf16.msra.mxu0 0
      %3231 = vmatprep.subr.bf16.mxu0 0
      %3232 = vmatpush1.bf16.msra.mxu0 0
      %3233 = vmatprep.subr.bf16.mxu0 0
      %3234 = vmatpush1.bf16.msra.mxu0 0
      %3235 = vmatprep.subr.bf16.mxu0 0
      %3236 = vmatpush1.bf16.msra.mxu0 0
      %3237 = vmatprep.subr.bf16.mxu0 %v3180
      %3238 = vmatpush1.bf16.msra.mxu0 %v3177
      %3239 = vmatprep.subr.bf16.mxu0 0
      %3240 = vmatpush2.bf16.msra.mxu0 0
      %3241 = vmatprep.subr.bf16.mxu0 0
      %3242 = vmatpush2.bf16.msra.mxu0 0
      %3243 = vmatprep.subr.bf16.mxu0 0
      %3244 = vmatpush2.bf16.msra.mxu0 0
      %3245 = vmatprep.subr.bf16.mxu0 0
      %3246 = vmatpush2.bf16.msra.mxu0 0
      %3247 = vmatprep.subr.bf16.mxu0 0
      %3248 = vmatpush2.bf16.msra.mxu0 0
      %3249 = vmatprep.subr.bf16.mxu0 0
      %3250 = vmatpush2.bf16.msra.mxu0 0
      %3251 = vmatprep.subr.bf16.mxu0 0
      %3252 = vmatpush2.bf16.msra.mxu0 0
      %3253 = vmatprep.subr.bf16.mxu0 0
      %3254 = vmatpush2.bf16.msra.mxu0 0
      %3255 = vmatprep.mubr.bf16.mxu0 0
      %3256 = vmatmul.mubr.bf16.gmra.mxu0 %v3168
      %v3257 = vpop.f32.mrf.mxu0
      %v3258 = vadd.f32 0.0, %v3257
      %v3259 = vpop.f32.mrf.mxu0
      %v3260 = vadd.f32 0.0, %v3259
      %v3261 = vpop.f32.mrf.mxu0
      %v3262 = vpop.f32.mrf.mxu0
      %3263 = vdwg.mxu0
      %v3264 = vadd.f32 %v3146, %v3217
      %v3265 = vadd.f32 %v3147, %v3219
      %v3266 = vadd.f32 %v3148, %v3258
      %v3267 = vadd.f32 %v3149, %v3260
      %s3268 = scalar_lea.vmem %s2, 104
      %v3269 = vld [vmem:[%s3268] sm:$0xf]
      %3270 = vrot.lane.b32.xlu0 %v214, 34
      %v3271 = vpop.permute.xlu0 %3270
      %3272 = vrot.lane.b32.xlu0 %v215, 34
      %v3273 = vpop.permute.xlu0 %3272
      %3274 = vrot.lane.b32.xlu0 %v216, 34
      %v3275 = vpop.permute.xlu0 %3274
      %3276 = vrot.lane.b32.xlu0 %v220, 34
      %v3277 = vpop.permute.xlu0 %3276
      %3278 = vrot.lane.b32.xlu0 %v221, 34
      %v3279 = vpop.permute.xlu0 %3278
      %vm3280 = vcmask 277504
      %v3281 = vsel %vm3280, %v3271, %v3273
      %v3282 = vsel %vm3280, %v3273, %v3275
      %v3283 = vsel %vm3280, %v3275, %v3277
      %v3284 = vsel %vm3280, %v3277, %v3279
      %v3286 = vsel %vm240, %v3269, 0
      %v3289 = vsel %vm244, %v3281, 0
      %v3292 = vsel %vm244, %v3282, 0
      %v3295 = vsel %vm244, %v3283, 0
      %v3298 = vsel %vm244, %v3284, 0
      %3300 = vmatprep.subr.bf16.mxu0 0
      %3301 = vmatpush1.bf16.msra.mxu0 0
      %3302 = vmatprep.subr.bf16.mxu0 0
      %3303 = vmatpush1.bf16.msra.mxu0 0
      %3304 = vmatprep.subr.bf16.mxu0 0
      %3305 = vmatpush1.bf16.msra.mxu0 0
      %3306 = vmatprep.subr.bf16.mxu0 0
      %3307 = vmatpush1.bf16.msra.mxu0 0
      %3308 = vmatprep.subr.bf16.mxu0 0
      %3309 = vmatpush1.bf16.msra.mxu0 0
      %3310 = vmatprep.subr.bf16.mxu0 0
      %3311 = vmatpush1.bf16.msra.mxu0 0
      %3312 = vmatprep.subr.bf16.mxu0 0
      %3313 = vmatpush1.bf16.msra.mxu0 0
      %3314 = vmatprep.subr.bf16.mxu0 %v3292
      %3315 = vmatpush1.bf16.msra.mxu0 %v3289
      %3316 = vmatprep.subr.bf16.mxu0 0
      %3317 = vmatpush2.bf16.msra.mxu0 0
      %3318 = vmatprep.subr.bf16.mxu0 0
      %3319 = vmatpush2.bf16.msra.mxu0 0
      %3320 = vmatprep.subr.bf16.mxu0 0
      %3321 = vmatpush2.bf16.msra.mxu0 0
      %3322 = vmatprep.subr.bf16.mxu0 0
      %3323 = vmatpush2.bf16.msra.mxu0 0
      %3324 = vmatprep.subr.bf16.mxu0 0
      %3325 = vmatpush2.bf16.msra.mxu0 0
      %3326 = vmatprep.subr.bf16.mxu0 0
      %3327 = vmatpush2.bf16.msra.mxu0 0
      %3328 = vmatprep.subr.bf16.mxu0 0
      %3329 = vmatpush2.bf16.msra.mxu0 0
      %3330 = vmatprep.subr.bf16.mxu0 0
      %3331 = vmatpush2.bf16.msra.mxu0 0
      %3332 = vmatprep.mubr.bf16.mxu0 0
      %3333 = vmatmul.mubr.bf16.gmra.mxu0 %v3286
      %v3334 = vpop.f32.mrf.mxu0
      %v3335 = vadd.f32 0.0, %v3334
      %v3336 = vpop.f32.mrf.mxu0
      %v3337 = vadd.f32 0.0, %v3336
      %v3338 = vpop.f32.mrf.mxu0
      %v3339 = vpop.f32.mrf.mxu0
      %3340 = vdwg.mxu0
      %3341 = vmatprep.subr.bf16.mxu0 0
      %3342 = vmatpush1.bf16.msra.mxu0 0
      %3343 = vmatprep.subr.bf16.mxu0 0
      %3344 = vmatpush1.bf16.msra.mxu0 0
      %3345 = vmatprep.subr.bf16.mxu0 0
      %3346 = vmatpush1.bf16.msra.mxu0 0
      %3347 = vmatprep.subr.bf16.mxu0 0
      %3348 = vmatpush1.bf16.msra.mxu0 0
      %3349 = vmatprep.subr.bf16.mxu0 0
      %3350 = vmatpush1.bf16.msra.mxu0 0
      %3351 = vmatprep.subr.bf16.mxu0 0
      %3352 = vmatpush1.bf16.msra.mxu0 0
      %3353 = vmatprep.subr.bf16.mxu0 0
      %3354 = vmatpush1.bf16.msra.mxu0 0
      %3355 = vmatprep.subr.bf16.mxu0 %v3298
      %3356 = vmatpush1.bf16.msra.mxu0 %v3295
      %3357 = vmatprep.subr.bf16.mxu0 0
      %3358 = vmatpush2.bf16.msra.mxu0 0
      %3359 = vmatprep.subr.bf16.mxu0 0
      %3360 = vmatpush2.bf16.msra.mxu0 0
      %3361 = vmatprep.subr.bf16.mxu0 0
      %3362 = vmatpush2.bf16.msra.mxu0 0
      %3363 = vmatprep.subr.bf16.mxu0 0
      %3364 = vmatpush2.bf16.msra.mxu0 0
      %3365 = vmatprep.subr.bf16.mxu0 0
      %3366 = vmatpush2.bf16.msra.mxu0 0
      %3367 = vmatprep.subr.bf16.mxu0 0
      %3368 = vmatpush2.bf16.msra.mxu0 0
      %3369 = vmatprep.subr.bf16.mxu0 0
      %3370 = vmatpush2.bf16.msra.mxu0 0
      %3371 = vmatprep.subr.bf16.mxu0 0
      %3372 = vmatpush2.bf16.msra.mxu0 0
      %3373 = vmatprep.mubr.bf16.mxu0 0
      %3374 = vmatmul.mubr.bf16.gmra.mxu0 %v3286
      %v3375 = vpop.f32.mrf.mxu0
      %v3376 = vadd.f32 0.0, %v3375
      %v3377 = vpop.f32.mrf.mxu0
      %v3378 = vadd.f32 0.0, %v3377
      %v3379 = vpop.f32.mrf.mxu0
      %v3380 = vpop.f32.mrf.mxu0
      %3381 = vdwg.mxu0
      %v3382 = vadd.f32 %v3264, %v3335
      %v3383 = vadd.f32 %v3265, %v3337
      %v3384 = vadd.f32 %v3266, %v3376
      %v3385 = vadd.f32 %v3267, %v3378
      %v3386 = vmax.f32 %v3382, 0.0
      %v3387 = vmax.f32 %v3383, 0.0
      %v3388 = vmax.f32 %v3384, 0.0
      %v3389 = vmax.f32 %v3385, 0.0
      %3390 = vst [vmem:[%s201] sm:$0xff] %v3386
      %3391 = vst [vmem:[%s201 + $0x8] sm:$0xff] %v3387
      %3392 = vst [vmem:[%s201 + $0x10] sm:$0xff] %v3388
      %3393 = vst [vmem:[%s201 + $0x18] sm:$0xff] %v3389
      %s3394 = smul.u32 4, %s14
      %p3395 = scmp.lt.s32.totalorder %s3394, 15
      %s3396 = scalar_select %p3395, %s3394, 15
      %s3397 = smul.addr %s3396, 8
      %s3398 = scalar_lea.vmem %s3, %s3397
      // Predicated region
      $region33: #{decoder_forward.9} parent=31 // pred_check
        %p3399 = pneg %p107
      $region34: #{decoder_forward.9} parent=31 // pred_check_branch
        %3401 = sbr.rel (%p3399) target = $region36
      $region35: #{decoder_forward.9} parent=31 // pred_region
        %s3402 = smul.u32 4, %s14
      $region36: #{decoder_forward.9} parent=31 // pred_fallthru
        _
    $region32: #{decoder_forward.9} parent=5 // pred_fallthru
      _
    %p3403 = scmp.le.s32.totalorder 2, %s9
    // Predicated region
    $region37: #{decoder_forward.9} parent=5 // pred_check
      %p3404 = pneg %p3403
    $region38: #{decoder_forward.9} parent=5 // pred_check_branch
      %3406 = sbr.rel (%p3404) target = $region40
    $region39: #{decoder_forward.9} parent=5 // pred_region
      %s3407 = ssub.s32 %s9, 2
      // Predicated region
      $region41: #{decoder_forward.9} parent=39 // pred_check
        %p3408 = pneg %p113
      $region42: #{decoder_forward.9} parent=39 // pred_check_branch
        %3410 = sbr.rel (%p3408) target = $region44
      $region43: #{decoder_forward.9} parent=39 // pred_region
        %s3411 = smul.u32 4, %s15
        %p3412 = scmp.lt.s32.totalorder %s3411, 15
        %s3413 = scalar_select %p3412, %s3411, 15
        %s3414 = smul.addr %s3413, 8
        %s3415 = scalar_lea.vmem %s3, %s3414
      $region44: #{decoder_forward.9} parent=39 // pred_fallthru
        _
    $region40: #{decoder_forward.9} parent=5 // pred_fallthru
      _
  $region6: #{decoder_forward.9} parent=0 // loop_footer
    %s13 = sadd.s32 1, %s9
  $region7: #{decoder_forward.9} parent=0 // loop_footer_branch
    %8 = sbr.rel target = $region3
  $region8: #{decoder_forward.9} parent=0 // loop_exit
    _

</llo_original>
